<compile_context>
chip_gen: v7x
topology: tpu7x:2x2x1
jax: 0.10.0
libtpu: 0.0.40
codegen_flags: <defaults>
</compile_context>

<pallas_src>
import functools

import numpy as np

import jax
import jax.numpy as jnp
from jax.experimental import pallas as pl
from jax.experimental.pallas import tpu as pltpu

LRELU_SLOPE = 0.2
BN_EPS = 1e-5
KSIZE = 4
LANES = 256          # common lane width of both packed operand buffers


# ----------------------------- static planning ----------------------------- #

def _conv_out(dim, stride):
    # kernel 4, padding 1
    return (dim + 2 - KSIZE) // stride + 1


def make_plan(h, w, input_channels, num_filters, num_disc_blocks):
    plan = []
    ci, co = input_channels, num_filters
    plan.append(dict(h=h, w=w, ci=ci, co=co, stride=2, bn=False, act=True))
    h, w, ci = _conv_out(h, 2), _conv_out(w, 2), co
    for i in range(num_disc_blocks):
        co = num_filters * 2 ** (i + 1)
        plan.append(dict(h=h, w=w, ci=ci, co=co, stride=2, bn=True, act=True))
        h, w, ci = _conv_out(h, 2), _conv_out(w, 2), co
    plan.append(dict(h=h, w=w, ci=ci, co=1, stride=1, bn=False, act=False))
    return plan, (_conv_out(h, 1), _conv_out(w, 1))


# ------------------------- weight / operand packing ------------------------- #

def _row_select(n, h, ho, stride, ki):
    """S[(b,oh), (b',i)] = 1 iff b==b' and i == stride*oh + ki - 1 (pad=1)."""
    s = np.zeros((n * ho, n * h), np.float32)
    for b in range(n):
        for oh in range(ho):
            i = stride * oh + ki - 1
            if 0 <= i < h:
                s[b * ho + oh, b * h + i] = 1.0
    return s


def _col_place(w, wo, stride):
    """P[kj, j, ow] = 1 iff j == stride*ow + kj - 1 (pad=1)."""
    p = np.zeros((KSIZE, w, wo), np.float32)
    for kj in range(KSIZE):
        for ow in range(wo):
            j = stride * ow + kj - 1
            if 0 <= j < w:
                p[kj, j, ow] = 1.0
    return p


def pack_operands(params, plan, n):
    """One-time re-layout of every operand into two lane-dense mega-buffers
    (bf16 conv weights, f32 BN aux) + a static layout table for the kernel."""
    weights = [params["conv1"]] + [wt for (wt, _, _) in params["blocks"]] + [params["final"]]

    wts_parts, aux_parts = [], []
    wts_off, aux_off = 0, 0
    layout = []

    def _add(parts, off, mat, row_align):
        r, c = mat.shape
        assert c <= LANES
        rp = ((r + row_align - 1) // row_align) * row_align
        buf = np.zeros((rp, LANES), np.float32)
        buf[:r, :c] = mat
        parts.append(buf)
        return (off, r, c), off + rp

    for li, spec in enumerate(plan):
        h, w, ci, co, stride = spec["h"], spec["w"], spec["ci"], spec["co"], spec["stride"]
        ho, wo = _conv_out(h, stride), _conv_out(w, stride)
        wmat = np.asarray(weights[li], np.float32)                    # (co, ci, 4, 4)

        wts_chunk_lo = wts_off

        # Stacked row-selection matrix: ONE matmul selects all four ki row sets.
        s_all = np.concatenate(
            [_row_select(n, h, ho, stride, ki) for ki in range(KSIZE)], axis=0)
        s_entry, wts_off = _add(wts_parts, wts_off, s_all, 16)

        # Packed weights: B[ki, (j,c), (ow,d)] = W[d,c,ki,kj] where j = s*ow+kj-1
        # (folds W-stride, W-padding and channel mixing into one matmul per ki).
        p = _col_place(w, wo, stride)                                 # (4, w, wo)
        wt = np.transpose(wmat, (2, 3, 1, 0))                         # (ki, kj, ci, co)
        b = np.einsum("qjo,kqcd->kjcod", p, wt).reshape(KSIZE, w * ci, wo * co)

        vpu_tail = (wo * co == 1)
        if vpu_tail:
            # Final single-output-channel conv: store the weight as a broadcast
            # row so the kernel uses a VPU multiply + lane reduce (no MXU, no
            # 128x lane padding of a (., 1) operand).
            bt = np.broadcast_to(b.reshape(KSIZE, 1, w * ci),
                                 (KSIZE, n * ho, w * ci)).reshape(KSIZE * n * ho, w * ci)
            b_entry, wts_off = _add(wts_parts, wts_off, np.ascontiguousarray(bt), 16)
        else:
            b_entry, wts_off = _add(wts_parts, wts_off,
                                    b.reshape(KSIZE * w * ci, wo * co), 16)

        wts_chunk = (wts_chunk_lo, wts_off)

        bn_entry, aux_chunk = None, None
        if spec["bn"]:
            aux_chunk_lo = aux_off
            t = np.tile(np.eye(co, dtype=np.float32), (wo, 1))        # (wo*co, co): lanes -> channel
            tt = np.ascontiguousarray(t.T)                            # (co, wo*co): channel -> lanes
            gamma = np.asarray(params["blocks"][li - 1][1], np.float32).reshape(1, co)
            beta = np.asarray(params["blocks"][li - 1][2], np.float32).reshape(1, co)
            t_entry, aux_off = _add(aux_parts, aux_off, t, 8)
            tt_entry, aux_off = _add(aux_parts, aux_off, tt, 8)
            gb_entry, aux_off = _add(aux_parts, aux_off, np.concatenate([gamma, beta], 0), 8)
            bn_entry = dict(t=t_entry, tt=tt_entry, gb=gb_entry)
            aux_chunk = (aux_chunk_lo, aux_off)

        layout.append(dict(w=w, ci=ci, co=co, ho=ho, wo=wo,
                           bn=spec["bn"], act=spec["act"], vpu_tail=vpu_tail,
                           s=s_entry, b=b_entry, bn_ops=bn_entry,
                           wts_chunk=wts_chunk, aux_chunk=aux_chunk))

    wts = jnp.asarray(np.concatenate(wts_parts, axis=0)).astype(jnp.bfloat16)
    if aux_parts:
        aux = jnp.asarray(np.concatenate(aux_parts, axis=0))
    else:
        aux = jnp.zeros((8, LANES), jnp.float32)
    return wts, aux, layout


# ------------------------------ fused kernel -------------------------------- #

def _fused_forward_kernel(x_ref, wts_hbm, aux_hbm, out_ref,
                          wts_vmem, aux_vmem, sems, *, layout, n):
    # Issue every weight/aux DMA up front (per-layer chunks, in need order) and
    # wait lazily just before each layer touches its data, so HBM->VMEM weight
    # traffic overlaps the previous layers' compute.
    copies = []

    def _queue(src, dst, chunk):
        lo, hi = chunk
        cp = pltpu.make_async_copy(src.at[pl.ds(lo, hi - lo)],
                                   dst.at[pl.ds(lo, hi - lo)],
                                   sems.at[len(copies)])
        copies.append(cp)
        return len(copies) - 1

    wts_cp, aux_cp = [], []
    for entry in layout:
        wts_cp.append(_queue(wts_hbm, wts_vmem, entry["wts_chunk"]))
        aux_cp.append(_queue(aux_hbm, aux_vmem, entry["aux_chunk"])
                      if entry["aux_chunk"] is not None else None)
    for cp in copies:
        cp.start()

    cur = x_ref[...]                                    # f32, rows=(n,h), lanes=(w,ci)
    for li, entry in enumerate(layout):
        ho, wo, ci, co, w = entry["ho"], entry["wo"], entry["ci"], entry["co"], entry["w"]
        nho, wci = n * ho, w * ci

        copies[wts_cp[li]].wait()                       # this layer's weights are resident

        s_off, s_rows, s_cols = entry["s"]
        b_off, b_rows, b_cols = entry["b"]

        # conv, step 1: one stacked selection matmul for all four kernel rows.
        s_all = wts_vmem[s_off:s_off + s_rows, :s_cols]               # bf16 (4*nho, n*h)
        rows_all = jnp.dot(s_all, cur.astype(jnp.bfloat16),
                           preferred_element_type=jnp.float32).astype(jnp.bfloat16)

        if entry["vpu_tail"]:
            # conv, step 2 (final 1-channel layer): VPU multiply + lane reduce.
            bt = wts_vmem[b_off:b_off + b_rows, :b_cols].astype(jnp.float32)
            part = jnp.sum(rows_all.astype(jnp.float32) * bt, axis=1, keepdims=True)
            acc = ((part[0 * nho:1 * nho] + part[1 * nho:2 * nho])
                   + (part[2 * nho:3 * nho] + part[3 * nho:4 * nho]))
        else:
            # conv, step 2: four bf16 packed-weight matmuls, tree-summed in f32.
            prods = []
            for ki in range(KSIZE):
                rows_ki = rows_all[ki * nho:(ki + 1) * nho, :]
                b_ki = wts_vmem[b_off + ki * wci:b_off + (ki + 1) * wci, :b_cols]
                prods.append(jnp.dot(rows_ki, b_ki, preferred_element_type=jnp.float32))
            acc = (prods[0] + prods[1]) + (prods[2] + prods[3])       # (nho, wo*co) f32

        if entry["bn"]:
            copies[aux_cp[li]].wait()
            t_off, t_rows, t_cols = entry["bn_ops"]["t"]
            tt_off, tt_rows, tt_cols = entry["bn_ops"]["tt"]
            gb_off, gb_rows, gb_cols = entry["bn_ops"]["gb"]
            t = aux_vmem[t_off:t_off + t_rows, :t_cols]               # (wo*co, co) f32
            tt = aux_vmem[tt_off:tt_off + tt_rows, :tt_cols]          # (co, wo*co) f32
            gb = aux_vmem[gb_off:gb_off + gb_rows, :gb_cols]          # (2, co): [gamma; beta]

            m = float(n * ho * wo)
            rsum = jnp.sum(acc, axis=0, keepdims=True)
            rsq = jnp.sum(acc * acc, axis=0, keepdims=True)
            stats = jnp.concatenate([rsum, rsq], axis=0)               # (2, wo*co)
            # Two tiny (M=2) matmuls, kept f32/HIGHEST so batch stats stay exact.
            red = jnp.dot(stats, t, preferred_element_type=jnp.float32,
                          precision=jax.lax.Precision.HIGHEST) / m     # (2, co)
            mean = red[0:1]
            var = jnp.maximum(red[1:2] - mean * mean, 0.0)             # biased, one-pass
            inv_std = jax.lax.rsqrt(var + BN_EPS)
            scale = gb[0:1] * inv_std
            shift = gb[1:2] - mean * scale
            lanes = jnp.dot(jnp.concatenate([scale, shift], axis=0), tt,
                            preferred_element_type=jnp.float32,
                            precision=jax.lax.Precision.HIGHEST)       # (2, wo*co)
            acc = acc * lanes[0:1] + lanes[1:2]

        if entry["act"]:
            acc = jnp.where(acc >= 0, acc, LRELU_SLOPE * acc)

        cur = acc

    out_ref[...] = cur.astype(out_ref.dtype)


def patch_discriminator_forward(x_nchw, wts, aux, *, layout, n, h, w, ci, out_hw):
    # TODO(synk): the NCHW -> (n*h, w*ci) input relayout stays outside the kernel as a
    # single fused XLA copy; an in-kernel 4-D transpose of an (n,3,h,w) block has no
    # matmul to hide under and adds lowering risk for a microsecond-level gain.
    x2d = jnp.transpose(x_nchw, (0, 2, 3, 1)).reshape(n * h, w * ci).astype(jnp.float32)
    oh, ow = out_hw
    n_copies = len(layout) + sum(1 for e in layout if e["aux_chunk"] is not None)
    out2d = pl.pallas_call(
        functools.partial(_fused_forward_kernel, layout=layout, n=n),
        out_shape=jax.ShapeDtypeStruct((n * oh, ow), jnp.float32),
        in_specs=[
            pl.BlockSpec(memory_space=pltpu.MemorySpace.VMEM),   # x: tiny, needed first
            pl.BlockSpec(memory_space=pl.ANY),                   # packed bf16 weights (HBM)
            pl.BlockSpec(memory_space=pl.ANY),                   # packed f32 BN aux (HBM)
        ],
        out_specs=pl.BlockSpec(memory_space=pltpu.MemorySpace.VMEM),
        scratch_shapes=[
            pltpu.VMEM(wts.shape, jnp.bfloat16),                 # streamed weight buffer
            pltpu.VMEM(aux.shape, jnp.float32),                  # streamed BN aux buffer
            pltpu.SemaphoreType.DMA((n_copies,)),
        ],
        compiler_params=pltpu.CompilerParams(vmem_limit_bytes=32 * 1024 * 1024),
    )(x2d, wts, aux)
    return out2d.reshape(n, oh, ow, 1).transpose(0, 3, 1, 2)


# --------------------------- params / reference ----------------------------- #

def init_params(key, input_channels, num_filters, num_disc_blocks):
    keys = jax.random.split(key, num_disc_blocks + 2)
    params = {
        "conv1": 0.05 * jax.random.normal(
            keys[0], (num_filters, input_channels, 4, 4), jnp.float32),
        "blocks": [],
        "final": 0.05 * jax.random.normal(
            keys[-1], (1, num_filters * 2 ** num_disc_blocks, 4, 4), jnp.float32),
    }
    for i in range(num_disc_blocks):
        cin = num_filters * 2 ** i
        cout = num_filters * 2 ** (i + 1)
        wgt = 0.05 * jax.random.normal(keys[i + 1], (cout, cin, 4, 4), jnp.float32)
        gamma = jnp.ones((cout,), jnp.float32)   # PyTorch BatchNorm2d default init
        beta = jnp.zeros((cout,), jnp.float32)
        params["blocks"].append((wgt, gamma, beta))
    return params


def reference_forward(x_nchw, params):
    def conv(x, wgt, stride):
        return jax.lax.conv_general_dilated(
            x, wgt, window_strides=(stride, stride), padding=((1, 1), (1, 1)),
            dimension_numbers=("NCHW", "OIHW", "NCHW"))

    def lrelu(v):
        return jnp.where(v >= 0, v, LRELU_SLOPE * v)

    x = lrelu(conv(x_nchw, params["conv1"], 2))
    for wgt, gamma, beta in params["blocks"]:
        y = conv(x, wgt, 2)
        mean = jnp.mean(y, axis=(0, 2, 3), keepdims=True)
        var = jnp.mean((y - mean) ** 2, axis=(0, 2, 3), keepdims=True)
        y = (y - mean) / jnp.sqrt(var + BN_EPS)
        y = y * gamma.reshape(1, -1, 1, 1) + beta.reshape(1, -1, 1, 1)
        x = lrelu(y)
    return conv(x, params["final"], 1)


# ---------------------------------- main ------------------------------------ #

if __name__ == "__main__":
    INPUT_CHANNELS = 3
    NUM_FILTERS = 16
    NUM_DISC_BLOCKS = 3
    N, H, W = 2, 32, 32  # 32 -> 16 -> 8 -> 4 -> 2 -> (final, stride 1) 1

    key = jax.random.PRNGKey(0)
    key_x, key_p = jax.random.split(key)
    x = jax.random.normal(key_x, (N, INPUT_CHANNELS, H, W), jnp.float32)
    params = init_params(key_p, INPUT_CHANNELS, NUM_FILTERS, NUM_DISC_BLOCKS)

    plan, out_hw = make_plan(H, W, INPUT_CHANNELS, NUM_FILTERS, NUM_DISC_BLOCKS)
    wts, aux, layout = pack_operands(params, plan, N)   # one-time setup (not hot path)

    fwd = jax.jit(functools.partial(
        patch_discriminator_forward, layout=layout, n=N, h=H, w=W,
        ci=INPUT_CHANNELS, out_hw=out_hw))

    out = jax.block_until_ready(fwd(x, wts, aux))
    ref = jax.block_until_ready(reference_forward(x, params))

    assert out.shape == (N, 1, out_hw[0], out_hw[1]), out.shape
    max_diff = float(jnp.max(jnp.abs(out - ref)))
    assert jnp.allclose(out, ref, rtol=2e-2, atol=2e-2), f"max abs diff {max_diff}"

    print("KERNEL_OK")
</pallas_src>

<mosaic_0001>
module attributes {stable_mosaic.version = 11 : i64} {
  func.func @_fused_forward_kernel(%arg0: memref<64x96xf32, #tpu.memory_space<vmem>>, %arg1: memref<3728x256xbf16, #tpu.memory_space<any>>, %arg2: memref<1016x256xf32, #tpu.memory_space<any>>, %arg3: memref<2x1xf32, #tpu.memory_space<vmem>>, %arg4: memref<3728x256xbf16, #tpu.memory_space<vmem>>, %arg5: memref<1016x256xf32, #tpu.memory_space<vmem>>, %arg6: memref<8x!tpu.dma_semaphore, #tpu.memory_space<semaphore_mem>>) attributes {dimension_semantics = [], scalar_prefetch = 0 : i64, scratch_operands = 3 : i64, tpu.core_type = #tpu.core_type<tc>} {
    %c0_i32 = arith.constant 0 : i32
    %c0_i32_0 = arith.constant 0 : i32
    %c0_i32_1 = arith.constant 0 : i32
    %0 = tpu.memref_slice %arg1[%c0_i32_0, %c0_i32_1] : memref<3728x256xbf16, #tpu.memory_space<any>> -> memref<512x256xbf16, #tpu.memory_space<any>>
    %c0_i32_2 = arith.constant 0 : i32
    %c0_i32_3 = arith.constant 0 : i32
    %1 = tpu.memref_slice %arg4[%c0_i32_2, %c0_i32_3] : memref<3728x256xbf16, #tpu.memory_space<vmem>> -> memref<512x256xbf16, #tpu.memory_space<vmem>>
    %2 = tpu.memref_slice %arg6[%c0_i32] : memref<8x!tpu.dma_semaphore, #tpu.memory_space<semaphore_mem>> -> memref<1x!tpu.dma_semaphore, #tpu.memory_space<semaphore_mem>>
    %3 = tpu.memref_squeeze %2 : memref<1x!tpu.dma_semaphore, #tpu.memory_space<semaphore_mem>> -> memref<!tpu.dma_semaphore, #tpu.memory_space<semaphore_mem>>
    tpu.enqueue_dma source(%0 : memref<512x256xbf16, #tpu.memory_space<any>>) target(%1 : memref<512x256xbf16, #tpu.memory_space<vmem>>) target_semaphore(%3 : memref<!tpu.dma_semaphore, #tpu.memory_space<semaphore_mem>>)
    %c1_i32 = arith.constant 1 : i32
    %c512_i32 = arith.constant 512 : i32
    %c0_i32_4 = arith.constant 0 : i32
    %4 = tpu.memref_slice %arg1[%c512_i32, %c0_i32_4] : memref<3728x256xbf16, #tpu.memory_space<any>> -> memref<1088x256xbf16, #tpu.memory_space<any>>
    %c512_i32_5 = arith.constant 512 : i32
    %c0_i32_6 = arith.constant 0 : i32
    %5 = tpu.memref_slice %arg4[%c512_i32_5, %c0_i32_6] : memref<3728x256xbf16, #tpu.memory_space<vmem>> -> memref<1088x256xbf16, #tpu.memory_space<vmem>>
    %6 = tpu.memref_slice %arg6[%c1_i32] : memref<8x!tpu.dma_semaphore, #tpu.memory_space<semaphore_mem>> -> memref<1x!tpu.dma_semaphore, #tpu.memory_space<semaphore_mem>>
    %7 = tpu.memref_squeeze %6 : memref<1x!tpu.dma_semaphore, #tpu.memory_space<semaphore_mem>> -> memref<!tpu.dma_semaphore, #tpu.memory_space<semaphore_mem>>
    tpu.enqueue_dma source(%4 : memref<1088x256xbf16, #tpu.memory_space<any>>) target(%5 : memref<1088x256xbf16, #tpu.memory_space<vmem>>) target_semaphore(%7 : memref<!tpu.dma_semaphore, #tpu.memory_space<semaphore_mem>>)
    %c2_i32 = arith.constant 2 : i32
    %c0_i32_7 = arith.constant 0 : i32
    %c0_i32_8 = arith.constant 0 : i32
    %8 = tpu.memref_slice %arg2[%c0_i32_7, %c0_i32_8] : memref<1016x256xf32, #tpu.memory_space<any>> -> memref<296x256xf32, #tpu.memory_space<any>>
    %c0_i32_9 = arith.constant 0 : i32
    %c0_i32_10 = arith.constant 0 : i32
    %9 = tpu.memref_slice %arg5[%c0_i32_9, %c0_i32_10] : memref<1016x256xf32, #tpu.memory_space<vmem>> -> memref<296x256xf32, #tpu.memory_space<vmem>>
    %10 = tpu.memref_slice %arg6[%c2_i32] : memref<8x!tpu.dma_semaphore, #tpu.memory_space<semaphore_mem>> -> memref<1x!tpu.dma_semaphore, #tpu.memory_space<semaphore_mem>>
    %11 = tpu.memref_squeeze %10 : memref<1x!tpu.dma_semaphore, #tpu.memory_space<semaphore_mem>> -> memref<!tpu.dma_semaphore, #tpu.memory_space<semaphore_mem>>
    tpu.enqueue_dma source(%8 : memref<296x256xf32, #tpu.memory_space<any>>) target(%9 : memref<296x256xf32, #tpu.memory_space<vmem>>) target_semaphore(%11 : memref<!tpu.dma_semaphore, #tpu.memory_space<semaphore_mem>>)
    %c3_i32 = arith.constant 3 : i32
    %c1600_i32 = arith.constant 1600 : i32
    %c0_i32_11 = arith.constant 0 : i32
    %12 = tpu.memref_slice %arg1[%c1600_i32, %c0_i32_11] : memref<3728x256xbf16, #tpu.memory_space<any>> -> memref<1056x256xbf16, #tpu.memory_space<any>>
    %c1600_i32_12 = arith.constant 1600 : i32
    %c0_i32_13 = arith.constant 0 : i32
    %13 = tpu.memref_slice %arg4[%c1600_i32_12, %c0_i32_13] : memref<3728x256xbf16, #tpu.memory_space<vmem>> -> memref<1056x256xbf16, #tpu.memory_space<vmem>>
    %14 = tpu.memref_slice %arg6[%c3_i32] : memref<8x!tpu.dma_semaphore, #tpu.memory_space<semaphore_mem>> -> memref<1x!tpu.dma_semaphore, #tpu.memory_space<semaphore_mem>>
    %15 = tpu.memref_squeeze %14 : memref<1x!tpu.dma_semaphore, #tpu.memory_space<semaphore_mem>> -> memref<!tpu.dma_semaphore, #tpu.memory_space<semaphore_mem>>
    tpu.enqueue_dma source(%12 : memref<1056x256xbf16, #tpu.memory_space<any>>) target(%13 : memref<1056x256xbf16, #tpu.memory_space<vmem>>) target_semaphore(%15 : memref<!tpu.dma_semaphore, #tpu.memory_space<semaphore_mem>>)
    %c4_i32 = arith.constant 4 : i32
    %c296_i32 = arith.constant 296 : i32
    %c0_i32_14 = arith.constant 0 : i32
    %16 = tpu.memref_slice %arg2[%c296_i32, %c0_i32_14] : memref<1016x256xf32, #tpu.memory_space<any>> -> memref<328x256xf32, #tpu.memory_space<any>>
    %c296_i32_15 = arith.constant 296 : i32
    %c0_i32_16 = arith.constant 0 : i32
    %17 = tpu.memref_slice %arg5[%c296_i32_15, %c0_i32_16] : memref<1016x256xf32, #tpu.memory_space<vmem>> -> memref<328x256xf32, #tpu.memory_space<vmem>>
    %18 = tpu.memref_slice %arg6[%c4_i32] : memref<8x!tpu.dma_semaphore, #tpu.memory_space<semaphore_mem>> -> memref<1x!tpu.dma_semaphore, #tpu.memory_space<semaphore_mem>>
    %19 = tpu.memref_squeeze %18 : memref<1x!tpu.dma_semaphore, #tpu.memory_space<semaphore_mem>> -> memref<!tpu.dma_semaphore, #tpu.memory_space<semaphore_mem>>
    tpu.enqueue_dma source(%16 : memref<328x256xf32, #tpu.memory_space<any>>) target(%17 : memref<328x256xf32, #tpu.memory_space<vmem>>) target_semaphore(%19 : memref<!tpu.dma_semaphore, #tpu.memory_space<semaphore_mem>>)
    %c5_i32 = arith.constant 5 : i32
    %c2656_i32 = arith.constant 2656 : i32
    %c0_i32_17 = arith.constant 0 : i32
    %20 = tpu.memref_slice %arg1[%c2656_i32, %c0_i32_17] : memref<3728x256xbf16, #tpu.memory_space<any>> -> memref<1040x256xbf16, #tpu.memory_space<any>>
    %c2656_i32_18 = arith.constant 2656 : i32
    %c0_i32_19 = arith.constant 0 : i32
    %21 = tpu.memref_slice %arg4[%c2656_i32_18, %c0_i32_19] : memref<3728x256xbf16, #tpu.memory_space<vmem>> -> memref<1040x256xbf16, #tpu.memory_space<vmem>>
    %22 = tpu.memref_slice %arg6[%c5_i32] : memref<8x!tpu.dma_semaphore, #tpu.memory_space<semaphore_mem>> -> memref<1x!tpu.dma_semaphore, #tpu.memory_space<semaphore_mem>>
    %23 = tpu.memref_squeeze %22 : memref<1x!tpu.dma_semaphore, #tpu.memory_space<semaphore_mem>> -> memref<!tpu.dma_semaphore, #tpu.memory_space<semaphore_mem>>
    tpu.enqueue_dma source(%20 : memref<1040x256xbf16, #tpu.memory_space<any>>) target(%21 : memref<1040x256xbf16, #tpu.memory_space<vmem>>) target_semaphore(%23 : memref<!tpu.dma_semaphore, #tpu.memory_space<semaphore_mem>>)
    %c6_i32 = arith.constant 6 : i32
    %c624_i32 = arith.constant 624 : i32
    %c0_i32_20 = arith.constant 0 : i32
    %24 = tpu.memref_slice %arg2[%c624_i32, %c0_i32_20] : memref<1016x256xf32, #tpu.memory_space<any>> -> memref<392x256xf32, #tpu.memory_space<any>>
    %c624_i32_21 = arith.constant 624 : i32
    %c0_i32_22 = arith.constant 0 : i32
    %25 = tpu.memref_slice %arg5[%c624_i32_21, %c0_i32_22] : memref<1016x256xf32, #tpu.memory_space<vmem>> -> memref<392x256xf32, #tpu.memory_space<vmem>>
    %26 = tpu.memref_slice %arg6[%c6_i32] : memref<8x!tpu.dma_semaphore, #tpu.memory_space<semaphore_mem>> -> memref<1x!tpu.dma_semaphore, #tpu.memory_space<semaphore_mem>>
    %27 = tpu.memref_squeeze %26 : memref<1x!tpu.dma_semaphore, #tpu.memory_space<semaphore_mem>> -> memref<!tpu.dma_semaphore, #tpu.memory_space<semaphore_mem>>
    tpu.enqueue_dma source(%24 : memref<392x256xf32, #tpu.memory_space<any>>) target(%25 : memref<392x256xf32, #tpu.memory_space<vmem>>) target_semaphore(%27 : memref<!tpu.dma_semaphore, #tpu.memory_space<semaphore_mem>>)
    %c7_i32 = arith.constant 7 : i32
    %c3696_i32 = arith.constant 3696 : i32
    %c0_i32_23 = arith.constant 0 : i32
    %28 = tpu.memref_slice %arg1[%c3696_i32, %c0_i32_23] : memref<3728x256xbf16, #tpu.memory_space<any>> -> memref<32x256xbf16, #tpu.memory_space<any>>
    %c3696_i32_24 = arith.constant 3696 : i32
    %c0_i32_25 = arith.constant 0 : i32
    %29 = tpu.memref_slice %arg4[%c3696_i32_24, %c0_i32_25] : memref<3728x256xbf16, #tpu.memory_space<vmem>> -> memref<32x256xbf16, #tpu.memory_space<vmem>>
    %30 = tpu.memref_slice %arg6[%c7_i32] : memref<8x!tpu.dma_semaphore, #tpu.memory_space<semaphore_mem>> -> memref<1x!tpu.dma_semaphore, #tpu.memory_space<semaphore_mem>>
    %31 = tpu.memref_squeeze %30 : memref<1x!tpu.dma_semaphore, #tpu.memory_space<semaphore_mem>> -> memref<!tpu.dma_semaphore, #tpu.memory_space<semaphore_mem>>
    tpu.enqueue_dma source(%28 : memref<32x256xbf16, #tpu.memory_space<any>>) target(%29 : memref<32x256xbf16, #tpu.memory_space<vmem>>) target_semaphore(%31 : memref<!tpu.dma_semaphore, #tpu.memory_space<semaphore_mem>>)
    %c0 = arith.constant 0 : index
    %c0_26 = arith.constant 0 : index
    %32 = vector.load %arg0[%c0, %c0_26] : memref<64x96xf32, #tpu.memory_space<vmem>>, vector<64x96xf32>
    %c0_i32_27 = arith.constant 0 : i32
    %c0_i32_28 = arith.constant 0 : i32
    %c0_i32_29 = arith.constant 0 : i32
    %33 = tpu.memref_slice %arg1[%c0_i32_28, %c0_i32_29] : memref<3728x256xbf16, #tpu.memory_space<any>> -> memref<512x256xbf16, #tpu.memory_space<any>>
    %c0_i32_30 = arith.constant 0 : i32
    %c0_i32_31 = arith.constant 0 : i32
    %34 = tpu.memref_slice %arg4[%c0_i32_30, %c0_i32_31] : memref<3728x256xbf16, #tpu.memory_space<vmem>> -> memref<512x256xbf16, #tpu.memory_space<vmem>>
    %35 = tpu.memref_slice %arg6[%c0_i32_27] : memref<8x!tpu.dma_semaphore, #tpu.memory_space<semaphore_mem>> -> memref<1x!tpu.dma_semaphore, #tpu.memory_space<semaphore_mem>>
    %36 = tpu.memref_squeeze %35 : memref<1x!tpu.dma_semaphore, #tpu.memory_space<semaphore_mem>> -> memref<!tpu.dma_semaphore, #tpu.memory_space<semaphore_mem>>
    tpu.wait_dma2 semaphore(%36 : memref<!tpu.dma_semaphore, #tpu.memory_space<semaphore_mem>>) src(%33 : memref<512x256xbf16, #tpu.memory_space<any>>) dst(%34 : memref<512x256xbf16, #tpu.memory_space<vmem>>)
    %c0_32 = arith.constant 0 : index
    %c0_33 = arith.constant 0 : index
    %37 = vector.load %arg4[%c0_32, %c0_33] : memref<3728x256xbf16, #tpu.memory_space<vmem>>, vector<128x64xbf16>
    %38 = arith.truncf %32 : vector<64x96xf32> to vector<64x96xbf16>
    %cst = arith.constant dense<0.000000e+00> : vector<128x96xf32>
    %39 = tpu.matmul %37, %38, %cst {dimension_numbers = #tpu.dot_dimension_numbers<[1], [0], [0], [1], [0, 0, 1, 1], [], []>} : vector<128x64xbf16>, vector<64x96xbf16>, vector<128x96xf32> -> vector<128x96xf32>
    %40 = arith.truncf %39 : vector<128x96xf32> to vector<128x96xbf16>
    %41 = vector.extract_strided_slice %40 {offsets = [0, 0], sizes = [32, 96], strides = [1, 1]} : vector<128x96xbf16> to vector<32x96xbf16>
    %c128 = arith.constant 128 : index
    %c0_34 = arith.constant 0 : index
    %42 = vector.load %arg4[%c128, %c0_34] : memref<3728x256xbf16, #tpu.memory_space<vmem>>, vector<96x256xbf16>
    %cst_35 = arith.constant dense<0.000000e+00> : vector<32x256xf32>
    %43 = tpu.matmul %41, %42, %cst_35 {dimension_numbers = #tpu.dot_dimension_numbers<[1], [0], [0], [1], [0, 0, 1, 1], [], []>} : vector<32x96xbf16>, vector<96x256xbf16>, vector<32x256xf32> -> vector<32x256xf32>
    %44 = vector.extract_strided_slice %40 {offsets = [32, 0], sizes = [32, 96], strides = [1, 1]} : vector<128x96xbf16> to vector<32x96xbf16>
    %c224 = arith.constant 224 : index
    %c0_36 = arith.constant 0 : index
    %45 = vector.load %arg4[%c224, %c0_36] : memref<3728x256xbf16, #tpu.memory_space<vmem>>, vector<96x256xbf16>
    %cst_37 = arith.constant dense<0.000000e+00> : vector<32x256xf32>
    %46 = tpu.matmul %44, %45, %cst_37 {dimension_numbers = #tpu.dot_dimension_numbers<[1], [0], [0], [1], [0, 0, 1, 1], [], []>} : vector<32x96xbf16>, vector<96x256xbf16>, vector<32x256xf32> -> vector<32x256xf32>
    %47 = vector.extract_strided_slice %40 {offsets = [64, 0], sizes = [32, 96], strides = [1, 1]} : vector<128x96xbf16> to vector<32x96xbf16>
    %c320 = arith.constant 320 : index
    %c0_38 = arith.constant 0 : index
    %48 = vector.load %arg4[%c320, %c0_38] : memref<3728x256xbf16, #tpu.memory_space<vmem>>, vector<96x256xbf16>
    %cst_39 = arith.constant dense<0.000000e+00> : vector<32x256xf32>
    %49 = tpu.matmul %47, %48, %cst_39 {dimension_numbers = #tpu.dot_dimension_numbers<[1], [0], [0], [1], [0, 0, 1, 1], [], []>} : vector<32x96xbf16>, vector<96x256xbf16>, vector<32x256xf32> -> vector<32x256xf32>
    %50 = vector.extract_strided_slice %40 {offsets = [96, 0], sizes = [32, 96], strides = [1, 1]} : vector<128x96xbf16> to vector<32x96xbf16>
    %c416 = arith.constant 416 : index
    %c0_40 = arith.constant 0 : index
    %51 = vector.load %arg4[%c416, %c0_40] : memref<3728x256xbf16, #tpu.memory_space<vmem>>, vector<96x256xbf16>
    %cst_41 = arith.constant dense<0.000000e+00> : vector<32x256xf32>
    %52 = tpu.matmul %50, %51, %cst_41 {dimension_numbers = #tpu.dot_dimension_numbers<[1], [0], [0], [1], [0, 0, 1, 1], [], []>} : vector<32x96xbf16>, vector<96x256xbf16>, vector<32x256xf32> -> vector<32x256xf32>
    %53 = arith.addf %43, %46 : vector<32x256xf32>
    %54 = arith.addf %49, %52 : vector<32x256xf32>
    %55 = arith.addf %53, %54 : vector<32x256xf32>
    %cst_42 = arith.constant 0.000000e+00 : f32
    %56 = vector.broadcast %cst_42 : f32 to vector<32x256xf32>
    %57 = arith.cmpf oge, %55, %56 : vector<32x256xf32>
    %cst_43 = arith.constant 2.000000e-01 : f32
    %58 = vector.broadcast %cst_43 : f32 to vector<32x256xf32>
    %59 = arith.mulf %58, %55 : vector<32x256xf32>
    %60 = arith.select %57, %55, %59 : vector<32x256xi1>, vector<32x256xf32>
    %c1_i32_44 = arith.constant 1 : i32
    %c512_i32_45 = arith.constant 512 : i32
    %c0_i32_46 = arith.constant 0 : i32
    %61 = tpu.memref_slice %arg1[%c512_i32_45, %c0_i32_46] : memref<3728x256xbf16, #tpu.memory_space<any>> -> memref<1088x256xbf16, #tpu.memory_space<any>>
    %c512_i32_47 = arith.constant 512 : i32
    %c0_i32_48 = arith.constant 0 : i32
    %62 = tpu.memref_slice %arg4[%c512_i32_47, %c0_i32_48] : memref<3728x256xbf16, #tpu.memory_space<vmem>> -> memref<1088x256xbf16, #tpu.memory_space<vmem>>
    %63 = tpu.memref_slice %arg6[%c1_i32_44] : memref<8x!tpu.dma_semaphore, #tpu.memory_space<semaphore_mem>> -> memref<1x!tpu.dma_semaphore, #tpu.memory_space<semaphore_mem>>
    %64 = tpu.memref_squeeze %63 : memref<1x!tpu.dma_semaphore, #tpu.memory_space<semaphore_mem>> -> memref<!tpu.dma_semaphore, #tpu.memory_space<semaphore_mem>>
    tpu.wait_dma2 semaphore(%64 : memref<!tpu.dma_semaphore, #tpu.memory_space<semaphore_mem>>) src(%61 : memref<1088x256xbf16, #tpu.memory_space<any>>) dst(%62 : memref<1088x256xbf16, #tpu.memory_space<vmem>>)
    %c512 = arith.constant 512 : index
    %c0_49 = arith.constant 0 : index
    %65 = vector.load %arg4[%c512, %c0_49] : memref<3728x256xbf16, #tpu.memory_space<vmem>>, vector<64x32xbf16>
    %66 = arith.truncf %60 : vector<32x256xf32> to vector<32x256xbf16>
    %cst_50 = arith.constant dense<0.000000e+00> : vector<64x256xf32>
    %67 = tpu.matmul %65, %66, %cst_50 {dimension_numbers = #tpu.dot_dimension_numbers<[1], [0], [0], [1], [0, 0, 1, 1], [], []>} : vector<64x32xbf16>, vector<32x256xbf16>, vector<64x256xf32> -> vector<64x256xf32>
    %68 = arith.truncf %67 : vector<64x256xf32> to vector<64x256xbf16>
    %69 = vector.extract_strided_slice %68 {offsets = [0, 0], sizes = [16, 256], strides = [1, 1]} : vector<64x256xbf16> to vector<16x256xbf16>
    %c576 = arith.constant 576 : index
    %c0_51 = arith.constant 0 : index
    %70 = vector.load %arg4[%c576, %c0_51] : memref<3728x256xbf16, #tpu.memory_space<vmem>>, vector<256x256xbf16>
    %cst_52 = arith.constant dense<0.000000e+00> : vector<16x256xf32>
    %71 = tpu.matmul %69, %70, %cst_52 {dimension_numbers = #tpu.dot_dimension_numbers<[1], [0], [0], [1], [0, 0, 1, 1], [], []>} : vector<16x256xbf16>, vector<256x256xbf16>, vector<16x256xf32> -> vector<16x256xf32>
    %72 = vector.extract_strided_slice %68 {offsets = [16, 0], sizes = [16, 256], strides = [1, 1]} : vector<64x256xbf16> to vector<16x256xbf16>
    %c832 = arith.constant 832 : index
    %c0_53 = arith.constant 0 : index
    %73 = vector.load %arg4[%c832, %c0_53] : memref<3728x256xbf16, #tpu.memory_space<vmem>>, vector<256x256xbf16>
    %cst_54 = arith.constant dense<0.000000e+00> : vector<16x256xf32>
    %74 = tpu.matmul %72, %73, %cst_54 {dimension_numbers = #tpu.dot_dimension_numbers<[1], [0], [0], [1], [0, 0, 1, 1], [], []>} : vector<16x256xbf16>, vector<256x256xbf16>, vector<16x256xf32> -> vector<16x256xf32>
    %75 = vector.extract_strided_slice %68 {offsets = [32, 0], sizes = [16, 256], strides = [1, 1]} : vector<64x256xbf16> to vector<16x256xbf16>
    %c1088 = arith.constant 1088 : index
    %c0_55 = arith.constant 0 : index
    %76 = vector.load %arg4[%c1088, %c0_55] : memref<3728x256xbf16, #tpu.memory_space<vmem>>, vector<256x256xbf16>
    %cst_56 = arith.constant dense<0.000000e+00> : vector<16x256xf32>
    %77 = tpu.matmul %75, %76, %cst_56 {dimension_numbers = #tpu.dot_dimension_numbers<[1], [0], [0], [1], [0, 0, 1, 1], [], []>} : vector<16x256xbf16>, vector<256x256xbf16>, vector<16x256xf32> -> vector<16x256xf32>
    %78 = vector.extract_strided_slice %68 {offsets = [48, 0], sizes = [16, 256], strides = [1, 1]} : vector<64x256xbf16> to vector<16x256xbf16>
    %c1344 = arith.constant 1344 : index
    %c0_57 = arith.constant 0 : index
    %79 = vector.load %arg4[%c1344, %c0_57] : memref<3728x256xbf16, #tpu.memory_space<vmem>>, vector<256x256xbf16>
    %cst_58 = arith.constant dense<0.000000e+00> : vector<16x256xf32>
    %80 = tpu.matmul %78, %79, %cst_58 {dimension_numbers = #tpu.dot_dimension_numbers<[1], [0], [0], [1], [0, 0, 1, 1], [], []>} : vector<16x256xbf16>, vector<256x256xbf16>, vector<16x256xf32> -> vector<16x256xf32>
    %81 = arith.addf %71, %74 : vector<16x256xf32>
    %82 = arith.addf %77, %80 : vector<16x256xf32>
    %83 = arith.addf %81, %82 : vector<16x256xf32>
    %c2_i32_59 = arith.constant 2 : i32
    %c0_i32_60 = arith.constant 0 : i32
    %c0_i32_61 = arith.constant 0 : i32
    %84 = tpu.memref_slice %arg2[%c0_i32_60, %c0_i32_61] : memref<1016x256xf32, #tpu.memory_space<any>> -> memref<296x256xf32, #tpu.memory_space<any>>
    %c0_i32_62 = arith.constant 0 : i32
    %c0_i32_63 = arith.constant 0 : i32
    %85 = tpu.memref_slice %arg5[%c0_i32_62, %c0_i32_63] : memref<1016x256xf32, #tpu.memory_space<vmem>> -> memref<296x256xf32, #tpu.memory_space<vmem>>
    %86 = tpu.memref_slice %arg6[%c2_i32_59] : memref<8x!tpu.dma_semaphore, #tpu.memory_space<semaphore_mem>> -> memref<1x!tpu.dma_semaphore, #tpu.memory_space<semaphore_mem>>
    %87 = tpu.memref_squeeze %86 : memref<1x!tpu.dma_semaphore, #tpu.memory_space<semaphore_mem>> -> memref<!tpu.dma_semaphore, #tpu.memory_space<semaphore_mem>>
    tpu.wait_dma2 semaphore(%87 : memref<!tpu.dma_semaphore, #tpu.memory_space<semaphore_mem>>) src(%84 : memref<296x256xf32, #tpu.memory_space<any>>) dst(%85 : memref<296x256xf32, #tpu.memory_space<vmem>>)
    %c0_64 = arith.constant 0 : index
    %c0_65 = arith.constant 0 : index
    %88 = vector.load %arg5[%c0_64, %c0_65] : memref<1016x256xf32, #tpu.memory_space<vmem>>, vector<256x32xf32>
    %c256 = arith.constant 256 : index
    %c0_66 = arith.constant 0 : index
    %89 = vector.load %arg5[%c256, %c0_66] : memref<1016x256xf32, #tpu.memory_space<vmem>>, vector<32x256xf32>
    %c288 = arith.constant 288 : index
    %c0_67 = arith.constant 0 : index
    %90 = vector.load %arg5[%c288, %c0_67] : memref<1016x256xf32, #tpu.memory_space<vmem>>, vector<2x32xf32>
    %cst_68 = arith.constant dense<0.000000e+00> : vector<256xf32>
    %91 = vector.multi_reduction <add>, %83, %cst_68 [0] : vector<16x256xf32> to vector<256xf32>
    %92 = vector.shape_cast %91 : vector<256xf32> to vector<1x256xf32>
    %93 = arith.mulf %83, %83 : vector<16x256xf32>
    %cst_69 = arith.constant dense<0.000000e+00> : vector<256xf32>
    %94 = vector.multi_reduction <add>, %93, %cst_69 [0] : vector<16x256xf32> to vector<256xf32>
    %95 = vector.shape_cast %94 : vector<256xf32> to vector<1x256xf32>
    %96 = tpu.concatenate %92, %95 in 0 : vector<1x256xf32>, vector<1x256xf32> -> vector<2x256xf32>
    %cst_70 = arith.constant dense<0.000000e+00> : vector<2x32xf32>
    %97 = tpu.matmul %96, %88, %cst_70 {dimension_numbers = #tpu.dot_dimension_numbers<[1], [0], [0], [1], [0, 0, 1, 1], [], []>, precision = #tpu.contract_precision<fp32>} : vector<2x256xf32>, vector<256x32xf32>, vector<2x32xf32> -> vector<2x32xf32>
    %cst_71 = arith.constant 1.280000e+02 : f32
    %98 = vector.broadcast %cst_71 : f32 to vector<2x32xf32>
    %99 = arith.divf %97, %98 : vector<2x32xf32>
    %100 = vector.extract_strided_slice %99 {offsets = [0, 0], sizes = [1, 32], strides = [1, 1]} : vector<2x32xf32> to vector<1x32xf32>
    %101 = vector.extract_strided_slice %99 {offsets = [1, 0], sizes = [1, 32], strides = [1, 1]} : vector<2x32xf32> to vector<1x32xf32>
    %102 = arith.mulf %100, %100 : vector<1x32xf32>
    %103 = arith.subf %101, %102 : vector<1x32xf32>
    %cst_72 = arith.constant 0.000000e+00 : f32
    %104 = vector.broadcast %cst_72 : f32 to vector<1x32xf32>
    %105 = arith.maximumf %103, %104 : vector<1x32xf32>
    %cst_73 = arith.constant 9.99999974E-6 : f32
    %106 = vector.broadcast %cst_73 : f32 to vector<1x32xf32>
    %107 = arith.addf %105, %106 : vector<1x32xf32>
    %108 = math.rsqrt %107 : vector<1x32xf32>
    %109 = vector.extract_strided_slice %90 {offsets = [0, 0], sizes = [1, 32], strides = [1, 1]} : vector<2x32xf32> to vector<1x32xf32>
    %110 = arith.mulf %109, %108 : vector<1x32xf32>
    %111 = vector.extract_strided_slice %90 {offsets = [1, 0], sizes = [1, 32], strides = [1, 1]} : vector<2x32xf32> to vector<1x32xf32>
    %112 = arith.mulf %100, %110 : vector<1x32xf32>
    %113 = arith.subf %111, %112 : vector<1x32xf32>
    %114 = tpu.concatenate %110, %113 in 0 : vector<1x32xf32>, vector<1x32xf32> -> vector<2x32xf32>
    %cst_74 = arith.constant dense<0.000000e+00> : vector<2x256xf32>
    %115 = tpu.matmul %114, %89, %cst_74 {dimension_numbers = #tpu.dot_dimension_numbers<[1], [0], [0], [1], [0, 0, 1, 1], [], []>, precision = #tpu.contract_precision<fp32>} : vector<2x32xf32>, vector<32x256xf32>, vector<2x256xf32> -> vector<2x256xf32>
    %116 = vector.extract_strided_slice %115 {offsets = [0, 0], sizes = [1, 256], strides = [1, 1]} : vector<2x256xf32> to vector<1x256xf32>
    %117 = vector.broadcast %116 : vector<1x256xf32> to vector<16x256xf32>
    %118 = arith.mulf %83, %117 : vector<16x256xf32>
    %119 = vector.extract_strided_slice %115 {offsets = [1, 0], sizes = [1, 256], strides = [1, 1]} : vector<2x256xf32> to vector<1x256xf32>
    %120 = vector.broadcast %119 : vector<1x256xf32> to vector<16x256xf32>
    %121 = arith.addf %118, %120 : vector<16x256xf32>
    %cst_75 = arith.constant 0.000000e+00 : f32
    %122 = vector.broadcast %cst_75 : f32 to vector<16x256xf32>
    %123 = arith.cmpf oge, %121, %122 : vector<16x256xf32>
    %cst_76 = arith.constant 2.000000e-01 : f32
    %124 = vector.broadcast %cst_76 : f32 to vector<16x256xf32>
    %125 = arith.mulf %124, %121 : vector<16x256xf32>
    %126 = arith.select %123, %121, %125 : vector<16x256xi1>, vector<16x256xf32>
    %c3_i32_77 = arith.constant 3 : i32
    %c1600_i32_78 = arith.constant 1600 : i32
    %c0_i32_79 = arith.constant 0 : i32
    %127 = tpu.memref_slice %arg1[%c1600_i32_78, %c0_i32_79] : memref<3728x256xbf16, #tpu.memory_space<any>> -> memref<1056x256xbf16, #tpu.memory_space<any>>
    %c1600_i32_80 = arith.constant 1600 : i32
    %c0_i32_81 = arith.constant 0 : i32
    %128 = tpu.memref_slice %arg4[%c1600_i32_80, %c0_i32_81] : memref<3728x256xbf16, #tpu.memory_space<vmem>> -> memref<1056x256xbf16, #tpu.memory_space<vmem>>
    %129 = tpu.memref_slice %arg6[%c3_i32_77] : memref<8x!tpu.dma_semaphore, #tpu.memory_space<semaphore_mem>> -> memref<1x!tpu.dma_semaphore, #tpu.memory_space<semaphore_mem>>
    %130 = tpu.memref_squeeze %129 : memref<1x!tpu.dma_semaphore, #tpu.memory_space<semaphore_mem>> -> memref<!tpu.dma_semaphore, #tpu.memory_space<semaphore_mem>>
    tpu.wait_dma2 semaphore(%130 : memref<!tpu.dma_semaphore, #tpu.memory_space<semaphore_mem>>) src(%127 : memref<1056x256xbf16, #tpu.memory_space<any>>) dst(%128 : memref<1056x256xbf16, #tpu.memory_space<vmem>>)
    %c1600 = arith.constant 1600 : index
    %c0_82 = arith.constant 0 : index
    %131 = vector.load %arg4[%c1600, %c0_82] : memref<3728x256xbf16, #tpu.memory_space<vmem>>, vector<32x16xbf16>
    %132 = arith.truncf %126 : vector<16x256xf32> to vector<16x256xbf16>
    %cst_83 = arith.constant dense<0.000000e+00> : vector<32x256xf32>
    %133 = tpu.matmul %131, %132, %cst_83 {dimension_numbers = #tpu.dot_dimension_numbers<[1], [0], [0], [1], [0, 0, 1, 1], [], []>} : vector<32x16xbf16>, vector<16x256xbf16>, vector<32x256xf32> -> vector<32x256xf32>
    %134 = arith.truncf %133 : vector<32x256xf32> to vector<32x256xbf16>
    %135 = vector.extract_strided_slice %134 {offsets = [0, 0], sizes = [8, 256], strides = [1, 1]} : vector<32x256xbf16> to vector<8x256xbf16>
    %c1632 = arith.constant 1632 : index
    %c0_84 = arith.constant 0 : index
    %136 = vector.load %arg4[%c1632, %c0_84] : memref<3728x256xbf16, #tpu.memory_space<vmem>>, vector<256x256xbf16>
    %cst_85 = arith.constant dense<0.000000e+00> : vector<8x256xf32>
    %137 = tpu.matmul %135, %136, %cst_85 {dimension_numbers = #tpu.dot_dimension_numbers<[1], [0], [0], [1], [0, 0, 1, 1], [], []>} : vector<8x256xbf16>, vector<256x256xbf16>, vector<8x256xf32> -> vector<8x256xf32>
    %138 = vector.extract_strided_slice %134 {offsets = [8, 0], sizes = [8, 256], strides = [1, 1]} : vector<32x256xbf16> to vector<8x256xbf16>
    %c1888 = arith.constant 1888 : index
    %c0_86 = arith.constant 0 : index
    %139 = vector.load %arg4[%c1888, %c0_86] : memref<3728x256xbf16, #tpu.memory_space<vmem>>, vector<256x256xbf16>
    %cst_87 = arith.constant dense<0.000000e+00> : vector<8x256xf32>
    %140 = tpu.matmul %138, %139, %cst_87 {dimension_numbers = #tpu.dot_dimension_numbers<[1], [0], [0], [1], [0, 0, 1, 1], [], []>} : vector<8x256xbf16>, vector<256x256xbf16>, vector<8x256xf32> -> vector<8x256xf32>
    %141 = vector.extract_strided_slice %134 {offsets = [16, 0], sizes = [8, 256], strides = [1, 1]} : vector<32x256xbf16> to vector<8x256xbf16>
    %c2144 = arith.constant 2144 : index
    %c0_88 = arith.constant 0 : index
    %142 = vector.load %arg4[%c2144, %c0_88] : memref<3728x256xbf16, #tpu.memory_space<vmem>>, vector<256x256xbf16>
    %cst_89 = arith.constant dense<0.000000e+00> : vector<8x256xf32>
    %143 = tpu.matmul %141, %142, %cst_89 {dimension_numbers = #tpu.dot_dimension_numbers<[1], [0], [0], [1], [0, 0, 1, 1], [], []>} : vector<8x256xbf16>, vector<256x256xbf16>, vector<8x256xf32> -> vector<8x256xf32>
    %144 = vector.extract_strided_slice %134 {offsets = [24, 0], sizes = [8, 256], strides = [1, 1]} : vector<32x256xbf16> to vector<8x256xbf16>
    %c2400 = arith.constant 2400 : index
    %c0_90 = arith.constant 0 : index
    %145 = vector.load %arg4[%c2400, %c0_90] : memref<3728x256xbf16, #tpu.memory_space<vmem>>, vector<256x256xbf16>
    %cst_91 = arith.constant dense<0.000000e+00> : vector<8x256xf32>
    %146 = tpu.matmul %144, %145, %cst_91 {dimension_numbers = #tpu.dot_dimension_numbers<[1], [0], [0], [1], [0, 0, 1, 1], [], []>} : vector<8x256xbf16>, vector<256x256xbf16>, vector<8x256xf32> -> vector<8x256xf32>
    %147 = arith.addf %137, %140 : vector<8x256xf32>
    %148 = arith.addf %143, %146 : vector<8x256xf32>
    %149 = arith.addf %147, %148 : vector<8x256xf32>
    %c4_i32_92 = arith.constant 4 : i32
    %c296_i32_93 = arith.constant 296 : i32
    %c0_i32_94 = arith.constant 0 : i32
    %150 = tpu.memref_slice %arg2[%c296_i32_93, %c0_i32_94] : memref<1016x256xf32, #tpu.memory_space<any>> -> memref<328x256xf32, #tpu.memory_space<any>>
    %c296_i32_95 = arith.constant 296 : i32
    %c0_i32_96 = arith.constant 0 : i32
    %151 = tpu.memref_slice %arg5[%c296_i32_95, %c0_i32_96] : memref<1016x256xf32, #tpu.memory_space<vmem>> -> memref<328x256xf32, #tpu.memory_space<vmem>>
    %152 = tpu.memref_slice %arg6[%c4_i32_92] : memref<8x!tpu.dma_semaphore, #tpu.memory_space<semaphore_mem>> -> memref<1x!tpu.dma_semaphore, #tpu.memory_space<semaphore_mem>>
    %153 = tpu.memref_squeeze %152 : memref<1x!tpu.dma_semaphore, #tpu.memory_space<semaphore_mem>> -> memref<!tpu.dma_semaphore, #tpu.memory_space<semaphore_mem>>
    tpu.wait_dma2 semaphore(%153 : memref<!tpu.dma_semaphore, #tpu.memory_space<semaphore_mem>>) src(%150 : memref<328x256xf32, #tpu.memory_space<any>>) dst(%151 : memref<328x256xf32, #tpu.memory_space<vmem>>)
    %c296 = arith.constant 296 : index
    %c0_97 = arith.constant 0 : index
    %154 = vector.load %arg5[%c296, %c0_97] : memref<1016x256xf32, #tpu.memory_space<vmem>>, vector<256x64xf32>
    %c552 = arith.constant 552 : index
    %c0_98 = arith.constant 0 : index
    %155 = vector.load %arg5[%c552, %c0_98] : memref<1016x256xf32, #tpu.memory_space<vmem>>, vector<64x256xf32>
    %c616 = arith.constant 616 : index
    %c0_99 = arith.constant 0 : index
    %156 = vector.load %arg5[%c616, %c0_99] : memref<1016x256xf32, #tpu.memory_space<vmem>>, vector<2x64xf32>
    %cst_100 = arith.constant dense<0.000000e+00> : vector<256xf32>
    %157 = vector.multi_reduction <add>, %149, %cst_100 [0] : vector<8x256xf32> to vector<256xf32>
    %158 = vector.shape_cast %157 : vector<256xf32> to vector<1x256xf32>
    %159 = arith.mulf %149, %149 : vector<8x256xf32>
    %cst_101 = arith.constant dense<0.000000e+00> : vector<256xf32>
    %160 = vector.multi_reduction <add>, %159, %cst_101 [0] : vector<8x256xf32> to vector<256xf32>
    %161 = vector.shape_cast %160 : vector<256xf32> to vector<1x256xf32>
    %162 = tpu.concatenate %158, %161 in 0 : vector<1x256xf32>, vector<1x256xf32> -> vector<2x256xf32>
    %cst_102 = arith.constant dense<0.000000e+00> : vector<2x64xf32>
    %163 = tpu.matmul %162, %154, %cst_102 {dimension_numbers = #tpu.dot_dimension_numbers<[1], [0], [0], [1], [0, 0, 1, 1], [], []>, precision = #tpu.contract_precision<fp32>} : vector<2x256xf32>, vector<256x64xf32>, vector<2x64xf32> -> vector<2x64xf32>
    %cst_103 = arith.constant 3.200000e+01 : f32
    %164 = vector.broadcast %cst_103 : f32 to vector<2x64xf32>
    %165 = arith.divf %163, %164 : vector<2x64xf32>
    %166 = vector.extract_strided_slice %165 {offsets = [0, 0], sizes = [1, 64], strides = [1, 1]} : vector<2x64xf32> to vector<1x64xf32>
    %167 = vector.extract_strided_slice %165 {offsets = [1, 0], sizes = [1, 64], strides = [1, 1]} : vector<2x64xf32> to vector<1x64xf32>
    %168 = arith.mulf %166, %166 : vector<1x64xf32>
    %169 = arith.subf %167, %168 : vector<1x64xf32>
    %cst_104 = arith.constant 0.000000e+00 : f32
    %170 = vector.broadcast %cst_104 : f32 to vector<1x64xf32>
    %171 = arith.maximumf %169, %170 : vector<1x64xf32>
    %cst_105 = arith.constant 9.99999974E-6 : f32
    %172 = vector.broadcast %cst_105 : f32 to vector<1x64xf32>
    %173 = arith.addf %171, %172 : vector<1x64xf32>
    %174 = math.rsqrt %173 : vector<1x64xf32>
    %175 = vector.extract_strided_slice %156 {offsets = [0, 0], sizes = [1, 64], strides = [1, 1]} : vector<2x64xf32> to vector<1x64xf32>
    %176 = arith.mulf %175, %174 : vector<1x64xf32>
    %177 = vector.extract_strided_slice %156 {offsets = [1, 0], sizes = [1, 64], strides = [1, 1]} : vector<2x64xf32> to vector<1x64xf32>
    %178 = arith.mulf %166, %176 : vector<1x64xf32>
    %179 = arith.subf %177, %178 : vector<1x64xf32>
    %180 = tpu.concatenate %176, %179 in 0 : vector<1x64xf32>, vector<1x64xf32> -> vector<2x64xf32>
    %cst_106 = arith.constant dense<0.000000e+00> : vector<2x256xf32>
    %181 = tpu.matmul %180, %155, %cst_106 {dimension_numbers = #tpu.dot_dimension_numbers<[1], [0], [0], [1], [0, 0, 1, 1], [], []>, precision = #tpu.contract_precision<fp32>} : vector<2x64xf32>, vector<64x256xf32>, vector<2x256xf32> -> vector<2x256xf32>
    %182 = vector.extract_strided_slice %181 {offsets = [0, 0], sizes = [1, 256], strides = [1, 1]} : vector<2x256xf32> to vector<1x256xf32>
    %183 = vector.broadcast %182 : vector<1x256xf32> to vector<8x256xf32>
    %184 = arith.mulf %149, %183 : vector<8x256xf32>
    %185 = vector.extract_strided_slice %181 {offsets = [1, 0], sizes = [1, 256], strides = [1, 1]} : vector<2x256xf32> to vector<1x256xf32>
    %186 = vector.broadcast %185 : vector<1x256xf32> to vector<8x256xf32>
    %187 = arith.addf %184, %186 : vector<8x256xf32>
    %cst_107 = arith.constant 0.000000e+00 : f32
    %188 = vector.broadcast %cst_107 : f32 to vector<8x256xf32>
    %189 = arith.cmpf oge, %187, %188 : vector<8x256xf32>
    %cst_108 = arith.constant 2.000000e-01 : f32
    %190 = vector.broadcast %cst_108 : f32 to vector<8x256xf32>
    %191 = arith.mulf %190, %187 : vector<8x256xf32>
    %192 = arith.select %189, %187, %191 : vector<8x256xi1>, vector<8x256xf32>
    %c5_i32_109 = arith.constant 5 : i32
    %c2656_i32_110 = arith.constant 2656 : i32
    %c0_i32_111 = arith.constant 0 : i32
    %193 = tpu.memref_slice %arg1[%c2656_i32_110, %c0_i32_111] : memref<3728x256xbf16, #tpu.memory_space<any>> -> memref<1040x256xbf16, #tpu.memory_space<any>>
    %c2656_i32_112 = arith.constant 2656 : i32
    %c0_i32_113 = arith.constant 0 : i32
    %194 = tpu.memref_slice %arg4[%c2656_i32_112, %c0_i32_113] : memref<3728x256xbf16, #tpu.memory_space<vmem>> -> memref<1040x256xbf16, #tpu.memory_space<vmem>>
    %195 = tpu.memref_slice %arg6[%c5_i32_109] : memref<8x!tpu.dma_semaphore, #tpu.memory_space<semaphore_mem>> -> memref<1x!tpu.dma_semaphore, #tpu.memory_space<semaphore_mem>>
    %196 = tpu.memref_squeeze %195 : memref<1x!tpu.dma_semaphore, #tpu.memory_space<semaphore_mem>> -> memref<!tpu.dma_semaphore, #tpu.memory_space<semaphore_mem>>
    tpu.wait_dma2 semaphore(%196 : memref<!tpu.dma_semaphore, #tpu.memory_space<semaphore_mem>>) src(%193 : memref<1040x256xbf16, #tpu.memory_space<any>>) dst(%194 : memref<1040x256xbf16, #tpu.memory_space<vmem>>)
    %c2656 = arith.constant 2656 : index
    %c0_114 = arith.constant 0 : index
    %197 = vector.load %arg4[%c2656, %c0_114] : memref<3728x256xbf16, #tpu.memory_space<vmem>>, vector<16x8xbf16>
    %198 = arith.truncf %192 : vector<8x256xf32> to vector<8x256xbf16>
    %cst_115 = arith.constant dense<0.000000e+00> : vector<16x256xf32>
    %199 = tpu.matmul %197, %198, %cst_115 {dimension_numbers = #tpu.dot_dimension_numbers<[1], [0], [0], [1], [0, 0, 1, 1], [], []>} : vector<16x8xbf16>, vector<8x256xbf16>, vector<16x256xf32> -> vector<16x256xf32>
    %200 = arith.truncf %199 : vector<16x256xf32> to vector<16x256xbf16>
    %201 = vector.extract_strided_slice %200 {offsets = [0, 0], sizes = [4, 256], strides = [1, 1]} : vector<16x256xbf16> to vector<4x256xbf16>
    %c2672 = arith.constant 2672 : index
    %c0_116 = arith.constant 0 : index
    %202 = vector.load %arg4[%c2672, %c0_116] : memref<3728x256xbf16, #tpu.memory_space<vmem>>, vector<256x256xbf16>
    %cst_117 = arith.constant dense<0.000000e+00> : vector<4x256xf32>
    %203 = tpu.matmul %201, %202, %cst_117 {dimension_numbers = #tpu.dot_dimension_numbers<[1], [0], [0], [1], [0, 0, 1, 1], [], []>} : vector<4x256xbf16>, vector<256x256xbf16>, vector<4x256xf32> -> vector<4x256xf32>
    %204 = vector.extract_strided_slice %200 {offsets = [4, 0], sizes = [4, 256], strides = [1, 1]} : vector<16x256xbf16> to vector<4x256xbf16>
    %c2928 = arith.constant 2928 : index
    %c0_118 = arith.constant 0 : index
    %205 = vector.load %arg4[%c2928, %c0_118] : memref<3728x256xbf16, #tpu.memory_space<vmem>>, vector<256x256xbf16>
    %cst_119 = arith.constant dense<0.000000e+00> : vector<4x256xf32>
    %206 = tpu.matmul %204, %205, %cst_119 {dimension_numbers = #tpu.dot_dimension_numbers<[1], [0], [0], [1], [0, 0, 1, 1], [], []>} : vector<4x256xbf16>, vector<256x256xbf16>, vector<4x256xf32> -> vector<4x256xf32>
    %207 = vector.extract_strided_slice %200 {offsets = [8, 0], sizes = [4, 256], strides = [1, 1]} : vector<16x256xbf16> to vector<4x256xbf16>
    %c3184 = arith.constant 3184 : index
    %c0_120 = arith.constant 0 : index
    %208 = vector.load %arg4[%c3184, %c0_120] : memref<3728x256xbf16, #tpu.memory_space<vmem>>, vector<256x256xbf16>
    %cst_121 = arith.constant dense<0.000000e+00> : vector<4x256xf32>
    %209 = tpu.matmul %207, %208, %cst_121 {dimension_numbers = #tpu.dot_dimension_numbers<[1], [0], [0], [1], [0, 0, 1, 1], [], []>} : vector<4x256xbf16>, vector<256x256xbf16>, vector<4x256xf32> -> vector<4x256xf32>
    %210 = vector.extract_strided_slice %200 {offsets = [12, 0], sizes = [4, 256], strides = [1, 1]} : vector<16x256xbf16> to vector<4x256xbf16>
    %c3440 = arith.constant 3440 : index
    %c0_122 = arith.constant 0 : index
    %211 = vector.load %arg4[%c3440, %c0_122] : memref<3728x256xbf16, #tpu.memory_space<vmem>>, vector<256x256xbf16>
    %cst_123 = arith.constant dense<0.000000e+00> : vector<4x256xf32>
    %212 = tpu.matmul %210, %211, %cst_123 {dimension_numbers = #tpu.dot_dimension_numbers<[1], [0], [0], [1], [0, 0, 1, 1], [], []>} : vector<4x256xbf16>, vector<256x256xbf16>, vector<4x256xf32> -> vector<4x256xf32>
    %213 = arith.addf %203, %206 : vector<4x256xf32>
    %214 = arith.addf %209, %212 : vector<4x256xf32>
    %215 = arith.addf %213, %214 : vector<4x256xf32>
    %c6_i32_124 = arith.constant 6 : i32
    %c624_i32_125 = arith.constant 624 : i32
    %c0_i32_126 = arith.constant 0 : i32
    %216 = tpu.memref_slice %arg2[%c624_i32_125, %c0_i32_126] : memref<1016x256xf32, #tpu.memory_space<any>> -> memref<392x256xf32, #tpu.memory_space<any>>
    %c624_i32_127 = arith.constant 624 : i32
    %c0_i32_128 = arith.constant 0 : i32
    %217 = tpu.memref_slice %arg5[%c624_i32_127, %c0_i32_128] : memref<1016x256xf32, #tpu.memory_space<vmem>> -> memref<392x256xf32, #tpu.memory_space<vmem>>
    %218 = tpu.memref_slice %arg6[%c6_i32_124] : memref<8x!tpu.dma_semaphore, #tpu.memory_space<semaphore_mem>> -> memref<1x!tpu.dma_semaphore, #tpu.memory_space<semaphore_mem>>
    %219 = tpu.memref_squeeze %218 : memref<1x!tpu.dma_semaphore, #tpu.memory_space<semaphore_mem>> -> memref<!tpu.dma_semaphore, #tpu.memory_space<semaphore_mem>>
    tpu.wait_dma2 semaphore(%219 : memref<!tpu.dma_semaphore, #tpu.memory_space<semaphore_mem>>) src(%216 : memref<392x256xf32, #tpu.memory_space<any>>) dst(%217 : memref<392x256xf32, #tpu.memory_space<vmem>>)
    %c624 = arith.constant 624 : index
    %c0_129 = arith.constant 0 : index
    %220 = vector.load %arg5[%c624, %c0_129] : memref<1016x256xf32, #tpu.memory_space<vmem>>, vector<256x128xf32>
    %c880 = arith.constant 880 : index
    %c0_130 = arith.constant 0 : index
    %221 = vector.load %arg5[%c880, %c0_130] : memref<1016x256xf32, #tpu.memory_space<vmem>>, vector<128x256xf32>
    %c1008 = arith.constant 1008 : index
    %c0_131 = arith.constant 0 : index
    %222 = vector.load %arg5[%c1008, %c0_131] : memref<1016x256xf32, #tpu.memory_space<vmem>>, vector<2x128xf32>
    %cst_132 = arith.constant dense<0.000000e+00> : vector<256xf32>
    %223 = vector.multi_reduction <add>, %215, %cst_132 [0] : vector<4x256xf32> to vector<256xf32>
    %224 = vector.shape_cast %223 : vector<256xf32> to vector<1x256xf32>
    %225 = arith.mulf %215, %215 : vector<4x256xf32>
    %cst_133 = arith.constant dense<0.000000e+00> : vector<256xf32>
    %226 = vector.multi_reduction <add>, %225, %cst_133 [0] : vector<4x256xf32> to vector<256xf32>
    %227 = vector.shape_cast %226 : vector<256xf32> to vector<1x256xf32>
    %228 = tpu.concatenate %224, %227 in 0 : vector<1x256xf32>, vector<1x256xf32> -> vector<2x256xf32>
    %cst_134 = arith.constant dense<0.000000e+00> : vector<2x128xf32>
    %229 = tpu.matmul %228, %220, %cst_134 {dimension_numbers = #tpu.dot_dimension_numbers<[1], [0], [0], [1], [0, 0, 1, 1], [], []>, precision = #tpu.contract_precision<fp32>} : vector<2x256xf32>, vector<256x128xf32>, vector<2x128xf32> -> vector<2x128xf32>
    %cst_135 = arith.constant 8.000000e+00 : f32
    %230 = vector.broadcast %cst_135 : f32 to vector<2x128xf32>
    %231 = arith.divf %229, %230 : vector<2x128xf32>
    %232 = vector.extract_strided_slice %231 {offsets = [0, 0], sizes = [1, 128], strides = [1, 1]} : vector<2x128xf32> to vector<1x128xf32>
    %233 = vector.extract_strided_slice %231 {offsets = [1, 0], sizes = [1, 128], strides = [1, 1]} : vector<2x128xf32> to vector<1x128xf32>
    %234 = arith.mulf %232, %232 : vector<1x128xf32>
    %235 = arith.subf %233, %234 : vector<1x128xf32>
    %cst_136 = arith.constant 0.000000e+00 : f32
    %236 = vector.broadcast %cst_136 : f32 to vector<1x128xf32>
    %237 = arith.maximumf %235, %236 : vector<1x128xf32>
    %cst_137 = arith.constant 9.99999974E-6 : f32
    %238 = vector.broadcast %cst_137 : f32 to vector<1x128xf32>
    %239 = arith.addf %237, %238 : vector<1x128xf32>
    %240 = math.rsqrt %239 : vector<1x128xf32>
    %241 = vector.extract_strided_slice %222 {offsets = [0, 0], sizes = [1, 128], strides = [1, 1]} : vector<2x128xf32> to vector<1x128xf32>
    %242 = arith.mulf %241, %240 : vector<1x128xf32>
    %243 = vector.extract_strided_slice %222 {offsets = [1, 0], sizes = [1, 128], strides = [1, 1]} : vector<2x128xf32> to vector<1x128xf32>
    %244 = arith.mulf %232, %242 : vector<1x128xf32>
    %245 = arith.subf %243, %244 : vector<1x128xf32>
    %246 = tpu.concatenate %242, %245 in 0 : vector<1x128xf32>, vector<1x128xf32> -> vector<2x128xf32>
    %cst_138 = arith.constant dense<0.000000e+00> : vector<2x256xf32>
    %247 = tpu.matmul %246, %221, %cst_138 {dimension_numbers = #tpu.dot_dimension_numbers<[1], [0], [0], [1], [0, 0, 1, 1], [], []>, precision = #tpu.contract_precision<fp32>} : vector<2x128xf32>, vector<128x256xf32>, vector<2x256xf32> -> vector<2x256xf32>
    %248 = vector.extract_strided_slice %247 {offsets = [0, 0], sizes = [1, 256], strides = [1, 1]} : vector<2x256xf32> to vector<1x256xf32>
    %249 = vector.broadcast %248 : vector<1x256xf32> to vector<4x256xf32>
    %250 = arith.mulf %215, %249 : vector<4x256xf32>
    %251 = vector.extract_strided_slice %247 {offsets = [1, 0], sizes = [1, 256], strides = [1, 1]} : vector<2x256xf32> to vector<1x256xf32>
    %252 = vector.broadcast %251 : vector<1x256xf32> to vector<4x256xf32>
    %253 = arith.addf %250, %252 : vector<4x256xf32>
    %cst_139 = arith.constant 0.000000e+00 : f32
    %254 = vector.broadcast %cst_139 : f32 to vector<4x256xf32>
    %255 = arith.cmpf oge, %253, %254 : vector<4x256xf32>
    %cst_140 = arith.constant 2.000000e-01 : f32
    %256 = vector.broadcast %cst_140 : f32 to vector<4x256xf32>
    %257 = arith.mulf %256, %253 : vector<4x256xf32>
    %258 = arith.select %255, %253, %257 : vector<4x256xi1>, vector<4x256xf32>
    %c7_i32_141 = arith.constant 7 : i32
    %c3696_i32_142 = arith.constant 3696 : i32
    %c0_i32_143 = arith.constant 0 : i32
    %259 = tpu.memref_slice %arg1[%c3696_i32_142, %c0_i32_143] : memref<3728x256xbf16, #tpu.memory_space<any>> -> memref<32x256xbf16, #tpu.memory_space<any>>
    %c3696_i32_144 = arith.constant 3696 : i32
    %c0_i32_145 = arith.constant 0 : i32
    %260 = tpu.memref_slice %arg4[%c3696_i32_144, %c0_i32_145] : memref<3728x256xbf16, #tpu.memory_space<vmem>> -> memref<32x256xbf16, #tpu.memory_space<vmem>>
    %261 = tpu.memref_slice %arg6[%c7_i32_141] : memref<8x!tpu.dma_semaphore, #tpu.memory_space<semaphore_mem>> -> memref<1x!tpu.dma_semaphore, #tpu.memory_space<semaphore_mem>>
    %262 = tpu.memref_squeeze %261 : memref<1x!tpu.dma_semaphore, #tpu.memory_space<semaphore_mem>> -> memref<!tpu.dma_semaphore, #tpu.memory_space<semaphore_mem>>
    tpu.wait_dma2 semaphore(%262 : memref<!tpu.dma_semaphore, #tpu.memory_space<semaphore_mem>>) src(%259 : memref<32x256xbf16, #tpu.memory_space<any>>) dst(%260 : memref<32x256xbf16, #tpu.memory_space<vmem>>)
    %c3696 = arith.constant 3696 : index
    %c0_146 = arith.constant 0 : index
    %263 = vector.load %arg4[%c3696, %c0_146] : memref<3728x256xbf16, #tpu.memory_space<vmem>>, vector<8x4xbf16>
    %264 = arith.truncf %258 : vector<4x256xf32> to vector<4x256xbf16>
    %cst_147 = arith.constant dense<0.000000e+00> : vector<8x256xf32>
    %265 = tpu.matmul %263, %264, %cst_147 {dimension_numbers = #tpu.dot_dimension_numbers<[1], [0], [0], [1], [0, 0, 1, 1], [], []>} : vector<8x4xbf16>, vector<4x256xbf16>, vector<8x256xf32> -> vector<8x256xf32>
    %266 = arith.truncf %265 : vector<8x256xf32> to vector<8x256xbf16>
    %c3712 = arith.constant 3712 : index
    %c0_148 = arith.constant 0 : index
    %267 = vector.load %arg4[%c3712, %c0_148] : memref<3728x256xbf16, #tpu.memory_space<vmem>>, vector<8x256xbf16>
    %268 = arith.extf %267 : vector<8x256xbf16> to vector<8x256xf32>
    %269 = arith.extf %266 : vector<8x256xbf16> to vector<8x256xf32>
    %270 = arith.mulf %269, %268 : vector<8x256xf32>
    %cst_149 = arith.constant dense<0.000000e+00> : vector<8xf32>
    %271 = vector.multi_reduction <add>, %270, %cst_149 [1] : vector<8x256xf32> to vector<8xf32>
    %272 = vector.shape_cast %271 : vector<8xf32> to vector<8x1xf32>
    %273 = vector.extract_strided_slice %272 {offsets = [0, 0], sizes = [2, 1], strides = [1, 1]} : vector<8x1xf32> to vector<2x1xf32>
    %274 = vector.extract_strided_slice %272 {offsets = [2, 0], sizes = [2, 1], strides = [1, 1]} : vector<8x1xf32> to vector<2x1xf32>
    %275 = arith.addf %273, %274 : vector<2x1xf32>
    %276 = vector.extract_strided_slice %272 {offsets = [4, 0], sizes = [2, 1], strides = [1, 1]} : vector<8x1xf32> to vector<2x1xf32>
    %277 = vector.extract_strided_slice %272 {offsets = [6, 0], sizes = [2, 1], strides = [1, 1]} : vector<8x1xf32> to vector<2x1xf32>
    %278 = arith.addf %276, %277 : vector<2x1xf32>
    %279 = arith.addf %275, %278 : vector<2x1xf32>
    %c0_150 = arith.constant 0 : index
    %c0_151 = arith.constant 0 : index
    %280 = vector.load %arg3[%c0_150, %c0_151] : memref<2x1xf32, #tpu.memory_space<vmem>>, vector<2x1xf32>
    tpu.vector_store %arg3[%c0_150, %c0_151], %279 {strides = array<i32>} : memref<2x1xf32, #tpu.memory_space<vmem>>, vector<2x1xf32>,
    return
  }
}

</mosaic_0001>

<llo_original>
// kernel: patch_discriminator_forward.1
$region0: #{patch_discriminator_forward.1}
  #allocation0 [shape = 'u32[]', space=smem, size = 0x4, offset = 0x4, fixed_abs, tag = 'smem constant byte address 0x4 - core index']
  #allocation1 [shape = 'u32[144,128]{1,0:T(1,128)}', space=vmem, size = 0x12000, scoped, tag = 'internal scratch']
  #allocation2 [shape = 'bf16[3728,256]{1,0:T(16,128)(2,1)}', space=vmem, size = 0x1d2000, scoped, tag = 'scratch operand']
  #allocation3 [shape = 'f32[1016,256]{1,0:T(8,128)}', space=vmem, size = 0xfe000, scoped, tag = 'scratch operand']
  #allocation4 [shape = 's32[8]{0}', space=sflag, size = 0x20, scoped, tag = 'scratch operand']
  #allocation5 [shape = 's32[]', space=sflag, size = 0x4, offset = 0, fixed_abs, tag = 'sflag constant byte address 0x0 - dummy sync flag']
  #allocation7 [shape = 's32[]', space=sflag, size = 0x4, offset = 0, fixed_abs, tag = 'sflag constant byte address 0x0 - dummy sync flag']
  #allocation9 [shape = 's32[]', space=sflag, size = 0x4, offset = 0, fixed_abs, tag = 'sflag constant byte address 0x0 - dummy sync flag']
  #allocation10 [shape = 's32[]', space=sflag, size = 0x4, offset = 0, fixed_abs, tag = 'sflag constant byte address 0x0 - dummy sync flag']
  #allocation11 [shape = 'u32[]', space=smem, size = 0x4, offset = 0x44, fixed_abs, tag = 'smem constant byte address 0x44 - assertion arg 0']
  #allocation12 [shape = 'u32[]', space=smem, size = 0x4, offset = 0x48, fixed_abs, tag = 'smem constant byte address 0x48 - assertion arg 1']
  #allocation13 [shape = 's32[]', space=sflag, size = 0x4, offset = 0, fixed_abs, tag = 'sflag constant byte address 0x0 - dummy sync flag']
  #allocation15 [shape = 's32[]', space=sflag, size = 0x4, offset = 0, fixed_abs, tag = 'sflag constant byte address 0x0 - dummy sync flag']
  #allocation16 [shape = 's32[]', space=sflag, size = 0x4, offset = 0, fixed_abs, tag = 'sflag constant byte address 0x0 - dummy sync flag']
  #allocation17 [shape = 's32[]', space=sflag, size = 0x4, offset = 0, fixed_abs, tag = 'sflag constant byte address 0x0 - dummy sync flag']
  #allocation19 [shape = 's32[]', space=sflag, size = 0x4, offset = 0, fixed_abs, tag = 'sflag constant byte address 0x0 - dummy sync flag']
  #allocation20 [shape = 's32[]', space=sflag, size = 0x4, offset = 0, fixed_abs, tag = 'sflag constant byte address 0x0 - dummy sync flag']
  #allocation21 [shape = 's32[]', space=sflag, size = 0x4, offset = 0, fixed_abs, tag = 'sflag constant byte address 0x0 - dummy sync flag']
  %s0 = inlined_call_operand.vmem [shape: f32[64,96], index: 0, kind: input, shape index: {}]
  %s1 = inlined_call_operand.hbm [shape: bf16[3728,256], index: 1, kind: input, shape index: {}]
  %s2 = inlined_call_operand.hbm [shape: f32[1016,256], index: 2, kind: input, shape index: {}]
  %s3 = inlined_call_operand.vmem [shape: f32[2,1], index: 3, kind: output, shape index: {}]
  %s4 = sld [smem:[#allocation0]]
  $region26: #{patch_discriminator_forward.1} parent=0
    _
  %s6 = ssub.s32 1, %s4
  %s7 = scalar_select 0, %s6, %s4
  $region1: #{patch_discriminator_forward.1} parent=0
    #allocation6 [shape = 'u32[9]{0}', space=smem, size = 0x24, scoped, tag = 'DMA stride descriptor']
    #allocation8 [shape = 'u32[9]{0}', space=smem, size = 0x24, scoped, tag = 'DMA stride descriptor']
    #allocation14 [shape = 'u32[9]{0}', space=smem, size = 0x24, scoped, tag = 'DMA stride descriptor']
    #allocation18 [shape = 'u32[9]{0}', space=smem, size = 0x24, scoped, tag = 'DMA stride descriptor']
    #allocation22 [shape = 'u32[9]{0}', space=smem, size = 0x24, scoped, tag = 'DMA stride descriptor']
    // Predicated region
    $region2: #{patch_discriminator_forward.1} parent=1 // pred_check
      _
    $region3: #{patch_discriminator_forward.1} parent=1 // pred_check_branch
      %9 = sbr.rel (0) target = $region5
    $region4: #{patch_discriminator_forward.1} parent=1 // pred_region
      _
    $region5: #{patch_discriminator_forward.1} parent=1 // pred_fallthru
      _
    %s12 = sshll.u32 1, 14
    %s13 = sxor.u32 4294967295, %s12
    %s15 = sld [smem:[#allocation0]]
    %s16 = sadd.s32 2, %s15
    %s18 = sshll.u32 7, 26
    %s19 = sxor.u32 4294967295, %s18
    %s20 = sand.u32 0, %s19
    %s21 = sshll.u32 %s16, 26
    %s22 = sor.u32 %s20, %s21
    %s23 = sshll.u32 [#allocation2], 4
    %s24 = int_to_ptr.vmem [resolvable:$true] %s23
    %27 = sst [smem:[#allocation6]] 256
    %s28 = scalar_lea.smem [#allocation6], 1
    %29 = sst [smem:[%s28]] 256
    %s30 = scalar_lea.smem [#allocation6], 2
    %31 = sst [smem:[%s30]] 2
    %s32 = scalar_lea.smem [#allocation6], 3
    %33 = sst [smem:[%s32]] 64
    %s34 = scalar_lea.smem [#allocation6], 4
    %35 = sst [smem:[%s34]] 128
    %s36 = scalar_lea.smem [#allocation6], 5
    %37 = sst [smem:[%s36]] 2
    %s38 = scalar_lea.smem [#allocation6], 6
    %39 = sst [smem:[%s38]] 128
    %s40 = scalar_lea.smem [#allocation6], 7
    %41 = sst [smem:[%s40]] 64
    %s42 = scalar_lea.smem [#allocation6], 8
    %43 = sst [smem:[%s42]] 4
    %45 = dma.general %s1, 8192, %s24, [#allocation4], [#allocation5], [#allocation6], %s22, 0
    %s46 = scalar_lea.hbm %s1, 8192
    %s47 = scalar_lea.vmem [#allocation2], 512
    %s48 = scalar_lea.sflag [#allocation4], 1
    %s50 = sshll.u32 1, 14
    %s51 = sxor.u32 4294967295, %s50
    %s53 = sadd.s32 2, %s15
    %s55 = sshll.u32 7, 26
    %s56 = sxor.u32 4294967295, %s55
    %s57 = sand.u32 0, %s56
    %s58 = sshll.u32 %s53, 26
    %s59 = sor.u32 %s57, %s58
    %s60 = sshll.u32 %s47, 4
    %s61 = int_to_ptr.vmem [resolvable:$true] %s60
    %64 = sst [smem:[#allocation8]] 256
    %s65 = scalar_lea.smem [#allocation8], 1
    %66 = sst [smem:[%s65]] 256
    %s67 = scalar_lea.smem [#allocation8], 2
    %68 = sst [smem:[%s67]] 2
    %s69 = scalar_lea.smem [#allocation8], 3
    %70 = sst [smem:[%s69]] 64
    %s71 = scalar_lea.smem [#allocation8], 4
    %72 = sst [smem:[%s71]] 128
    %s73 = scalar_lea.smem [#allocation8], 5
    %74 = sst [smem:[%s73]] 2
    %s75 = scalar_lea.smem [#allocation8], 6
    %76 = sst [smem:[%s75]] 128
    %s77 = scalar_lea.smem [#allocation8], 7
    %78 = sst [smem:[%s77]] 64
    %s79 = scalar_lea.smem [#allocation8], 8
    %80 = sst [smem:[%s79]] 4
    %82 = dma.general %s46, 17408, %s61, %s48, [#allocation7], [#allocation8], %s59, 0
    %s83 = scalar_lea.sflag [#allocation4], 2
    // Predicated region
    $region6: #{patch_discriminator_forward.1} parent=1 // pred_check
      _
    $region7: #{patch_discriminator_forward.1} parent=1 // pred_check_branch
      %85 = sbr.rel target = $region9
    $region8: #{patch_discriminator_forward.1} parent=1 // pred_region
      %86 = sst [smem:[#allocation11]] [#allocation10]
      %87 = sst [smem:[#allocation12]] [#allocation9]
    $region9: #{patch_discriminator_forward.1} parent=1 // pred_fallthru
      _
    %89 = shalt.err (0)
    %s91 = sshll.u32 [#allocation3], 4
    %s92 = int_to_ptr.vmem [resolvable:$true] %s91
    %94 = dma.hbm_to_vmem [thread:$0]  %s2, 9472, %s92, %s83
    %s95 = scalar_lea.hbm %s1, 25600
    %s96 = scalar_lea.vmem [#allocation2], 1600
    %s97 = scalar_lea.sflag [#allocation4], 3
    %s99 = sshll.u32 1, 14
    %s100 = sxor.u32 4294967295, %s99
    %s102 = sadd.s32 2, %s15
    %s104 = sshll.u32 7, 26
    %s105 = sxor.u32 4294967295, %s104
    %s106 = sand.u32 0, %s105
    %s107 = sshll.u32 %s102, 26
    %s108 = sor.u32 %s106, %s107
    %s109 = sshll.u32 %s96, 4
    %s110 = int_to_ptr.vmem [resolvable:$true] %s109
    %113 = sst [smem:[#allocation14]] 256
    %s114 = scalar_lea.smem [#allocation14], 1
    %115 = sst [smem:[%s114]] 256
    %s116 = scalar_lea.smem [#allocation14], 2
    %117 = sst [smem:[%s116]] 2
    %s118 = scalar_lea.smem [#allocation14], 3
    %119 = sst [smem:[%s118]] 64
    %s120 = scalar_lea.smem [#allocation14], 4
    %121 = sst [smem:[%s120]] 128
    %s122 = scalar_lea.smem [#allocation14], 5
    %123 = sst [smem:[%s122]] 2
    %s124 = scalar_lea.smem [#allocation14], 6
    %125 = sst [smem:[%s124]] 128
    %s126 = scalar_lea.smem [#allocation14], 7
    %127 = sst [smem:[%s126]] 64
    %s128 = scalar_lea.smem [#allocation14], 8
    %129 = sst [smem:[%s128]] 4
    %131 = dma.general %s95, 16896, %s110, %s97, [#allocation13], [#allocation14], %s108, 0
    %s132 = scalar_lea.hbm %s2, 9472
    %s133 = scalar_lea.vmem [#allocation3], 592
    %s134 = scalar_lea.sflag [#allocation4], 4
    // Predicated region
    $region10: #{patch_discriminator_forward.1} parent=1 // pred_check
      _
    $region11: #{patch_discriminator_forward.1} parent=1 // pred_check_branch
      %136 = sbr.rel target = $region13
    $region12: #{patch_discriminator_forward.1} parent=1 // pred_region
      %137 = sst [smem:[#allocation11]] [#allocation16]
      %138 = sst [smem:[#allocation12]] [#allocation15]
    $region13: #{patch_discriminator_forward.1} parent=1 // pred_fallthru
      _
    %140 = shalt.err (0)
    %s142 = sshll.u32 %s133, 4
    %s143 = int_to_ptr.vmem [resolvable:$true] %s142
    %145 = dma.hbm_to_vmem [thread:$0]  %s132, 10496, %s143, %s134
    %s146 = scalar_lea.hbm %s1, 42496
    %s147 = scalar_lea.vmem [#allocation2], 2656
    %s148 = scalar_lea.sflag [#allocation4], 5
    %s150 = sshll.u32 1, 14
    %s151 = sxor.u32 4294967295, %s150
    %s153 = sadd.s32 2, %s15
    %s155 = sshll.u32 7, 26
    %s156 = sxor.u32 4294967295, %s155
    %s157 = sand.u32 0, %s156
    %s158 = sshll.u32 %s153, 26
    %s159 = sor.u32 %s157, %s158
    %s160 = sshll.u32 %s147, 4
    %s161 = int_to_ptr.vmem [resolvable:$true] %s160
    %164 = sst [smem:[#allocation18]] 256
    %s165 = scalar_lea.smem [#allocation18], 1
    %166 = sst [smem:[%s165]] 256
    %s167 = scalar_lea.smem [#allocation18], 2
    %168 = sst [smem:[%s167]] 2
    %s169 = scalar_lea.smem [#allocation18], 3
    %170 = sst [smem:[%s169]] 64
    %s171 = scalar_lea.smem [#allocation18], 4
    %172 = sst [smem:[%s171]] 128
    %s173 = scalar_lea.smem [#allocation18], 5
    %174 = sst [smem:[%s173]] 2
    %s175 = scalar_lea.smem [#allocation18], 6
    %176 = sst [smem:[%s175]] 128
    %s177 = scalar_lea.smem [#allocation18], 7
    %178 = sst [smem:[%s177]] 64
    %s179 = scalar_lea.smem [#allocation18], 8
    %180 = sst [smem:[%s179]] 4
    %182 = dma.general %s146, 16640, %s161, %s148, [#allocation17], [#allocation18], %s159, 0
    %s183 = scalar_lea.hbm %s2, 19968
    %s184 = scalar_lea.vmem [#allocation3], 1248
    %s185 = scalar_lea.sflag [#allocation4], 6
    // Predicated region
    $region14: #{patch_discriminator_forward.1} parent=1 // pred_check
      _
    $region15: #{patch_discriminator_forward.1} parent=1 // pred_check_branch
      %187 = sbr.rel target = $region17
    $region16: #{patch_discriminator_forward.1} parent=1 // pred_region
      %188 = sst [smem:[#allocation11]] [#allocation20]
      %189 = sst [smem:[#allocation12]] [#allocation19]
    $region17: #{patch_discriminator_forward.1} parent=1 // pred_fallthru
      _
    %191 = shalt.err (0)
    %s193 = sshll.u32 %s184, 4
    %s194 = int_to_ptr.vmem [resolvable:$true] %s193
    %196 = dma.hbm_to_vmem [thread:$0]  %s183, 12544, %s194, %s185
    %s197 = scalar_lea.hbm %s1, 59136
    %s198 = scalar_lea.vmem [#allocation2], 3696
    %s199 = scalar_lea.sflag [#allocation4], 7
    %s201 = sshll.u32 1, 14
    %s202 = sxor.u32 4294967295, %s201
    %s204 = sadd.s32 2, %s15
    %s206 = sshll.u32 7, 26
    %s207 = sxor.u32 4294967295, %s206
    %s208 = sand.u32 0, %s207
    %s209 = sshll.u32 %s204, 26
    %s210 = sor.u32 %s208, %s209
    %s211 = sshll.u32 %s198, 4
    %s212 = int_to_ptr.vmem [resolvable:$true] %s211
    %215 = sst [smem:[#allocation22]] 256
    %s216 = scalar_lea.smem [#allocation22], 1
    %217 = sst [smem:[%s216]] 256
    %s218 = scalar_lea.smem [#allocation22], 2
    %219 = sst [smem:[%s218]] 2
    %s220 = scalar_lea.smem [#allocation22], 3
    %221 = sst [smem:[%s220]] 64
    %s222 = scalar_lea.smem [#allocation22], 4
    %223 = sst [smem:[%s222]] 128
    %s224 = scalar_lea.smem [#allocation22], 5
    %225 = sst [smem:[%s224]] 2
    %s226 = scalar_lea.smem [#allocation22], 6
    %227 = sst [smem:[%s226]] 128
    %s228 = scalar_lea.smem [#allocation22], 7
    %229 = sst [smem:[%s228]] 64
    %s230 = scalar_lea.smem [#allocation22], 8
    %231 = sst [smem:[%s230]] 4
    %233 = dma.general %s197, 512, %s212, %s199, [#allocation21], [#allocation22], %s210, 0
    %v234 = vld [vmem:[%s0] sm:$0xff]
    %v235 = vld [vmem:[%s0 + $0x8] sm:$0xff]
    %v236 = vld [vmem:[%s0 + $0x10] sm:$0xff]
    %v237 = vld [vmem:[%s0 + $0x18] sm:$0xff]
    %v238 = vld [vmem:[%s0 + $0x20] sm:$0xff]
    %v239 = vld [vmem:[%s0 + $0x28] sm:$0xff]
    %v240 = vld [vmem:[%s0 + $0x30] sm:$0xff]
    %v241 = vld [vmem:[%s0 + $0x38] sm:$0xff]
    %s242 = smul.u32 4, 64
    %s243 = smul.u32 %s242, 2
    %s244 = sshll.u32 %s243, 4
    %245 = dma.done [#allocation4], %s244
    %v246 = vld [vmem:[#allocation2] sm:$0xff]
    %v247 = vld [vmem:[#allocation2 + $0x10] sm:$0xff]
    %v248 = vld [vmem:[#allocation2 + $0x20] sm:$0xff]
    %v249 = vld [vmem:[#allocation2 + $0x30] sm:$0xff]
    %v250 = vld [vmem:[#allocation2 + $0x40] sm:$0xff]
    %v251 = vld [vmem:[#allocation2 + $0x50] sm:$0xff]
    %v252 = vld [vmem:[#allocation2 + $0x60] sm:$0xff]
    %v253 = vld [vmem:[#allocation2 + $0x70] sm:$0xff]
    %v254 = vpack.c.bf16 %v235, %v234
    %v255 = vpack.c.bf16 %v237, %v236
    %v256 = vpack.c.bf16 %v239, %v238
    %v257 = vpack.c.bf16 %v241, %v240
    %vm258 = vcmask 523264
    %v260 = vsel %vm258, %v246, 0
    %v263 = vsel %vm258, %v247, 0
    %v266 = vsel %vm258, %v248, 0
    %v269 = vsel %vm258, %v249, 0
    %v272 = vsel %vm258, %v250, 0
    %v275 = vsel %vm258, %v251, 0
    %v278 = vsel %vm258, %v252, 0
    %v281 = vsel %vm258, %v253, 0
    %283 = vmatprep.subr.bf16.mxu0 0
    %284 = vmatpush1.bf16.msra.mxu0 %v254
    %285 = vmatprep.subr.bf16.mxu0 0
    %286 = vmatpush1.bf16.msra.mxu0 %v255
    %287 = vmatprep.subr.bf16.mxu0 0
    %288 = vmatpush1.bf16.msra.mxu0 %v256
    %289 = vmatprep.subr.bf16.mxu0 0
    %290 = vmatpush1.bf16.msra.mxu0 %v257
    %291 = vmatprep.subr.bf16.mxu0 0
    %292 = vmatpush1.bf16.msra.mxu0 0
    %293 = vmatprep.subr.bf16.mxu0 0
    %294 = vmatpush1.bf16.msra.mxu0 0
    %295 = vmatprep.subr.bf16.mxu0 0
    %296 = vmatpush1.bf16.msra.mxu0 0
    %297 = vmatprep.subr.bf16.mxu0 0
    %298 = vmatpush1.bf16.msra.mxu0 0
    %299 = vmatprep.subr.bf16.mxu0 0
    %300 = vmatpush1.bf16.msra.mxu0 0
    %301 = vmatprep.subr.bf16.mxu0 0
    %302 = vmatpush1.bf16.msra.mxu0 0
    %303 = vmatprep.subr.bf16.mxu0 0
    %304 = vmatpush1.bf16.msra.mxu0 0
    %305 = vmatprep.subr.bf16.mxu0 0
    %306 = vmatpush1.bf16.msra.mxu0 0
    %307 = vmatprep.subr.bf16.mxu0 0
    %308 = vmatpush1.bf16.msra.mxu0 0
    %309 = vmatprep.subr.bf16.mxu0 0
    %310 = vmatpush1.bf16.msra.mxu0 0
    %311 = vmatprep.subr.bf16.mxu0 0
    %312 = vmatpush1.bf16.msra.mxu0 0
    %313 = vmatprep.subr.bf16.mxu0 0
    %314 = vmatpush1.bf16.msra.mxu0 0
    %315 = vmatprep.mubr.bf16.mxu0 0
    %316 = vmatmul.mubr.bf16.gmra.mrb[0].mxu0 %v260
    %v317 = vpop.f32.mrb[0].mxu0
    %v318 = vadd.f32 0.0, %v317
    %v319 = vpop.f32.mrb[0].mxu0
    %v320 = vpop.f32.mrb[0].mxu0
    %v321 = vadd.f32 0.0, %v320
    %v322 = vpop.f32.mrb[0].mxu0
    %323 = vmatprep.mubr.bf16.mxu0 0
    %324 = vmatmul.mubr.bf16.gmra.mrb[0].mxu0 %v263
    %v325 = vpop.f32.mrb[0].mxu0
    %v326 = vadd.f32 0.0, %v325
    %v327 = vpop.f32.mrb[0].mxu0
    %v328 = vpop.f32.mrb[0].mxu0
    %v329 = vadd.f32 0.0, %v328
    %v330 = vpop.f32.mrb[0].mxu0
    %331 = vmatprep.mubr.bf16.mxu0 0
    %332 = vmatmul.mubr.bf16.gmra.mrb[0].mxu0 %v266
    %v333 = vpop.f32.mrb[0].mxu0
    %v334 = vadd.f32 0.0, %v333
    %v335 = vpop.f32.mrb[0].mxu0
    %v336 = vpop.f32.mrb[0].mxu0
    %v337 = vadd.f32 0.0, %v336
    %v338 = vpop.f32.mrb[0].mxu0
    %339 = vmatprep.mubr.bf16.mxu0 0
    %340 = vmatmul.mubr.bf16.gmra.mrb[0].mxu0 %v269
    %v341 = vpop.f32.mrb[0].mxu0
    %v342 = vadd.f32 0.0, %v341
    %v343 = vpop.f32.mrb[0].mxu0
    %v344 = vpop.f32.mrb[0].mxu0
    %v345 = vadd.f32 0.0, %v344
    %v346 = vpop.f32.mrb[0].mxu0
    %347 = vmatprep.mubr.bf16.mxu0 0
    %348 = vmatmul.mubr.bf16.gmra.mrb[0].mxu0 %v272
    %v349 = vpop.f32.mrb[0].mxu0
    %v350 = vadd.f32 0.0, %v349
    %v351 = vpop.f32.mrb[0].mxu0
    %v352 = vpop.f32.mrb[0].mxu0
    %v353 = vadd.f32 0.0, %v352
    %v354 = vpop.f32.mrb[0].mxu0
    %355 = vmatprep.mubr.bf16.mxu0 0
    %356 = vmatmul.mubr.bf16.gmra.mrb[0].mxu0 %v275
    %v357 = vpop.f32.mrb[0].mxu0
    %v358 = vadd.f32 0.0, %v357
    %v359 = vpop.f32.mrb[0].mxu0
    %v360 = vpop.f32.mrb[0].mxu0
    %v361 = vadd.f32 0.0, %v360
    %v362 = vpop.f32.mrb[0].mxu0
    %363 = vmatprep.mubr.bf16.mxu0 0
    %364 = vmatmul.mubr.bf16.gmra.mrb[0].mxu0 %v278
    %v365 = vpop.f32.mrb[0].mxu0
    %v366 = vadd.f32 0.0, %v365
    %v367 = vpop.f32.mrb[0].mxu0
    %v368 = vpop.f32.mrb[0].mxu0
    %v369 = vadd.f32 0.0, %v368
    %v370 = vpop.f32.mrb[0].mxu0
    %371 = vmatprep.mubr.bf16.mxu0 0
    %372 = vmatmul.mubr.bf16.gmra.mrb[0].mxu0 %v281
    %v373 = vpop.f32.mrb[0].mxu0
    %v374 = vadd.f32 0.0, %v373
    %v375 = vpop.f32.mrb[0].mxu0
    %v376 = vpop.f32.mrb[0].mxu0
    %v377 = vadd.f32 0.0, %v376
    %v378 = vpop.f32.mrb[0].mxu0
    %379 = vdwg.mxu0
    %v380 = vpack.c.bf16 %v321, %v318
    %v381 = vpack.c.bf16 %v329, %v326
    %v382 = vpack.c.bf16 %v337, %v334
    %v383 = vpack.c.bf16 %v345, %v342
    %v384 = vpack.c.bf16 %v353, %v350
    %v385 = vpack.c.bf16 %v361, %v358
    %v386 = vpack.c.bf16 %v369, %v366
    %v387 = vpack.c.bf16 %v377, %v374
    %v388 = vld [vmem:[#allocation2 + $0x80] sm:$0xff]
    %v389 = vld [vmem:[#allocation2 + $0x88] sm:$0xff]
    %v390 = vld [vmem:[#allocation2 + $0x90] sm:$0xff]
    %v391 = vld [vmem:[#allocation2 + $0x98] sm:$0xff]
    %v392 = vld [vmem:[#allocation2 + $0xa0] sm:$0xff]
    %v393 = vld [vmem:[#allocation2 + $0xa8] sm:$0xff]
    %v394 = vld [vmem:[#allocation2 + $0xb0] sm:$0xff]
    %v395 = vld [vmem:[#allocation2 + $0xb8] sm:$0xff]
    %v396 = vld [vmem:[#allocation2 + $0xc0] sm:$0xff]
    %v397 = vld [vmem:[#allocation2 + $0xc8] sm:$0xff]
    %v398 = vld [vmem:[#allocation2 + $0xd0] sm:$0xff]
    %v399 = vld [vmem:[#allocation2 + $0xd8] sm:$0xff]
    %v400 = vld [vmem:[#allocation2 + $0xe0] sm:$0xff]
    %v401 = vld [vmem:[#allocation2 + $0xe8] sm:$0xff]
    %v402 = vld [vmem:[#allocation2 + $0xf0] sm:$0xff]
    %v403 = vld [vmem:[#allocation2 + $0xf8] sm:$0xff]
    %v404 = vld [vmem:[#allocation2 + $0x100] sm:$0xff]
    %v405 = vld [vmem:[#allocation2 + $0x108] sm:$0xff]
    %v406 = vld [vmem:[#allocation2 + $0x110] sm:$0xff]
    %v407 = vld [vmem:[#allocation2 + $0x118] sm:$0xff]
    %v408 = vld [vmem:[#allocation2 + $0x120] sm:$0xff]
    %v409 = vld [vmem:[#allocation2 + $0x128] sm:$0xff]
    %v410 = vld [vmem:[#allocation2 + $0x130] sm:$0xff]
    %v411 = vld [vmem:[#allocation2 + $0x138] sm:$0xff]
    %vm412 = vcmask 785408
    %v414 = vsel %vm412, %v382, 0
    %v417 = vsel %vm412, %v383, 0
    %419 = vmatprep.subr.bf16.mxu0 %v401
    %420 = vmatpush1.bf16.msra.mxu0 %v400
    %421 = vmatprep.subr.bf16.mxu0 %v403
    %422 = vmatpush1.bf16.msra.mxu0 %v402
    %423 = vmatprep.subr.bf16.mxu0 %v405
    %424 = vmatpush1.bf16.msra.mxu0 %v404
    %425 = vmatprep.subr.bf16.mxu0 %v407
    %426 = vmatpush1.bf16.msra.mxu0 %v406
    %427 = vmatprep.subr.bf16.mxu0 %v409
    %428 = vmatpush1.bf16.msra.mxu0 %v408
    %429 = vmatprep.subr.bf16.mxu0 %v411
    %430 = vmatpush1.bf16.msra.mxu0 %v410
    %431 = vmatprep.subr.bf16.mxu0 0
    %432 = vmatpush1.bf16.msra.mxu0 0
    %433 = vmatprep.subr.bf16.mxu0 0
    %434 = vmatpush1.bf16.msra.mxu0 0
    %435 = vmatprep.subr.bf16.mxu0 0
    %436 = vmatpush1.bf16.msra.mxu0 0
    %437 = vmatprep.subr.bf16.mxu0 0
    %438 = vmatpush1.bf16.msra.mxu0 0
    %439 = vmatprep.subr.bf16.mxu0 0
    %440 = vmatpush1.bf16.msra.mxu0 0
    %441 = vmatprep.subr.bf16.mxu0 0
    %442 = vmatpush1.bf16.msra.mxu0 0
    %443 = vmatprep.subr.bf16.mxu0 0
    %444 = vmatpush1.bf16.msra.mxu0 0
    %445 = vmatprep.subr.bf16.mxu0 0
    %446 = vmatpush1.bf16.msra.mxu0 0
    %447 = vmatprep.subr.bf16.mxu0 0
    %448 = vmatpush1.bf16.msra.mxu0 0
    %449 = vmatprep.subr.bf16.mxu0 0
    %450 = vmatpush1.bf16.msra.mxu0 0
    %451 = vmatprep.mubr.bf16.mxu0 0
    %452 = vmatmul.mubr.bf16.gmra.mrb[0].mxu0 %v414
    %v453 = vpop.f32.mrb[0].mxu0
    %v454 = vadd.f32 0.0, %v453
    %v455 = vpop.f32.mrb[0].mxu0
    %v456 = vadd.f32 0.0, %v455
    %v457 = vpop.f32.mrb[0].mxu0
    %v458 = vadd.f32 0.0, %v457
    %v459 = vpop.f32.mrb[0].mxu0
    %v460 = vadd.f32 0.0, %v459
    %461 = vmatprep.mubr.bf16.mxu0 0
    %462 = vmatmul.mubr.bf16.gmra.mrb[0].mxu0 %v417
    %v463 = vpop.f32.mrb[0].mxu0
    %v464 = vadd.f32 0.0, %v463
    %v465 = vpop.f32.mrb[0].mxu0
    %v466 = vadd.f32 0.0, %v465
    %v467 = vpop.f32.mrb[0].mxu0
    %v468 = vadd.f32 0.0, %v467
    %v469 = vpop.f32.mrb[0].mxu0
    %v470 = vadd.f32 0.0, %v469
    %471 = vdwg.mxu0
    %v472 = vld [vmem:[#allocation2 + $0x140] sm:$0xff]
    %v473 = vld [vmem:[#allocation2 + $0x148] sm:$0xff]
    %v474 = vld [vmem:[#allocation2 + $0x150] sm:$0xff]
    %v475 = vld [vmem:[#allocation2 + $0x158] sm:$0xff]
    %v476 = vld [vmem:[#allocation2 + $0x160] sm:$0xff]
    %v477 = vld [vmem:[#allocation2 + $0x168] sm:$0xff]
    %v478 = vld [vmem:[#allocation2 + $0x170] sm:$0xff]
    %v479 = vld [vmem:[#allocation2 + $0x178] sm:$0xff]
    %v480 = vld [vmem:[#allocation2 + $0x180] sm:$0xff]
    %v481 = vld [vmem:[#allocation2 + $0x188] sm:$0xff]
    %v482 = vld [vmem:[#allocation2 + $0x190] sm:$0xff]
    %v483 = vld [vmem:[#allocation2 + $0x198] sm:$0xff]
    %v484 = vld [vmem:[#allocation2 + $0x1a0] sm:$0xff]
    %v485 = vld [vmem:[#allocation2 + $0x1a8] sm:$0xff]
    %v486 = vld [vmem:[#allocation2 + $0x1b0] sm:$0xff]
    %v487 = vld [vmem:[#allocation2 + $0x1b8] sm:$0xff]
    %v488 = vld [vmem:[#allocation2 + $0x1c0] sm:$0xff]
    %v489 = vld [vmem:[#allocation2 + $0x1c8] sm:$0xff]
    %v490 = vld [vmem:[#allocation2 + $0x1d0] sm:$0xff]
    %v491 = vld [vmem:[#allocation2 + $0x1d8] sm:$0xff]
    %v492 = vld [vmem:[#allocation2 + $0x1e0] sm:$0xff]
    %v493 = vld [vmem:[#allocation2 + $0x1e8] sm:$0xff]
    %v494 = vld [vmem:[#allocation2 + $0x1f0] sm:$0xff]
    %v495 = vld [vmem:[#allocation2 + $0x1f8] sm:$0xff]
    %v497 = vsel %vm412, %v386, 0
    %v500 = vsel %vm412, %v387, 0
    %502 = vmatprep.subr.bf16.mxu0 %v485
    %503 = vmatpush1.bf16.msra.mxu0 %v484
    %504 = vmatprep.subr.bf16.mxu0 %v487
    %505 = vmatpush1.bf16.msra.mxu0 %v486
    %506 = vmatprep.subr.bf16.mxu0 %v489
    %507 = vmatpush1.bf16.msra.mxu0 %v488
    %508 = vmatprep.subr.bf16.mxu0 %v491
    %509 = vmatpush1.bf16.msra.mxu0 %v490
    %510 = vmatprep.subr.bf16.mxu0 %v493
    %511 = vmatpush1.bf16.msra.mxu0 %v492
    %512 = vmatprep.subr.bf16.mxu0 %v495
    %513 = vmatpush1.bf16.msra.mxu0 %v494
    %514 = vmatprep.subr.bf16.mxu0 0
    %515 = vmatpush1.bf16.msra.mxu0 0
    %516 = vmatprep.subr.bf16.mxu0 0
    %517 = vmatpush1.bf16.msra.mxu0 0
    %518 = vmatprep.subr.bf16.mxu0 0
    %519 = vmatpush1.bf16.msra.mxu0 0
    %520 = vmatprep.subr.bf16.mxu0 0
    %521 = vmatpush1.bf16.msra.mxu0 0
    %522 = vmatprep.subr.bf16.mxu0 0
    %523 = vmatpush1.bf16.msra.mxu0 0
    %524 = vmatprep.subr.bf16.mxu0 0
    %525 = vmatpush1.bf16.msra.mxu0 0
    %526 = vmatprep.subr.bf16.mxu0 0
    %527 = vmatpush1.bf16.msra.mxu0 0
    %528 = vmatprep.subr.bf16.mxu0 0
    %529 = vmatpush1.bf16.msra.mxu0 0
    %530 = vmatprep.subr.bf16.mxu0 0
    %531 = vmatpush1.bf16.msra.mxu0 0
    %532 = vmatprep.subr.bf16.mxu0 0
    %533 = vmatpush1.bf16.msra.mxu0 0
    %534 = vmatprep.mubr.bf16.mxu0 0
    %535 = vmatmul.mubr.bf16.gmra.mrb[0].mxu0 %v497
    %v536 = vpop.f32.mrb[0].mxu0
    %v537 = vadd.f32 0.0, %v536
    %v538 = vpop.f32.mrb[0].mxu0
    %v539 = vadd.f32 0.0, %v538
    %v540 = vpop.f32.mrb[0].mxu0
    %v541 = vadd.f32 0.0, %v540
    %v542 = vpop.f32.mrb[0].mxu0
    %v543 = vadd.f32 0.0, %v542
    %544 = vmatprep.mubr.bf16.mxu0 0
    %545 = vmatmul.mubr.bf16.gmra.mrb[0].mxu0 %v500
    %v546 = vpop.f32.mrb[0].mxu0
    %v547 = vadd.f32 0.0, %v546
    %v548 = vpop.f32.mrb[0].mxu0
    %v549 = vadd.f32 0.0, %v548
    %v550 = vpop.f32.mrb[0].mxu0
    %v551 = vadd.f32 0.0, %v550
    %v552 = vpop.f32.mrb[0].mxu0
    %v553 = vadd.f32 0.0, %v552
    %554 = vdwg.mxu0
    %v556 = vsel %vm412, %v380, 0
    %v559 = vsel %vm412, %v381, 0
    %561 = vmatprep.subr.bf16.mxu0 %v389
    %562 = vmatpush1.bf16.msra.mxu0 %v388
    %563 = vmatprep.subr.bf16.mxu0 %v391
    %564 = vmatpush1.bf16.msra.mxu0 %v390
    %565 = vmatprep.subr.bf16.mxu0 %v393
    %566 = vmatpush1.bf16.msra.mxu0 %v392
    %567 = vmatprep.subr.bf16.mxu0 %v395
    %568 = vmatpush1.bf16.msra.mxu0 %v394
    %569 = vmatprep.subr.bf16.mxu0 %v397
    %570 = vmatpush1.bf16.msra.mxu0 %v396
    %571 = vmatprep.subr.bf16.mxu0 %v399
    %572 = vmatpush1.bf16.msra.mxu0 %v398
    %573 = vmatprep.subr.bf16.mxu0 0
    %574 = vmatpush1.bf16.msra.mxu0 0
    %575 = vmatprep.subr.bf16.mxu0 0
    %576 = vmatpush1.bf16.msra.mxu0 0
    %577 = vmatprep.subr.bf16.mxu0 0
    %578 = vmatpush1.bf16.msra.mxu0 0
    %579 = vmatprep.subr.bf16.mxu0 0
    %580 = vmatpush1.bf16.msra.mxu0 0
    %581 = vmatprep.subr.bf16.mxu0 0
    %582 = vmatpush1.bf16.msra.mxu0 0
    %583 = vmatprep.subr.bf16.mxu0 0
    %584 = vmatpush1.bf16.msra.mxu0 0
    %585 = vmatprep.subr.bf16.mxu0 0
    %586 = vmatpush1.bf16.msra.mxu0 0
    %587 = vmatprep.subr.bf16.mxu0 0
    %588 = vmatpush1.bf16.msra.mxu0 0
    %589 = vmatprep.subr.bf16.mxu0 0
    %590 = vmatpush1.bf16.msra.mxu0 0
    %591 = vmatprep.subr.bf16.mxu0 0
    %592 = vmatpush1.bf16.msra.mxu0 0
    %593 = vmatprep.mubr.bf16.mxu0 0
    %594 = vmatmul.mubr.bf16.gmra.mrb[0].mxu0 %v556
    %v595 = vpop.f32.mrb[0].mxu0
    %v596 = vadd.f32 %v454, %v595
    %v597 = vpop.f32.mrb[0].mxu0
    %v598 = vadd.f32 %v456, %v597
    %v599 = vpop.f32.mrb[0].mxu0
    %v600 = vadd.f32 %v458, %v599
    %v601 = vpop.f32.mrb[0].mxu0
    %v602 = vadd.f32 %v460, %v601
    %603 = vmatprep.mubr.bf16.mxu0 0
    %604 = vmatmul.mubr.bf16.gmra.mrb[0].mxu0 %v559
    %v605 = vpop.f32.mrb[0].mxu0
    %v606 = vadd.f32 %v464, %v605
    %v607 = vpop.f32.mrb[0].mxu0
    %v608 = vadd.f32 %v466, %v607
    %v609 = vpop.f32.mrb[0].mxu0
    %v610 = vadd.f32 %v468, %v609
    %v611 = vpop.f32.mrb[0].mxu0
    %v612 = vadd.f32 %v470, %v611
    %613 = vdwg.mxu0
    %v615 = vsel %vm412, %v384, 0
    %v618 = vsel %vm412, %v385, 0
    %620 = vmatprep.subr.bf16.mxu0 %v473
    %621 = vmatpush1.bf16.msra.mxu0 %v472
    %622 = vmatprep.subr.bf16.mxu0 %v475
    %623 = vmatpush1.bf16.msra.mxu0 %v474
    %624 = vmatprep.subr.bf16.mxu0 %v477
    %625 = vmatpush1.bf16.msra.mxu0 %v476
    %626 = vmatprep.subr.bf16.mxu0 %v479
    %627 = vmatpush1.bf16.msra.mxu0 %v478
    %628 = vmatprep.subr.bf16.mxu0 %v481
    %629 = vmatpush1.bf16.msra.mxu0 %v480
    %630 = vmatprep.subr.bf16.mxu0 %v483
    %631 = vmatpush1.bf16.msra.mxu0 %v482
    %632 = vmatprep.subr.bf16.mxu0 0
    %633 = vmatpush1.bf16.msra.mxu0 0
    %634 = vmatprep.subr.bf16.mxu0 0
    %635 = vmatpush1.bf16.msra.mxu0 0
    %636 = vmatprep.subr.bf16.mxu0 0
    %637 = vmatpush1.bf16.msra.mxu0 0
    %638 = vmatprep.subr.bf16.mxu0 0
    %639 = vmatpush1.bf16.msra.mxu0 0
    %640 = vmatprep.subr.bf16.mxu0 0
    %641 = vmatpush1.bf16.msra.mxu0 0
    %642 = vmatprep.subr.bf16.mxu0 0
    %643 = vmatpush1.bf16.msra.mxu0 0
    %644 = vmatprep.subr.bf16.mxu0 0
    %645 = vmatpush1.bf16.msra.mxu0 0
    %646 = vmatprep.subr.bf16.mxu0 0
    %647 = vmatpush1.bf16.msra.mxu0 0
    %648 = vmatprep.subr.bf16.mxu0 0
    %649 = vmatpush1.bf16.msra.mxu0 0
    %650 = vmatprep.subr.bf16.mxu0 0
    %651 = vmatpush1.bf16.msra.mxu0 0
    %652 = vmatprep.mubr.bf16.mxu0 0
    %653 = vmatmul.mubr.bf16.gmra.mrb[0].mxu0 %v615
    %v654 = vpop.f32.mrb[0].mxu0
    %v655 = vadd.f32 %v537, %v654
    %v656 = vpop.f32.mrb[0].mxu0
    %v657 = vadd.f32 %v539, %v656
    %v658 = vpop.f32.mrb[0].mxu0
    %v659 = vadd.f32 %v541, %v658
    %v660 = vpop.f32.mrb[0].mxu0
    %v661 = vadd.f32 %v543, %v660
    %662 = vmatprep.mubr.bf16.mxu0 0
    %663 = vmatmul.mubr.bf16.gmra.mrb[0].mxu0 %v618
    %v664 = vpop.f32.mrb[0].mxu0
    %v665 = vadd.f32 %v547, %v664
    %v666 = vpop.f32.mrb[0].mxu0
    %v667 = vadd.f32 %v549, %v666
    %v668 = vpop.f32.mrb[0].mxu0
    %v669 = vadd.f32 %v551, %v668
    %v670 = vpop.f32.mrb[0].mxu0
    %v671 = vadd.f32 %v553, %v670
    %672 = vdwg.mxu0
    %v673 = vadd.f32 %v596, %v655
    %v674 = vadd.f32 %v598, %v657
    %v675 = vadd.f32 %v600, %v659
    %v676 = vadd.f32 %v602, %v661
    %v677 = vadd.f32 %v606, %v665
    %v678 = vadd.f32 %v608, %v667
    %v679 = vadd.f32 %v610, %v669
    %v680 = vadd.f32 %v612, %v671
    %vm681 = vcmp.ge.f32.partialorder %v673, 0.0
    %vm682 = vcmp.ge.f32.partialorder %v674, 0.0
    %vm683 = vcmp.ge.f32.partialorder %v675, 0.0
    %vm684 = vcmp.ge.f32.partialorder %v676, 0.0
    %vm685 = vcmp.ge.f32.partialorder %v677, 0.0
    %vm686 = vcmp.ge.f32.partialorder %v678, 0.0
    %vm687 = vcmp.ge.f32.partialorder %v679, 0.0
    %vm688 = vcmp.ge.f32.partialorder %v680, 0.0
    %v689 = vmul.f32 %v673, 0.2
    %v690 = vmul.f32 %v674, 0.2
    %v691 = vmul.f32 %v675, 0.2
    %v692 = vmul.f32 %v676, 0.2
    %v693 = vmul.f32 %v677, 0.2
    %v694 = vmul.f32 %v678, 0.2
    %v695 = vmul.f32 %v679, 0.2
    %v696 = vmul.f32 %v680, 0.2
    %v697 = vsel %vm681, %v673, %v689
    %v698 = vsel %vm682, %v674, %v690
    %v699 = vsel %vm683, %v675, %v691
    %v700 = vsel %vm684, %v676, %v692
    %v701 = vsel %vm685, %v677, %v693
    %v702 = vsel %vm686, %v678, %v694
    %v703 = vsel %vm687, %v679, %v695
    %v704 = vsel %vm688, %v680, %v696
    %s705 = smul.u32 4, 136
    %s706 = smul.u32 %s705, 2
    %s707 = sshll.u32 %s706, 4
    %708 = dma.done %s48, %s707
    %v709 = vld [vmem:[#allocation2 + $0x200] sm:$0xff]
    %v710 = vld [vmem:[#allocation2 + $0x210] sm:$0xff]
    %v711 = vld [vmem:[#allocation2 + $0x220] sm:$0xff]
    %v712 = vld [vmem:[#allocation2 + $0x230] sm:$0xff]
    %v713 = vpack.c.bf16 %v699, %v697
    %v714 = vpack.c.bf16 %v700, %v698
    %v715 = vpack.c.bf16 %v703, %v701
    %v716 = vpack.c.bf16 %v704, %v702
    %vm717 = vcmask 261120
    %v719 = vsel %vm717, %v709, 0
    %v722 = vsel %vm717, %v710, 0
    %v725 = vsel %vm717, %v711, 0
    %v728 = vsel %vm717, %v712, 0
    %730 = vmatprep.subr.bf16.mxu0 %v714
    %731 = vmatpush1.bf16.msra.mxu0 %v713
    %732 = vmatprep.subr.bf16.mxu0 %v716
    %733 = vmatpush1.bf16.msra.mxu0 %v715
    %734 = vmatprep.subr.bf16.mxu0 0
    %735 = vmatpush1.bf16.msra.mxu0 0
    %736 = vmatprep.subr.bf16.mxu0 0
    %737 = vmatpush1.bf16.msra.mxu0 0
    %738 = vmatprep.subr.bf16.mxu0 0
    %739 = vmatpush1.bf16.msra.mxu0 0
    %740 = vmatprep.subr.bf16.mxu0 0
    %741 = vmatpush1.bf16.msra.mxu0 0
    %742 = vmatprep.subr.bf16.mxu0 0
    %743 = vmatpush1.bf16.msra.mxu0 0
    %744 = vmatprep.subr.bf16.mxu0 0
    %745 = vmatpush1.bf16.msra.mxu0 0
    %746 = vmatprep.subr.bf16.mxu0 0
    %747 = vmatpush1.bf16.msra.mxu0 0
    %748 = vmatprep.subr.bf16.mxu0 0
    %749 = vmatpush1.bf16.msra.mxu0 0
    %750 = vmatprep.subr.bf16.mxu0 0
    %751 = vmatpush1.bf16.msra.mxu0 0
    %752 = vmatprep.subr.bf16.mxu0 0
    %753 = vmatpush1.bf16.msra.mxu0 0
    %754 = vmatprep.subr.bf16.mxu0 0
    %755 = vmatpush1.bf16.msra.mxu0 0
    %756 = vmatprep.subr.bf16.mxu0 0
    %757 = vmatpush1.bf16.msra.mxu0 0
    %758 = vmatprep.subr.bf16.mxu0 0
    %759 = vmatpush1.bf16.msra.mxu0 0
    %760 = vmatprep.subr.bf16.mxu0 0
    %761 = vmatpush1.bf16.msra.mxu0 0
    %762 = vmatprep.mubr.bf16.mxu0 0
    %763 = vmatmul.mubr.bf16.gmra.mrb[0].mxu0 %v719
    %v764 = vpop.f32.mrb[0].mxu0
    %v765 = vadd.f32 0.0, %v764
    %v766 = vpop.f32.mrb[0].mxu0
    %v767 = vadd.f32 0.0, %v766
    %v768 = vpop.f32.mrb[0].mxu0
    %v769 = vadd.f32 0.0, %v768
    %v770 = vpop.f32.mrb[0].mxu0
    %v771 = vadd.f32 0.0, %v770
    %772 = vmatprep.mubr.bf16.mxu0 0
    %773 = vmatmul.mubr.bf16.gmra.mrb[0].mxu0 %v722
    %v774 = vpop.f32.mrb[0].mxu0
    %v775 = vadd.f32 0.0, %v774
    %v776 = vpop.f32.mrb[0].mxu0
    %v777 = vadd.f32 0.0, %v776
    %v778 = vpop.f32.mrb[0].mxu0
    %v779 = vadd.f32 0.0, %v778
    %v780 = vpop.f32.mrb[0].mxu0
    %v781 = vadd.f32 0.0, %v780
    %782 = vmatprep.mubr.bf16.mxu0 0
    %783 = vmatmul.mubr.bf16.gmra.mrb[0].mxu0 %v725
    %v784 = vpop.f32.mrb[0].mxu0
    %v785 = vadd.f32 0.0, %v784
    %v786 = vpop.f32.mrb[0].mxu0
    %v787 = vadd.f32 0.0, %v786
    %v788 = vpop.f32.mrb[0].mxu0
    %v789 = vadd.f32 0.0, %v788
    %v790 = vpop.f32.mrb[0].mxu0
    %v791 = vadd.f32 0.0, %v790
    %792 = vmatprep.mubr.bf16.mxu0 0
    %793 = vmatmul.mubr.bf16.gmra.mrb[0].mxu0 %v728
    %v794 = vpop.f32.mrb[0].mxu0
    %v795 = vadd.f32 0.0, %v794
    %v796 = vpop.f32.mrb[0].mxu0
    %v797 = vadd.f32 0.0, %v796
    %v798 = vpop.f32.mrb[0].mxu0
    %v799 = vadd.f32 0.0, %v798
    %v800 = vpop.f32.mrb[0].mxu0
    %v801 = vadd.f32 0.0, %v800
    %802 = vdwg.mxu0
    %v803 = vpack.c.bf16 %v769, %v765
    %v804 = vpack.c.bf16 %v771, %v767
    %v805 = vpack.c.bf16 %v779, %v775
    %v806 = vpack.c.bf16 %v781, %v777
    %v807 = vpack.c.bf16 %v789, %v785
    %v808 = vpack.c.bf16 %v791, %v787
    %v809 = vpack.c.bf16 %v799, %v795
    %v810 = vpack.c.bf16 %v801, %v797
    %v811 = vld [vmem:[#allocation2 + $0x240] sm:$0xff]
    %v812 = vld [vmem:[#allocation2 + $0x248] sm:$0xff]
    %v813 = vld [vmem:[#allocation2 + $0x250] sm:$0xff]
    %v814 = vld [vmem:[#allocation2 + $0x258] sm:$0xff]
    %v815 = vld [vmem:[#allocation2 + $0x260] sm:$0xff]
    %v816 = vld [vmem:[#allocation2 + $0x268] sm:$0xff]
    %v817 = vld [vmem:[#allocation2 + $0x270] sm:$0xff]
    %v818 = vld [vmem:[#allocation2 + $0x278] sm:$0xff]
    %v819 = vld [vmem:[#allocation2 + $0x280] sm:$0xff]
    %v820 = vld [vmem:[#allocation2 + $0x288] sm:$0xff]
    %v821 = vld [vmem:[#allocation2 + $0x290] sm:$0xff]
    %v822 = vld [vmem:[#allocation2 + $0x298] sm:$0xff]
    %v823 = vld [vmem:[#allocation2 + $0x2a0] sm:$0xff]
    %v824 = vld [vmem:[#allocation2 + $0x2a8] sm:$0xff]
    %v825 = vld [vmem:[#allocation2 + $0x2b0] sm:$0xff]
    %v826 = vld [vmem:[#allocation2 + $0x2b8] sm:$0xff]
    %v827 = vld [vmem:[#allocation2 + $0x2c0] sm:$0xff]
    %v828 = vld [vmem:[#allocation2 + $0x2c8] sm:$0xff]
    %v829 = vld [vmem:[#allocation2 + $0x2d0] sm:$0xff]
    %v830 = vld [vmem:[#allocation2 + $0x2d8] sm:$0xff]
    %v831 = vld [vmem:[#allocation2 + $0x2e0] sm:$0xff]
    %v832 = vld [vmem:[#allocation2 + $0x2e8] sm:$0xff]
    %v833 = vld [vmem:[#allocation2 + $0x2f0] sm:$0xff]
    %v834 = vld [vmem:[#allocation2 + $0x2f8] sm:$0xff]
    %v835 = vld [vmem:[#allocation2 + $0x300] sm:$0xff]
    %v836 = vld [vmem:[#allocation2 + $0x308] sm:$0xff]
    %v837 = vld [vmem:[#allocation2 + $0x310] sm:$0xff]
    %v838 = vld [vmem:[#allocation2 + $0x318] sm:$0xff]
    %v839 = vld [vmem:[#allocation2 + $0x320] sm:$0xff]
    %v840 = vld [vmem:[#allocation2 + $0x328] sm:$0xff]
    %v841 = vld [vmem:[#allocation2 + $0x330] sm:$0xff]
    %v842 = vld [vmem:[#allocation2 + $0x338] sm:$0xff]
    %v843 = vld [vmem:[#allocation2 + $0x340] sm:$0xff]
    %v844 = vld [vmem:[#allocation2 + $0x348] sm:$0xff]
    %v845 = vld [vmem:[#allocation2 + $0x350] sm:$0xff]
    %v846 = vld [vmem:[#allocation2 + $0x358] sm:$0xff]
    %v847 = vld [vmem:[#allocation2 + $0x360] sm:$0xff]
    %v848 = vld [vmem:[#allocation2 + $0x368] sm:$0xff]
    %v849 = vld [vmem:[#allocation2 + $0x370] sm:$0xff]
    %v850 = vld [vmem:[#allocation2 + $0x378] sm:$0xff]
    %v851 = vld [vmem:[#allocation2 + $0x380] sm:$0xff]
    %v852 = vld [vmem:[#allocation2 + $0x388] sm:$0xff]
    %v853 = vld [vmem:[#allocation2 + $0x390] sm:$0xff]
    %v854 = vld [vmem:[#allocation2 + $0x398] sm:$0xff]
    %v855 = vld [vmem:[#allocation2 + $0x3a0] sm:$0xff]
    %v856 = vld [vmem:[#allocation2 + $0x3a8] sm:$0xff]
    %v857 = vld [vmem:[#allocation2 + $0x3b0] sm:$0xff]
    %v858 = vld [vmem:[#allocation2 + $0x3b8] sm:$0xff]
    %v859 = vld [vmem:[#allocation2 + $0x3c0] sm:$0xff]
    %v860 = vld [vmem:[#allocation2 + $0x3c8] sm:$0xff]
    %v861 = vld [vmem:[#allocation2 + $0x3d0] sm:$0xff]
    %v862 = vld [vmem:[#allocation2 + $0x3d8] sm:$0xff]
    %v863 = vld [vmem:[#allocation2 + $0x3e0] sm:$0xff]
    %v864 = vld [vmem:[#allocation2 + $0x3e8] sm:$0xff]
    %v865 = vld [vmem:[#allocation2 + $0x3f0] sm:$0xff]
    %v866 = vld [vmem:[#allocation2 + $0x3f8] sm:$0xff]
    %v867 = vld [vmem:[#allocation2 + $0x400] sm:$0xff]
    %v868 = vld [vmem:[#allocation2 + $0x408] sm:$0xff]
    %v869 = vld [vmem:[#allocation2 + $0x410] sm:$0xff]
    %v870 = vld [vmem:[#allocation2 + $0x418] sm:$0xff]
    %v871 = vld [vmem:[#allocation2 + $0x420] sm:$0xff]
    %v872 = vld [vmem:[#allocation2 + $0x428] sm:$0xff]
    %v873 = vld [vmem:[#allocation2 + $0x430] sm:$0xff]
    %v874 = vld [vmem:[#allocation2 + $0x438] sm:$0xff]
    %875 = vmatprep.subr.bf16.mxu0 %v844
    %876 = vmatpush1.bf16.msra.mxu0 %v843
    %877 = vmatprep.subr.bf16.mxu0 %v846
    %878 = vmatpush1.bf16.msra.mxu0 %v845
    %879 = vmatprep.subr.bf16.mxu0 %v848
    %880 = vmatpush1.bf16.msra.mxu0 %v847
    %881 = vmatprep.subr.bf16.mxu0 %v850
    %882 = vmatpush1.bf16.msra.mxu0 %v849
    %883 = vmatprep.subr.bf16.mxu0 %v852
    %884 = vmatpush1.bf16.msra.mxu0 %v851
    %885 = vmatprep.subr.bf16.mxu0 %v854
    %886 = vmatpush1.bf16.msra.mxu0 %v853
    %887 = vmatprep.subr.bf16.mxu0 %v856
    %888 = vmatpush1.bf16.msra.mxu0 %v855
    %889 = vmatprep.subr.bf16.mxu0 %v858
    %890 = vmatpush1.bf16.msra.mxu0 %v857
    %891 = vmatprep.subr.bf16.mxu0 %v860
    %892 = vmatpush1.bf16.msra.mxu0 %v859
    %893 = vmatprep.subr.bf16.mxu0 %v862
    %894 = vmatpush1.bf16.msra.mxu0 %v861
    %895 = vmatprep.subr.bf16.mxu0 %v864
    %896 = vmatpush1.bf16.msra.mxu0 %v863
    %897 = vmatprep.subr.bf16.mxu0 %v866
    %898 = vmatpush1.bf16.msra.mxu0 %v865
    %899 = vmatprep.subr.bf16.mxu0 %v868
    %900 = vmatpush1.bf16.msra.mxu0 %v867
    %901 = vmatprep.subr.bf16.mxu0 %v870
    %902 = vmatpush1.bf16.msra.mxu0 %v869
    %903 = vmatprep.subr.bf16.mxu0 %v872
    %904 = vmatpush1.bf16.msra.mxu0 %v871
    %905 = vmatprep.subr.bf16.mxu0 %v874
    %906 = vmatpush1.bf16.msra.mxu0 %v873
    %907 = vmatprep.mubr.bf16.mxu0 %v806
    %908 = vmatmul.mubr.bf16.gmra.mrb[0].mxu0 %v805
    %v909 = vpop.f32.mrb[0].mxu0
    %v910 = vadd.f32 0.0, %v909
    %v911 = vpop.f32.mrb[0].mxu0
    %v912 = vadd.f32 0.0, %v911
    %v913 = vpop.f32.mrb[0].mxu0
    %v914 = vadd.f32 0.0, %v913
    %v915 = vpop.f32.mrb[0].mxu0
    %v916 = vadd.f32 0.0, %v915
    %917 = vdwg.mxu0
    %v918 = vld [vmem:[#allocation2 + $0x440] sm:$0xff]
    %v919 = vld [vmem:[#allocation2 + $0x448] sm:$0xff]
    %v920 = vld [vmem:[#allocation2 + $0x450] sm:$0xff]
    %v921 = vld [vmem:[#allocation2 + $0x458] sm:$0xff]
    %v922 = vld [vmem:[#allocation2 + $0x460] sm:$0xff]
    %v923 = vld [vmem:[#allocation2 + $0x468] sm:$0xff]
    %v924 = vld [vmem:[#allocation2 + $0x470] sm:$0xff]
    %v925 = vld [vmem:[#allocation2 + $0x478] sm:$0xff]
    %v926 = vld [vmem:[#allocation2 + $0x480] sm:$0xff]
    %v927 = vld [vmem:[#allocation2 + $0x488] sm:$0xff]
    %v928 = vld [vmem:[#allocation2 + $0x490] sm:$0xff]
    %v929 = vld [vmem:[#allocation2 + $0x498] sm:$0xff]
    %v930 = vld [vmem:[#allocation2 + $0x4a0] sm:$0xff]
    %v931 = vld [vmem:[#allocation2 + $0x4a8] sm:$0xff]
    %v932 = vld [vmem:[#allocation2 + $0x4b0] sm:$0xff]
    %v933 = vld [vmem:[#allocation2 + $0x4b8] sm:$0xff]
    %v934 = vld [vmem:[#allocation2 + $0x4c0] sm:$0xff]
    %v935 = vld [vmem:[#allocation2 + $0x4c8] sm:$0xff]
    %v936 = vld [vmem:[#allocation2 + $0x4d0] sm:$0xff]
    %v937 = vld [vmem:[#allocation2 + $0x4d8] sm:$0xff]
    %v938 = vld [vmem:[#allocation2 + $0x4e0] sm:$0xff]
    %v939 = vld [vmem:[#allocation2 + $0x4e8] sm:$0xff]
    %v940 = vld [vmem:[#allocation2 + $0x4f0] sm:$0xff]
    %v941 = vld [vmem:[#allocation2 + $0x4f8] sm:$0xff]
    %v942 = vld [vmem:[#allocation2 + $0x500] sm:$0xff]
    %v943 = vld [vmem:[#allocation2 + $0x508] sm:$0xff]
    %v944 = vld [vmem:[#allocation2 + $0x510] sm:$0xff]
    %v945 = vld [vmem:[#allocation2 + $0x518] sm:$0xff]
    %v946 = vld [vmem:[#allocation2 + $0x520] sm:$0xff]
    %v947 = vld [vmem:[#allocation2 + $0x528] sm:$0xff]
    %v948 = vld [vmem:[#allocation2 + $0x530] sm:$0xff]
    %v949 = vld [vmem:[#allocation2 + $0x538] sm:$0xff]
    %v950 = vld [vmem:[#allocation2 + $0x540] sm:$0xff]
    %v951 = vld [vmem:[#allocation2 + $0x548] sm:$0xff]
    %v952 = vld [vmem:[#allocation2 + $0x550] sm:$0xff]
    %v953 = vld [vmem:[#allocation2 + $0x558] sm:$0xff]
    %v954 = vld [vmem:[#allocation2 + $0x560] sm:$0xff]
    %v955 = vld [vmem:[#allocation2 + $0x568] sm:$0xff]
    %v956 = vld [vmem:[#allocation2 + $0x570] sm:$0xff]
    %v957 = vld [vmem:[#allocation2 + $0x578] sm:$0xff]
    %v958 = vld [vmem:[#allocation2 + $0x580] sm:$0xff]
    %v959 = vld [vmem:[#allocation2 + $0x588] sm:$0xff]
    %v960 = vld [vmem:[#allocation2 + $0x590] sm:$0xff]
    %v961 = vld [vmem:[#allocation2 + $0x598] sm:$0xff]
    %v962 = vld [vmem:[#allocation2 + $0x5a0] sm:$0xff]
    %v963 = vld [vmem:[#allocation2 + $0x5a8] sm:$0xff]
    %v964 = vld [vmem:[#allocation2 + $0x5b0] sm:$0xff]
    %v965 = vld [vmem:[#allocation2 + $0x5b8] sm:$0xff]
    %v966 = vld [vmem:[#allocation2 + $0x5c0] sm:$0xff]
    %v967 = vld [vmem:[#allocation2 + $0x5c8] sm:$0xff]
    %v968 = vld [vmem:[#allocation2 + $0x5d0] sm:$0xff]
    %v969 = vld [vmem:[#allocation2 + $0x5d8] sm:$0xff]
    %v970 = vld [vmem:[#allocation2 + $0x5e0] sm:$0xff]
    %v971 = vld [vmem:[#allocation2 + $0x5e8] sm:$0xff]
    %v972 = vld [vmem:[#allocation2 + $0x5f0] sm:$0xff]
    %v973 = vld [vmem:[#allocation2 + $0x5f8] sm:$0xff]
    %v974 = vld [vmem:[#allocation2 + $0x600] sm:$0xff]
    %v975 = vld [vmem:[#allocation2 + $0x608] sm:$0xff]
    %v976 = vld [vmem:[#allocation2 + $0x610] sm:$0xff]
    %v977 = vld [vmem:[#allocation2 + $0x618] sm:$0xff]
    %v978 = vld [vmem:[#allocation2 + $0x620] sm:$0xff]
    %v979 = vld [vmem:[#allocation2 + $0x628] sm:$0xff]
    %v980 = vld [vmem:[#allocation2 + $0x630] sm:$0xff]
    %v981 = vld [vmem:[#allocation2 + $0x638] sm:$0xff]
    %982 = vmatprep.subr.bf16.mxu0 %v951
    %983 = vmatpush1.bf16.msra.mxu0 %v950
    %984 = vmatprep.subr.bf16.mxu0 %v953
    %985 = vmatpush1.bf16.msra.mxu0 %v952
    %986 = vmatprep.subr.bf16.mxu0 %v955
    %987 = vmatpush1.bf16.msra.mxu0 %v954
    %988 = vmatprep.subr.bf16.mxu0 %v957
    %989 = vmatpush1.bf16.msra.mxu0 %v956
    %990 = vmatprep.subr.bf16.mxu0 %v959
    %991 = vmatpush1.bf16.msra.mxu0 %v958
    %992 = vmatprep.subr.bf16.mxu0 %v961
    %993 = vmatpush1.bf16.msra.mxu0 %v960
    %994 = vmatprep.subr.bf16.mxu0 %v963
    %995 = vmatpush1.bf16.msra.mxu0 %v962
    %996 = vmatprep.subr.bf16.mxu0 %v965
    %997 = vmatpush1.bf16.msra.mxu0 %v964
    %998 = vmatprep.subr.bf16.mxu0 %v967
    %999 = vmatpush1.bf16.msra.mxu0 %v966
    %1000 = vmatprep.subr.bf16.mxu0 %v969
    %1001 = vmatpush1.bf16.msra.mxu0 %v968
    %1002 = vmatprep.subr.bf16.mxu0 %v971
    %1003 = vmatpush1.bf16.msra.mxu0 %v970
    %1004 = vmatprep.subr.bf16.mxu0 %v973
    %1005 = vmatpush1.bf16.msra.mxu0 %v972
    %1006 = vmatprep.subr.bf16.mxu0 %v975
    %1007 = vmatpush1.bf16.msra.mxu0 %v974
    %1008 = vmatprep.subr.bf16.mxu0 %v977
    %1009 = vmatpush1.bf16.msra.mxu0 %v976
    %1010 = vmatprep.subr.bf16.mxu0 %v979
    %1011 = vmatpush1.bf16.msra.mxu0 %v978
    %1012 = vmatprep.subr.bf16.mxu0 %v981
    %1013 = vmatpush1.bf16.msra.mxu0 %v980
    %1014 = vmatprep.mubr.bf16.mxu0 %v810
    %1015 = vmatmul.mubr.bf16.gmra.mrb[0].mxu0 %v809
    %v1016 = vpop.f32.mrb[0].mxu0
    %v1017 = vadd.f32 0.0, %v1016
    %v1018 = vpop.f32.mrb[0].mxu0
    %v1019 = vadd.f32 0.0, %v1018
    %v1020 = vpop.f32.mrb[0].mxu0
    %v1021 = vadd.f32 0.0, %v1020
    %v1022 = vpop.f32.mrb[0].mxu0
    %v1023 = vadd.f32 0.0, %v1022
    %1024 = vdwg.mxu0
    %1025 = vmatprep.subr.bf16.mxu0 %v812
    %1026 = vmatpush1.bf16.msra.mxu0 %v811
    %1027 = vmatprep.subr.bf16.mxu0 %v814
    %1028 = vmatpush1.bf16.msra.mxu0 %v813
    %1029 = vmatprep.subr.bf16.mxu0 %v816
    %1030 = vmatpush1.bf16.msra.mxu0 %v815
    %1031 = vmatprep.subr.bf16.mxu0 %v818
    %1032 = vmatpush1.bf16.msra.mxu0 %v817
    %1033 = vmatprep.subr.bf16.mxu0 %v820
    %1034 = vmatpush1.bf16.msra.mxu0 %v819
    %1035 = vmatprep.subr.bf16.mxu0 %v822
    %1036 = vmatpush1.bf16.msra.mxu0 %v821
    %1037 = vmatprep.subr.bf16.mxu0 %v824
    %1038 = vmatpush1.bf16.msra.mxu0 %v823
    %1039 = vmatprep.subr.bf16.mxu0 %v826
    %1040 = vmatpush1.bf16.msra.mxu0 %v825
    %1041 = vmatprep.subr.bf16.mxu0 %v828
    %1042 = vmatpush1.bf16.msra.mxu0 %v827
    %1043 = vmatprep.subr.bf16.mxu0 %v830
    %1044 = vmatpush1.bf16.msra.mxu0 %v829
    %1045 = vmatprep.subr.bf16.mxu0 %v832
    %1046 = vmatpush1.bf16.msra.mxu0 %v831
    %1047 = vmatprep.subr.bf16.mxu0 %v834
    %1048 = vmatpush1.bf16.msra.mxu0 %v833
    %1049 = vmatprep.subr.bf16.mxu0 %v836
    %1050 = vmatpush1.bf16.msra.mxu0 %v835
    %1051 = vmatprep.subr.bf16.mxu0 %v838
    %1052 = vmatpush1.bf16.msra.mxu0 %v837
    %1053 = vmatprep.subr.bf16.mxu0 %v840
    %1054 = vmatpush1.bf16.msra.mxu0 %v839
    %1055 = vmatprep.subr.bf16.mxu0 %v842
    %1056 = vmatpush1.bf16.msra.mxu0 %v841
    %1057 = vmatprep.mubr.bf16.mxu0 %v804
    %1058 = vmatmul.mubr.bf16.gmra.mrb[0].mxu0 %v803
    %v1059 = vpop.f32.mrb[0].mxu0
    %v1060 = vadd.f32 %v910, %v1059
    %v1061 = vpop.f32.mrb[0].mxu0
    %v1062 = vadd.f32 %v912, %v1061
    %v1063 = vpop.f32.mrb[0].mxu0
    %v1064 = vadd.f32 %v914, %v1063
    %v1065 = vpop.f32.mrb[0].mxu0
    %v1066 = vadd.f32 %v916, %v1065
    %1067 = vdwg.mxu0
    %1068 = vmatprep.subr.bf16.mxu0 %v919
    %1069 = vmatpush1.bf16.msra.mxu0 %v918
    %1070 = vmatprep.subr.bf16.mxu0 %v921
    %1071 = vmatpush1.bf16.msra.mxu0 %v920
    %1072 = vmatprep.subr.bf16.mxu0 %v923
    %1073 = vmatpush1.bf16.msra.mxu0 %v922
    %1074 = vmatprep.subr.bf16.mxu0 %v925
    %1075 = vmatpush1.bf16.msra.mxu0 %v924
    %1076 = vmatprep.subr.bf16.mxu0 %v927
    %1077 = vmatpush1.bf16.msra.mxu0 %v926
    %1078 = vmatprep.subr.bf16.mxu0 %v929
    %1079 = vmatpush1.bf16.msra.mxu0 %v928
    %1080 = vmatprep.subr.bf16.mxu0 %v931
    %1081 = vmatpush1.bf16.msra.mxu0 %v930
    %1082 = vmatprep.subr.bf16.mxu0 %v933
    %1083 = vmatpush1.bf16.msra.mxu0 %v932
    %1084 = vmatprep.subr.bf16.mxu0 %v935
    %1085 = vmatpush1.bf16.msra.mxu0 %v934
    %1086 = vmatprep.subr.bf16.mxu0 %v937
    %1087 = vmatpush1.bf16.msra.mxu0 %v936
    %1088 = vmatprep.subr.bf16.mxu0 %v939
    %1089 = vmatpush1.bf16.msra.mxu0 %v938
    %1090 = vmatprep.subr.bf16.mxu0 %v941
    %1091 = vmatpush1.bf16.msra.mxu0 %v940
    %1092 = vmatprep.subr.bf16.mxu0 %v943
    %1093 = vmatpush1.bf16.msra.mxu0 %v942
    %1094 = vmatprep.subr.bf16.mxu0 %v945
    %1095 = vmatpush1.bf16.msra.mxu0 %v944
    %1096 = vmatprep.subr.bf16.mxu0 %v947
    %1097 = vmatpush1.bf16.msra.mxu0 %v946
    %1098 = vmatprep.subr.bf16.mxu0 %v949
    %1099 = vmatpush1.bf16.msra.mxu0 %v948
    %1100 = vmatprep.mubr.bf16.mxu0 %v808
    %1101 = vmatmul.mubr.bf16.gmra.mrb[0].mxu0 %v807
    %v1102 = vpop.f32.mrb[0].mxu0
    %v1103 = vadd.f32 %v1017, %v1102
    %v1104 = vpop.f32.mrb[0].mxu0
    %v1105 = vadd.f32 %v1019, %v1104
    %v1106 = vpop.f32.mrb[0].mxu0
    %v1107 = vadd.f32 %v1021, %v1106
    %v1108 = vpop.f32.mrb[0].mxu0
    %v1109 = vadd.f32 %v1023, %v1108
    %1110 = vdwg.mxu0
    %v1111 = vadd.f32 %v1060, %v1103
    %v1112 = vadd.f32 %v1062, %v1105
    %v1113 = vadd.f32 %v1064, %v1107
    %v1114 = vadd.f32 %v1066, %v1109
    %s1115 = smul.u32 8, 37
    %s1116 = smul.u32 %s1115, 2
    %s1117 = sshll.u32 %s1116, 4
    %1118 = dma.done %s83, %s1117
    %v1119 = vld [vmem:[#allocation3] sm:$0xff]
    %v1120 = vld [vmem:[#allocation3 + $0x10] sm:$0xff]
    %v1121 = vld [vmem:[#allocation3 + $0x20] sm:$0xff]
    %v1122 = vld [vmem:[#allocation3 + $0x30] sm:$0xff]
    %v1123 = vld [vmem:[#allocation3 + $0x40] sm:$0xff]
    %v1124 = vld [vmem:[#allocation3 + $0x50] sm:$0xff]
    %v1125 = vld [vmem:[#allocation3 + $0x60] sm:$0xff]
    %v1126 = vld [vmem:[#allocation3 + $0x70] sm:$0xff]
    %v1127 = vld [vmem:[#allocation3 + $0x80] sm:$0xff]
    %v1128 = vld [vmem:[#allocation3 + $0x90] sm:$0xff]
    %v1129 = vld [vmem:[#allocation3 + $0xa0] sm:$0xff]
    %v1130 = vld [vmem:[#allocation3 + $0xb0] sm:$0xff]
    %v1131 = vld [vmem:[#allocation3 + $0xc0] sm:$0xff]
    %v1132 = vld [vmem:[#allocation3 + $0xd0] sm:$0xff]
    %v1133 = vld [vmem:[#allocation3 + $0xe0] sm:$0xff]
    %v1134 = vld [vmem:[#allocation3 + $0xf0] sm:$0xff]
    %v1135 = vld [vmem:[#allocation3 + $0x100] sm:$0xff]
    %v1136 = vld [vmem:[#allocation3 + $0x110] sm:$0xff]
    %v1137 = vld [vmem:[#allocation3 + $0x120] sm:$0xff]
    %v1138 = vld [vmem:[#allocation3 + $0x130] sm:$0xff]
    %v1139 = vld [vmem:[#allocation3 + $0x140] sm:$0xff]
    %v1140 = vld [vmem:[#allocation3 + $0x150] sm:$0xff]
    %v1141 = vld [vmem:[#allocation3 + $0x160] sm:$0xff]
    %v1142 = vld [vmem:[#allocation3 + $0x170] sm:$0xff]
    %v1143 = vld [vmem:[#allocation3 + $0x180] sm:$0xff]
    %v1144 = vld [vmem:[#allocation3 + $0x190] sm:$0xff]
    %v1145 = vld [vmem:[#allocation3 + $0x1a0] sm:$0xff]
    %v1146 = vld [vmem:[#allocation3 + $0x1b0] sm:$0xff]
    %v1147 = vld [vmem:[#allocation3 + $0x1c0] sm:$0xff]
    %v1148 = vld [vmem:[#allocation3 + $0x1d0] sm:$0xff]
    %v1149 = vld [vmem:[#allocation3 + $0x1e0] sm:$0xff]
    %v1150 = vld [vmem:[#allocation3 + $0x1f0] sm:$0xff]
    %v1151 = vld [vmem:[#allocation3 + $0x200] sm:$0xff]
    %v1152 = vld [vmem:[#allocation3 + $0x208] sm:$0xff]
    %v1153 = vld [vmem:[#allocation3 + $0x210] sm:$0xff]
    %v1154 = vld [vmem:[#allocation3 + $0x218] sm:$0xff]
    %v1155 = vld [vmem:[#allocation3 + $0x220] sm:$0xff]
    %v1156 = vld [vmem:[#allocation3 + $0x228] sm:$0xff]
    %v1157 = vld [vmem:[#allocation3 + $0x230] sm:$0xff]
    %v1158 = vld [vmem:[#allocation3 + $0x238] sm:$0xff]
    %v1159 = vld [vmem:[#allocation3 + $0x240] sm:$0x3]
    %v1160 = vadd.f32 %v1111, %v1113
    %v1161 = vrot.slane %v1160, 4
    %v1162 = vadd.f32 %v1160, %v1161
    %v1163 = vrot.slane %v1162, 2
    %v1164 = vadd.f32 %v1162, %v1163
    %v1165 = vrot.slane %v1164, 1
    %v1166 = vadd.f32 %v1164, %v1165
    %v1167 = vadd.f32 %v1112, %v1114
    %v1168 = vrot.slane %v1167, 4
    %v1169 = vadd.f32 %v1167, %v1168
    %v1170 = vrot.slane %v1169, 2
    %v1171 = vadd.f32 %v1169, %v1170
    %v1172 = vrot.slane %v1171, 1
    %v1173 = vadd.f32 %v1171, %v1172
    %v1174 = vmul.f32 %v1111, %v1111
    %v1175 = vmul.f32 %v1112, %v1112
    %v1176 = vmul.f32 %v1113, %v1113
    %v1177 = vmul.f32 %v1114, %v1114
    %v1178 = vadd.f32 %v1174, %v1176
    %v1179 = vrot.slane %v1178, 4
    %v1180 = vadd.f32 %v1178, %v1179
    %v1181 = vrot.slane %v1180, 2
    %v1182 = vadd.f32 %v1180, %v1181
    %v1183 = vrot.slane %v1182, 1
    %v1184 = vadd.f32 %v1182, %v1183
    %v1185 = vadd.f32 %v1175, %v1177
    %v1186 = vrot.slane %v1185, 4
    %v1187 = vadd.f32 %v1185, %v1186
    %v1188 = vrot.slane %v1187, 2
    %v1189 = vadd.f32 %v1187, %v1188
    %v1190 = vrot.slane %v1189, 1
    %v1191 = vadd.f32 %v1189, %v1190
    %vm1192 = vcmask 1040384
    %v1193 = vsel %vm1192, %v1166, %v1184
    %v1194 = vsel %vm1192, %v1173, %v1191
    %1195 = vmatprep.subr.mxu0 0.0
    %v1196 = vand.u32 %v1119, 4294901760
    %1197 = vmatpush1.msra.mxu0 %v1196
    %1198 = vmatprep.subr.mxu0 0.0
    %v1199 = vand.u32 %v1120, 4294901760
    %1200 = vmatpush1.msra.mxu0 %v1199
    %1201 = vmatprep.subr.mxu0 0.0
    %v1202 = vand.u32 %v1121, 4294901760
    %1203 = vmatpush1.msra.mxu0 %v1202
    %1204 = vmatprep.subr.mxu0 0.0
    %v1205 = vand.u32 %v1122, 4294901760
    %1206 = vmatpush1.msra.mxu0 %v1205
    %1207 = vmatprep.subr.mxu0 0.0
    %v1208 = vand.u32 %v1123, 4294901760
    %1209 = vmatpush1.msra.mxu0 %v1208
    %1210 = vmatprep.subr.mxu0 0.0
    %v1211 = vand.u32 %v1124, 4294901760
    %1212 = vmatpush1.msra.mxu0 %v1211
    %1213 = vmatprep.subr.mxu0 0.0
    %v1214 = vand.u32 %v1125, 4294901760
    %1215 = vmatpush1.msra.mxu0 %v1214
    %1216 = vmatprep.subr.mxu0 0.0
    %v1217 = vand.u32 %v1126, 4294901760
    %1218 = vmatpush1.msra.mxu0 %v1217
    %1219 = vmatprep.subr.mxu0 0.0
    %v1220 = vand.u32 %v1127, 4294901760
    %1221 = vmatpush1.msra.mxu0 %v1220
    %1222 = vmatprep.subr.mxu0 0.0
    %v1223 = vand.u32 %v1128, 4294901760
    %1224 = vmatpush1.msra.mxu0 %v1223
    %1225 = vmatprep.subr.mxu0 0.0
    %v1226 = vand.u32 %v1129, 4294901760
    %1227 = vmatpush1.msra.mxu0 %v1226
    %1228 = vmatprep.subr.mxu0 0.0
    %v1229 = vand.u32 %v1130, 4294901760
    %1230 = vmatpush1.msra.mxu0 %v1229
    %1231 = vmatprep.subr.mxu0 0.0
    %v1232 = vand.u32 %v1131, 4294901760
    %1233 = vmatpush1.msra.mxu0 %v1232
    %1234 = vmatprep.subr.mxu0 0.0
    %v1235 = vand.u32 %v1132, 4294901760
    %1236 = vmatpush1.msra.mxu0 %v1235
    %1237 = vmatprep.subr.mxu0 0.0
    %v1238 = vand.u32 %v1133, 4294901760
    %1239 = vmatpush1.msra.mxu0 %v1238
    %1240 = vmatprep.subr.mxu0 0.0
    %v1241 = vand.u32 %v1134, 4294901760
    %1242 = vmatpush1.msra.mxu0 %v1241
    %1243 = vmatprep.subr.mxu0 0.0
    %v1244 = vand.u32 %v1135, 4294901760
    %1245 = vmatpush1.msra.mxu0 %v1244
    %1246 = vmatprep.subr.mxu0 0.0
    %v1247 = vand.u32 %v1136, 4294901760
    %1248 = vmatpush1.msra.mxu0 %v1247
    %1249 = vmatprep.subr.mxu0 0.0
    %v1250 = vand.u32 %v1137, 4294901760
    %1251 = vmatpush1.msra.mxu0 %v1250
    %1252 = vmatprep.subr.mxu0 0.0
    %v1253 = vand.u32 %v1138, 4294901760
    %1254 = vmatpush1.msra.mxu0 %v1253
    %1255 = vmatprep.subr.mxu0 0.0
    %v1256 = vand.u32 %v1139, 4294901760
    %1257 = vmatpush1.msra.mxu0 %v1256
    %1258 = vmatprep.subr.mxu0 0.0
    %v1259 = vand.u32 %v1140, 4294901760
    %1260 = vmatpush1.msra.mxu0 %v1259
    %1261 = vmatprep.subr.mxu0 0.0
    %v1262 = vand.u32 %v1141, 4294901760
    %1263 = vmatpush1.msra.mxu0 %v1262
    %1264 = vmatprep.subr.mxu0 0.0
    %v1265 = vand.u32 %v1142, 4294901760
    %1266 = vmatpush1.msra.mxu0 %v1265
    %1267 = vmatprep.subr.mxu0 0.0
    %v1268 = vand.u32 %v1143, 4294901760
    %1269 = vmatpush1.msra.mxu0 %v1268
    %1270 = vmatprep.subr.mxu0 0.0
    %v1271 = vand.u32 %v1144, 4294901760
    %1272 = vmatpush1.msra.mxu0 %v1271
    %1273 = vmatprep.subr.mxu0 0.0
    %v1274 = vand.u32 %v1145, 4294901760
    %1275 = vmatpush1.msra.mxu0 %v1274
    %1276 = vmatprep.subr.mxu0 0.0
    %v1277 = vand.u32 %v1146, 4294901760
    %1278 = vmatpush1.msra.mxu0 %v1277
    %1279 = vmatprep.subr.mxu0 0.0
    %v1280 = vand.u32 %v1147, 4294901760
    %1281 = vmatpush1.msra.mxu0 %v1280
    %1282 = vmatprep.subr.mxu0 0.0
    %v1283 = vand.u32 %v1148, 4294901760
    %1284 = vmatpush1.msra.mxu0 %v1283
    %1285 = vmatprep.subr.mxu0 0.0
    %v1286 = vand.u32 %v1149, 4294901760
    %1287 = vmatpush1.msra.mxu0 %v1286
    %1288 = vmatprep.subr.mxu0 0.0
    %v1289 = vand.u32 %v1150, 4294901760
    %1290 = vmatpush1.msra.mxu0 %v1289
    %v1291 = vand.u32 %v1194, 4294901760
    %v1292 = vsub.f32 %v1194, %v1291
    %v1293 = vand.u32 %v1292, 4294901760
    %v1294 = vsub.f32 %v1292, %v1293
    %v1295 = vand.u32 %v1294, 4294901760
    %1296 = vmatprep.mubr.f32.mxu0 %v1295
    %v1297 = vand.u32 %v1193, 4294901760
    %v1298 = vsub.f32 %v1193, %v1297
    %v1299 = vand.u32 %v1298, 4294901760
    %v1300 = vsub.f32 %v1298, %v1299
    %v1301 = vand.u32 %v1300, 4294901760
    %1302 = vmatmul.mubr.f32.gmra.mrb[0].mxu0 %v1301
    %v1303 = vpop.f32.mrb[0].mxu0
    %v1304 = vadd.f32 0.0, %v1303
    %v1305 = vpop.f32.mrb[0].mxu0
    %1306 = vdwg.mxu0
    %1307 = vmatprep.subr.mxu0 0.0
    %v1308 = vand.u32 %v1119, 4294901760
    %v1309 = vsub.f32 %v1119, %v1308
    %v1310 = vand.u32 %v1309, 4294901760
    %v1311 = vsub.f32 %v1309, %v1310
    %v1312 = vand.u32 %v1311, 4294901760
    %1313 = vmatpush1.msra.mxu0 %v1312
    %1314 = vmatprep.subr.mxu0 0.0
    %v1315 = vand.u32 %v1120, 4294901760
    %v1316 = vsub.f32 %v1120, %v1315
    %v1317 = vand.u32 %v1316, 4294901760
    %v1318 = vsub.f32 %v1316, %v1317
    %v1319 = vand.u32 %v1318, 4294901760
    %1320 = vmatpush1.msra.mxu0 %v1319
    %1321 = vmatprep.subr.mxu0 0.0
    %v1322 = vand.u32 %v1121, 4294901760
    %v1323 = vsub.f32 %v1121, %v1322
    %v1324 = vand.u32 %v1323, 4294901760
    %v1325 = vsub.f32 %v1323, %v1324
    %v1326 = vand.u32 %v1325, 4294901760
    %1327 = vmatpush1.msra.mxu0 %v1326
    %1328 = vmatprep.subr.mxu0 0.0
    %v1329 = vand.u32 %v1122, 4294901760
    %v1330 = vsub.f32 %v1122, %v1329
    %v1331 = vand.u32 %v1330, 4294901760
    %v1332 = vsub.f32 %v1330, %v1331
    %v1333 = vand.u32 %v1332, 4294901760
    %1334 = vmatpush1.msra.mxu0 %v1333
    %1335 = vmatprep.subr.mxu0 0.0
    %v1336 = vand.u32 %v1123, 4294901760
    %v1337 = vsub.f32 %v1123, %v1336
    %v1338 = vand.u32 %v1337, 4294901760
    %v1339 = vsub.f32 %v1337, %v1338
    %v1340 = vand.u32 %v1339, 4294901760
    %1341 = vmatpush1.msra.mxu0 %v1340
    %1342 = vmatprep.subr.mxu0 0.0
    %v1343 = vand.u32 %v1124, 4294901760
    %v1344 = vsub.f32 %v1124, %v1343
    %v1345 = vand.u32 %v1344, 4294901760
    %v1346 = vsub.f32 %v1344, %v1345
    %v1347 = vand.u32 %v1346, 4294901760
    %1348 = vmatpush1.msra.mxu0 %v1347
    %1349 = vmatprep.subr.mxu0 0.0
    %v1350 = vand.u32 %v1125, 4294901760
    %v1351 = vsub.f32 %v1125, %v1350
    %v1352 = vand.u32 %v1351, 4294901760
    %v1353 = vsub.f32 %v1351, %v1352
    %v1354 = vand.u32 %v1353, 4294901760
    %1355 = vmatpush1.msra.mxu0 %v1354
    %1356 = vmatprep.subr.mxu0 0.0
    %v1357 = vand.u32 %v1126, 4294901760
    %v1358 = vsub.f32 %v1126, %v1357
    %v1359 = vand.u32 %v1358, 4294901760
    %v1360 = vsub.f32 %v1358, %v1359
    %v1361 = vand.u32 %v1360, 4294901760
    %1362 = vmatpush1.msra.mxu0 %v1361
    %1363 = vmatprep.subr.mxu0 0.0
    %v1364 = vand.u32 %v1127, 4294901760
    %v1365 = vsub.f32 %v1127, %v1364
    %v1366 = vand.u32 %v1365, 4294901760
    %v1367 = vsub.f32 %v1365, %v1366
    %v1368 = vand.u32 %v1367, 4294901760
    %1369 = vmatpush1.msra.mxu0 %v1368
    %1370 = vmatprep.subr.mxu0 0.0
    %v1371 = vand.u32 %v1128, 4294901760
    %v1372 = vsub.f32 %v1128, %v1371
    %v1373 = vand.u32 %v1372, 4294901760
    %v1374 = vsub.f32 %v1372, %v1373
    %v1375 = vand.u32 %v1374, 4294901760
    %1376 = vmatpush1.msra.mxu0 %v1375
    %1377 = vmatprep.subr.mxu0 0.0
    %v1378 = vand.u32 %v1129, 4294901760
    %v1379 = vsub.f32 %v1129, %v1378
    %v1380 = vand.u32 %v1379, 4294901760
    %v1381 = vsub.f32 %v1379, %v1380
    %v1382 = vand.u32 %v1381, 4294901760
    %1383 = vmatpush1.msra.mxu0 %v1382
    %1384 = vmatprep.subr.mxu0 0.0
    %v1385 = vand.u32 %v1130, 4294901760
    %v1386 = vsub.f32 %v1130, %v1385
    %v1387 = vand.u32 %v1386, 4294901760
    %v1388 = vsub.f32 %v1386, %v1387
    %v1389 = vand.u32 %v1388, 4294901760
    %1390 = vmatpush1.msra.mxu0 %v1389
    %1391 = vmatprep.subr.mxu0 0.0
    %v1392 = vand.u32 %v1131, 4294901760
    %v1393 = vsub.f32 %v1131, %v1392
    %v1394 = vand.u32 %v1393, 4294901760
    %v1395 = vsub.f32 %v1393, %v1394
    %v1396 = vand.u32 %v1395, 4294901760
    %1397 = vmatpush1.msra.mxu0 %v1396
    %1398 = vmatprep.subr.mxu0 0.0
    %v1399 = vand.u32 %v1132, 4294901760
    %v1400 = vsub.f32 %v1132, %v1399
    %v1401 = vand.u32 %v1400, 4294901760
    %v1402 = vsub.f32 %v1400, %v1401
    %v1403 = vand.u32 %v1402, 4294901760
    %1404 = vmatpush1.msra.mxu0 %v1403
    %1405 = vmatprep.subr.mxu0 0.0
    %v1406 = vand.u32 %v1133, 4294901760
    %v1407 = vsub.f32 %v1133, %v1406
    %v1408 = vand.u32 %v1407, 4294901760
    %v1409 = vsub.f32 %v1407, %v1408
    %v1410 = vand.u32 %v1409, 4294901760
    %1411 = vmatpush1.msra.mxu0 %v1410
    %1412 = vmatprep.subr.mxu0 0.0
    %v1413 = vand.u32 %v1134, 4294901760
    %v1414 = vsub.f32 %v1134, %v1413
    %v1415 = vand.u32 %v1414, 4294901760
    %v1416 = vsub.f32 %v1414, %v1415
    %v1417 = vand.u32 %v1416, 4294901760
    %1418 = vmatpush1.msra.mxu0 %v1417
    %1419 = vmatprep.subr.mxu0 0.0
    %v1420 = vand.u32 %v1135, 4294901760
    %v1421 = vsub.f32 %v1135, %v1420
    %v1422 = vand.u32 %v1421, 4294901760
    %v1423 = vsub.f32 %v1421, %v1422
    %v1424 = vand.u32 %v1423, 4294901760
    %1425 = vmatpush1.msra.mxu0 %v1424
    %1426 = vmatprep.subr.mxu0 0.0
    %v1427 = vand.u32 %v1136, 4294901760
    %v1428 = vsub.f32 %v1136, %v1427
    %v1429 = vand.u32 %v1428, 4294901760
    %v1430 = vsub.f32 %v1428, %v1429
    %v1431 = vand.u32 %v1430, 4294901760
    %1432 = vmatpush1.msra.mxu0 %v1431
    %1433 = vmatprep.subr.mxu0 0.0
    %v1434 = vand.u32 %v1137, 4294901760
    %v1435 = vsub.f32 %v1137, %v1434
    %v1436 = vand.u32 %v1435, 4294901760
    %v1437 = vsub.f32 %v1435, %v1436
    %v1438 = vand.u32 %v1437, 4294901760
    %1439 = vmatpush1.msra.mxu0 %v1438
    %1440 = vmatprep.subr.mxu0 0.0
    %v1441 = vand.u32 %v1138, 4294901760
    %v1442 = vsub.f32 %v1138, %v1441
    %v1443 = vand.u32 %v1442, 4294901760
    %v1444 = vsub.f32 %v1442, %v1443
    %v1445 = vand.u32 %v1444, 4294901760
    %1446 = vmatpush1.msra.mxu0 %v1445
    %1447 = vmatprep.subr.mxu0 0.0
    %v1448 = vand.u32 %v1139, 4294901760
    %v1449 = vsub.f32 %v1139, %v1448
    %v1450 = vand.u32 %v1449, 4294901760
    %v1451 = vsub.f32 %v1449, %v1450
    %v1452 = vand.u32 %v1451, 4294901760
    %1453 = vmatpush1.msra.mxu0 %v1452
    %1454 = vmatprep.subr.mxu0 0.0
    %v1455 = vand.u32 %v1140, 4294901760
    %v1456 = vsub.f32 %v1140, %v1455
    %v1457 = vand.u32 %v1456, 4294901760
    %v1458 = vsub.f32 %v1456, %v1457
    %v1459 = vand.u32 %v1458, 4294901760
    %1460 = vmatpush1.msra.mxu0 %v1459
    %1461 = vmatprep.subr.mxu0 0.0
    %v1462 = vand.u32 %v1141, 4294901760
    %v1463 = vsub.f32 %v1141, %v1462
    %v1464 = vand.u32 %v1463, 4294901760
    %v1465 = vsub.f32 %v1463, %v1464
    %v1466 = vand.u32 %v1465, 4294901760
    %1467 = vmatpush1.msra.mxu0 %v1466
    %1468 = vmatprep.subr.mxu0 0.0
    %v1469 = vand.u32 %v1142, 4294901760
    %v1470 = vsub.f32 %v1142, %v1469
    %v1471 = vand.u32 %v1470, 4294901760
    %v1472 = vsub.f32 %v1470, %v1471
    %v1473 = vand.u32 %v1472, 4294901760
    %1474 = vmatpush1.msra.mxu0 %v1473
    %1475 = vmatprep.subr.mxu0 0.0
    %v1476 = vand.u32 %v1143, 4294901760
    %v1477 = vsub.f32 %v1143, %v1476
    %v1478 = vand.u32 %v1477, 4294901760
    %v1479 = vsub.f32 %v1477, %v1478
    %v1480 = vand.u32 %v1479, 4294901760
    %1481 = vmatpush1.msra.mxu0 %v1480
    %1482 = vmatprep.subr.mxu0 0.0
    %v1483 = vand.u32 %v1144, 4294901760
    %v1484 = vsub.f32 %v1144, %v1483
    %v1485 = vand.u32 %v1484, 4294901760
    %v1486 = vsub.f32 %v1484, %v1485
    %v1487 = vand.u32 %v1486, 4294901760
    %1488 = vmatpush1.msra.mxu0 %v1487
    %1489 = vmatprep.subr.mxu0 0.0
    %v1490 = vand.u32 %v1145, 4294901760
    %v1491 = vsub.f32 %v1145, %v1490
    %v1492 = vand.u32 %v1491, 4294901760
    %v1493 = vsub.f32 %v1491, %v1492
    %v1494 = vand.u32 %v1493, 4294901760
    %1495 = vmatpush1.msra.mxu0 %v1494
    %1496 = vmatprep.subr.mxu0 0.0
    %v1497 = vand.u32 %v1146, 4294901760
    %v1498 = vsub.f32 %v1146, %v1497
    %v1499 = vand.u32 %v1498, 4294901760
    %v1500 = vsub.f32 %v1498, %v1499
    %v1501 = vand.u32 %v1500, 4294901760
    %1502 = vmatpush1.msra.mxu0 %v1501
    %1503 = vmatprep.subr.mxu0 0.0
    %v1504 = vand.u32 %v1147, 4294901760
    %v1505 = vsub.f32 %v1147, %v1504
    %v1506 = vand.u32 %v1505, 4294901760
    %v1507 = vsub.f32 %v1505, %v1506
    %v1508 = vand.u32 %v1507, 4294901760
    %1509 = vmatpush1.msra.mxu0 %v1508
    %1510 = vmatprep.subr.mxu0 0.0
    %v1511 = vand.u32 %v1148, 4294901760
    %v1512 = vsub.f32 %v1148, %v1511
    %v1513 = vand.u32 %v1512, 4294901760
    %v1514 = vsub.f32 %v1512, %v1513
    %v1515 = vand.u32 %v1514, 4294901760
    %1516 = vmatpush1.msra.mxu0 %v1515
    %1517 = vmatprep.subr.mxu0 0.0
    %v1518 = vand.u32 %v1149, 4294901760
    %v1519 = vsub.f32 %v1149, %v1518
    %v1520 = vand.u32 %v1519, 4294901760
    %v1521 = vsub.f32 %v1519, %v1520
    %v1522 = vand.u32 %v1521, 4294901760
    %1523 = vmatpush1.msra.mxu0 %v1522
    %1524 = vmatprep.subr.mxu0 0.0
    %v1525 = vand.u32 %v1150, 4294901760
    %v1526 = vsub.f32 %v1150, %v1525
    %v1527 = vand.u32 %v1526, 4294901760
    %v1528 = vsub.f32 %v1526, %v1527
    %v1529 = vand.u32 %v1528, 4294901760
    %1530 = vmatpush1.msra.mxu0 %v1529
    %v1531 = vand.u32 %v1194, 4294901760
    %1532 = vmatprep.mubr.f32.mxu0 %v1531
    %v1533 = vand.u32 %v1193, 4294901760
    %1534 = vmatmul.mubr.f32.gmra.mrb[0].mxu0 %v1533
    %v1535 = vpop.f32.mrb[0].mxu0
    %v1536 = vadd.f32 %v1304, %v1535
    %v1537 = vpop.f32.mrb[0].mxu0
    %1538 = vdwg.mxu0
    %1539 = vmatprep.subr.mxu0 0.0
    %v1540 = vand.u32 %v1119, 4294901760
    %v1541 = vsub.f32 %v1119, %v1540
    %1542 = vmatpush1.msra.mxu0 %v1541
    %1543 = vmatprep.subr.mxu0 0.0
    %v1544 = vand.u32 %v1120, 4294901760
    %v1545 = vsub.f32 %v1120, %v1544
    %1546 = vmatpush1.msra.mxu0 %v1545
    %1547 = vmatprep.subr.mxu0 0.0
    %v1548 = vand.u32 %v1121, 4294901760
    %v1549 = vsub.f32 %v1121, %v1548
    %1550 = vmatpush1.msra.mxu0 %v1549
    %1551 = vmatprep.subr.mxu0 0.0
    %v1552 = vand.u32 %v1122, 4294901760
    %v1553 = vsub.f32 %v1122, %v1552
    %1554 = vmatpush1.msra.mxu0 %v1553
    %1555 = vmatprep.subr.mxu0 0.0
    %v1556 = vand.u32 %v1123, 4294901760
    %v1557 = vsub.f32 %v1123, %v1556
    %1558 = vmatpush1.msra.mxu0 %v1557
    %1559 = vmatprep.subr.mxu0 0.0
    %v1560 = vand.u32 %v1124, 4294901760
    %v1561 = vsub.f32 %v1124, %v1560
    %1562 = vmatpush1.msra.mxu0 %v1561
    %1563 = vmatprep.subr.mxu0 0.0
    %v1564 = vand.u32 %v1125, 4294901760
    %v1565 = vsub.f32 %v1125, %v1564
    %1566 = vmatpush1.msra.mxu0 %v1565
    %1567 = vmatprep.subr.mxu0 0.0
    %v1568 = vand.u32 %v1126, 4294901760
    %v1569 = vsub.f32 %v1126, %v1568
    %1570 = vmatpush1.msra.mxu0 %v1569
    %1571 = vmatprep.subr.mxu0 0.0
    %v1572 = vand.u32 %v1127, 4294901760
    %v1573 = vsub.f32 %v1127, %v1572
    %1574 = vmatpush1.msra.mxu0 %v1573
    %1575 = vmatprep.subr.mxu0 0.0
    %v1576 = vand.u32 %v1128, 4294901760
    %v1577 = vsub.f32 %v1128, %v1576
    %1578 = vmatpush1.msra.mxu0 %v1577
    %1579 = vmatprep.subr.mxu0 0.0
    %v1580 = vand.u32 %v1129, 4294901760
    %v1581 = vsub.f32 %v1129, %v1580
    %1582 = vmatpush1.msra.mxu0 %v1581
    %1583 = vmatprep.subr.mxu0 0.0
    %v1584 = vand.u32 %v1130, 4294901760
    %v1585 = vsub.f32 %v1130, %v1584
    %1586 = vmatpush1.msra.mxu0 %v1585
    %1587 = vmatprep.subr.mxu0 0.0
    %v1588 = vand.u32 %v1131, 4294901760
    %v1589 = vsub.f32 %v1131, %v1588
    %1590 = vmatpush1.msra.mxu0 %v1589
    %1591 = vmatprep.subr.mxu0 0.0
    %v1592 = vand.u32 %v1132, 4294901760
    %v1593 = vsub.f32 %v1132, %v1592
    %1594 = vmatpush1.msra.mxu0 %v1593
    %1595 = vmatprep.subr.mxu0 0.0
    %v1596 = vand.u32 %v1133, 4294901760
    %v1597 = vsub.f32 %v1133, %v1596
    %1598 = vmatpush1.msra.mxu0 %v1597
    %1599 = vmatprep.subr.mxu0 0.0
    %v1600 = vand.u32 %v1134, 4294901760
    %v1601 = vsub.f32 %v1134, %v1600
    %1602 = vmatpush1.msra.mxu0 %v1601
    %1603 = vmatprep.subr.mxu0 0.0
    %v1604 = vand.u32 %v1135, 4294901760
    %v1605 = vsub.f32 %v1135, %v1604
    %1606 = vmatpush1.msra.mxu0 %v1605
    %1607 = vmatprep.subr.mxu0 0.0
    %v1608 = vand.u32 %v1136, 4294901760
    %v1609 = vsub.f32 %v1136, %v1608
    %1610 = vmatpush1.msra.mxu0 %v1609
    %1611 = vmatprep.subr.mxu0 0.0
    %v1612 = vand.u32 %v1137, 4294901760
    %v1613 = vsub.f32 %v1137, %v1612
    %1614 = vmatpush1.msra.mxu0 %v1613
    %1615 = vmatprep.subr.mxu0 0.0
    %v1616 = vand.u32 %v1138, 4294901760
    %v1617 = vsub.f32 %v1138, %v1616
    %1618 = vmatpush1.msra.mxu0 %v1617
    %1619 = vmatprep.subr.mxu0 0.0
    %v1620 = vand.u32 %v1139, 4294901760
    %v1621 = vsub.f32 %v1139, %v1620
    %1622 = vmatpush1.msra.mxu0 %v1621
    %1623 = vmatprep.subr.mxu0 0.0
    %v1624 = vand.u32 %v1140, 4294901760
    %v1625 = vsub.f32 %v1140, %v1624
    %1626 = vmatpush1.msra.mxu0 %v1625
    %1627 = vmatprep.subr.mxu0 0.0
    %v1628 = vand.u32 %v1141, 4294901760
    %v1629 = vsub.f32 %v1141, %v1628
    %1630 = vmatpush1.msra.mxu0 %v1629
    %1631 = vmatprep.subr.mxu0 0.0
    %v1632 = vand.u32 %v1142, 4294901760
    %v1633 = vsub.f32 %v1142, %v1632
    %1634 = vmatpush1.msra.mxu0 %v1633
    %1635 = vmatprep.subr.mxu0 0.0
    %v1636 = vand.u32 %v1143, 4294901760
    %v1637 = vsub.f32 %v1143, %v1636
    %1638 = vmatpush1.msra.mxu0 %v1637
    %1639 = vmatprep.subr.mxu0 0.0
    %v1640 = vand.u32 %v1144, 4294901760
    %v1641 = vsub.f32 %v1144, %v1640
    %1642 = vmatpush1.msra.mxu0 %v1641
    %1643 = vmatprep.subr.mxu0 0.0
    %v1644 = vand.u32 %v1145, 4294901760
    %v1645 = vsub.f32 %v1145, %v1644
    %1646 = vmatpush1.msra.mxu0 %v1645
    %1647 = vmatprep.subr.mxu0 0.0
    %v1648 = vand.u32 %v1146, 4294901760
    %v1649 = vsub.f32 %v1146, %v1648
    %1650 = vmatpush1.msra.mxu0 %v1649
    %1651 = vmatprep.subr.mxu0 0.0
    %v1652 = vand.u32 %v1147, 4294901760
    %v1653 = vsub.f32 %v1147, %v1652
    %1654 = vmatpush1.msra.mxu0 %v1653
    %1655 = vmatprep.subr.mxu0 0.0
    %v1656 = vand.u32 %v1148, 4294901760
    %v1657 = vsub.f32 %v1148, %v1656
    %1658 = vmatpush1.msra.mxu0 %v1657
    %1659 = vmatprep.subr.mxu0 0.0
    %v1660 = vand.u32 %v1149, 4294901760
    %v1661 = vsub.f32 %v1149, %v1660
    %1662 = vmatpush1.msra.mxu0 %v1661
    %1663 = vmatprep.subr.mxu0 0.0
    %v1664 = vand.u32 %v1150, 4294901760
    %v1665 = vsub.f32 %v1150, %v1664
    %1666 = vmatpush1.msra.mxu0 %v1665
    %v1667 = vand.u32 %v1194, 4294901760
    %v1668 = vsub.f32 %v1194, %v1667
    %1669 = vmatprep.mubr.f32.mxu0 %v1668
    %v1670 = vand.u32 %v1193, 4294901760
    %v1671 = vsub.f32 %v1193, %v1670
    %1672 = vmatmul.mubr.f32.gmra.mrb[0].mxu0 %v1671
    %v1673 = vpop.f32.mrb[0].mxu0
    %v1674 = vadd.f32 %v1536, %v1673
    %v1675 = vpop.f32.mrb[0].mxu0
    %1676 = vdwg.mxu0
    %1677 = vmatprep.subr.mxu0 0.0
    %v1678 = vand.u32 %v1119, 4294901760
    %1679 = vmatpush1.msra.mxu0 %v1678
    %1680 = vmatprep.subr.mxu0 0.0
    %v1681 = vand.u32 %v1120, 4294901760
    %1682 = vmatpush1.msra.mxu0 %v1681
    %1683 = vmatprep.subr.mxu0 0.0
    %v1684 = vand.u32 %v1121, 4294901760
    %1685 = vmatpush1.msra.mxu0 %v1684
    %1686 = vmatprep.subr.mxu0 0.0
    %v1687 = vand.u32 %v1122, 4294901760
    %1688 = vmatpush1.msra.mxu0 %v1687
    %1689 = vmatprep.subr.mxu0 0.0
    %v1690 = vand.u32 %v1123, 4294901760
    %1691 = vmatpush1.msra.mxu0 %v1690
    %1692 = vmatprep.subr.mxu0 0.0
    %v1693 = vand.u32 %v1124, 4294901760
    %1694 = vmatpush1.msra.mxu0 %v1693
    %1695 = vmatprep.subr.mxu0 0.0
    %v1696 = vand.u32 %v1125, 4294901760
    %1697 = vmatpush1.msra.mxu0 %v1696
    %1698 = vmatprep.subr.mxu0 0.0
    %v1699 = vand.u32 %v1126, 4294901760
    %1700 = vmatpush1.msra.mxu0 %v1699
    %1701 = vmatprep.subr.mxu0 0.0
    %v1702 = vand.u32 %v1127, 4294901760
    %1703 = vmatpush1.msra.mxu0 %v1702
    %1704 = vmatprep.subr.mxu0 0.0
    %v1705 = vand.u32 %v1128, 4294901760
    %1706 = vmatpush1.msra.mxu0 %v1705
    %1707 = vmatprep.subr.mxu0 0.0
    %v1708 = vand.u32 %v1129, 4294901760
    %1709 = vmatpush1.msra.mxu0 %v1708
    %1710 = vmatprep.subr.mxu0 0.0
    %v1711 = vand.u32 %v1130, 4294901760
    %1712 = vmatpush1.msra.mxu0 %v1711
    %1713 = vmatprep.subr.mxu0 0.0
    %v1714 = vand.u32 %v1131, 4294901760
    %1715 = vmatpush1.msra.mxu0 %v1714
    %1716 = vmatprep.subr.mxu0 0.0
    %v1717 = vand.u32 %v1132, 4294901760
    %1718 = vmatpush1.msra.mxu0 %v1717
    %1719 = vmatprep.subr.mxu0 0.0
    %v1720 = vand.u32 %v1133, 4294901760
    %1721 = vmatpush1.msra.mxu0 %v1720
    %1722 = vmatprep.subr.mxu0 0.0
    %v1723 = vand.u32 %v1134, 4294901760
    %1724 = vmatpush1.msra.mxu0 %v1723
    %1725 = vmatprep.subr.mxu0 0.0
    %v1726 = vand.u32 %v1135, 4294901760
    %1727 = vmatpush1.msra.mxu0 %v1726
    %1728 = vmatprep.subr.mxu0 0.0
    %v1729 = vand.u32 %v1136, 4294901760
    %1730 = vmatpush1.msra.mxu0 %v1729
    %1731 = vmatprep.subr.mxu0 0.0
    %v1732 = vand.u32 %v1137, 4294901760
    %1733 = vmatpush1.msra.mxu0 %v1732
    %1734 = vmatprep.subr.mxu0 0.0
    %v1735 = vand.u32 %v1138, 4294901760
    %1736 = vmatpush1.msra.mxu0 %v1735
    %1737 = vmatprep.subr.mxu0 0.0
    %v1738 = vand.u32 %v1139, 4294901760
    %1739 = vmatpush1.msra.mxu0 %v1738
    %1740 = vmatprep.subr.mxu0 0.0
    %v1741 = vand.u32 %v1140, 4294901760
    %1742 = vmatpush1.msra.mxu0 %v1741
    %1743 = vmatprep.subr.mxu0 0.0
    %v1744 = vand.u32 %v1141, 4294901760
    %1745 = vmatpush1.msra.mxu0 %v1744
    %1746 = vmatprep.subr.mxu0 0.0
    %v1747 = vand.u32 %v1142, 4294901760
    %1748 = vmatpush1.msra.mxu0 %v1747
    %1749 = vmatprep.subr.mxu0 0.0
    %v1750 = vand.u32 %v1143, 4294901760
    %1751 = vmatpush1.msra.mxu0 %v1750
    %1752 = vmatprep.subr.mxu0 0.0
    %v1753 = vand.u32 %v1144, 4294901760
    %1754 = vmatpush1.msra.mxu0 %v1753
    %1755 = vmatprep.subr.mxu0 0.0
    %v1756 = vand.u32 %v1145, 4294901760
    %1757 = vmatpush1.msra.mxu0 %v1756
    %1758 = vmatprep.subr.mxu0 0.0
    %v1759 = vand.u32 %v1146, 4294901760
    %1760 = vmatpush1.msra.mxu0 %v1759
    %1761 = vmatprep.subr.mxu0 0.0
    %v1762 = vand.u32 %v1147, 4294901760
    %1763 = vmatpush1.msra.mxu0 %v1762
    %1764 = vmatprep.subr.mxu0 0.0
    %v1765 = vand.u32 %v1148, 4294901760
    %1766 = vmatpush1.msra.mxu0 %v1765
    %1767 = vmatprep.subr.mxu0 0.0
    %v1768 = vand.u32 %v1149, 4294901760
    %1769 = vmatpush1.msra.mxu0 %v1768
    %1770 = vmatprep.subr.mxu0 0.0
    %v1771 = vand.u32 %v1150, 4294901760
    %1772 = vmatpush1.msra.mxu0 %v1771
    %v1773 = vand.u32 %v1194, 4294901760
    %v1774 = vsub.f32 %v1194, %v1773
    %v1775 = vand.u32 %v1774, 4294901760
    %1776 = vmatprep.mubr.f32.mxu0 %v1775
    %v1777 = vand.u32 %v1193, 4294901760
    %v1778 = vsub.f32 %v1193, %v1777
    %v1779 = vand.u32 %v1778, 4294901760
    %1780 = vmatmul.mubr.f32.gmra.mrb[0].mxu0 %v1779
    %v1781 = vpop.f32.mrb[0].mxu0
    %v1782 = vadd.f32 %v1674, %v1781
    %v1783 = vpop.f32.mrb[0].mxu0
    %1784 = vdwg.mxu0
    %1785 = vmatprep.subr.mxu0 0.0
    %v1786 = vand.u32 %v1119, 4294901760
    %v1787 = vsub.f32 %v1119, %v1786
    %v1788 = vand.u32 %v1787, 4294901760
    %1789 = vmatpush1.msra.mxu0 %v1788
    %1790 = vmatprep.subr.mxu0 0.0
    %v1791 = vand.u32 %v1120, 4294901760
    %v1792 = vsub.f32 %v1120, %v1791
    %v1793 = vand.u32 %v1792, 4294901760
    %1794 = vmatpush1.msra.mxu0 %v1793
    %1795 = vmatprep.subr.mxu0 0.0
    %v1796 = vand.u32 %v1121, 4294901760
    %v1797 = vsub.f32 %v1121, %v1796
    %v1798 = vand.u32 %v1797, 4294901760
    %1799 = vmatpush1.msra.mxu0 %v1798
    %1800 = vmatprep.subr.mxu0 0.0
    %v1801 = vand.u32 %v1122, 4294901760
    %v1802 = vsub.f32 %v1122, %v1801
    %v1803 = vand.u32 %v1802, 4294901760
    %1804 = vmatpush1.msra.mxu0 %v1803
    %1805 = vmatprep.subr.mxu0 0.0
    %v1806 = vand.u32 %v1123, 4294901760
    %v1807 = vsub.f32 %v1123, %v1806
    %v1808 = vand.u32 %v1807, 4294901760
    %1809 = vmatpush1.msra.mxu0 %v1808
    %1810 = vmatprep.subr.mxu0 0.0
    %v1811 = vand.u32 %v1124, 4294901760
    %v1812 = vsub.f32 %v1124, %v1811
    %v1813 = vand.u32 %v1812, 4294901760
    %1814 = vmatpush1.msra.mxu0 %v1813
    %1815 = vmatprep.subr.mxu0 0.0
    %v1816 = vand.u32 %v1125, 4294901760
    %v1817 = vsub.f32 %v1125, %v1816
    %v1818 = vand.u32 %v1817, 4294901760
    %1819 = vmatpush1.msra.mxu0 %v1818
    %1820 = vmatprep.subr.mxu0 0.0
    %v1821 = vand.u32 %v1126, 4294901760
    %v1822 = vsub.f32 %v1126, %v1821
    %v1823 = vand.u32 %v1822, 4294901760
    %1824 = vmatpush1.msra.mxu0 %v1823
    %1825 = vmatprep.subr.mxu0 0.0
    %v1826 = vand.u32 %v1127, 4294901760
    %v1827 = vsub.f32 %v1127, %v1826
    %v1828 = vand.u32 %v1827, 4294901760
    %1829 = vmatpush1.msra.mxu0 %v1828
    %1830 = vmatprep.subr.mxu0 0.0
    %v1831 = vand.u32 %v1128, 4294901760
    %v1832 = vsub.f32 %v1128, %v1831
    %v1833 = vand.u32 %v1832, 4294901760
    %1834 = vmatpush1.msra.mxu0 %v1833
    %1835 = vmatprep.subr.mxu0 0.0
    %v1836 = vand.u32 %v1129, 4294901760
    %v1837 = vsub.f32 %v1129, %v1836
    %v1838 = vand.u32 %v1837, 4294901760
    %1839 = vmatpush1.msra.mxu0 %v1838
    %1840 = vmatprep.subr.mxu0 0.0
    %v1841 = vand.u32 %v1130, 4294901760
    %v1842 = vsub.f32 %v1130, %v1841
    %v1843 = vand.u32 %v1842, 4294901760
    %1844 = vmatpush1.msra.mxu0 %v1843
    %1845 = vmatprep.subr.mxu0 0.0
    %v1846 = vand.u32 %v1131, 4294901760
    %v1847 = vsub.f32 %v1131, %v1846
    %v1848 = vand.u32 %v1847, 4294901760
    %1849 = vmatpush1.msra.mxu0 %v1848
    %1850 = vmatprep.subr.mxu0 0.0
    %v1851 = vand.u32 %v1132, 4294901760
    %v1852 = vsub.f32 %v1132, %v1851
    %v1853 = vand.u32 %v1852, 4294901760
    %1854 = vmatpush1.msra.mxu0 %v1853
    %1855 = vmatprep.subr.mxu0 0.0
    %v1856 = vand.u32 %v1133, 4294901760
    %v1857 = vsub.f32 %v1133, %v1856
    %v1858 = vand.u32 %v1857, 4294901760
    %1859 = vmatpush1.msra.mxu0 %v1858
    %1860 = vmatprep.subr.mxu0 0.0
    %v1861 = vand.u32 %v1134, 4294901760
    %v1862 = vsub.f32 %v1134, %v1861
    %v1863 = vand.u32 %v1862, 4294901760
    %1864 = vmatpush1.msra.mxu0 %v1863
    %1865 = vmatprep.subr.mxu0 0.0
    %v1866 = vand.u32 %v1135, 4294901760
    %v1867 = vsub.f32 %v1135, %v1866
    %v1868 = vand.u32 %v1867, 4294901760
    %1869 = vmatpush1.msra.mxu0 %v1868
    %1870 = vmatprep.subr.mxu0 0.0
    %v1871 = vand.u32 %v1136, 4294901760
    %v1872 = vsub.f32 %v1136, %v1871
    %v1873 = vand.u32 %v1872, 4294901760
    %1874 = vmatpush1.msra.mxu0 %v1873
    %1875 = vmatprep.subr.mxu0 0.0
    %v1876 = vand.u32 %v1137, 4294901760
    %v1877 = vsub.f32 %v1137, %v1876
    %v1878 = vand.u32 %v1877, 4294901760
    %1879 = vmatpush1.msra.mxu0 %v1878
    %1880 = vmatprep.subr.mxu0 0.0
    %v1881 = vand.u32 %v1138, 4294901760
    %v1882 = vsub.f32 %v1138, %v1881
    %v1883 = vand.u32 %v1882, 4294901760
    %1884 = vmatpush1.msra.mxu0 %v1883
    %1885 = vmatprep.subr.mxu0 0.0
    %v1886 = vand.u32 %v1139, 4294901760
    %v1887 = vsub.f32 %v1139, %v1886
    %v1888 = vand.u32 %v1887, 4294901760
    %1889 = vmatpush1.msra.mxu0 %v1888
    %1890 = vmatprep.subr.mxu0 0.0
    %v1891 = vand.u32 %v1140, 4294901760
    %v1892 = vsub.f32 %v1140, %v1891
    %v1893 = vand.u32 %v1892, 4294901760
    %1894 = vmatpush1.msra.mxu0 %v1893
    %1895 = vmatprep.subr.mxu0 0.0
    %v1896 = vand.u32 %v1141, 4294901760
    %v1897 = vsub.f32 %v1141, %v1896
    %v1898 = vand.u32 %v1897, 4294901760
    %1899 = vmatpush1.msra.mxu0 %v1898
    %1900 = vmatprep.subr.mxu0 0.0
    %v1901 = vand.u32 %v1142, 4294901760
    %v1902 = vsub.f32 %v1142, %v1901
    %v1903 = vand.u32 %v1902, 4294901760
    %1904 = vmatpush1.msra.mxu0 %v1903
    %1905 = vmatprep.subr.mxu0 0.0
    %v1906 = vand.u32 %v1143, 4294901760
    %v1907 = vsub.f32 %v1143, %v1906
    %v1908 = vand.u32 %v1907, 4294901760
    %1909 = vmatpush1.msra.mxu0 %v1908
    %1910 = vmatprep.subr.mxu0 0.0
    %v1911 = vand.u32 %v1144, 4294901760
    %v1912 = vsub.f32 %v1144, %v1911
    %v1913 = vand.u32 %v1912, 4294901760
    %1914 = vmatpush1.msra.mxu0 %v1913
    %1915 = vmatprep.subr.mxu0 0.0
    %v1916 = vand.u32 %v1145, 4294901760
    %v1917 = vsub.f32 %v1145, %v1916
    %v1918 = vand.u32 %v1917, 4294901760
    %1919 = vmatpush1.msra.mxu0 %v1918
    %1920 = vmatprep.subr.mxu0 0.0
    %v1921 = vand.u32 %v1146, 4294901760
    %v1922 = vsub.f32 %v1146, %v1921
    %v1923 = vand.u32 %v1922, 4294901760
    %1924 = vmatpush1.msra.mxu0 %v1923
    %1925 = vmatprep.subr.mxu0 0.0
    %v1926 = vand.u32 %v1147, 4294901760
    %v1927 = vsub.f32 %v1147, %v1926
    %v1928 = vand.u32 %v1927, 4294901760
    %1929 = vmatpush1.msra.mxu0 %v1928
    %1930 = vmatprep.subr.mxu0 0.0
    %v1931 = vand.u32 %v1148, 4294901760
    %v1932 = vsub.f32 %v1148, %v1931
    %v1933 = vand.u32 %v1932, 4294901760
    %1934 = vmatpush1.msra.mxu0 %v1933
    %1935 = vmatprep.subr.mxu0 0.0
    %v1936 = vand.u32 %v1149, 4294901760
    %v1937 = vsub.f32 %v1149, %v1936
    %v1938 = vand.u32 %v1937, 4294901760
    %1939 = vmatpush1.msra.mxu0 %v1938
    %1940 = vmatprep.subr.mxu0 0.0
    %v1941 = vand.u32 %v1150, 4294901760
    %v1942 = vsub.f32 %v1150, %v1941
    %v1943 = vand.u32 %v1942, 4294901760
    %1944 = vmatpush1.msra.mxu0 %v1943
    %v1945 = vand.u32 %v1194, 4294901760
    %1946 = vmatprep.mubr.f32.mxu0 %v1945
    %v1947 = vand.u32 %v1193, 4294901760
    %1948 = vmatmul.mubr.f32.gmra.mrb[0].mxu0 %v1947
    %v1949 = vpop.f32.mrb[0].mxu0
    %v1950 = vadd.f32 %v1782, %v1949
    %v1951 = vpop.f32.mrb[0].mxu0
    %1952 = vdwg.mxu0
    %1953 = vmatprep.subr.mxu0 0.0
    %v1954 = vand.u32 %v1119, 4294901760
    %1955 = vmatpush1.msra.mxu0 %v1954
    %1956 = vmatprep.subr.mxu0 0.0
    %v1957 = vand.u32 %v1120, 4294901760
    %1958 = vmatpush1.msra.mxu0 %v1957
    %1959 = vmatprep.subr.mxu0 0.0
    %v1960 = vand.u32 %v1121, 4294901760
    %1961 = vmatpush1.msra.mxu0 %v1960
    %1962 = vmatprep.subr.mxu0 0.0
    %v1963 = vand.u32 %v1122, 4294901760
    %1964 = vmatpush1.msra.mxu0 %v1963
    %1965 = vmatprep.subr.mxu0 0.0
    %v1966 = vand.u32 %v1123, 4294901760
    %1967 = vmatpush1.msra.mxu0 %v1966
    %1968 = vmatprep.subr.mxu0 0.0
    %v1969 = vand.u32 %v1124, 4294901760
    %1970 = vmatpush1.msra.mxu0 %v1969
    %1971 = vmatprep.subr.mxu0 0.0
    %v1972 = vand.u32 %v1125, 4294901760
    %1973 = vmatpush1.msra.mxu0 %v1972
    %1974 = vmatprep.subr.mxu0 0.0
    %v1975 = vand.u32 %v1126, 4294901760
    %1976 = vmatpush1.msra.mxu0 %v1975
    %1977 = vmatprep.subr.mxu0 0.0
    %v1978 = vand.u32 %v1127, 4294901760
    %1979 = vmatpush1.msra.mxu0 %v1978
    %1980 = vmatprep.subr.mxu0 0.0
    %v1981 = vand.u32 %v1128, 4294901760
    %1982 = vmatpush1.msra.mxu0 %v1981
    %1983 = vmatprep.subr.mxu0 0.0
    %v1984 = vand.u32 %v1129, 4294901760
    %1985 = vmatpush1.msra.mxu0 %v1984
    %1986 = vmatprep.subr.mxu0 0.0
    %v1987 = vand.u32 %v1130, 4294901760
    %1988 = vmatpush1.msra.mxu0 %v1987
    %1989 = vmatprep.subr.mxu0 0.0
    %v1990 = vand.u32 %v1131, 4294901760
    %1991 = vmatpush1.msra.mxu0 %v1990
    %1992 = vmatprep.subr.mxu0 0.0
    %v1993 = vand.u32 %v1132, 4294901760
    %1994 = vmatpush1.msra.mxu0 %v1993
    %1995 = vmatprep.subr.mxu0 0.0
    %v1996 = vand.u32 %v1133, 4294901760
    %1997 = vmatpush1.msra.mxu0 %v1996
    %1998 = vmatprep.subr.mxu0 0.0
    %v1999 = vand.u32 %v1134, 4294901760
    %2000 = vmatpush1.msra.mxu0 %v1999
    %2001 = vmatprep.subr.mxu0 0.0
    %v2002 = vand.u32 %v1135, 4294901760
    %2003 = vmatpush1.msra.mxu0 %v2002
    %2004 = vmatprep.subr.mxu0 0.0
    %v2005 = vand.u32 %v1136, 4294901760
    %2006 = vmatpush1.msra.mxu0 %v2005
    %2007 = vmatprep.subr.mxu0 0.0
    %v2008 = vand.u32 %v1137, 4294901760
    %2009 = vmatpush1.msra.mxu0 %v2008
    %2010 = vmatprep.subr.mxu0 0.0
    %v2011 = vand.u32 %v1138, 4294901760
    %2012 = vmatpush1.msra.mxu0 %v2011
    %2013 = vmatprep.subr.mxu0 0.0
    %v2014 = vand.u32 %v1139, 4294901760
    %2015 = vmatpush1.msra.mxu0 %v2014
    %2016 = vmatprep.subr.mxu0 0.0
    %v2017 = vand.u32 %v1140, 4294901760
    %2018 = vmatpush1.msra.mxu0 %v2017
    %2019 = vmatprep.subr.mxu0 0.0
    %v2020 = vand.u32 %v1141, 4294901760
    %2021 = vmatpush1.msra.mxu0 %v2020
    %2022 = vmatprep.subr.mxu0 0.0
    %v2023 = vand.u32 %v1142, 4294901760
    %2024 = vmatpush1.msra.mxu0 %v2023
    %2025 = vmatprep.subr.mxu0 0.0
    %v2026 = vand.u32 %v1143, 4294901760
    %2027 = vmatpush1.msra.mxu0 %v2026
    %2028 = vmatprep.subr.mxu0 0.0
    %v2029 = vand.u32 %v1144, 4294901760
    %2030 = vmatpush1.msra.mxu0 %v2029
    %2031 = vmatprep.subr.mxu0 0.0
    %v2032 = vand.u32 %v1145, 4294901760
    %2033 = vmatpush1.msra.mxu0 %v2032
    %2034 = vmatprep.subr.mxu0 0.0
    %v2035 = vand.u32 %v1146, 4294901760
    %2036 = vmatpush1.msra.mxu0 %v2035
    %2037 = vmatprep.subr.mxu0 0.0
    %v2038 = vand.u32 %v1147, 4294901760
    %2039 = vmatpush1.msra.mxu0 %v2038
    %2040 = vmatprep.subr.mxu0 0.0
    %v2041 = vand.u32 %v1148, 4294901760
    %2042 = vmatpush1.msra.mxu0 %v2041
    %2043 = vmatprep.subr.mxu0 0.0
    %v2044 = vand.u32 %v1149, 4294901760
    %2045 = vmatpush1.msra.mxu0 %v2044
    %2046 = vmatprep.subr.mxu0 0.0
    %v2047 = vand.u32 %v1150, 4294901760
    %2048 = vmatpush1.msra.mxu0 %v2047
    %v2049 = vand.u32 %v1194, 4294901760
    %2050 = vmatprep.mubr.f32.mxu0 %v2049
    %v2051 = vand.u32 %v1193, 4294901760
    %2052 = vmatmul.mubr.f32.gmra.mrb[0].mxu0 %v2051
    %v2053 = vpop.f32.mrb[0].mxu0
    %v2054 = vadd.f32 %v1950, %v2053
    %v2055 = vpop.f32.mrb[0].mxu0
    %2056 = vdwg.mxu0
    %v2057 = vrcp.pop 128.0
    %v2058 = vmul.f32 %v2054, %v2057
    %v2059 = vmul.f32 %v2058, %v2058
    %v2061 = vrot.slane %v2059, 7
    %v2063 = vsub.f32 %v2058, %v2061
    %v2064 = vmax.f32 %v2063, 0.0
    %v2065 = vadd.f32 %v2064, 1e-05
    %v2066 = vrsqrt.pop %v2065
    %v2068 = vrot.slane %v2066, 1
    %v2070 = vmul.f32 %v1159, %v2068
    %v2071 = vmul.f32 %v2058, %v2070
    %v2073 = vrot.slane %v2071, 7
    %v2075 = vsub.f32 %v1159, %v2073
    %v2076 = vsel %vm1192, %v2070, %v2075
    %v2078 = vsel %vm717, %v2076, 0
    %v2080 = vand.u32 %v1152, 4294901760
    %2081 = vmatprep.subr.mxu0 %v2080
    %v2082 = vand.u32 %v1151, 4294901760
    %2083 = vmatpush1.msra.mxu0 %v2082
    %v2084 = vand.u32 %v1154, 4294901760
    %2085 = vmatprep.subr.mxu0 %v2084
    %v2086 = vand.u32 %v1153, 4294901760
    %2087 = vmatpush1.msra.mxu0 %v2086
    %v2088 = vand.u32 %v1156, 4294901760
    %2089 = vmatprep.subr.mxu0 %v2088
    %v2090 = vand.u32 %v1155, 4294901760
    %2091 = vmatpush1.msra.mxu0 %v2090
    %v2092 = vand.u32 %v1158, 4294901760
    %2093 = vmatprep.subr.mxu0 %v2092
    %v2094 = vand.u32 %v1157, 4294901760
    %2095 = vmatpush1.msra.mxu0 %v2094
    %2096 = vmatprep.subr.mxu0 0.0
    %2097 = vmatpush1.msra.mxu0 0.0
    %2098 = vmatprep.subr.mxu0 0.0
    %2099 = vmatpush1.msra.mxu0 0.0
    %2100 = vmatprep.subr.mxu0 0.0
    %2101 = vmatpush1.msra.mxu0 0.0
    %2102 = vmatprep.subr.mxu0 0.0
    %2103 = vmatpush1.msra.mxu0 0.0
    %2104 = vmatprep.subr.mxu0 0.0
    %2105 = vmatpush1.msra.mxu0 0.0
    %2106 = vmatprep.subr.mxu0 0.0
    %2107 = vmatpush1.msra.mxu0 0.0
    %2108 = vmatprep.subr.mxu0 0.0
    %2109 = vmatpush1.msra.mxu0 0.0
    %2110 = vmatprep.subr.mxu0 0.0
    %2111 = vmatpush1.msra.mxu0 0.0
    %2112 = vmatprep.subr.mxu0 0.0
    %2113 = vmatpush1.msra.mxu0 0.0
    %2114 = vmatprep.subr.mxu0 0.0
    %2115 = vmatpush1.msra.mxu0 0.0
    %2116 = vmatprep.subr.mxu0 0.0
    %2117 = vmatpush1.msra.mxu0 0.0
    %2118 = vmatprep.subr.mxu0 0.0
    %2119 = vmatpush1.msra.mxu0 0.0
    %2120 = vmatprep.subr.mxu0 0.0
    %2121 = vmatpush1.msra.mxu0 0.0
    %2122 = vmatprep.subr.mxu0 0.0
    %2123 = vmatpush1.msra.mxu0 0.0
    %2124 = vmatprep.subr.mxu0 0.0
    %2125 = vmatpush1.msra.mxu0 0.0
    %2126 = vmatprep.subr.mxu0 0.0
    %2127 = vmatpush1.msra.mxu0 0.0
    %2128 = vmatprep.subr.mxu0 0.0
    %2129 = vmatpush1.msra.mxu0 0.0
    %2130 = vmatprep.subr.mxu0 0.0
    %2131 = vmatpush1.msra.mxu0 0.0
    %2132 = vmatprep.subr.mxu0 0.0
    %2133 = vmatpush1.msra.mxu0 0.0
    %2134 = vmatprep.subr.mxu0 0.0
    %2135 = vmatpush1.msra.mxu0 0.0
    %2136 = vmatprep.subr.mxu0 0.0
    %2137 = vmatpush1.msra.mxu0 0.0
    %2138 = vmatprep.subr.mxu0 0.0
    %2139 = vmatpush1.msra.mxu0 0.0
    %2140 = vmatprep.subr.mxu0 0.0
    %2141 = vmatpush1.msra.mxu0 0.0
    %2142 = vmatprep.subr.mxu0 0.0
    %2143 = vmatpush1.msra.mxu0 0.0
    %2144 = vmatprep.subr.mxu0 0.0
    %2145 = vmatpush1.msra.mxu0 0.0
    %2146 = vmatprep.subr.mxu0 0.0
    %2147 = vmatpush1.msra.mxu0 0.0
    %2148 = vmatprep.subr.mxu0 0.0
    %2149 = vmatpush1.msra.mxu0 0.0
    %2150 = vmatprep.subr.mxu0 0.0
    %2151 = vmatpush1.msra.mxu0 0.0
    %2152 = vmatprep.mubr.f32.mxu0 0.0
    %v2153 = vand.u32 %v2078, 4294901760
    %v2154 = vsub.f32 %v2078, %v2153
    %v2155 = vand.u32 %v2154, 4294901760
    %v2156 = vsub.f32 %v2154, %v2155
    %v2157 = vand.u32 %v2156, 4294901760
    %2158 = vmatmul.mubr.f32.gmra.mrb[0].mxu0 %v2157
    %v2159 = vpop.f32.mrb[0].mxu0
    %v2160 = vadd.f32 0.0, %v2159
    %v2161 = vpop.f32.mrb[0].mxu0
    %v2162 = vadd.f32 0.0, %v2161
    %2163 = vdwg.mxu0
    %v2164 = vand.u32 %v1152, 4294901760
    %v2165 = vsub.f32 %v1152, %v2164
    %v2166 = vand.u32 %v2165, 4294901760
    %v2167 = vsub.f32 %v2165, %v2166
    %v2168 = vand.u32 %v2167, 4294901760
    %2169 = vmatprep.subr.mxu0 %v2168
    %v2170 = vand.u32 %v1151, 4294901760
    %v2171 = vsub.f32 %v1151, %v2170
    %v2172 = vand.u32 %v2171, 4294901760
    %v2173 = vsub.f32 %v2171, %v2172
    %v2174 = vand.u32 %v2173, 4294901760
    %2175 = vmatpush1.msra.mxu0 %v2174
    %v2176 = vand.u32 %v1154, 4294901760
    %v2177 = vsub.f32 %v1154, %v2176
    %v2178 = vand.u32 %v2177, 4294901760
    %v2179 = vsub.f32 %v2177, %v2178
    %v2180 = vand.u32 %v2179, 4294901760
    %2181 = vmatprep.subr.mxu0 %v2180
    %v2182 = vand.u32 %v1153, 4294901760
    %v2183 = vsub.f32 %v1153, %v2182
    %v2184 = vand.u32 %v2183, 4294901760
    %v2185 = vsub.f32 %v2183, %v2184
    %v2186 = vand.u32 %v2185, 4294901760
    %2187 = vmatpush1.msra.mxu0 %v2186
    %v2188 = vand.u32 %v1156, 4294901760
    %v2189 = vsub.f32 %v1156, %v2188
    %v2190 = vand.u32 %v2189, 4294901760
    %v2191 = vsub.f32 %v2189, %v2190
    %v2192 = vand.u32 %v2191, 4294901760
    %2193 = vmatprep.subr.mxu0 %v2192
    %v2194 = vand.u32 %v1155, 4294901760
    %v2195 = vsub.f32 %v1155, %v2194
    %v2196 = vand.u32 %v2195, 4294901760
    %v2197 = vsub.f32 %v2195, %v2196
    %v2198 = vand.u32 %v2197, 4294901760
    %2199 = vmatpush1.msra.mxu0 %v2198
    %v2200 = vand.u32 %v1158, 4294901760
    %v2201 = vsub.f32 %v1158, %v2200
    %v2202 = vand.u32 %v2201, 4294901760
    %v2203 = vsub.f32 %v2201, %v2202
    %v2204 = vand.u32 %v2203, 4294901760
    %2205 = vmatprep.subr.mxu0 %v2204
    %v2206 = vand.u32 %v1157, 4294901760
    %v2207 = vsub.f32 %v1157, %v2206
    %v2208 = vand.u32 %v2207, 4294901760
    %v2209 = vsub.f32 %v2207, %v2208
    %v2210 = vand.u32 %v2209, 4294901760
    %2211 = vmatpush1.msra.mxu0 %v2210
    %2212 = vmatprep.subr.mxu0 0.0
    %2213 = vmatpush1.msra.mxu0 0.0
    %2214 = vmatprep.subr.mxu0 0.0
    %2215 = vmatpush1.msra.mxu0 0.0
    %2216 = vmatprep.subr.mxu0 0.0
    %2217 = vmatpush1.msra.mxu0 0.0
    %2218 = vmatprep.subr.mxu0 0.0
    %2219 = vmatpush1.msra.mxu0 0.0
    %2220 = vmatprep.subr.mxu0 0.0
    %2221 = vmatpush1.msra.mxu0 0.0
    %2222 = vmatprep.subr.mxu0 0.0
    %2223 = vmatpush1.msra.mxu0 0.0
    %2224 = vmatprep.subr.mxu0 0.0
    %2225 = vmatpush1.msra.mxu0 0.0
    %2226 = vmatprep.subr.mxu0 0.0
    %2227 = vmatpush1.msra.mxu0 0.0
    %2228 = vmatprep.subr.mxu0 0.0
    %2229 = vmatpush1.msra.mxu0 0.0
    %2230 = vmatprep.subr.mxu0 0.0
    %2231 = vmatpush1.msra.mxu0 0.0
    %2232 = vmatprep.subr.mxu0 0.0
    %2233 = vmatpush1.msra.mxu0 0.0
    %2234 = vmatprep.subr.mxu0 0.0
    %2235 = vmatpush1.msra.mxu0 0.0
    %2236 = vmatprep.subr.mxu0 0.0
    %2237 = vmatpush1.msra.mxu0 0.0
    %2238 = vmatprep.subr.mxu0 0.0
    %2239 = vmatpush1.msra.mxu0 0.0
    %2240 = vmatprep.subr.mxu0 0.0
    %2241 = vmatpush1.msra.mxu0 0.0
    %2242 = vmatprep.subr.mxu0 0.0
    %2243 = vmatpush1.msra.mxu0 0.0
    %2244 = vmatprep.subr.mxu0 0.0
    %2245 = vmatpush1.msra.mxu0 0.0
    %2246 = vmatprep.subr.mxu0 0.0
    %2247 = vmatpush1.msra.mxu0 0.0
    %2248 = vmatprep.subr.mxu0 0.0
    %2249 = vmatpush1.msra.mxu0 0.0
    %2250 = vmatprep.subr.mxu0 0.0
    %2251 = vmatpush1.msra.mxu0 0.0
    %2252 = vmatprep.subr.mxu0 0.0
    %2253 = vmatpush1.msra.mxu0 0.0
    %2254 = vmatprep.subr.mxu0 0.0
    %2255 = vmatpush1.msra.mxu0 0.0
    %2256 = vmatprep.subr.mxu0 0.0
    %2257 = vmatpush1.msra.mxu0 0.0
    %2258 = vmatprep.subr.mxu0 0.0
    %2259 = vmatpush1.msra.mxu0 0.0
    %2260 = vmatprep.subr.mxu0 0.0
    %2261 = vmatpush1.msra.mxu0 0.0
    %2262 = vmatprep.subr.mxu0 0.0
    %2263 = vmatpush1.msra.mxu0 0.0
    %2264 = vmatprep.subr.mxu0 0.0
    %2265 = vmatpush1.msra.mxu0 0.0
    %2266 = vmatprep.subr.mxu0 0.0
    %2267 = vmatpush1.msra.mxu0 0.0
    %2268 = vmatprep.mubr.f32.mxu0 0.0
    %v2269 = vand.u32 %v2078, 4294901760
    %2270 = vmatmul.mubr.f32.gmra.mrb[0].mxu0 %v2269
    %v2271 = vpop.f32.mrb[0].mxu0
    %v2272 = vadd.f32 %v2160, %v2271
    %v2273 = vpop.f32.mrb[0].mxu0
    %v2274 = vadd.f32 %v2162, %v2273
    %2275 = vdwg.mxu0
    %v2276 = vand.u32 %v1152, 4294901760
    %v2277 = vsub.f32 %v1152, %v2276
    %2278 = vmatprep.subr.mxu0 %v2277
    %v2279 = vand.u32 %v1151, 4294901760
    %v2280 = vsub.f32 %v1151, %v2279
    %2281 = vmatpush1.msra.mxu0 %v2280
    %v2282 = vand.u32 %v1154, 4294901760
    %v2283 = vsub.f32 %v1154, %v2282
    %2284 = vmatprep.subr.mxu0 %v2283
    %v2285 = vand.u32 %v1153, 4294901760
    %v2286 = vsub.f32 %v1153, %v2285
    %2287 = vmatpush1.msra.mxu0 %v2286
    %v2288 = vand.u32 %v1156, 4294901760
    %v2289 = vsub.f32 %v1156, %v2288
    %2290 = vmatprep.subr.mxu0 %v2289
    %v2291 = vand.u32 %v1155, 4294901760
    %v2292 = vsub.f32 %v1155, %v2291
    %2293 = vmatpush1.msra.mxu0 %v2292
    %v2294 = vand.u32 %v1158, 4294901760
    %v2295 = vsub.f32 %v1158, %v2294
    %2296 = vmatprep.subr.mxu0 %v2295
    %v2297 = vand.u32 %v1157, 4294901760
    %v2298 = vsub.f32 %v1157, %v2297
    %2299 = vmatpush1.msra.mxu0 %v2298
    %2300 = vmatprep.subr.mxu0 0.0
    %2301 = vmatpush1.msra.mxu0 0.0
    %2302 = vmatprep.subr.mxu0 0.0
    %2303 = vmatpush1.msra.mxu0 0.0
    %2304 = vmatprep.subr.mxu0 0.0
    %2305 = vmatpush1.msra.mxu0 0.0
    %2306 = vmatprep.subr.mxu0 0.0
    %2307 = vmatpush1.msra.mxu0 0.0
    %2308 = vmatprep.subr.mxu0 0.0
    %2309 = vmatpush1.msra.mxu0 0.0
    %2310 = vmatprep.subr.mxu0 0.0
    %2311 = vmatpush1.msra.mxu0 0.0
    %2312 = vmatprep.subr.mxu0 0.0
    %2313 = vmatpush1.msra.mxu0 0.0
    %2314 = vmatprep.subr.mxu0 0.0
    %2315 = vmatpush1.msra.mxu0 0.0
    %2316 = vmatprep.subr.mxu0 0.0
    %2317 = vmatpush1.msra.mxu0 0.0
    %2318 = vmatprep.subr.mxu0 0.0
    %2319 = vmatpush1.msra.mxu0 0.0
    %2320 = vmatprep.subr.mxu0 0.0
    %2321 = vmatpush1.msra.mxu0 0.0
    %2322 = vmatprep.subr.mxu0 0.0
    %2323 = vmatpush1.msra.mxu0 0.0
    %2324 = vmatprep.subr.mxu0 0.0
    %2325 = vmatpush1.msra.mxu0 0.0
    %2326 = vmatprep.subr.mxu0 0.0
    %2327 = vmatpush1.msra.mxu0 0.0
    %2328 = vmatprep.subr.mxu0 0.0
    %2329 = vmatpush1.msra.mxu0 0.0
    %2330 = vmatprep.subr.mxu0 0.0
    %2331 = vmatpush1.msra.mxu0 0.0
    %2332 = vmatprep.subr.mxu0 0.0
    %2333 = vmatpush1.msra.mxu0 0.0
    %2334 = vmatprep.subr.mxu0 0.0
    %2335 = vmatpush1.msra.mxu0 0.0
    %2336 = vmatprep.subr.mxu0 0.0
    %2337 = vmatpush1.msra.mxu0 0.0
    %2338 = vmatprep.subr.mxu0 0.0
    %2339 = vmatpush1.msra.mxu0 0.0
    %2340 = vmatprep.subr.mxu0 0.0
    %2341 = vmatpush1.msra.mxu0 0.0
    %2342 = vmatprep.subr.mxu0 0.0
    %2343 = vmatpush1.msra.mxu0 0.0
    %2344 = vmatprep.subr.mxu0 0.0
    %2345 = vmatpush1.msra.mxu0 0.0
    %2346 = vmatprep.subr.mxu0 0.0
    %2347 = vmatpush1.msra.mxu0 0.0
    %2348 = vmatprep.subr.mxu0 0.0
    %2349 = vmatpush1.msra.mxu0 0.0
    %2350 = vmatprep.subr.mxu0 0.0
    %2351 = vmatpush1.msra.mxu0 0.0
    %2352 = vmatprep.subr.mxu0 0.0
    %2353 = vmatpush1.msra.mxu0 0.0
    %2354 = vmatprep.subr.mxu0 0.0
    %2355 = vmatpush1.msra.mxu0 0.0
    %2356 = vmatprep.mubr.f32.mxu0 0.0
    %v2357 = vand.u32 %v2078, 4294901760
    %v2358 = vsub.f32 %v2078, %v2357
    %2359 = vmatmul.mubr.f32.gmra.mrb[0].mxu0 %v2358
    %v2360 = vpop.f32.mrb[0].mxu0
    %v2361 = vadd.f32 %v2272, %v2360
    %v2362 = vpop.f32.mrb[0].mxu0
    %v2363 = vadd.f32 %v2274, %v2362
    %2364 = vdwg.mxu0
    %v2365 = vand.u32 %v1152, 4294901760
    %2366 = vmatprep.subr.mxu0 %v2365
    %v2367 = vand.u32 %v1151, 4294901760
    %2368 = vmatpush1.msra.mxu0 %v2367
    %v2369 = vand.u32 %v1154, 4294901760
    %2370 = vmatprep.subr.mxu0 %v2369
    %v2371 = vand.u32 %v1153, 4294901760
    %2372 = vmatpush1.msra.mxu0 %v2371
    %v2373 = vand.u32 %v1156, 4294901760
    %2374 = vmatprep.subr.mxu0 %v2373
    %v2375 = vand.u32 %v1155, 4294901760
    %2376 = vmatpush1.msra.mxu0 %v2375
    %v2377 = vand.u32 %v1158, 4294901760
    %2378 = vmatprep.subr.mxu0 %v2377
    %v2379 = vand.u32 %v1157, 4294901760
    %2380 = vmatpush1.msra.mxu0 %v2379
    %2381 = vmatprep.subr.mxu0 0.0
    %2382 = vmatpush1.msra.mxu0 0.0
    %2383 = vmatprep.subr.mxu0 0.0
    %2384 = vmatpush1.msra.mxu0 0.0
    %2385 = vmatprep.subr.mxu0 0.0
    %2386 = vmatpush1.msra.mxu0 0.0
    %2387 = vmatprep.subr.mxu0 0.0
    %2388 = vmatpush1.msra.mxu0 0.0
    %2389 = vmatprep.subr.mxu0 0.0
    %2390 = vmatpush1.msra.mxu0 0.0
    %2391 = vmatprep.subr.mxu0 0.0
    %2392 = vmatpush1.msra.mxu0 0.0
    %2393 = vmatprep.subr.mxu0 0.0
    %2394 = vmatpush1.msra.mxu0 0.0
    %2395 = vmatprep.subr.mxu0 0.0
    %2396 = vmatpush1.msra.mxu0 0.0
    %2397 = vmatprep.subr.mxu0 0.0
    %2398 = vmatpush1.msra.mxu0 0.0
    %2399 = vmatprep.subr.mxu0 0.0
    %2400 = vmatpush1.msra.mxu0 0.0
    %2401 = vmatprep.subr.mxu0 0.0
    %2402 = vmatpush1.msra.mxu0 0.0
    %2403 = vmatprep.subr.mxu0 0.0
    %2404 = vmatpush1.msra.mxu0 0.0
    %2405 = vmatprep.subr.mxu0 0.0
    %2406 = vmatpush1.msra.mxu0 0.0
    %2407 = vmatprep.subr.mxu0 0.0
    %2408 = vmatpush1.msra.mxu0 0.0
    %2409 = vmatprep.subr.mxu0 0.0
    %2410 = vmatpush1.msra.mxu0 0.0
    %2411 = vmatprep.subr.mxu0 0.0
    %2412 = vmatpush1.msra.mxu0 0.0
    %2413 = vmatprep.subr.mxu0 0.0
    %2414 = vmatpush1.msra.mxu0 0.0
    %2415 = vmatprep.subr.mxu0 0.0
    %2416 = vmatpush1.msra.mxu0 0.0
    %2417 = vmatprep.subr.mxu0 0.0
    %2418 = vmatpush1.msra.mxu0 0.0
    %2419 = vmatprep.subr.mxu0 0.0
    %2420 = vmatpush1.msra.mxu0 0.0
    %2421 = vmatprep.subr.mxu0 0.0
    %2422 = vmatpush1.msra.mxu0 0.0
    %2423 = vmatprep.subr.mxu0 0.0
    %2424 = vmatpush1.msra.mxu0 0.0
    %2425 = vmatprep.subr.mxu0 0.0
    %2426 = vmatpush1.msra.mxu0 0.0
    %2427 = vmatprep.subr.mxu0 0.0
    %2428 = vmatpush1.msra.mxu0 0.0
    %2429 = vmatprep.subr.mxu0 0.0
    %2430 = vmatpush1.msra.mxu0 0.0
    %2431 = vmatprep.subr.mxu0 0.0
    %2432 = vmatpush1.msra.mxu0 0.0
    %2433 = vmatprep.subr.mxu0 0.0
    %2434 = vmatpush1.msra.mxu0 0.0
    %2435 = vmatprep.subr.mxu0 0.0
    %2436 = vmatpush1.msra.mxu0 0.0
    %2437 = vmatprep.mubr.f32.mxu0 0.0
    %v2438 = vand.u32 %v2078, 4294901760
    %v2439 = vsub.f32 %v2078, %v2438
    %v2440 = vand.u32 %v2439, 4294901760
    %2441 = vmatmul.mubr.f32.gmra.mrb[0].mxu0 %v2440
    %v2442 = vpop.f32.mrb[0].mxu0
    %v2443 = vadd.f32 %v2361, %v2442
    %v2444 = vpop.f32.mrb[0].mxu0
    %v2445 = vadd.f32 %v2363, %v2444
    %2446 = vdwg.mxu0
    %v2447 = vand.u32 %v1152, 4294901760
    %v2448 = vsub.f32 %v1152, %v2447
    %v2449 = vand.u32 %v2448, 4294901760
    %2450 = vmatprep.subr.mxu0 %v2449
    %v2451 = vand.u32 %v1151, 4294901760
    %v2452 = vsub.f32 %v1151, %v2451
    %v2453 = vand.u32 %v2452, 4294901760
    %2454 = vmatpush1.msra.mxu0 %v2453
    %v2455 = vand.u32 %v1154, 4294901760
    %v2456 = vsub.f32 %v1154, %v2455
    %v2457 = vand.u32 %v2456, 4294901760
    %2458 = vmatprep.subr.mxu0 %v2457
    %v2459 = vand.u32 %v1153, 4294901760
    %v2460 = vsub.f32 %v1153, %v2459
    %v2461 = vand.u32 %v2460, 4294901760
    %2462 = vmatpush1.msra.mxu0 %v2461
    %v2463 = vand.u32 %v1156, 4294901760
    %v2464 = vsub.f32 %v1156, %v2463
    %v2465 = vand.u32 %v2464, 4294901760
    %2466 = vmatprep.subr.mxu0 %v2465
    %v2467 = vand.u32 %v1155, 4294901760
    %v2468 = vsub.f32 %v1155, %v2467
    %v2469 = vand.u32 %v2468, 4294901760
    %2470 = vmatpush1.msra.mxu0 %v2469
    %v2471 = vand.u32 %v1158, 4294901760
    %v2472 = vsub.f32 %v1158, %v2471
    %v2473 = vand.u32 %v2472, 4294901760
    %2474 = vmatprep.subr.mxu0 %v2473
    %v2475 = vand.u32 %v1157, 4294901760
    %v2476 = vsub.f32 %v1157, %v2475
    %v2477 = vand.u32 %v2476, 4294901760
    %2478 = vmatpush1.msra.mxu0 %v2477
    %2479 = vmatprep.subr.mxu0 0.0
    %2480 = vmatpush1.msra.mxu0 0.0
    %2481 = vmatprep.subr.mxu0 0.0
    %2482 = vmatpush1.msra.mxu0 0.0
    %2483 = vmatprep.subr.mxu0 0.0
    %2484 = vmatpush1.msra.mxu0 0.0
    %2485 = vmatprep.subr.mxu0 0.0
    %2486 = vmatpush1.msra.mxu0 0.0
    %2487 = vmatprep.subr.mxu0 0.0
    %2488 = vmatpush1.msra.mxu0 0.0
    %2489 = vmatprep.subr.mxu0 0.0
    %2490 = vmatpush1.msra.mxu0 0.0
    %2491 = vmatprep.subr.mxu0 0.0
    %2492 = vmatpush1.msra.mxu0 0.0
    %2493 = vmatprep.subr.mxu0 0.0
    %2494 = vmatpush1.msra.mxu0 0.0
    %2495 = vmatprep.subr.mxu0 0.0
    %2496 = vmatpush1.msra.mxu0 0.0
    %2497 = vmatprep.subr.mxu0 0.0
    %2498 = vmatpush1.msra.mxu0 0.0
    %2499 = vmatprep.subr.mxu0 0.0
    %2500 = vmatpush1.msra.mxu0 0.0
    %2501 = vmatprep.subr.mxu0 0.0
    %2502 = vmatpush1.msra.mxu0 0.0
    %2503 = vmatprep.subr.mxu0 0.0
    %2504 = vmatpush1.msra.mxu0 0.0
    %2505 = vmatprep.subr.mxu0 0.0
    %2506 = vmatpush1.msra.mxu0 0.0
    %2507 = vmatprep.subr.mxu0 0.0
    %2508 = vmatpush1.msra.mxu0 0.0
    %2509 = vmatprep.subr.mxu0 0.0
    %2510 = vmatpush1.msra.mxu0 0.0
    %2511 = vmatprep.subr.mxu0 0.0
    %2512 = vmatpush1.msra.mxu0 0.0
    %2513 = vmatprep.subr.mxu0 0.0
    %2514 = vmatpush1.msra.mxu0 0.0
    %2515 = vmatprep.subr.mxu0 0.0
    %2516 = vmatpush1.msra.mxu0 0.0
    %2517 = vmatprep.subr.mxu0 0.0
    %2518 = vmatpush1.msra.mxu0 0.0
    %2519 = vmatprep.subr.mxu0 0.0
    %2520 = vmatpush1.msra.mxu0 0.0
    %2521 = vmatprep.subr.mxu0 0.0
    %2522 = vmatpush1.msra.mxu0 0.0
    %2523 = vmatprep.subr.mxu0 0.0
    %2524 = vmatpush1.msra.mxu0 0.0
    %2525 = vmatprep.subr.mxu0 0.0
    %2526 = vmatpush1.msra.mxu0 0.0
    %2527 = vmatprep.subr.mxu0 0.0
    %2528 = vmatpush1.msra.mxu0 0.0
    %2529 = vmatprep.subr.mxu0 0.0
    %2530 = vmatpush1.msra.mxu0 0.0
    %2531 = vmatprep.subr.mxu0 0.0
    %2532 = vmatpush1.msra.mxu0 0.0
    %2533 = vmatprep.subr.mxu0 0.0
    %2534 = vmatpush1.msra.mxu0 0.0
    %2535 = vmatprep.mubr.f32.mxu0 0.0
    %v2536 = vand.u32 %v2078, 4294901760
    %2537 = vmatmul.mubr.f32.gmra.mrb[0].mxu0 %v2536
    %v2538 = vpop.f32.mrb[0].mxu0
    %v2539 = vadd.f32 %v2443, %v2538
    %v2540 = vpop.f32.mrb[0].mxu0
    %v2541 = vadd.f32 %v2445, %v2540
    %2542 = vdwg.mxu0
    %v2543 = vand.u32 %v1152, 4294901760
    %2544 = vmatprep.subr.mxu0 %v2543
    %v2545 = vand.u32 %v1151, 4294901760
    %2546 = vmatpush1.msra.mxu0 %v2545
    %v2547 = vand.u32 %v1154, 4294901760
    %2548 = vmatprep.subr.mxu0 %v2547
    %v2549 = vand.u32 %v1153, 4294901760
    %2550 = vmatpush1.msra.mxu0 %v2549
    %v2551 = vand.u32 %v1156, 4294901760
    %2552 = vmatprep.subr.mxu0 %v2551
    %v2553 = vand.u32 %v1155, 4294901760
    %2554 = vmatpush1.msra.mxu0 %v2553
    %v2555 = vand.u32 %v1158, 4294901760
    %2556 = vmatprep.subr.mxu0 %v2555
    %v2557 = vand.u32 %v1157, 4294901760
    %2558 = vmatpush1.msra.mxu0 %v2557
    %2559 = vmatprep.subr.mxu0 0.0
    %2560 = vmatpush1.msra.mxu0 0.0
    %2561 = vmatprep.subr.mxu0 0.0
    %2562 = vmatpush1.msra.mxu0 0.0
    %2563 = vmatprep.subr.mxu0 0.0
    %2564 = vmatpush1.msra.mxu0 0.0
    %2565 = vmatprep.subr.mxu0 0.0
    %2566 = vmatpush1.msra.mxu0 0.0
    %2567 = vmatprep.subr.mxu0 0.0
    %2568 = vmatpush1.msra.mxu0 0.0
    %2569 = vmatprep.subr.mxu0 0.0
    %2570 = vmatpush1.msra.mxu0 0.0
    %2571 = vmatprep.subr.mxu0 0.0
    %2572 = vmatpush1.msra.mxu0 0.0
    %2573 = vmatprep.subr.mxu0 0.0
    %2574 = vmatpush1.msra.mxu0 0.0
    %2575 = vmatprep.subr.mxu0 0.0
    %2576 = vmatpush1.msra.mxu0 0.0
    %2577 = vmatprep.subr.mxu0 0.0
    %2578 = vmatpush1.msra.mxu0 0.0
    %2579 = vmatprep.subr.mxu0 0.0
    %2580 = vmatpush1.msra.mxu0 0.0
    %2581 = vmatprep.subr.mxu0 0.0
    %2582 = vmatpush1.msra.mxu0 0.0
    %2583 = vmatprep.subr.mxu0 0.0
    %2584 = vmatpush1.msra.mxu0 0.0
    %2585 = vmatprep.subr.mxu0 0.0
    %2586 = vmatpush1.msra.mxu0 0.0
    %2587 = vmatprep.subr.mxu0 0.0
    %2588 = vmatpush1.msra.mxu0 0.0
    %2589 = vmatprep.subr.mxu0 0.0
    %2590 = vmatpush1.msra.mxu0 0.0
    %2591 = vmatprep.subr.mxu0 0.0
    %2592 = vmatpush1.msra.mxu0 0.0
    %2593 = vmatprep.subr.mxu0 0.0
    %2594 = vmatpush1.msra.mxu0 0.0
    %2595 = vmatprep.subr.mxu0 0.0
    %2596 = vmatpush1.msra.mxu0 0.0
    %2597 = vmatprep.subr.mxu0 0.0
    %2598 = vmatpush1.msra.mxu0 0.0
    %2599 = vmatprep.subr.mxu0 0.0
    %2600 = vmatpush1.msra.mxu0 0.0
    %2601 = vmatprep.subr.mxu0 0.0
    %2602 = vmatpush1.msra.mxu0 0.0
    %2603 = vmatprep.subr.mxu0 0.0
    %2604 = vmatpush1.msra.mxu0 0.0
    %2605 = vmatprep.subr.mxu0 0.0
    %2606 = vmatpush1.msra.mxu0 0.0
    %2607 = vmatprep.subr.mxu0 0.0
    %2608 = vmatpush1.msra.mxu0 0.0
    %2609 = vmatprep.subr.mxu0 0.0
    %2610 = vmatpush1.msra.mxu0 0.0
    %2611 = vmatprep.subr.mxu0 0.0
    %2612 = vmatpush1.msra.mxu0 0.0
    %2613 = vmatprep.subr.mxu0 0.0
    %2614 = vmatpush1.msra.mxu0 0.0
    %2615 = vmatprep.mubr.f32.mxu0 0.0
    %v2616 = vand.u32 %v2078, 4294901760
    %2617 = vmatmul.mubr.f32.gmra.mrb[0].mxu0 %v2616
    %v2618 = vpop.f32.mrb[0].mxu0
    %v2619 = vadd.f32 %v2539, %v2618
    %v2620 = vpop.f32.mrb[0].mxu0
    %v2621 = vadd.f32 %v2541, %v2620
    %2622 = vdwg.mxu0
    %v2623 = vlaneseq
    %v2624 = vshrl.u32 %v2623, 7
    %v2625 = vsub.s32 0, %v2624
    %v2626 = vrot.slane %v2619, %v2625
    %v2627 = vlaneseq
    %v2628 = vshrl.u32 %v2627, 7
    %v2629 = vsub.s32 0, %v2628
    %v2630 = vrot.slane %v2621, %v2629
    %v2631 = vmul.f32 %v1111, %v2626
    %v2632 = vmul.f32 %v1112, %v2630
    %v2633 = vmul.f32 %v1113, %v2626
    %v2634 = vmul.f32 %v1114, %v2630
    %v2635 = vlaneseq
    %v2636 = vshrl.u32 %v2635, 7
    %v2637 = vsub.s32 1, %v2636
    %v2638 = vrot.slane %v2619, %v2637
    %v2639 = vlaneseq
    %v2640 = vshrl.u32 %v2639, 7
    %v2641 = vsub.s32 1, %v2640
    %v2642 = vrot.slane %v2621, %v2641
    %v2643 = vadd.f32 %v2631, %v2638
    %v2644 = vadd.f32 %v2632, %v2642
    %v2645 = vadd.f32 %v2633, %v2638
    %v2646 = vadd.f32 %v2634, %v2642
    %vm2647 = vcmp.ge.f32.partialorder %v2643, 0.0
    %vm2648 = vcmp.ge.f32.partialorder %v2644, 0.0
    %vm2649 = vcmp.ge.f32.partialorder %v2645, 0.0
    %vm2650 = vcmp.ge.f32.partialorder %v2646, 0.0
    %v2651 = vmul.f32 %v2643, 0.2
    %v2652 = vmul.f32 %v2644, 0.2
    %v2653 = vmul.f32 %v2645, 0.2
    %v2654 = vmul.f32 %v2646, 0.2
    %v2655 = vsel %vm2647, %v2643, %v2651
    %v2656 = vsel %vm2648, %v2644, %v2652
    %v2657 = vsel %vm2649, %v2645, %v2653
    %v2658 = vsel %vm2650, %v2646, %v2654
    %s2659 = smul.u32 4, 132
    %s2660 = smul.u32 %s2659, 2
    %s2661 = sshll.u32 %s2660, 4
    %2662 = dma.done %s97, %s2661
    %v2663 = vld [vmem:[#allocation2 + $0x640] sm:$0xff]
    %v2664 = vld [vmem:[#allocation2 + $0x650] sm:$0xff]
    %v2665 = vpack.c.bf16 %v2657, %v2655
    %v2666 = vpack.c.bf16 %v2658, %v2656
    %vm2667 = vcmask 130048
    %v2669 = vsel %vm2667, %v2663, 0
    %v2672 = vsel %vm2667, %v2664, 0
    %2674 = vmatprep.subr.bf16.mxu0 %v2666
    %2675 = vmatpush1.bf16.msra.mxu0 %v2665
    %2676 = vmatprep.subr.bf16.mxu0 0
    %2677 = vmatpush1.bf16.msra.mxu0 0
    %2678 = vmatprep.subr.bf16.mxu0 0
    %2679 = vmatpush1.bf16.msra.mxu0 0
    %2680 = vmatprep.subr.bf16.mxu0 0
    %2681 = vmatpush1.bf16.msra.mxu0 0
    %2682 = vmatprep.subr.bf16.mxu0 0
    %2683 = vmatpush1.bf16.msra.mxu0 0
    %2684 = vmatprep.subr.bf16.mxu0 0
    %2685 = vmatpush1.bf16.msra.mxu0 0
    %2686 = vmatprep.subr.bf16.mxu0 0
    %2687 = vmatpush1.bf16.msra.mxu0 0
    %2688 = vmatprep.subr.bf16.mxu0 0
    %2689 = vmatpush1.bf16.msra.mxu0 0
    %2690 = vmatprep.subr.bf16.mxu0 0
    %2691 = vmatpush1.bf16.msra.mxu0 0
    %2692 = vmatprep.subr.bf16.mxu0 0
    %2693 = vmatpush1.bf16.msra.mxu0 0
    %2694 = vmatprep.subr.bf16.mxu0 0
    %2695 = vmatpush1.bf16.msra.mxu0 0
    %2696 = vmatprep.subr.bf16.mxu0 0
    %2697 = vmatpush1.bf16.msra.mxu0 0
    %2698 = vmatprep.subr.bf16.mxu0 0
    %2699 = vmatpush1.bf16.msra.mxu0 0
    %2700 = vmatprep.subr.bf16.mxu0 0
    %2701 = vmatpush1.bf16.msra.mxu0 0
    %2702 = vmatprep.subr.bf16.mxu0 0
    %2703 = vmatpush1.bf16.msra.mxu0 0
    %2704 = vmatprep.subr.bf16.mxu0 0
    %2705 = vmatpush1.bf16.msra.mxu0 0
    %2706 = vmatprep.mubr.bf16.mxu0 0
    %2707 = vmatmul.mubr.bf16.gmra.mrb[0].mxu0 %v2669
    %v2708 = vpop.f32.mrb[0].mxu0
    %v2709 = vadd.f32 0.0, %v2708
    %v2710 = vpop.f32.mrb[0].mxu0
    %v2711 = vadd.f32 0.0, %v2710
    %v2712 = vpop.f32.mrb[0].mxu0
    %v2713 = vadd.f32 0.0, %v2712
    %v2714 = vpop.f32.mrb[0].mxu0
    %v2715 = vadd.f32 0.0, %v2714
    %2716 = vmatprep.mubr.bf16.mxu0 0
    %2717 = vmatmul.mubr.bf16.gmra.mrb[0].mxu0 %v2672
    %v2718 = vpop.f32.mrb[0].mxu0
    %v2719 = vadd.f32 0.0, %v2718
    %v2720 = vpop.f32.mrb[0].mxu0
    %v2721 = vadd.f32 0.0, %v2720
    %v2722 = vpop.f32.mrb[0].mxu0
    %v2723 = vadd.f32 0.0, %v2722
    %v2724 = vpop.f32.mrb[0].mxu0
    %v2725 = vadd.f32 0.0, %v2724
    %2726 = vdwg.mxu0
    %v2727 = vpack.c.bf16 %v2713, %v2709
    %v2728 = vpack.c.bf16 %v2715, %v2711
    %v2729 = vpack.c.bf16 %v2723, %v2719
    %v2730 = vpack.c.bf16 %v2725, %v2721
    %v2731 = vld [vmem:[#allocation2 + $0x660] sm:$0xff]
    %v2732 = vld [vmem:[#allocation2 + $0x668] sm:$0xff]
    %v2733 = vld [vmem:[#allocation2 + $0x670] sm:$0xff]
    %v2734 = vld [vmem:[#allocation2 + $0x678] sm:$0xff]
    %v2735 = vld [vmem:[#allocation2 + $0x680] sm:$0xff]
    %v2736 = vld [vmem:[#allocation2 + $0x688] sm:$0xff]
    %v2737 = vld [vmem:[#allocation2 + $0x690] sm:$0xff]
    %v2738 = vld [vmem:[#allocation2 + $0x698] sm:$0xff]
    %v2739 = vld [vmem:[#allocation2 + $0x6a0] sm:$0xff]
    %v2740 = vld [vmem:[#allocation2 + $0x6a8] sm:$0xff]
    %v2741 = vld [vmem:[#allocation2 + $0x6b0] sm:$0xff]
    %v2742 = vld [vmem:[#allocation2 + $0x6b8] sm:$0xff]
    %v2743 = vld [vmem:[#allocation2 + $0x6c0] sm:$0xff]
    %v2744 = vld [vmem:[#allocation2 + $0x6c8] sm:$0xff]
    %v2745 = vld [vmem:[#allocation2 + $0x6d0] sm:$0xff]
    %v2746 = vld [vmem:[#allocation2 + $0x6d8] sm:$0xff]
    %v2747 = vld [vmem:[#allocation2 + $0x6e0] sm:$0xff]
    %v2748 = vld [vmem:[#allocation2 + $0x6e8] sm:$0xff]
    %v2749 = vld [vmem:[#allocation2 + $0x6f0] sm:$0xff]
    %v2750 = vld [vmem:[#allocation2 + $0x6f8] sm:$0xff]
    %v2751 = vld [vmem:[#allocation2 + $0x700] sm:$0xff]
    %v2752 = vld [vmem:[#allocation2 + $0x708] sm:$0xff]
    %v2753 = vld [vmem:[#allocation2 + $0x710] sm:$0xff]
    %v2754 = vld [vmem:[#allocation2 + $0x718] sm:$0xff]
    %v2755 = vld [vmem:[#allocation2 + $0x720] sm:$0xff]
    %v2756 = vld [vmem:[#allocation2 + $0x728] sm:$0xff]
    %v2757 = vld [vmem:[#allocation2 + $0x730] sm:$0xff]
    %v2758 = vld [vmem:[#allocation2 + $0x738] sm:$0xff]
    %v2759 = vld [vmem:[#allocation2 + $0x740] sm:$0xff]
    %v2760 = vld [vmem:[#allocation2 + $0x748] sm:$0xff]
    %v2761 = vld [vmem:[#allocation2 + $0x750] sm:$0xff]
    %v2762 = vld [vmem:[#allocation2 + $0x758] sm:$0xff]
    %v2763 = vld [vmem:[#allocation2 + $0x760] sm:$0xff]
    %v2764 = vld [vmem:[#allocation2 + $0x768] sm:$0xff]
    %v2765 = vld [vmem:[#allocation2 + $0x770] sm:$0xff]
    %v2766 = vld [vmem:[#allocation2 + $0x778] sm:$0xff]
    %v2767 = vld [vmem:[#allocation2 + $0x780] sm:$0xff]
    %v2768 = vld [vmem:[#allocation2 + $0x788] sm:$0xff]
    %v2769 = vld [vmem:[#allocation2 + $0x790] sm:$0xff]
    %v2770 = vld [vmem:[#allocation2 + $0x798] sm:$0xff]
    %v2771 = vld [vmem:[#allocation2 + $0x7a0] sm:$0xff]
    %v2772 = vld [vmem:[#allocation2 + $0x7a8] sm:$0xff]
    %v2773 = vld [vmem:[#allocation2 + $0x7b0] sm:$0xff]
    %v2774 = vld [vmem:[#allocation2 + $0x7b8] sm:$0xff]
    %v2775 = vld [vmem:[#allocation2 + $0x7c0] sm:$0xff]
    %v2776 = vld [vmem:[#allocation2 + $0x7c8] sm:$0xff]
    %v2777 = vld [vmem:[#allocation2 + $0x7d0] sm:$0xff]
    %v2778 = vld [vmem:[#allocation2 + $0x7d8] sm:$0xff]
    %v2779 = vld [vmem:[#allocation2 + $0x7e0] sm:$0xff]
    %v2780 = vld [vmem:[#allocation2 + $0x7e8] sm:$0xff]
    %v2781 = vld [vmem:[#allocation2 + $0x7f0] sm:$0xff]
    %v2782 = vld [vmem:[#allocation2 + $0x7f8] sm:$0xff]
    %v2783 = vld [vmem:[#allocation2 + $0x800] sm:$0xff]
    %v2784 = vld [vmem:[#allocation2 + $0x808] sm:$0xff]
    %v2785 = vld [vmem:[#allocation2 + $0x810] sm:$0xff]
    %v2786 = vld [vmem:[#allocation2 + $0x818] sm:$0xff]
    %v2787 = vld [vmem:[#allocation2 + $0x820] sm:$0xff]
    %v2788 = vld [vmem:[#allocation2 + $0x828] sm:$0xff]
    %v2789 = vld [vmem:[#allocation2 + $0x830] sm:$0xff]
    %v2790 = vld [vmem:[#allocation2 + $0x838] sm:$0xff]
    %v2791 = vld [vmem:[#allocation2 + $0x840] sm:$0xff]
    %v2792 = vld [vmem:[#allocation2 + $0x848] sm:$0xff]
    %v2793 = vld [vmem:[#allocation2 + $0x850] sm:$0xff]
    %v2794 = vld [vmem:[#allocation2 + $0x858] sm:$0xff]
    %v2797 = vrot.slane %v2727, 4
    %v2798 = vrot.slane %v2728, 4
    %2801 = vmatprep.subr.bf16.mxu0 %v2764
    %2802 = vmatpush1.bf16.msra.mxu0 %v2763
    %2803 = vmatprep.subr.bf16.mxu0 %v2766
    %2804 = vmatpush1.bf16.msra.mxu0 %v2765
    %2805 = vmatprep.subr.bf16.mxu0 %v2768
    %2806 = vmatpush1.bf16.msra.mxu0 %v2767
    %2807 = vmatprep.subr.bf16.mxu0 %v2770
    %2808 = vmatpush1.bf16.msra.mxu0 %v2769
    %2809 = vmatprep.subr.bf16.mxu0 %v2772
    %2810 = vmatpush1.bf16.msra.mxu0 %v2771
    %2811 = vmatprep.subr.bf16.mxu0 %v2774
    %2812 = vmatpush1.bf16.msra.mxu0 %v2773
    %2813 = vmatprep.subr.bf16.mxu0 %v2776
    %2814 = vmatpush1.bf16.msra.mxu0 %v2775
    %2815 = vmatprep.subr.bf16.mxu0 %v2778
    %2816 = vmatpush1.bf16.msra.mxu0 %v2777
    %2817 = vmatprep.subr.bf16.mxu0 %v2780
    %2818 = vmatpush1.bf16.msra.mxu0 %v2779
    %2819 = vmatprep.subr.bf16.mxu0 %v2782
    %2820 = vmatpush1.bf16.msra.mxu0 %v2781
    %2821 = vmatprep.subr.bf16.mxu0 %v2784
    %2822 = vmatpush1.bf16.msra.mxu0 %v2783
    %2823 = vmatprep.subr.bf16.mxu0 %v2786
    %2824 = vmatpush1.bf16.msra.mxu0 %v2785
    %2825 = vmatprep.subr.bf16.mxu0 %v2788
    %2826 = vmatpush1.bf16.msra.mxu0 %v2787
    %2827 = vmatprep.subr.bf16.mxu0 %v2790
    %2828 = vmatpush1.bf16.msra.mxu0 %v2789
    %2829 = vmatprep.subr.bf16.mxu0 %v2792
    %2830 = vmatpush1.bf16.msra.mxu0 %v2791
    %2831 = vmatprep.subr.bf16.mxu0 %v2794
    %2832 = vmatpush1.bf16.msra.mxu0 %v2793
    %2833 = vmatprep.mubr.bf16.mxu0 %v2798
    %2834 = vmatmul.mubr.bf16.gmra.mrb[0].mxu0 %v2797
    %v2835 = vpop.f32.mrb[0].mxu0
    %v2836 = vadd.f32 0.0, %v2835
    %v2837 = vpop.f32.mrb[0].mxu0
    %v2838 = vadd.f32 0.0, %v2837
    %v2839 = vpop.f32.mrb[0].mxu0
    %v2840 = vpop.f32.mrb[0].mxu0
    %2841 = vdwg.mxu0
    %v2842 = vld [vmem:[#allocation2 + $0x860] sm:$0xff]
    %v2843 = vld [vmem:[#allocation2 + $0x868] sm:$0xff]
    %v2844 = vld [vmem:[#allocation2 + $0x870] sm:$0xff]
    %v2845 = vld [vmem:[#allocation2 + $0x878] sm:$0xff]
    %v2846 = vld [vmem:[#allocation2 + $0x880] sm:$0xff]
    %v2847 = vld [vmem:[#allocation2 + $0x888] sm:$0xff]
    %v2848 = vld [vmem:[#allocation2 + $0x890] sm:$0xff]
    %v2849 = vld [vmem:[#allocation2 + $0x898] sm:$0xff]
    %v2850 = vld [vmem:[#allocation2 + $0x8a0] sm:$0xff]
    %v2851 = vld [vmem:[#allocation2 + $0x8a8] sm:$0xff]
    %v2852 = vld [vmem:[#allocation2 + $0x8b0] sm:$0xff]
    %v2853 = vld [vmem:[#allocation2 + $0x8b8] sm:$0xff]
    %v2854 = vld [vmem:[#allocation2 + $0x8c0] sm:$0xff]
    %v2855 = vld [vmem:[#allocation2 + $0x8c8] sm:$0xff]
    %v2856 = vld [vmem:[#allocation2 + $0x8d0] sm:$0xff]
    %v2857 = vld [vmem:[#allocation2 + $0x8d8] sm:$0xff]
    %v2858 = vld [vmem:[#allocation2 + $0x8e0] sm:$0xff]
    %v2859 = vld [vmem:[#allocation2 + $0x8e8] sm:$0xff]
    %v2860 = vld [vmem:[#allocation2 + $0x8f0] sm:$0xff]
    %v2861 = vld [vmem:[#allocation2 + $0x8f8] sm:$0xff]
    %v2862 = vld [vmem:[#allocation2 + $0x900] sm:$0xff]
    %v2863 = vld [vmem:[#allocation2 + $0x908] sm:$0xff]
    %v2864 = vld [vmem:[#allocation2 + $0x910] sm:$0xff]
    %v2865 = vld [vmem:[#allocation2 + $0x918] sm:$0xff]
    %v2866 = vld [vmem:[#allocation2 + $0x920] sm:$0xff]
    %v2867 = vld [vmem:[#allocation2 + $0x928] sm:$0xff]
    %v2868 = vld [vmem:[#allocation2 + $0x930] sm:$0xff]
    %v2869 = vld [vmem:[#allocation2 + $0x938] sm:$0xff]
    %v2870 = vld [vmem:[#allocation2 + $0x940] sm:$0xff]
    %v2871 = vld [vmem:[#allocation2 + $0x948] sm:$0xff]
    %v2872 = vld [vmem:[#allocation2 + $0x950] sm:$0xff]
    %v2873 = vld [vmem:[#allocation2 + $0x958] sm:$0xff]
    %v2874 = vld [vmem:[#allocation2 + $0x960] sm:$0xff]
    %v2875 = vld [vmem:[#allocation2 + $0x968] sm:$0xff]
    %v2876 = vld [vmem:[#allocation2 + $0x970] sm:$0xff]
    %v2877 = vld [vmem:[#allocation2 + $0x978] sm:$0xff]
    %v2878 = vld [vmem:[#allocation2 + $0x980] sm:$0xff]
    %v2879 = vld [vmem:[#allocation2 + $0x988] sm:$0xff]
    %v2880 = vld [vmem:[#allocation2 + $0x990] sm:$0xff]
    %v2881 = vld [vmem:[#allocation2 + $0x998] sm:$0xff]
    %v2882 = vld [vmem:[#allocation2 + $0x9a0] sm:$0xff]
    %v2883 = vld [vmem:[#allocation2 + $0x9a8] sm:$0xff]
    %v2884 = vld [vmem:[#allocation2 + $0x9b0] sm:$0xff]
    %v2885 = vld [vmem:[#allocation2 + $0x9b8] sm:$0xff]
    %v2886 = vld [vmem:[#allocation2 + $0x9c0] sm:$0xff]
    %v2887 = vld [vmem:[#allocation2 + $0x9c8] sm:$0xff]
    %v2888 = vld [vmem:[#allocation2 + $0x9d0] sm:$0xff]
    %v2889 = vld [vmem:[#allocation2 + $0x9d8] sm:$0xff]
    %v2890 = vld [vmem:[#allocation2 + $0x9e0] sm:$0xff]
    %v2891 = vld [vmem:[#allocation2 + $0x9e8] sm:$0xff]
    %v2892 = vld [vmem:[#allocation2 + $0x9f0] sm:$0xff]
    %v2893 = vld [vmem:[#allocation2 + $0x9f8] sm:$0xff]
    %v2894 = vld [vmem:[#allocation2 + $0xa00] sm:$0xff]
    %v2895 = vld [vmem:[#allocation2 + $0xa08] sm:$0xff]
    %v2896 = vld [vmem:[#allocation2 + $0xa10] sm:$0xff]
    %v2897 = vld [vmem:[#allocation2 + $0xa18] sm:$0xff]
    %v2898 = vld [vmem:[#allocation2 + $0xa20] sm:$0xff]
    %v2899 = vld [vmem:[#allocation2 + $0xa28] sm:$0xff]
    %v2900 = vld [vmem:[#allocation2 + $0xa30] sm:$0xff]
    %v2901 = vld [vmem:[#allocation2 + $0xa38] sm:$0xff]
    %v2902 = vld [vmem:[#allocation2 + $0xa40] sm:$0xff]
    %v2903 = vld [vmem:[#allocation2 + $0xa48] sm:$0xff]
    %v2904 = vld [vmem:[#allocation2 + $0xa50] sm:$0xff]
    %v2905 = vld [vmem:[#allocation2 + $0xa58] sm:$0xff]
    %v2908 = vrot.slane %v2729, 4
    %v2909 = vrot.slane %v2730, 4
    %2912 = vmatprep.subr.bf16.mxu0 %v2875
    %2913 = vmatpush1.bf16.msra.mxu0 %v2874
    %2914 = vmatprep.subr.bf16.mxu0 %v2877
    %2915 = vmatpush1.bf16.msra.mxu0 %v2876
    %2916 = vmatprep.subr.bf16.mxu0 %v2879
    %2917 = vmatpush1.bf16.msra.mxu0 %v2878
    %2918 = vmatprep.subr.bf16.mxu0 %v2881
    %2919 = vmatpush1.bf16.msra.mxu0 %v2880
    %2920 = vmatprep.subr.bf16.mxu0 %v2883
    %2921 = vmatpush1.bf16.msra.mxu0 %v2882
    %2922 = vmatprep.subr.bf16.mxu0 %v2885
    %2923 = vmatpush1.bf16.msra.mxu0 %v2884
    %2924 = vmatprep.subr.bf16.mxu0 %v2887
    %2925 = vmatpush1.bf16.msra.mxu0 %v2886
    %2926 = vmatprep.subr.bf16.mxu0 %v2889
    %2927 = vmatpush1.bf16.msra.mxu0 %v2888
    %2928 = vmatprep.subr.bf16.mxu0 %v2891
    %2929 = vmatpush1.bf16.msra.mxu0 %v2890
    %2930 = vmatprep.subr.bf16.mxu0 %v2893
    %2931 = vmatpush1.bf16.msra.mxu0 %v2892
    %2932 = vmatprep.subr.bf16.mxu0 %v2895
    %2933 = vmatpush1.bf16.msra.mxu0 %v2894
    %2934 = vmatprep.subr.bf16.mxu0 %v2897
    %2935 = vmatpush1.bf16.msra.mxu0 %v2896
    %2936 = vmatprep.subr.bf16.mxu0 %v2899
    %2937 = vmatpush1.bf16.msra.mxu0 %v2898
    %2938 = vmatprep.subr.bf16.mxu0 %v2901
    %2939 = vmatpush1.bf16.msra.mxu0 %v2900
    %2940 = vmatprep.subr.bf16.mxu0 %v2903
    %2941 = vmatpush1.bf16.msra.mxu0 %v2902
    %2942 = vmatprep.subr.bf16.mxu0 %v2905
    %2943 = vmatpush1.bf16.msra.mxu0 %v2904
    %2944 = vmatprep.mubr.bf16.mxu0 %v2909
    %2945 = vmatmul.mubr.bf16.gmra.mrb[0].mxu0 %v2908
    %v2946 = vpop.f32.mrb[0].mxu0
    %v2947 = vadd.f32 0.0, %v2946
    %v2948 = vpop.f32.mrb[0].mxu0
    %v2949 = vadd.f32 0.0, %v2948
    %v2950 = vpop.f32.mrb[0].mxu0
    %v2951 = vpop.f32.mrb[0].mxu0
    %2952 = vdwg.mxu0
    %2953 = vmatprep.subr.bf16.mxu0 %v2732
    %2954 = vmatpush1.bf16.msra.mxu0 %v2731
    %2955 = vmatprep.subr.bf16.mxu0 %v2734
    %2956 = vmatpush1.bf16.msra.mxu0 %v2733
    %2957 = vmatprep.subr.bf16.mxu0 %v2736
    %2958 = vmatpush1.bf16.msra.mxu0 %v2735
    %2959 = vmatprep.subr.bf16.mxu0 %v2738
    %2960 = vmatpush1.bf16.msra.mxu0 %v2737
    %2961 = vmatprep.subr.bf16.mxu0 %v2740
    %2962 = vmatpush1.bf16.msra.mxu0 %v2739
    %2963 = vmatprep.subr.bf16.mxu0 %v2742
    %2964 = vmatpush1.bf16.msra.mxu0 %v2741
    %2965 = vmatprep.subr.bf16.mxu0 %v2744
    %2966 = vmatpush1.bf16.msra.mxu0 %v2743
    %2967 = vmatprep.subr.bf16.mxu0 %v2746
    %2968 = vmatpush1.bf16.msra.mxu0 %v2745
    %2969 = vmatprep.subr.bf16.mxu0 %v2748
    %2970 = vmatpush1.bf16.msra.mxu0 %v2747
    %2971 = vmatprep.subr.bf16.mxu0 %v2750
    %2972 = vmatpush1.bf16.msra.mxu0 %v2749
    %2973 = vmatprep.subr.bf16.mxu0 %v2752
    %2974 = vmatpush1.bf16.msra.mxu0 %v2751
    %2975 = vmatprep.subr.bf16.mxu0 %v2754
    %2976 = vmatpush1.bf16.msra.mxu0 %v2753
    %2977 = vmatprep.subr.bf16.mxu0 %v2756
    %2978 = vmatpush1.bf16.msra.mxu0 %v2755
    %2979 = vmatprep.subr.bf16.mxu0 %v2758
    %2980 = vmatpush1.bf16.msra.mxu0 %v2757
    %2981 = vmatprep.subr.bf16.mxu0 %v2760
    %2982 = vmatpush1.bf16.msra.mxu0 %v2759
    %2983 = vmatprep.subr.bf16.mxu0 %v2762
    %2984 = vmatpush1.bf16.msra.mxu0 %v2761
    %2985 = vmatprep.mubr.bf16.mxu0 %v2728
    %2986 = vmatmul.mubr.bf16.gmra.mrb[0].mxu0 %v2727
    %v2987 = vpop.f32.mrb[0].mxu0
    %v2988 = vadd.f32 %v2836, %v2987
    %v2989 = vpop.f32.mrb[0].mxu0
    %v2990 = vadd.f32 %v2838, %v2989
    %v2991 = vpop.f32.mrb[0].mxu0
    %v2992 = vpop.f32.mrb[0].mxu0
    %2993 = vdwg.mxu0
    %2994 = vmatprep.subr.bf16.mxu0 %v2843
    %2995 = vmatpush1.bf16.msra.mxu0 %v2842
    %2996 = vmatprep.subr.bf16.mxu0 %v2845
    %2997 = vmatpush1.bf16.msra.mxu0 %v2844
    %2998 = vmatprep.subr.bf16.mxu0 %v2847
    %2999 = vmatpush1.bf16.msra.mxu0 %v2846
    %3000 = vmatprep.subr.bf16.mxu0 %v2849
    %3001 = vmatpush1.bf16.msra.mxu0 %v2848
    %3002 = vmatprep.subr.bf16.mxu0 %v2851
    %3003 = vmatpush1.bf16.msra.mxu0 %v2850
    %3004 = vmatprep.subr.bf16.mxu0 %v2853
    %3005 = vmatpush1.bf16.msra.mxu0 %v2852
    %3006 = vmatprep.subr.bf16.mxu0 %v2855
    %3007 = vmatpush1.bf16.msra.mxu0 %v2854
    %3008 = vmatprep.subr.bf16.mxu0 %v2857
    %3009 = vmatpush1.bf16.msra.mxu0 %v2856
    %3010 = vmatprep.subr.bf16.mxu0 %v2859
    %3011 = vmatpush1.bf16.msra.mxu0 %v2858
    %3012 = vmatprep.subr.bf16.mxu0 %v2861
    %3013 = vmatpush1.bf16.msra.mxu0 %v2860
    %3014 = vmatprep.subr.bf16.mxu0 %v2863
    %3015 = vmatpush1.bf16.msra.mxu0 %v2862
    %3016 = vmatprep.subr.bf16.mxu0 %v2865
    %3017 = vmatpush1.bf16.msra.mxu0 %v2864
    %3018 = vmatprep.subr.bf16.mxu0 %v2867
    %3019 = vmatpush1.bf16.msra.mxu0 %v2866
    %3020 = vmatprep.subr.bf16.mxu0 %v2869
    %3021 = vmatpush1.bf16.msra.mxu0 %v2868
    %3022 = vmatprep.subr.bf16.mxu0 %v2871
    %3023 = vmatpush1.bf16.msra.mxu0 %v2870
    %3024 = vmatprep.subr.bf16.mxu0 %v2873
    %3025 = vmatpush1.bf16.msra.mxu0 %v2872
    %3026 = vmatprep.mubr.bf16.mxu0 %v2730
    %3027 = vmatmul.mubr.bf16.gmra.mrb[0].mxu0 %v2729
    %v3028 = vpop.f32.mrb[0].mxu0
    %v3029 = vadd.f32 %v2947, %v3028
    %v3030 = vpop.f32.mrb[0].mxu0
    %v3031 = vadd.f32 %v2949, %v3030
    %v3032 = vpop.f32.mrb[0].mxu0
    %v3033 = vpop.f32.mrb[0].mxu0
    %3034 = vdwg.mxu0
    %v3035 = vadd.f32 %v2988, %v3029
    %v3036 = vadd.f32 %v2990, %v3031
    %s3037 = smul.u32 8, 41
    %s3038 = smul.u32 %s3037, 2
    %s3039 = sshll.u32 %s3038, 4
    %3040 = dma.done %s134, %s3039
    %v3041 = vld [vmem:[#allocation3 + $0x250] sm:$0xff]
    %v3042 = vld [vmem:[#allocation3 + $0x260] sm:$0xff]
    %v3043 = vld [vmem:[#allocation3 + $0x270] sm:$0xff]
    %v3044 = vld [vmem:[#allocation3 + $0x280] sm:$0xff]
    %v3045 = vld [vmem:[#allocation3 + $0x290] sm:$0xff]
    %v3046 = vld [vmem:[#allocation3 + $0x2a0] sm:$0xff]
    %v3047 = vld [vmem:[#allocation3 + $0x2b0] sm:$0xff]
    %v3048 = vld [vmem:[#allocation3 + $0x2c0] sm:$0xff]
    %v3049 = vld [vmem:[#allocation3 + $0x2d0] sm:$0xff]
    %v3050 = vld [vmem:[#allocation3 + $0x2e0] sm:$0xff]
    %v3051 = vld [vmem:[#allocation3 + $0x2f0] sm:$0xff]
    %v3052 = vld [vmem:[#allocation3 + $0x300] sm:$0xff]
    %v3053 = vld [vmem:[#allocation3 + $0x310] sm:$0xff]
    %v3054 = vld [vmem:[#allocation3 + $0x320] sm:$0xff]
    %v3055 = vld [vmem:[#allocation3 + $0x330] sm:$0xff]
    %v3056 = vld [vmem:[#allocation3 + $0x340] sm:$0xff]
    %v3057 = vld [vmem:[#allocation3 + $0x350] sm:$0xff]
    %v3058 = vld [vmem:[#allocation3 + $0x360] sm:$0xff]
    %v3059 = vld [vmem:[#allocation3 + $0x370] sm:$0xff]
    %v3060 = vld [vmem:[#allocation3 + $0x380] sm:$0xff]
    %v3061 = vld [vmem:[#allocation3 + $0x390] sm:$0xff]
    %v3062 = vld [vmem:[#allocation3 + $0x3a0] sm:$0xff]
    %v3063 = vld [vmem:[#allocation3 + $0x3b0] sm:$0xff]
    %v3064 = vld [vmem:[#allocation3 + $0x3c0] sm:$0xff]
    %v3065 = vld [vmem:[#allocation3 + $0x3d0] sm:$0xff]
    %v3066 = vld [vmem:[#allocation3 + $0x3e0] sm:$0xff]
    %v3067 = vld [vmem:[#allocation3 + $0x3f0] sm:$0xff]
    %v3068 = vld [vmem:[#allocation3 + $0x400] sm:$0xff]
    %v3069 = vld [vmem:[#allocation3 + $0x410] sm:$0xff]
    %v3070 = vld [vmem:[#allocation3 + $0x420] sm:$0xff]
    %v3071 = vld [vmem:[#allocation3 + $0x430] sm:$0xff]
    %v3072 = vld [vmem:[#allocation3 + $0x440] sm:$0xff]
    %v3073 = vld [vmem:[#allocation3 + $0x450] sm:$0xff]
    %v3074 = vld [vmem:[#allocation3 + $0x458] sm:$0xff]
    %v3075 = vld [vmem:[#allocation3 + $0x460] sm:$0xff]
    %v3076 = vld [vmem:[#allocation3 + $0x468] sm:$0xff]
    %v3077 = vld [vmem:[#allocation3 + $0x470] sm:$0xff]
    %v3078 = vld [vmem:[#allocation3 + $0x478] sm:$0xff]
    %v3079 = vld [vmem:[#allocation3 + $0x480] sm:$0xff]
    %v3080 = vld [vmem:[#allocation3 + $0x488] sm:$0xff]
    %v3081 = vld [vmem:[#allocation3 + $0x490] sm:$0xff]
    %v3082 = vld [vmem:[#allocation3 + $0x498] sm:$0xff]
    %v3083 = vld [vmem:[#allocation3 + $0x4a0] sm:$0xff]
    %v3084 = vld [vmem:[#allocation3 + $0x4a8] sm:$0xff]
    %v3085 = vld [vmem:[#allocation3 + $0x4b0] sm:$0xff]
    %v3086 = vld [vmem:[#allocation3 + $0x4b8] sm:$0xff]
    %v3087 = vld [vmem:[#allocation3 + $0x4c0] sm:$0xff]
    %v3088 = vld [vmem:[#allocation3 + $0x4c8] sm:$0xff]
    %v3089 = vld [vmem:[#allocation3 + $0x4d0] sm:$0x3]
    %v3090 = vrot.slane %v3035, 4
    %v3091 = vadd.f32 %v3035, %v3090
    %v3092 = vrot.slane %v3091, 2
    %v3093 = vadd.f32 %v3091, %v3092
    %v3094 = vrot.slane %v3093, 1
    %v3095 = vadd.f32 %v3093, %v3094
    %v3096 = vrot.slane %v3036, 4
    %v3097 = vadd.f32 %v3036, %v3096
    %v3098 = vrot.slane %v3097, 2
    %v3099 = vadd.f32 %v3097, %v3098
    %v3100 = vrot.slane %v3099, 1
    %v3101 = vadd.f32 %v3099, %v3100
    %v3102 = vmul.f32 %v3035, %v3035
    %v3103 = vmul.f32 %v3036, %v3036
    %v3104 = vrot.slane %v3102, 4
    %v3105 = vadd.f32 %v3102, %v3104
    %v3106 = vrot.slane %v3105, 2
    %v3107 = vadd.f32 %v3105, %v3106
    %v3108 = vrot.slane %v3107, 1
    %v3109 = vadd.f32 %v3107, %v3108
    %v3110 = vrot.slane %v3103, 4
    %v3111 = vadd.f32 %v3103, %v3110
    %v3112 = vrot.slane %v3111, 2
    %v3113 = vadd.f32 %v3111, %v3112
    %v3114 = vrot.slane %v3113, 1
    %v3115 = vadd.f32 %v3113, %v3114
    %v3116 = vsel %vm1192, %v3095, %v3109
    %v3117 = vsel %vm1192, %v3101, %v3115
    %3118 = vmatprep.subr.mxu0 0.0
    %v3119 = vand.u32 %v3041, 4294901760
    %3120 = vmatpush1.msra.mxu0 %v3119
    %3121 = vmatprep.subr.mxu0 0.0
    %v3122 = vand.u32 %v3042, 4294901760
    %3123 = vmatpush1.msra.mxu0 %v3122
    %3124 = vmatprep.subr.mxu0 0.0
    %v3125 = vand.u32 %v3043, 4294901760
    %3126 = vmatpush1.msra.mxu0 %v3125
    %3127 = vmatprep.subr.mxu0 0.0
    %v3128 = vand.u32 %v3044, 4294901760
    %3129 = vmatpush1.msra.mxu0 %v3128
    %3130 = vmatprep.subr.mxu0 0.0
    %v3131 = vand.u32 %v3045, 4294901760
    %3132 = vmatpush1.msra.mxu0 %v3131
    %3133 = vmatprep.subr.mxu0 0.0
    %v3134 = vand.u32 %v3046, 4294901760
    %3135 = vmatpush1.msra.mxu0 %v3134
    %3136 = vmatprep.subr.mxu0 0.0
    %v3137 = vand.u32 %v3047, 4294901760
    %3138 = vmatpush1.msra.mxu0 %v3137
    %3139 = vmatprep.subr.mxu0 0.0
    %v3140 = vand.u32 %v3048, 4294901760
    %3141 = vmatpush1.msra.mxu0 %v3140
    %3142 = vmatprep.subr.mxu0 0.0
    %v3143 = vand.u32 %v3049, 4294901760
    %3144 = vmatpush1.msra.mxu0 %v3143
    %3145 = vmatprep.subr.mxu0 0.0
    %v3146 = vand.u32 %v3050, 4294901760
    %3147 = vmatpush1.msra.mxu0 %v3146
    %3148 = vmatprep.subr.mxu0 0.0
    %v3149 = vand.u32 %v3051, 4294901760
    %3150 = vmatpush1.msra.mxu0 %v3149
    %3151 = vmatprep.subr.mxu0 0.0
    %v3152 = vand.u32 %v3052, 4294901760
    %3153 = vmatpush1.msra.mxu0 %v3152
    %3154 = vmatprep.subr.mxu0 0.0
    %v3155 = vand.u32 %v3053, 4294901760
    %3156 = vmatpush1.msra.mxu0 %v3155
    %3157 = vmatprep.subr.mxu0 0.0
    %v3158 = vand.u32 %v3054, 4294901760
    %3159 = vmatpush1.msra.mxu0 %v3158
    %3160 = vmatprep.subr.mxu0 0.0
    %v3161 = vand.u32 %v3055, 4294901760
    %3162 = vmatpush1.msra.mxu0 %v3161
    %3163 = vmatprep.subr.mxu0 0.0
    %v3164 = vand.u32 %v3056, 4294901760
    %3165 = vmatpush1.msra.mxu0 %v3164
    %3166 = vmatprep.subr.mxu0 0.0
    %v3167 = vand.u32 %v3057, 4294901760
    %3168 = vmatpush1.msra.mxu0 %v3167
    %3169 = vmatprep.subr.mxu0 0.0
    %v3170 = vand.u32 %v3058, 4294901760
    %3171 = vmatpush1.msra.mxu0 %v3170
    %3172 = vmatprep.subr.mxu0 0.0
    %v3173 = vand.u32 %v3059, 4294901760
    %3174 = vmatpush1.msra.mxu0 %v3173
    %3175 = vmatprep.subr.mxu0 0.0
    %v3176 = vand.u32 %v3060, 4294901760
    %3177 = vmatpush1.msra.mxu0 %v3176
    %3178 = vmatprep.subr.mxu0 0.0
    %v3179 = vand.u32 %v3061, 4294901760
    %3180 = vmatpush1.msra.mxu0 %v3179
    %3181 = vmatprep.subr.mxu0 0.0
    %v3182 = vand.u32 %v3062, 4294901760
    %3183 = vmatpush1.msra.mxu0 %v3182
    %3184 = vmatprep.subr.mxu0 0.0
    %v3185 = vand.u32 %v3063, 4294901760
    %3186 = vmatpush1.msra.mxu0 %v3185
    %3187 = vmatprep.subr.mxu0 0.0
    %v3188 = vand.u32 %v3064, 4294901760
    %3189 = vmatpush1.msra.mxu0 %v3188
    %3190 = vmatprep.subr.mxu0 0.0
    %v3191 = vand.u32 %v3065, 4294901760
    %3192 = vmatpush1.msra.mxu0 %v3191
    %3193 = vmatprep.subr.mxu0 0.0
    %v3194 = vand.u32 %v3066, 4294901760
    %3195 = vmatpush1.msra.mxu0 %v3194
    %3196 = vmatprep.subr.mxu0 0.0
    %v3197 = vand.u32 %v3067, 4294901760
    %3198 = vmatpush1.msra.mxu0 %v3197
    %3199 = vmatprep.subr.mxu0 0.0
    %v3200 = vand.u32 %v3068, 4294901760
    %3201 = vmatpush1.msra.mxu0 %v3200
    %3202 = vmatprep.subr.mxu0 0.0
    %v3203 = vand.u32 %v3069, 4294901760
    %3204 = vmatpush1.msra.mxu0 %v3203
    %3205 = vmatprep.subr.mxu0 0.0
    %v3206 = vand.u32 %v3070, 4294901760
    %3207 = vmatpush1.msra.mxu0 %v3206
    %3208 = vmatprep.subr.mxu0 0.0
    %v3209 = vand.u32 %v3071, 4294901760
    %3210 = vmatpush1.msra.mxu0 %v3209
    %3211 = vmatprep.subr.mxu0 0.0
    %v3212 = vand.u32 %v3072, 4294901760
    %3213 = vmatpush1.msra.mxu0 %v3212
    %v3214 = vand.u32 %v3117, 4294901760
    %v3215 = vsub.f32 %v3117, %v3214
    %v3216 = vand.u32 %v3215, 4294901760
    %v3217 = vsub.f32 %v3215, %v3216
    %v3218 = vand.u32 %v3217, 4294901760
    %3219 = vmatprep.mubr.f32.mxu0 %v3218
    %v3220 = vand.u32 %v3116, 4294901760
    %v3221 = vsub.f32 %v3116, %v3220
    %v3222 = vand.u32 %v3221, 4294901760
    %v3223 = vsub.f32 %v3221, %v3222
    %v3224 = vand.u32 %v3223, 4294901760
    %3225 = vmatmul.mubr.f32.gmra.mrb[0].mxu0 %v3224
    %v3226 = vpop.f32.mrb[0].mxu0
    %v3227 = vadd.f32 0.0, %v3226
    %v3228 = vpop.f32.mrb[0].mxu0
    %3229 = vdwg.mxu0
    %3230 = vmatprep.subr.mxu0 0.0
    %v3231 = vand.u32 %v3041, 4294901760
    %v3232 = vsub.f32 %v3041, %v3231
    %v3233 = vand.u32 %v3232, 4294901760
    %v3234 = vsub.f32 %v3232, %v3233
    %v3235 = vand.u32 %v3234, 4294901760
    %3236 = vmatpush1.msra.mxu0 %v3235
    %3237 = vmatprep.subr.mxu0 0.0
    %v3238 = vand.u32 %v3042, 4294901760
    %v3239 = vsub.f32 %v3042, %v3238
    %v3240 = vand.u32 %v3239, 4294901760
    %v3241 = vsub.f32 %v3239, %v3240
    %v3242 = vand.u32 %v3241, 4294901760
    %3243 = vmatpush1.msra.mxu0 %v3242
    %3244 = vmatprep.subr.mxu0 0.0
    %v3245 = vand.u32 %v3043, 4294901760
    %v3246 = vsub.f32 %v3043, %v3245
    %v3247 = vand.u32 %v3246, 4294901760
    %v3248 = vsub.f32 %v3246, %v3247
    %v3249 = vand.u32 %v3248, 4294901760
    %3250 = vmatpush1.msra.mxu0 %v3249
    %3251 = vmatprep.subr.mxu0 0.0
    %v3252 = vand.u32 %v3044, 4294901760
    %v3253 = vsub.f32 %v3044, %v3252
    %v3254 = vand.u32 %v3253, 4294901760
    %v3255 = vsub.f32 %v3253, %v3254
    %v3256 = vand.u32 %v3255, 4294901760
    %3257 = vmatpush1.msra.mxu0 %v3256
    %3258 = vmatprep.subr.mxu0 0.0
    %v3259 = vand.u32 %v3045, 4294901760
    %v3260 = vsub.f32 %v3045, %v3259
    %v3261 = vand.u32 %v3260, 4294901760
    %v3262 = vsub.f32 %v3260, %v3261
    %v3263 = vand.u32 %v3262, 4294901760
    %3264 = vmatpush1.msra.mxu0 %v3263
    %3265 = vmatprep.subr.mxu0 0.0
    %v3266 = vand.u32 %v3046, 4294901760
    %v3267 = vsub.f32 %v3046, %v3266
    %v3268 = vand.u32 %v3267, 4294901760
    %v3269 = vsub.f32 %v3267, %v3268
    %v3270 = vand.u32 %v3269, 4294901760
    %3271 = vmatpush1.msra.mxu0 %v3270
    %3272 = vmatprep.subr.mxu0 0.0
    %v3273 = vand.u32 %v3047, 4294901760
    %v3274 = vsub.f32 %v3047, %v3273
    %v3275 = vand.u32 %v3274, 4294901760
    %v3276 = vsub.f32 %v3274, %v3275
    %v3277 = vand.u32 %v3276, 4294901760
    %3278 = vmatpush1.msra.mxu0 %v3277
    %3279 = vmatprep.subr.mxu0 0.0
    %v3280 = vand.u32 %v3048, 4294901760
    %v3281 = vsub.f32 %v3048, %v3280
    %v3282 = vand.u32 %v3281, 4294901760
    %v3283 = vsub.f32 %v3281, %v3282
    %v3284 = vand.u32 %v3283, 4294901760
    %3285 = vmatpush1.msra.mxu0 %v3284
    %3286 = vmatprep.subr.mxu0 0.0
    %v3287 = vand.u32 %v3049, 4294901760
    %v3288 = vsub.f32 %v3049, %v3287
    %v3289 = vand.u32 %v3288, 4294901760
    %v3290 = vsub.f32 %v3288, %v3289
    %v3291 = vand.u32 %v3290, 4294901760
    %3292 = vmatpush1.msra.mxu0 %v3291
    %3293 = vmatprep.subr.mxu0 0.0
    %v3294 = vand.u32 %v3050, 4294901760
    %v3295 = vsub.f32 %v3050, %v3294
    %v3296 = vand.u32 %v3295, 4294901760
    %v3297 = vsub.f32 %v3295, %v3296
    %v3298 = vand.u32 %v3297, 4294901760
    %3299 = vmatpush1.msra.mxu0 %v3298
    %3300 = vmatprep.subr.mxu0 0.0
    %v3301 = vand.u32 %v3051, 4294901760
    %v3302 = vsub.f32 %v3051, %v3301
    %v3303 = vand.u32 %v3302, 4294901760
    %v3304 = vsub.f32 %v3302, %v3303
    %v3305 = vand.u32 %v3304, 4294901760
    %3306 = vmatpush1.msra.mxu0 %v3305
    %3307 = vmatprep.subr.mxu0 0.0
    %v3308 = vand.u32 %v3052, 4294901760
    %v3309 = vsub.f32 %v3052, %v3308
    %v3310 = vand.u32 %v3309, 4294901760
    %v3311 = vsub.f32 %v3309, %v3310
    %v3312 = vand.u32 %v3311, 4294901760
    %3313 = vmatpush1.msra.mxu0 %v3312
    %3314 = vmatprep.subr.mxu0 0.0
    %v3315 = vand.u32 %v3053, 4294901760
    %v3316 = vsub.f32 %v3053, %v3315
    %v3317 = vand.u32 %v3316, 4294901760
    %v3318 = vsub.f32 %v3316, %v3317
    %v3319 = vand.u32 %v3318, 4294901760
    %3320 = vmatpush1.msra.mxu0 %v3319
    %3321 = vmatprep.subr.mxu0 0.0
    %v3322 = vand.u32 %v3054, 4294901760
    %v3323 = vsub.f32 %v3054, %v3322
    %v3324 = vand.u32 %v3323, 4294901760
    %v3325 = vsub.f32 %v3323, %v3324
    %v3326 = vand.u32 %v3325, 4294901760
    %3327 = vmatpush1.msra.mxu0 %v3326
    %3328 = vmatprep.subr.mxu0 0.0
    %v3329 = vand.u32 %v3055, 4294901760
    %v3330 = vsub.f32 %v3055, %v3329
    %v3331 = vand.u32 %v3330, 4294901760
    %v3332 = vsub.f32 %v3330, %v3331
    %v3333 = vand.u32 %v3332, 4294901760
    %3334 = vmatpush1.msra.mxu0 %v3333
    %3335 = vmatprep.subr.mxu0 0.0
    %v3336 = vand.u32 %v3056, 4294901760
    %v3337 = vsub.f32 %v3056, %v3336
    %v3338 = vand.u32 %v3337, 4294901760
    %v3339 = vsub.f32 %v3337, %v3338
    %v3340 = vand.u32 %v3339, 4294901760
    %3341 = vmatpush1.msra.mxu0 %v3340
    %3342 = vmatprep.subr.mxu0 0.0
    %v3343 = vand.u32 %v3057, 4294901760
    %v3344 = vsub.f32 %v3057, %v3343
    %v3345 = vand.u32 %v3344, 4294901760
    %v3346 = vsub.f32 %v3344, %v3345
    %v3347 = vand.u32 %v3346, 4294901760
    %3348 = vmatpush1.msra.mxu0 %v3347
    %3349 = vmatprep.subr.mxu0 0.0
    %v3350 = vand.u32 %v3058, 4294901760
    %v3351 = vsub.f32 %v3058, %v3350
    %v3352 = vand.u32 %v3351, 4294901760
    %v3353 = vsub.f32 %v3351, %v3352
    %v3354 = vand.u32 %v3353, 4294901760
    %3355 = vmatpush1.msra.mxu0 %v3354
    %3356 = vmatprep.subr.mxu0 0.0
    %v3357 = vand.u32 %v3059, 4294901760
    %v3358 = vsub.f32 %v3059, %v3357
    %v3359 = vand.u32 %v3358, 4294901760
    %v3360 = vsub.f32 %v3358, %v3359
    %v3361 = vand.u32 %v3360, 4294901760
    %3362 = vmatpush1.msra.mxu0 %v3361
    %3363 = vmatprep.subr.mxu0 0.0
    %v3364 = vand.u32 %v3060, 4294901760
    %v3365 = vsub.f32 %v3060, %v3364
    %v3366 = vand.u32 %v3365, 4294901760
    %v3367 = vsub.f32 %v3365, %v3366
    %v3368 = vand.u32 %v3367, 4294901760
    %3369 = vmatpush1.msra.mxu0 %v3368
    %3370 = vmatprep.subr.mxu0 0.0
    %v3371 = vand.u32 %v3061, 4294901760
    %v3372 = vsub.f32 %v3061, %v3371
    %v3373 = vand.u32 %v3372, 4294901760
    %v3374 = vsub.f32 %v3372, %v3373
    %v3375 = vand.u32 %v3374, 4294901760
    %3376 = vmatpush1.msra.mxu0 %v3375
    %3377 = vmatprep.subr.mxu0 0.0
    %v3378 = vand.u32 %v3062, 4294901760
    %v3379 = vsub.f32 %v3062, %v3378
    %v3380 = vand.u32 %v3379, 4294901760
    %v3381 = vsub.f32 %v3379, %v3380
    %v3382 = vand.u32 %v3381, 4294901760
    %3383 = vmatpush1.msra.mxu0 %v3382
    %3384 = vmatprep.subr.mxu0 0.0
    %v3385 = vand.u32 %v3063, 4294901760
    %v3386 = vsub.f32 %v3063, %v3385
    %v3387 = vand.u32 %v3386, 4294901760
    %v3388 = vsub.f32 %v3386, %v3387
    %v3389 = vand.u32 %v3388, 4294901760
    %3390 = vmatpush1.msra.mxu0 %v3389
    %3391 = vmatprep.subr.mxu0 0.0
    %v3392 = vand.u32 %v3064, 4294901760
    %v3393 = vsub.f32 %v3064, %v3392
    %v3394 = vand.u32 %v3393, 4294901760
    %v3395 = vsub.f32 %v3393, %v3394
    %v3396 = vand.u32 %v3395, 4294901760
    %3397 = vmatpush1.msra.mxu0 %v3396
    %3398 = vmatprep.subr.mxu0 0.0
    %v3399 = vand.u32 %v3065, 4294901760
    %v3400 = vsub.f32 %v3065, %v3399
    %v3401 = vand.u32 %v3400, 4294901760
    %v3402 = vsub.f32 %v3400, %v3401
    %v3403 = vand.u32 %v3402, 4294901760
    %3404 = vmatpush1.msra.mxu0 %v3403
    %3405 = vmatprep.subr.mxu0 0.0
    %v3406 = vand.u32 %v3066, 4294901760
    %v3407 = vsub.f32 %v3066, %v3406
    %v3408 = vand.u32 %v3407, 4294901760
    %v3409 = vsub.f32 %v3407, %v3408
    %v3410 = vand.u32 %v3409, 4294901760
    %3411 = vmatpush1.msra.mxu0 %v3410
    %3412 = vmatprep.subr.mxu0 0.0
    %v3413 = vand.u32 %v3067, 4294901760
    %v3414 = vsub.f32 %v3067, %v3413
    %v3415 = vand.u32 %v3414, 4294901760
    %v3416 = vsub.f32 %v3414, %v3415
    %v3417 = vand.u32 %v3416, 4294901760
    %3418 = vmatpush1.msra.mxu0 %v3417
    %3419 = vmatprep.subr.mxu0 0.0
    %v3420 = vand.u32 %v3068, 4294901760
    %v3421 = vsub.f32 %v3068, %v3420
    %v3422 = vand.u32 %v3421, 4294901760
    %v3423 = vsub.f32 %v3421, %v3422
    %v3424 = vand.u32 %v3423, 4294901760
    %3425 = vmatpush1.msra.mxu0 %v3424
    %3426 = vmatprep.subr.mxu0 0.0
    %v3427 = vand.u32 %v3069, 4294901760
    %v3428 = vsub.f32 %v3069, %v3427
    %v3429 = vand.u32 %v3428, 4294901760
    %v3430 = vsub.f32 %v3428, %v3429
    %v3431 = vand.u32 %v3430, 4294901760
    %3432 = vmatpush1.msra.mxu0 %v3431
    %3433 = vmatprep.subr.mxu0 0.0
    %v3434 = vand.u32 %v3070, 4294901760
    %v3435 = vsub.f32 %v3070, %v3434
    %v3436 = vand.u32 %v3435, 4294901760
    %v3437 = vsub.f32 %v3435, %v3436
    %v3438 = vand.u32 %v3437, 4294901760
    %3439 = vmatpush1.msra.mxu0 %v3438
    %3440 = vmatprep.subr.mxu0 0.0
    %v3441 = vand.u32 %v3071, 4294901760
    %v3442 = vsub.f32 %v3071, %v3441
    %v3443 = vand.u32 %v3442, 4294901760
    %v3444 = vsub.f32 %v3442, %v3443
    %v3445 = vand.u32 %v3444, 4294901760
    %3446 = vmatpush1.msra.mxu0 %v3445
    %3447 = vmatprep.subr.mxu0 0.0
    %v3448 = vand.u32 %v3072, 4294901760
    %v3449 = vsub.f32 %v3072, %v3448
    %v3450 = vand.u32 %v3449, 4294901760
    %v3451 = vsub.f32 %v3449, %v3450
    %v3452 = vand.u32 %v3451, 4294901760
    %3453 = vmatpush1.msra.mxu0 %v3452
    %v3454 = vand.u32 %v3117, 4294901760
    %3455 = vmatprep.mubr.f32.mxu0 %v3454
    %v3456 = vand.u32 %v3116, 4294901760
    %3457 = vmatmul.mubr.f32.gmra.mrb[0].mxu0 %v3456
    %v3458 = vpop.f32.mrb[0].mxu0
    %v3459 = vadd.f32 %v3227, %v3458
    %v3460 = vpop.f32.mrb[0].mxu0
    %3461 = vdwg.mxu0
    %3462 = vmatprep.subr.mxu0 0.0
    %v3463 = vand.u32 %v3041, 4294901760
    %v3464 = vsub.f32 %v3041, %v3463
    %3465 = vmatpush1.msra.mxu0 %v3464
    %3466 = vmatprep.subr.mxu0 0.0
    %v3467 = vand.u32 %v3042, 4294901760
    %v3468 = vsub.f32 %v3042, %v3467
    %3469 = vmatpush1.msra.mxu0 %v3468
    %3470 = vmatprep.subr.mxu0 0.0
    %v3471 = vand.u32 %v3043, 4294901760
    %v3472 = vsub.f32 %v3043, %v3471
    %3473 = vmatpush1.msra.mxu0 %v3472
    %3474 = vmatprep.subr.mxu0 0.0
    %v3475 = vand.u32 %v3044, 4294901760
    %v3476 = vsub.f32 %v3044, %v3475
    %3477 = vmatpush1.msra.mxu0 %v3476
    %3478 = vmatprep.subr.mxu0 0.0
    %v3479 = vand.u32 %v3045, 4294901760
    %v3480 = vsub.f32 %v3045, %v3479
    %3481 = vmatpush1.msra.mxu0 %v3480
    %3482 = vmatprep.subr.mxu0 0.0
    %v3483 = vand.u32 %v3046, 4294901760
    %v3484 = vsub.f32 %v3046, %v3483
    %3485 = vmatpush1.msra.mxu0 %v3484
    %3486 = vmatprep.subr.mxu0 0.0
    %v3487 = vand.u32 %v3047, 4294901760
    %v3488 = vsub.f32 %v3047, %v3487
    %3489 = vmatpush1.msra.mxu0 %v3488
    %3490 = vmatprep.subr.mxu0 0.0
    %v3491 = vand.u32 %v3048, 4294901760
    %v3492 = vsub.f32 %v3048, %v3491
    %3493 = vmatpush1.msra.mxu0 %v3492
    %3494 = vmatprep.subr.mxu0 0.0
    %v3495 = vand.u32 %v3049, 4294901760
    %v3496 = vsub.f32 %v3049, %v3495
    %3497 = vmatpush1.msra.mxu0 %v3496
    %3498 = vmatprep.subr.mxu0 0.0
    %v3499 = vand.u32 %v3050, 4294901760
    %v3500 = vsub.f32 %v3050, %v3499
    %3501 = vmatpush1.msra.mxu0 %v3500
    %3502 = vmatprep.subr.mxu0 0.0
    %v3503 = vand.u32 %v3051, 4294901760
    %v3504 = vsub.f32 %v3051, %v3503
    %3505 = vmatpush1.msra.mxu0 %v3504
    %3506 = vmatprep.subr.mxu0 0.0
    %v3507 = vand.u32 %v3052, 4294901760
    %v3508 = vsub.f32 %v3052, %v3507
    %3509 = vmatpush1.msra.mxu0 %v3508
    %3510 = vmatprep.subr.mxu0 0.0
    %v3511 = vand.u32 %v3053, 4294901760
    %v3512 = vsub.f32 %v3053, %v3511
    %3513 = vmatpush1.msra.mxu0 %v3512
    %3514 = vmatprep.subr.mxu0 0.0
    %v3515 = vand.u32 %v3054, 4294901760
    %v3516 = vsub.f32 %v3054, %v3515
    %3517 = vmatpush1.msra.mxu0 %v3516
    %3518 = vmatprep.subr.mxu0 0.0
    %v3519 = vand.u32 %v3055, 4294901760
    %v3520 = vsub.f32 %v3055, %v3519
    %3521 = vmatpush1.msra.mxu0 %v3520
    %3522 = vmatprep.subr.mxu0 0.0
    %v3523 = vand.u32 %v3056, 4294901760
    %v3524 = vsub.f32 %v3056, %v3523
    %3525 = vmatpush1.msra.mxu0 %v3524
    %3526 = vmatprep.subr.mxu0 0.0
    %v3527 = vand.u32 %v3057, 4294901760
    %v3528 = vsub.f32 %v3057, %v3527
    %3529 = vmatpush1.msra.mxu0 %v3528
    %3530 = vmatprep.subr.mxu0 0.0
    %v3531 = vand.u32 %v3058, 4294901760
    %v3532 = vsub.f32 %v3058, %v3531
    %3533 = vmatpush1.msra.mxu0 %v3532
    %3534 = vmatprep.subr.mxu0 0.0
    %v3535 = vand.u32 %v3059, 4294901760
    %v3536 = vsub.f32 %v3059, %v3535
    %3537 = vmatpush1.msra.mxu0 %v3536
    %3538 = vmatprep.subr.mxu0 0.0
    %v3539 = vand.u32 %v3060, 4294901760
    %v3540 = vsub.f32 %v3060, %v3539
    %3541 = vmatpush1.msra.mxu0 %v3540
    %3542 = vmatprep.subr.mxu0 0.0
    %v3543 = vand.u32 %v3061, 4294901760
    %v3544 = vsub.f32 %v3061, %v3543
    %3545 = vmatpush1.msra.mxu0 %v3544
    %3546 = vmatprep.subr.mxu0 0.0
    %v3547 = vand.u32 %v3062, 4294901760
    %v3548 = vsub.f32 %v3062, %v3547
    %3549 = vmatpush1.msra.mxu0 %v3548
    %3550 = vmatprep.subr.mxu0 0.0
    %v3551 = vand.u32 %v3063, 4294901760
    %v3552 = vsub.f32 %v3063, %v3551
    %3553 = vmatpush1.msra.mxu0 %v3552
    %3554 = vmatprep.subr.mxu0 0.0
    %v3555 = vand.u32 %v3064, 4294901760
    %v3556 = vsub.f32 %v3064, %v3555
    %3557 = vmatpush1.msra.mxu0 %v3556
    %3558 = vmatprep.subr.mxu0 0.0
    %v3559 = vand.u32 %v3065, 4294901760
    %v3560 = vsub.f32 %v3065, %v3559
    %3561 = vmatpush1.msra.mxu0 %v3560
    %3562 = vmatprep.subr.mxu0 0.0
    %v3563 = vand.u32 %v3066, 4294901760
    %v3564 = vsub.f32 %v3066, %v3563
    %3565 = vmatpush1.msra.mxu0 %v3564
    %3566 = vmatprep.subr.mxu0 0.0
    %v3567 = vand.u32 %v3067, 4294901760
    %v3568 = vsub.f32 %v3067, %v3567
    %3569 = vmatpush1.msra.mxu0 %v3568
    %3570 = vmatprep.subr.mxu0 0.0
    %v3571 = vand.u32 %v3068, 4294901760
    %v3572 = vsub.f32 %v3068, %v3571
    %3573 = vmatpush1.msra.mxu0 %v3572
    %3574 = vmatprep.subr.mxu0 0.0
    %v3575 = vand.u32 %v3069, 4294901760
    %v3576 = vsub.f32 %v3069, %v3575
    %3577 = vmatpush1.msra.mxu0 %v3576
    %3578 = vmatprep.subr.mxu0 0.0
    %v3579 = vand.u32 %v3070, 4294901760
    %v3580 = vsub.f32 %v3070, %v3579
    %3581 = vmatpush1.msra.mxu0 %v3580
    %3582 = vmatprep.subr.mxu0 0.0
    %v3583 = vand.u32 %v3071, 4294901760
    %v3584 = vsub.f32 %v3071, %v3583
    %3585 = vmatpush1.msra.mxu0 %v3584
    %3586 = vmatprep.subr.mxu0 0.0
    %v3587 = vand.u32 %v3072, 4294901760
    %v3588 = vsub.f32 %v3072, %v3587
    %3589 = vmatpush1.msra.mxu0 %v3588
    %v3590 = vand.u32 %v3117, 4294901760
    %v3591 = vsub.f32 %v3117, %v3590
    %3592 = vmatprep.mubr.f32.mxu0 %v3591
    %v3593 = vand.u32 %v3116, 4294901760
    %v3594 = vsub.f32 %v3116, %v3593
    %3595 = vmatmul.mubr.f32.gmra.mrb[0].mxu0 %v3594
    %v3596 = vpop.f32.mrb[0].mxu0
    %v3597 = vadd.f32 %v3459, %v3596
    %v3598 = vpop.f32.mrb[0].mxu0
    %3599 = vdwg.mxu0
    %3600 = vmatprep.subr.mxu0 0.0
    %v3601 = vand.u32 %v3041, 4294901760
    %3602 = vmatpush1.msra.mxu0 %v3601
    %3603 = vmatprep.subr.mxu0 0.0
    %v3604 = vand.u32 %v3042, 4294901760
    %3605 = vmatpush1.msra.mxu0 %v3604
    %3606 = vmatprep.subr.mxu0 0.0
    %v3607 = vand.u32 %v3043, 4294901760
    %3608 = vmatpush1.msra.mxu0 %v3607
    %3609 = vmatprep.subr.mxu0 0.0
    %v3610 = vand.u32 %v3044, 4294901760
    %3611 = vmatpush1.msra.mxu0 %v3610
    %3612 = vmatprep.subr.mxu0 0.0
    %v3613 = vand.u32 %v3045, 4294901760
    %3614 = vmatpush1.msra.mxu0 %v3613
    %3615 = vmatprep.subr.mxu0 0.0
    %v3616 = vand.u32 %v3046, 4294901760
    %3617 = vmatpush1.msra.mxu0 %v3616
    %3618 = vmatprep.subr.mxu0 0.0
    %v3619 = vand.u32 %v3047, 4294901760
    %3620 = vmatpush1.msra.mxu0 %v3619
    %3621 = vmatprep.subr.mxu0 0.0
    %v3622 = vand.u32 %v3048, 4294901760
    %3623 = vmatpush1.msra.mxu0 %v3622
    %3624 = vmatprep.subr.mxu0 0.0
    %v3625 = vand.u32 %v3049, 4294901760
    %3626 = vmatpush1.msra.mxu0 %v3625
    %3627 = vmatprep.subr.mxu0 0.0
    %v3628 = vand.u32 %v3050, 4294901760
    %3629 = vmatpush1.msra.mxu0 %v3628
    %3630 = vmatprep.subr.mxu0 0.0
    %v3631 = vand.u32 %v3051, 4294901760
    %3632 = vmatpush1.msra.mxu0 %v3631
    %3633 = vmatprep.subr.mxu0 0.0
    %v3634 = vand.u32 %v3052, 4294901760
    %3635 = vmatpush1.msra.mxu0 %v3634
    %3636 = vmatprep.subr.mxu0 0.0
    %v3637 = vand.u32 %v3053, 4294901760
    %3638 = vmatpush1.msra.mxu0 %v3637
    %3639 = vmatprep.subr.mxu0 0.0
    %v3640 = vand.u32 %v3054, 4294901760
    %3641 = vmatpush1.msra.mxu0 %v3640
    %3642 = vmatprep.subr.mxu0 0.0
    %v3643 = vand.u32 %v3055, 4294901760
    %3644 = vmatpush1.msra.mxu0 %v3643
    %3645 = vmatprep.subr.mxu0 0.0
    %v3646 = vand.u32 %v3056, 4294901760
    %3647 = vmatpush1.msra.mxu0 %v3646
    %3648 = vmatprep.subr.mxu0 0.0
    %v3649 = vand.u32 %v3057, 4294901760
    %3650 = vmatpush1.msra.mxu0 %v3649
    %3651 = vmatprep.subr.mxu0 0.0
    %v3652 = vand.u32 %v3058, 4294901760
    %3653 = vmatpush1.msra.mxu0 %v3652
    %3654 = vmatprep.subr.mxu0 0.0
    %v3655 = vand.u32 %v3059, 4294901760
    %3656 = vmatpush1.msra.mxu0 %v3655
    %3657 = vmatprep.subr.mxu0 0.0
    %v3658 = vand.u32 %v3060, 4294901760
    %3659 = vmatpush1.msra.mxu0 %v3658
    %3660 = vmatprep.subr.mxu0 0.0
    %v3661 = vand.u32 %v3061, 4294901760
    %3662 = vmatpush1.msra.mxu0 %v3661
    %3663 = vmatprep.subr.mxu0 0.0
    %v3664 = vand.u32 %v3062, 4294901760
    %3665 = vmatpush1.msra.mxu0 %v3664
    %3666 = vmatprep.subr.mxu0 0.0
    %v3667 = vand.u32 %v3063, 4294901760
    %3668 = vmatpush1.msra.mxu0 %v3667
    %3669 = vmatprep.subr.mxu0 0.0
    %v3670 = vand.u32 %v3064, 4294901760
    %3671 = vmatpush1.msra.mxu0 %v3670
    %3672 = vmatprep.subr.mxu0 0.0
    %v3673 = vand.u32 %v3065, 4294901760
    %3674 = vmatpush1.msra.mxu0 %v3673
    %3675 = vmatprep.subr.mxu0 0.0
    %v3676 = vand.u32 %v3066, 4294901760
    %3677 = vmatpush1.msra.mxu0 %v3676
    %3678 = vmatprep.subr.mxu0 0.0
    %v3679 = vand.u32 %v3067, 4294901760
    %3680 = vmatpush1.msra.mxu0 %v3679
    %3681 = vmatprep.subr.mxu0 0.0
    %v3682 = vand.u32 %v3068, 4294901760
    %3683 = vmatpush1.msra.mxu0 %v3682
    %3684 = vmatprep.subr.mxu0 0.0
    %v3685 = vand.u32 %v3069, 4294901760
    %3686 = vmatpush1.msra.mxu0 %v3685
    %3687 = vmatprep.subr.mxu0 0.0
    %v3688 = vand.u32 %v3070, 4294901760
    %3689 = vmatpush1.msra.mxu0 %v3688
    %3690 = vmatprep.subr.mxu0 0.0
    %v3691 = vand.u32 %v3071, 4294901760
    %3692 = vmatpush1.msra.mxu0 %v3691
    %3693 = vmatprep.subr.mxu0 0.0
    %v3694 = vand.u32 %v3072, 4294901760
    %3695 = vmatpush1.msra.mxu0 %v3694
    %v3696 = vand.u32 %v3117, 4294901760
    %v3697 = vsub.f32 %v3117, %v3696
    %v3698 = vand.u32 %v3697, 4294901760
    %3699 = vmatprep.mubr.f32.mxu0 %v3698
    %v3700 = vand.u32 %v3116, 4294901760
    %v3701 = vsub.f32 %v3116, %v3700
    %v3702 = vand.u32 %v3701, 4294901760
    %3703 = vmatmul.mubr.f32.gmra.mrb[0].mxu0 %v3702
    %v3704 = vpop.f32.mrb[0].mxu0
    %v3705 = vadd.f32 %v3597, %v3704
    %v3706 = vpop.f32.mrb[0].mxu0
    %3707 = vdwg.mxu0
    %3708 = vmatprep.subr.mxu0 0.0
    %v3709 = vand.u32 %v3041, 4294901760
    %v3710 = vsub.f32 %v3041, %v3709
    %v3711 = vand.u32 %v3710, 4294901760
    %3712 = vmatpush1.msra.mxu0 %v3711
    %3713 = vmatprep.subr.mxu0 0.0
    %v3714 = vand.u32 %v3042, 4294901760
    %v3715 = vsub.f32 %v3042, %v3714
    %v3716 = vand.u32 %v3715, 4294901760
    %3717 = vmatpush1.msra.mxu0 %v3716
    %3718 = vmatprep.subr.mxu0 0.0
    %v3719 = vand.u32 %v3043, 4294901760
    %v3720 = vsub.f32 %v3043, %v3719
    %v3721 = vand.u32 %v3720, 4294901760
    %3722 = vmatpush1.msra.mxu0 %v3721
    %3723 = vmatprep.subr.mxu0 0.0
    %v3724 = vand.u32 %v3044, 4294901760
    %v3725 = vsub.f32 %v3044, %v3724
    %v3726 = vand.u32 %v3725, 4294901760
    %3727 = vmatpush1.msra.mxu0 %v3726
    %3728 = vmatprep.subr.mxu0 0.0
    %v3729 = vand.u32 %v3045, 4294901760
    %v3730 = vsub.f32 %v3045, %v3729
    %v3731 = vand.u32 %v3730, 4294901760
    %3732 = vmatpush1.msra.mxu0 %v3731
    %3733 = vmatprep.subr.mxu0 0.0
    %v3734 = vand.u32 %v3046, 4294901760
    %v3735 = vsub.f32 %v3046, %v3734
    %v3736 = vand.u32 %v3735, 4294901760
    %3737 = vmatpush1.msra.mxu0 %v3736
    %3738 = vmatprep.subr.mxu0 0.0
    %v3739 = vand.u32 %v3047, 4294901760
    %v3740 = vsub.f32 %v3047, %v3739
    %v3741 = vand.u32 %v3740, 4294901760
    %3742 = vmatpush1.msra.mxu0 %v3741
    %3743 = vmatprep.subr.mxu0 0.0
    %v3744 = vand.u32 %v3048, 4294901760
    %v3745 = vsub.f32 %v3048, %v3744
    %v3746 = vand.u32 %v3745, 4294901760
    %3747 = vmatpush1.msra.mxu0 %v3746
    %3748 = vmatprep.subr.mxu0 0.0
    %v3749 = vand.u32 %v3049, 4294901760
    %v3750 = vsub.f32 %v3049, %v3749
    %v3751 = vand.u32 %v3750, 4294901760
    %3752 = vmatpush1.msra.mxu0 %v3751
    %3753 = vmatprep.subr.mxu0 0.0
    %v3754 = vand.u32 %v3050, 4294901760
    %v3755 = vsub.f32 %v3050, %v3754
    %v3756 = vand.u32 %v3755, 4294901760
    %3757 = vmatpush1.msra.mxu0 %v3756
    %3758 = vmatprep.subr.mxu0 0.0
    %v3759 = vand.u32 %v3051, 4294901760
    %v3760 = vsub.f32 %v3051, %v3759
    %v3761 = vand.u32 %v3760, 4294901760
    %3762 = vmatpush1.msra.mxu0 %v3761
    %3763 = vmatprep.subr.mxu0 0.0
    %v3764 = vand.u32 %v3052, 4294901760
    %v3765 = vsub.f32 %v3052, %v3764
    %v3766 = vand.u32 %v3765, 4294901760
    %3767 = vmatpush1.msra.mxu0 %v3766
    %3768 = vmatprep.subr.mxu0 0.0
    %v3769 = vand.u32 %v3053, 4294901760
    %v3770 = vsub.f32 %v3053, %v3769
    %v3771 = vand.u32 %v3770, 4294901760
    %3772 = vmatpush1.msra.mxu0 %v3771
    %3773 = vmatprep.subr.mxu0 0.0
    %v3774 = vand.u32 %v3054, 4294901760
    %v3775 = vsub.f32 %v3054, %v3774
    %v3776 = vand.u32 %v3775, 4294901760
    %3777 = vmatpush1.msra.mxu0 %v3776
    %3778 = vmatprep.subr.mxu0 0.0
    %v3779 = vand.u32 %v3055, 4294901760
    %v3780 = vsub.f32 %v3055, %v3779
    %v3781 = vand.u32 %v3780, 4294901760
    %3782 = vmatpush1.msra.mxu0 %v3781
    %3783 = vmatprep.subr.mxu0 0.0
    %v3784 = vand.u32 %v3056, 4294901760
    %v3785 = vsub.f32 %v3056, %v3784
    %v3786 = vand.u32 %v3785, 4294901760
    %3787 = vmatpush1.msra.mxu0 %v3786
    %3788 = vmatprep.subr.mxu0 0.0
    %v3789 = vand.u32 %v3057, 4294901760
    %v3790 = vsub.f32 %v3057, %v3789
    %v3791 = vand.u32 %v3790, 4294901760
    %3792 = vmatpush1.msra.mxu0 %v3791
    %3793 = vmatprep.subr.mxu0 0.0
    %v3794 = vand.u32 %v3058, 4294901760
    %v3795 = vsub.f32 %v3058, %v3794
    %v3796 = vand.u32 %v3795, 4294901760
    %3797 = vmatpush1.msra.mxu0 %v3796
    %3798 = vmatprep.subr.mxu0 0.0
    %v3799 = vand.u32 %v3059, 4294901760
    %v3800 = vsub.f32 %v3059, %v3799
    %v3801 = vand.u32 %v3800, 4294901760
    %3802 = vmatpush1.msra.mxu0 %v3801
    %3803 = vmatprep.subr.mxu0 0.0
    %v3804 = vand.u32 %v3060, 4294901760
    %v3805 = vsub.f32 %v3060, %v3804
    %v3806 = vand.u32 %v3805, 4294901760
    %3807 = vmatpush1.msra.mxu0 %v3806
    %3808 = vmatprep.subr.mxu0 0.0
    %v3809 = vand.u32 %v3061, 4294901760
    %v3810 = vsub.f32 %v3061, %v3809
    %v3811 = vand.u32 %v3810, 4294901760
    %3812 = vmatpush1.msra.mxu0 %v3811
    %3813 = vmatprep.subr.mxu0 0.0
    %v3814 = vand.u32 %v3062, 4294901760
    %v3815 = vsub.f32 %v3062, %v3814
    %v3816 = vand.u32 %v3815, 4294901760
    %3817 = vmatpush1.msra.mxu0 %v3816
    %3818 = vmatprep.subr.mxu0 0.0
    %v3819 = vand.u32 %v3063, 4294901760
    %v3820 = vsub.f32 %v3063, %v3819
    %v3821 = vand.u32 %v3820, 4294901760
    %3822 = vmatpush1.msra.mxu0 %v3821
    %3823 = vmatprep.subr.mxu0 0.0
    %v3824 = vand.u32 %v3064, 4294901760
    %v3825 = vsub.f32 %v3064, %v3824
    %v3826 = vand.u32 %v3825, 4294901760
    %3827 = vmatpush1.msra.mxu0 %v3826
    %3828 = vmatprep.subr.mxu0 0.0
    %v3829 = vand.u32 %v3065, 4294901760
    %v3830 = vsub.f32 %v3065, %v3829
    %v3831 = vand.u32 %v3830, 4294901760
    %3832 = vmatpush1.msra.mxu0 %v3831
    %3833 = vmatprep.subr.mxu0 0.0
    %v3834 = vand.u32 %v3066, 4294901760
    %v3835 = vsub.f32 %v3066, %v3834
    %v3836 = vand.u32 %v3835, 4294901760
    %3837 = vmatpush1.msra.mxu0 %v3836
    %3838 = vmatprep.subr.mxu0 0.0
    %v3839 = vand.u32 %v3067, 4294901760
    %v3840 = vsub.f32 %v3067, %v3839
    %v3841 = vand.u32 %v3840, 4294901760
    %3842 = vmatpush1.msra.mxu0 %v3841
    %3843 = vmatprep.subr.mxu0 0.0
    %v3844 = vand.u32 %v3068, 4294901760
    %v3845 = vsub.f32 %v3068, %v3844
    %v3846 = vand.u32 %v3845, 4294901760
    %3847 = vmatpush1.msra.mxu0 %v3846
    %3848 = vmatprep.subr.mxu0 0.0
    %v3849 = vand.u32 %v3069, 4294901760
    %v3850 = vsub.f32 %v3069, %v3849
    %v3851 = vand.u32 %v3850, 4294901760
    %3852 = vmatpush1.msra.mxu0 %v3851
    %3853 = vmatprep.subr.mxu0 0.0
    %v3854 = vand.u32 %v3070, 4294901760
    %v3855 = vsub.f32 %v3070, %v3854
    %v3856 = vand.u32 %v3855, 4294901760
    %3857 = vmatpush1.msra.mxu0 %v3856
    %3858 = vmatprep.subr.mxu0 0.0
    %v3859 = vand.u32 %v3071, 4294901760
    %v3860 = vsub.f32 %v3071, %v3859
    %v3861 = vand.u32 %v3860, 4294901760
    %3862 = vmatpush1.msra.mxu0 %v3861
    %3863 = vmatprep.subr.mxu0 0.0
    %v3864 = vand.u32 %v3072, 4294901760
    %v3865 = vsub.f32 %v3072, %v3864
    %v3866 = vand.u32 %v3865, 4294901760
    %3867 = vmatpush1.msra.mxu0 %v3866
    %v3868 = vand.u32 %v3117, 4294901760
    %3869 = vmatprep.mubr.f32.mxu0 %v3868
    %v3870 = vand.u32 %v3116, 4294901760
    %3871 = vmatmul.mubr.f32.gmra.mrb[0].mxu0 %v3870
    %v3872 = vpop.f32.mrb[0].mxu0
    %v3873 = vadd.f32 %v3705, %v3872
    %v3874 = vpop.f32.mrb[0].mxu0
    %3875 = vdwg.mxu0
    %3876 = vmatprep.subr.mxu0 0.0
    %v3877 = vand.u32 %v3041, 4294901760
    %3878 = vmatpush1.msra.mxu0 %v3877
    %3879 = vmatprep.subr.mxu0 0.0
    %v3880 = vand.u32 %v3042, 4294901760
    %3881 = vmatpush1.msra.mxu0 %v3880
    %3882 = vmatprep.subr.mxu0 0.0
    %v3883 = vand.u32 %v3043, 4294901760
    %3884 = vmatpush1.msra.mxu0 %v3883
    %3885 = vmatprep.subr.mxu0 0.0
    %v3886 = vand.u32 %v3044, 4294901760
    %3887 = vmatpush1.msra.mxu0 %v3886
    %3888 = vmatprep.subr.mxu0 0.0
    %v3889 = vand.u32 %v3045, 4294901760
    %3890 = vmatpush1.msra.mxu0 %v3889
    %3891 = vmatprep.subr.mxu0 0.0
    %v3892 = vand.u32 %v3046, 4294901760
    %3893 = vmatpush1.msra.mxu0 %v3892
    %3894 = vmatprep.subr.mxu0 0.0
    %v3895 = vand.u32 %v3047, 4294901760
    %3896 = vmatpush1.msra.mxu0 %v3895
    %3897 = vmatprep.subr.mxu0 0.0
    %v3898 = vand.u32 %v3048, 4294901760
    %3899 = vmatpush1.msra.mxu0 %v3898
    %3900 = vmatprep.subr.mxu0 0.0
    %v3901 = vand.u32 %v3049, 4294901760
    %3902 = vmatpush1.msra.mxu0 %v3901
    %3903 = vmatprep.subr.mxu0 0.0
    %v3904 = vand.u32 %v3050, 4294901760
    %3905 = vmatpush1.msra.mxu0 %v3904
    %3906 = vmatprep.subr.mxu0 0.0
    %v3907 = vand.u32 %v3051, 4294901760
    %3908 = vmatpush1.msra.mxu0 %v3907
    %3909 = vmatprep.subr.mxu0 0.0
    %v3910 = vand.u32 %v3052, 4294901760
    %3911 = vmatpush1.msra.mxu0 %v3910
    %3912 = vmatprep.subr.mxu0 0.0
    %v3913 = vand.u32 %v3053, 4294901760
    %3914 = vmatpush1.msra.mxu0 %v3913
    %3915 = vmatprep.subr.mxu0 0.0
    %v3916 = vand.u32 %v3054, 4294901760
    %3917 = vmatpush1.msra.mxu0 %v3916
    %3918 = vmatprep.subr.mxu0 0.0
    %v3919 = vand.u32 %v3055, 4294901760
    %3920 = vmatpush1.msra.mxu0 %v3919
    %3921 = vmatprep.subr.mxu0 0.0
    %v3922 = vand.u32 %v3056, 4294901760
    %3923 = vmatpush1.msra.mxu0 %v3922
    %3924 = vmatprep.subr.mxu0 0.0
    %v3925 = vand.u32 %v3057, 4294901760
    %3926 = vmatpush1.msra.mxu0 %v3925
    %3927 = vmatprep.subr.mxu0 0.0
    %v3928 = vand.u32 %v3058, 4294901760
    %3929 = vmatpush1.msra.mxu0 %v3928
    %3930 = vmatprep.subr.mxu0 0.0
    %v3931 = vand.u32 %v3059, 4294901760
    %3932 = vmatpush1.msra.mxu0 %v3931
    %3933 = vmatprep.subr.mxu0 0.0
    %v3934 = vand.u32 %v3060, 4294901760
    %3935 = vmatpush1.msra.mxu0 %v3934
    %3936 = vmatprep.subr.mxu0 0.0
    %v3937 = vand.u32 %v3061, 4294901760
    %3938 = vmatpush1.msra.mxu0 %v3937
    %3939 = vmatprep.subr.mxu0 0.0
    %v3940 = vand.u32 %v3062, 4294901760
    %3941 = vmatpush1.msra.mxu0 %v3940
    %3942 = vmatprep.subr.mxu0 0.0
    %v3943 = vand.u32 %v3063, 4294901760
    %3944 = vmatpush1.msra.mxu0 %v3943
    %3945 = vmatprep.subr.mxu0 0.0
    %v3946 = vand.u32 %v3064, 4294901760
    %3947 = vmatpush1.msra.mxu0 %v3946
    %3948 = vmatprep.subr.mxu0 0.0
    %v3949 = vand.u32 %v3065, 4294901760
    %3950 = vmatpush1.msra.mxu0 %v3949
    %3951 = vmatprep.subr.mxu0 0.0
    %v3952 = vand.u32 %v3066, 4294901760
    %3953 = vmatpush1.msra.mxu0 %v3952
    %3954 = vmatprep.subr.mxu0 0.0
    %v3955 = vand.u32 %v3067, 4294901760
    %3956 = vmatpush1.msra.mxu0 %v3955
    %3957 = vmatprep.subr.mxu0 0.0
    %v3958 = vand.u32 %v3068, 4294901760
    %3959 = vmatpush1.msra.mxu0 %v3958
    %3960 = vmatprep.subr.mxu0 0.0
    %v3961 = vand.u32 %v3069, 4294901760
    %3962 = vmatpush1.msra.mxu0 %v3961
    %3963 = vmatprep.subr.mxu0 0.0
    %v3964 = vand.u32 %v3070, 4294901760
    %3965 = vmatpush1.msra.mxu0 %v3964
    %3966 = vmatprep.subr.mxu0 0.0
    %v3967 = vand.u32 %v3071, 4294901760
    %3968 = vmatpush1.msra.mxu0 %v3967
    %3969 = vmatprep.subr.mxu0 0.0
    %v3970 = vand.u32 %v3072, 4294901760
    %3971 = vmatpush1.msra.mxu0 %v3970
    %v3972 = vand.u32 %v3117, 4294901760
    %3973 = vmatprep.mubr.f32.mxu0 %v3972
    %v3974 = vand.u32 %v3116, 4294901760
    %3975 = vmatmul.mubr.f32.gmra.mrb[0].mxu0 %v3974
    %v3976 = vpop.f32.mrb[0].mxu0
    %v3977 = vadd.f32 %v3873, %v3976
    %v3978 = vpop.f32.mrb[0].mxu0
    %3979 = vdwg.mxu0
    %v3980 = vrcp.pop 32.0
    %v3981 = vmul.f32 %v3977, %v3980
    %v3982 = vmul.f32 %v3981, %v3981
    %v3984 = vrot.slane %v3982, 7
    %v3986 = vsub.f32 %v3981, %v3984
    %v3987 = vmax.f32 %v3986, 0.0
    %v3988 = vadd.f32 %v3987, 1e-05
    %v3989 = vrsqrt.pop %v3988
    %v3991 = vrot.slane %v3989, 1
    %v3993 = vmul.f32 %v3089, %v3991
    %v3994 = vmul.f32 %v3981, %v3993
    %v3996 = vrot.slane %v3994, 7
    %v3998 = vsub.f32 %v3089, %v3996
    %v3999 = vsel %vm1192, %v3993, %v3998
    %v4001 = vsel %vm258, %v3999, 0
    %v4003 = vand.u32 %v3074, 4294901760
    %4004 = vmatprep.subr.mxu0 %v4003
    %v4005 = vand.u32 %v3073, 4294901760
    %4006 = vmatpush1.msra.mxu0 %v4005
    %v4007 = vand.u32 %v3076, 4294901760
    %4008 = vmatprep.subr.mxu0 %v4007
    %v4009 = vand.u32 %v3075, 4294901760
    %4010 = vmatpush1.msra.mxu0 %v4009
    %v4011 = vand.u32 %v3078, 4294901760
    %4012 = vmatprep.subr.mxu0 %v4011
    %v4013 = vand.u32 %v3077, 4294901760
    %4014 = vmatpush1.msra.mxu0 %v4013
    %v4015 = vand.u32 %v3080, 4294901760
    %4016 = vmatprep.subr.mxu0 %v4015
    %v4017 = vand.u32 %v3079, 4294901760
    %4018 = vmatpush1.msra.mxu0 %v4017
    %v4019 = vand.u32 %v3082, 4294901760
    %4020 = vmatprep.subr.mxu0 %v4019
    %v4021 = vand.u32 %v3081, 4294901760
    %4022 = vmatpush1.msra.mxu0 %v4021
    %v4023 = vand.u32 %v3084, 4294901760
    %4024 = vmatprep.subr.mxu0 %v4023
    %v4025 = vand.u32 %v3083, 4294901760
    %4026 = vmatpush1.msra.mxu0 %v4025
    %v4027 = vand.u32 %v3086, 4294901760
    %4028 = vmatprep.subr.mxu0 %v4027
    %v4029 = vand.u32 %v3085, 4294901760
    %4030 = vmatpush1.msra.mxu0 %v4029
    %v4031 = vand.u32 %v3088, 4294901760
    %4032 = vmatprep.subr.mxu0 %v4031
    %v4033 = vand.u32 %v3087, 4294901760
    %4034 = vmatpush1.msra.mxu0 %v4033
    %4035 = vmatprep.subr.mxu0 0.0
    %4036 = vmatpush1.msra.mxu0 0.0
    %4037 = vmatprep.subr.mxu0 0.0
    %4038 = vmatpush1.msra.mxu0 0.0
    %4039 = vmatprep.subr.mxu0 0.0
    %4040 = vmatpush1.msra.mxu0 0.0
    %4041 = vmatprep.subr.mxu0 0.0
    %4042 = vmatpush1.msra.mxu0 0.0
    %4043 = vmatprep.subr.mxu0 0.0
    %4044 = vmatpush1.msra.mxu0 0.0
    %4045 = vmatprep.subr.mxu0 0.0
    %4046 = vmatpush1.msra.mxu0 0.0
    %4047 = vmatprep.subr.mxu0 0.0
    %4048 = vmatpush1.msra.mxu0 0.0
    %4049 = vmatprep.subr.mxu0 0.0
    %4050 = vmatpush1.msra.mxu0 0.0
    %4051 = vmatprep.subr.mxu0 0.0
    %4052 = vmatpush1.msra.mxu0 0.0
    %4053 = vmatprep.subr.mxu0 0.0
    %4054 = vmatpush1.msra.mxu0 0.0
    %4055 = vmatprep.subr.mxu0 0.0
    %4056 = vmatpush1.msra.mxu0 0.0
    %4057 = vmatprep.subr.mxu0 0.0
    %4058 = vmatpush1.msra.mxu0 0.0
    %4059 = vmatprep.subr.mxu0 0.0
    %4060 = vmatpush1.msra.mxu0 0.0
    %4061 = vmatprep.subr.mxu0 0.0
    %4062 = vmatpush1.msra.mxu0 0.0
    %4063 = vmatprep.subr.mxu0 0.0
    %4064 = vmatpush1.msra.mxu0 0.0
    %4065 = vmatprep.subr.mxu0 0.0
    %4066 = vmatpush1.msra.mxu0 0.0
    %4067 = vmatprep.subr.mxu0 0.0
    %4068 = vmatpush1.msra.mxu0 0.0
    %4069 = vmatprep.subr.mxu0 0.0
    %4070 = vmatpush1.msra.mxu0 0.0
    %4071 = vmatprep.subr.mxu0 0.0
    %4072 = vmatpush1.msra.mxu0 0.0
    %4073 = vmatprep.subr.mxu0 0.0
    %4074 = vmatpush1.msra.mxu0 0.0
    %4075 = vmatprep.subr.mxu0 0.0
    %4076 = vmatpush1.msra.mxu0 0.0
    %4077 = vmatprep.subr.mxu0 0.0
    %4078 = vmatpush1.msra.mxu0 0.0
    %4079 = vmatprep.subr.mxu0 0.0
    %4080 = vmatpush1.msra.mxu0 0.0
    %4081 = vmatprep.subr.mxu0 0.0
    %4082 = vmatpush1.msra.mxu0 0.0
    %4083 = vmatprep.mubr.f32.mxu0 0.0
    %v4084 = vand.u32 %v4001, 4294901760
    %v4085 = vsub.f32 %v4001, %v4084
    %v4086 = vand.u32 %v4085, 4294901760
    %v4087 = vsub.f32 %v4085, %v4086
    %v4088 = vand.u32 %v4087, 4294901760
    %4089 = vmatmul.mubr.f32.gmra.mrb[0].mxu0 %v4088
    %v4090 = vpop.f32.mrb[0].mxu0
    %v4091 = vadd.f32 0.0, %v4090
    %v4092 = vpop.f32.mrb[0].mxu0
    %v4093 = vadd.f32 0.0, %v4092
    %4094 = vdwg.mxu0
    %v4095 = vand.u32 %v3074, 4294901760
    %v4096 = vsub.f32 %v3074, %v4095
    %v4097 = vand.u32 %v4096, 4294901760
    %v4098 = vsub.f32 %v4096, %v4097
    %v4099 = vand.u32 %v4098, 4294901760
    %4100 = vmatprep.subr.mxu0 %v4099
    %v4101 = vand.u32 %v3073, 4294901760
    %v4102 = vsub.f32 %v3073, %v4101
    %v4103 = vand.u32 %v4102, 4294901760
    %v4104 = vsub.f32 %v4102, %v4103
    %v4105 = vand.u32 %v4104, 4294901760
    %4106 = vmatpush1.msra.mxu0 %v4105
    %v4107 = vand.u32 %v3076, 4294901760
    %v4108 = vsub.f32 %v3076, %v4107
    %v4109 = vand.u32 %v4108, 4294901760
    %v4110 = vsub.f32 %v4108, %v4109
    %v4111 = vand.u32 %v4110, 4294901760
    %4112 = vmatprep.subr.mxu0 %v4111
    %v4113 = vand.u32 %v3075, 4294901760
    %v4114 = vsub.f32 %v3075, %v4113
    %v4115 = vand.u32 %v4114, 4294901760
    %v4116 = vsub.f32 %v4114, %v4115
    %v4117 = vand.u32 %v4116, 4294901760
    %4118 = vmatpush1.msra.mxu0 %v4117
    %v4119 = vand.u32 %v3078, 4294901760
    %v4120 = vsub.f32 %v3078, %v4119
    %v4121 = vand.u32 %v4120, 4294901760
    %v4122 = vsub.f32 %v4120, %v4121
    %v4123 = vand.u32 %v4122, 4294901760
    %4124 = vmatprep.subr.mxu0 %v4123
    %v4125 = vand.u32 %v3077, 4294901760
    %v4126 = vsub.f32 %v3077, %v4125
    %v4127 = vand.u32 %v4126, 4294901760
    %v4128 = vsub.f32 %v4126, %v4127
    %v4129 = vand.u32 %v4128, 4294901760
    %4130 = vmatpush1.msra.mxu0 %v4129
    %v4131 = vand.u32 %v3080, 4294901760
    %v4132 = vsub.f32 %v3080, %v4131
    %v4133 = vand.u32 %v4132, 4294901760
    %v4134 = vsub.f32 %v4132, %v4133
    %v4135 = vand.u32 %v4134, 4294901760
    %4136 = vmatprep.subr.mxu0 %v4135
    %v4137 = vand.u32 %v3079, 4294901760
    %v4138 = vsub.f32 %v3079, %v4137
    %v4139 = vand.u32 %v4138, 4294901760
    %v4140 = vsub.f32 %v4138, %v4139
    %v4141 = vand.u32 %v4140, 4294901760
    %4142 = vmatpush1.msra.mxu0 %v4141
    %v4143 = vand.u32 %v3082, 4294901760
    %v4144 = vsub.f32 %v3082, %v4143
    %v4145 = vand.u32 %v4144, 4294901760
    %v4146 = vsub.f32 %v4144, %v4145
    %v4147 = vand.u32 %v4146, 4294901760
    %4148 = vmatprep.subr.mxu0 %v4147
    %v4149 = vand.u32 %v3081, 4294901760
    %v4150 = vsub.f32 %v3081, %v4149
    %v4151 = vand.u32 %v4150, 4294901760
    %v4152 = vsub.f32 %v4150, %v4151
    %v4153 = vand.u32 %v4152, 4294901760
    %4154 = vmatpush1.msra.mxu0 %v4153
    %v4155 = vand.u32 %v3084, 4294901760
    %v4156 = vsub.f32 %v3084, %v4155
    %v4157 = vand.u32 %v4156, 4294901760
    %v4158 = vsub.f32 %v4156, %v4157
    %v4159 = vand.u32 %v4158, 4294901760
    %4160 = vmatprep.subr.mxu0 %v4159
    %v4161 = vand.u32 %v3083, 4294901760
    %v4162 = vsub.f32 %v3083, %v4161
    %v4163 = vand.u32 %v4162, 4294901760
    %v4164 = vsub.f32 %v4162, %v4163
    %v4165 = vand.u32 %v4164, 4294901760
    %4166 = vmatpush1.msra.mxu0 %v4165
    %v4167 = vand.u32 %v3086, 4294901760
    %v4168 = vsub.f32 %v3086, %v4167
    %v4169 = vand.u32 %v4168, 4294901760
    %v4170 = vsub.f32 %v4168, %v4169
    %v4171 = vand.u32 %v4170, 4294901760
    %4172 = vmatprep.subr.mxu0 %v4171
    %v4173 = vand.u32 %v3085, 4294901760
    %v4174 = vsub.f32 %v3085, %v4173
    %v4175 = vand.u32 %v4174, 4294901760
    %v4176 = vsub.f32 %v4174, %v4175
    %v4177 = vand.u32 %v4176, 4294901760
    %4178 = vmatpush1.msra.mxu0 %v4177
    %v4179 = vand.u32 %v3088, 4294901760
    %v4180 = vsub.f32 %v3088, %v4179
    %v4181 = vand.u32 %v4180, 4294901760
    %v4182 = vsub.f32 %v4180, %v4181
    %v4183 = vand.u32 %v4182, 4294901760
    %4184 = vmatprep.subr.mxu0 %v4183
    %v4185 = vand.u32 %v3087, 4294901760
    %v4186 = vsub.f32 %v3087, %v4185
    %v4187 = vand.u32 %v4186, 4294901760
    %v4188 = vsub.f32 %v4186, %v4187
    %v4189 = vand.u32 %v4188, 4294901760
    %4190 = vmatpush1.msra.mxu0 %v4189
    %4191 = vmatprep.subr.mxu0 0.0
    %4192 = vmatpush1.msra.mxu0 0.0
    %4193 = vmatprep.subr.mxu0 0.0
    %4194 = vmatpush1.msra.mxu0 0.0
    %4195 = vmatprep.subr.mxu0 0.0
    %4196 = vmatpush1.msra.mxu0 0.0
    %4197 = vmatprep.subr.mxu0 0.0
    %4198 = vmatpush1.msra.mxu0 0.0
    %4199 = vmatprep.subr.mxu0 0.0
    %4200 = vmatpush1.msra.mxu0 0.0
    %4201 = vmatprep.subr.mxu0 0.0
    %4202 = vmatpush1.msra.mxu0 0.0
    %4203 = vmatprep.subr.mxu0 0.0
    %4204 = vmatpush1.msra.mxu0 0.0
    %4205 = vmatprep.subr.mxu0 0.0
    %4206 = vmatpush1.msra.mxu0 0.0
    %4207 = vmatprep.subr.mxu0 0.0
    %4208 = vmatpush1.msra.mxu0 0.0
    %4209 = vmatprep.subr.mxu0 0.0
    %4210 = vmatpush1.msra.mxu0 0.0
    %4211 = vmatprep.subr.mxu0 0.0
    %4212 = vmatpush1.msra.mxu0 0.0
    %4213 = vmatprep.subr.mxu0 0.0
    %4214 = vmatpush1.msra.mxu0 0.0
    %4215 = vmatprep.subr.mxu0 0.0
    %4216 = vmatpush1.msra.mxu0 0.0
    %4217 = vmatprep.subr.mxu0 0.0
    %4218 = vmatpush1.msra.mxu0 0.0
    %4219 = vmatprep.subr.mxu0 0.0
    %4220 = vmatpush1.msra.mxu0 0.0
    %4221 = vmatprep.subr.mxu0 0.0
    %4222 = vmatpush1.msra.mxu0 0.0
    %4223 = vmatprep.subr.mxu0 0.0
    %4224 = vmatpush1.msra.mxu0 0.0
    %4225 = vmatprep.subr.mxu0 0.0
    %4226 = vmatpush1.msra.mxu0 0.0
    %4227 = vmatprep.subr.mxu0 0.0
    %4228 = vmatpush1.msra.mxu0 0.0
    %4229 = vmatprep.subr.mxu0 0.0
    %4230 = vmatpush1.msra.mxu0 0.0
    %4231 = vmatprep.subr.mxu0 0.0
    %4232 = vmatpush1.msra.mxu0 0.0
    %4233 = vmatprep.subr.mxu0 0.0
    %4234 = vmatpush1.msra.mxu0 0.0
    %4235 = vmatprep.subr.mxu0 0.0
    %4236 = vmatpush1.msra.mxu0 0.0
    %4237 = vmatprep.subr.mxu0 0.0
    %4238 = vmatpush1.msra.mxu0 0.0
    %4239 = vmatprep.mubr.f32.mxu0 0.0
    %v4240 = vand.u32 %v4001, 4294901760
    %4241 = vmatmul.mubr.f32.gmra.mrb[0].mxu0 %v4240
    %v4242 = vpop.f32.mrb[0].mxu0
    %v4243 = vadd.f32 %v4091, %v4242
    %v4244 = vpop.f32.mrb[0].mxu0
    %v4245 = vadd.f32 %v4093, %v4244
    %4246 = vdwg.mxu0
    %v4247 = vand.u32 %v3074, 4294901760
    %v4248 = vsub.f32 %v3074, %v4247
    %4249 = vmatprep.subr.mxu0 %v4248
    %v4250 = vand.u32 %v3073, 4294901760
    %v4251 = vsub.f32 %v3073, %v4250
    %4252 = vmatpush1.msra.mxu0 %v4251
    %v4253 = vand.u32 %v3076, 4294901760
    %v4254 = vsub.f32 %v3076, %v4253
    %4255 = vmatprep.subr.mxu0 %v4254
    %v4256 = vand.u32 %v3075, 4294901760
    %v4257 = vsub.f32 %v3075, %v4256
    %4258 = vmatpush1.msra.mxu0 %v4257
    %v4259 = vand.u32 %v3078, 4294901760
    %v4260 = vsub.f32 %v3078, %v4259
    %4261 = vmatprep.subr.mxu0 %v4260
    %v4262 = vand.u32 %v3077, 4294901760
    %v4263 = vsub.f32 %v3077, %v4262
    %4264 = vmatpush1.msra.mxu0 %v4263
    %v4265 = vand.u32 %v3080, 4294901760
    %v4266 = vsub.f32 %v3080, %v4265
    %4267 = vmatprep.subr.mxu0 %v4266
    %v4268 = vand.u32 %v3079, 4294901760
    %v4269 = vsub.f32 %v3079, %v4268
    %4270 = vmatpush1.msra.mxu0 %v4269
    %v4271 = vand.u32 %v3082, 4294901760
    %v4272 = vsub.f32 %v3082, %v4271
    %4273 = vmatprep.subr.mxu0 %v4272
    %v4274 = vand.u32 %v3081, 4294901760
    %v4275 = vsub.f32 %v3081, %v4274
    %4276 = vmatpush1.msra.mxu0 %v4275
    %v4277 = vand.u32 %v3084, 4294901760
    %v4278 = vsub.f32 %v3084, %v4277
    %4279 = vmatprep.subr.mxu0 %v4278
    %v4280 = vand.u32 %v3083, 4294901760
    %v4281 = vsub.f32 %v3083, %v4280
    %4282 = vmatpush1.msra.mxu0 %v4281
    %v4283 = vand.u32 %v3086, 4294901760
    %v4284 = vsub.f32 %v3086, %v4283
    %4285 = vmatprep.subr.mxu0 %v4284
    %v4286 = vand.u32 %v3085, 4294901760
    %v4287 = vsub.f32 %v3085, %v4286
    %4288 = vmatpush1.msra.mxu0 %v4287
    %v4289 = vand.u32 %v3088, 4294901760
    %v4290 = vsub.f32 %v3088, %v4289
    %4291 = vmatprep.subr.mxu0 %v4290
    %v4292 = vand.u32 %v3087, 4294901760
    %v4293 = vsub.f32 %v3087, %v4292
    %4294 = vmatpush1.msra.mxu0 %v4293
    %4295 = vmatprep.subr.mxu0 0.0
    %4296 = vmatpush1.msra.mxu0 0.0
    %4297 = vmatprep.subr.mxu0 0.0
    %4298 = vmatpush1.msra.mxu0 0.0
    %4299 = vmatprep.subr.mxu0 0.0
    %4300 = vmatpush1.msra.mxu0 0.0
    %4301 = vmatprep.subr.mxu0 0.0
    %4302 = vmatpush1.msra.mxu0 0.0
    %4303 = vmatprep.subr.mxu0 0.0
    %4304 = vmatpush1.msra.mxu0 0.0
    %4305 = vmatprep.subr.mxu0 0.0
    %4306 = vmatpush1.msra.mxu0 0.0
    %4307 = vmatprep.subr.mxu0 0.0
    %4308 = vmatpush1.msra.mxu0 0.0
    %4309 = vmatprep.subr.mxu0 0.0
    %4310 = vmatpush1.msra.mxu0 0.0
    %4311 = vmatprep.subr.mxu0 0.0
    %4312 = vmatpush1.msra.mxu0 0.0
    %4313 = vmatprep.subr.mxu0 0.0
    %4314 = vmatpush1.msra.mxu0 0.0
    %4315 = vmatprep.subr.mxu0 0.0
    %4316 = vmatpush1.msra.mxu0 0.0
    %4317 = vmatprep.subr.mxu0 0.0
    %4318 = vmatpush1.msra.mxu0 0.0
    %4319 = vmatprep.subr.mxu0 0.0
    %4320 = vmatpush1.msra.mxu0 0.0
    %4321 = vmatprep.subr.mxu0 0.0
    %4322 = vmatpush1.msra.mxu0 0.0
    %4323 = vmatprep.subr.mxu0 0.0
    %4324 = vmatpush1.msra.mxu0 0.0
    %4325 = vmatprep.subr.mxu0 0.0
    %4326 = vmatpush1.msra.mxu0 0.0
    %4327 = vmatprep.subr.mxu0 0.0
    %4328 = vmatpush1.msra.mxu0 0.0
    %4329 = vmatprep.subr.mxu0 0.0
    %4330 = vmatpush1.msra.mxu0 0.0
    %4331 = vmatprep.subr.mxu0 0.0
    %4332 = vmatpush1.msra.mxu0 0.0
    %4333 = vmatprep.subr.mxu0 0.0
    %4334 = vmatpush1.msra.mxu0 0.0
    %4335 = vmatprep.subr.mxu0 0.0
    %4336 = vmatpush1.msra.mxu0 0.0
    %4337 = vmatprep.subr.mxu0 0.0
    %4338 = vmatpush1.msra.mxu0 0.0
    %4339 = vmatprep.subr.mxu0 0.0
    %4340 = vmatpush1.msra.mxu0 0.0
    %4341 = vmatprep.subr.mxu0 0.0
    %4342 = vmatpush1.msra.mxu0 0.0
    %4343 = vmatprep.mubr.f32.mxu0 0.0
    %v4344 = vand.u32 %v4001, 4294901760
    %v4345 = vsub.f32 %v4001, %v4344
    %4346 = vmatmul.mubr.f32.gmra.mrb[0].mxu0 %v4345
    %v4347 = vpop.f32.mrb[0].mxu0
    %v4348 = vadd.f32 %v4243, %v4347
    %v4349 = vpop.f32.mrb[0].mxu0
    %v4350 = vadd.f32 %v4245, %v4349
    %4351 = vdwg.mxu0
    %v4352 = vand.u32 %v3074, 4294901760
    %4353 = vmatprep.subr.mxu0 %v4352
    %v4354 = vand.u32 %v3073, 4294901760
    %4355 = vmatpush1.msra.mxu0 %v4354
    %v4356 = vand.u32 %v3076, 4294901760
    %4357 = vmatprep.subr.mxu0 %v4356
    %v4358 = vand.u32 %v3075, 4294901760
    %4359 = vmatpush1.msra.mxu0 %v4358
    %v4360 = vand.u32 %v3078, 4294901760
    %4361 = vmatprep.subr.mxu0 %v4360
    %v4362 = vand.u32 %v3077, 4294901760
    %4363 = vmatpush1.msra.mxu0 %v4362
    %v4364 = vand.u32 %v3080, 4294901760
    %4365 = vmatprep.subr.mxu0 %v4364
    %v4366 = vand.u32 %v3079, 4294901760
    %4367 = vmatpush1.msra.mxu0 %v4366
    %v4368 = vand.u32 %v3082, 4294901760
    %4369 = vmatprep.subr.mxu0 %v4368
    %v4370 = vand.u32 %v3081, 4294901760
    %4371 = vmatpush1.msra.mxu0 %v4370
    %v4372 = vand.u32 %v3084, 4294901760
    %4373 = vmatprep.subr.mxu0 %v4372
    %v4374 = vand.u32 %v3083, 4294901760
    %4375 = vmatpush1.msra.mxu0 %v4374
    %v4376 = vand.u32 %v3086, 4294901760
    %4377 = vmatprep.subr.mxu0 %v4376
    %v4378 = vand.u32 %v3085, 4294901760
    %4379 = vmatpush1.msra.mxu0 %v4378
    %v4380 = vand.u32 %v3088, 4294901760
    %4381 = vmatprep.subr.mxu0 %v4380
    %v4382 = vand.u32 %v3087, 4294901760
    %4383 = vmatpush1.msra.mxu0 %v4382
    %4384 = vmatprep.subr.mxu0 0.0
    %4385 = vmatpush1.msra.mxu0 0.0
    %4386 = vmatprep.subr.mxu0 0.0
    %4387 = vmatpush1.msra.mxu0 0.0
    %4388 = vmatprep.subr.mxu0 0.0
    %4389 = vmatpush1.msra.mxu0 0.0
    %4390 = vmatprep.subr.mxu0 0.0
    %4391 = vmatpush1.msra.mxu0 0.0
    %4392 = vmatprep.subr.mxu0 0.0
    %4393 = vmatpush1.msra.mxu0 0.0
    %4394 = vmatprep.subr.mxu0 0.0
    %4395 = vmatpush1.msra.mxu0 0.0
    %4396 = vmatprep.subr.mxu0 0.0
    %4397 = vmatpush1.msra.mxu0 0.0
    %4398 = vmatprep.subr.mxu0 0.0
    %4399 = vmatpush1.msra.mxu0 0.0
    %4400 = vmatprep.subr.mxu0 0.0
    %4401 = vmatpush1.msra.mxu0 0.0
    %4402 = vmatprep.subr.mxu0 0.0
    %4403 = vmatpush1.msra.mxu0 0.0
    %4404 = vmatprep.subr.mxu0 0.0
    %4405 = vmatpush1.msra.mxu0 0.0
    %4406 = vmatprep.subr.mxu0 0.0
    %4407 = vmatpush1.msra.mxu0 0.0
    %4408 = vmatprep.subr.mxu0 0.0
    %4409 = vmatpush1.msra.mxu0 0.0
    %4410 = vmatprep.subr.mxu0 0.0
    %4411 = vmatpush1.msra.mxu0 0.0
    %4412 = vmatprep.subr.mxu0 0.0
    %4413 = vmatpush1.msra.mxu0 0.0
    %4414 = vmatprep.subr.mxu0 0.0
    %4415 = vmatpush1.msra.mxu0 0.0
    %4416 = vmatprep.subr.mxu0 0.0
    %4417 = vmatpush1.msra.mxu0 0.0
    %4418 = vmatprep.subr.mxu0 0.0
    %4419 = vmatpush1.msra.mxu0 0.0
    %4420 = vmatprep.subr.mxu0 0.0
    %4421 = vmatpush1.msra.mxu0 0.0
    %4422 = vmatprep.subr.mxu0 0.0
    %4423 = vmatpush1.msra.mxu0 0.0
    %4424 = vmatprep.subr.mxu0 0.0
    %4425 = vmatpush1.msra.mxu0 0.0
    %4426 = vmatprep.subr.mxu0 0.0
    %4427 = vmatpush1.msra.mxu0 0.0
    %4428 = vmatprep.subr.mxu0 0.0
    %4429 = vmatpush1.msra.mxu0 0.0
    %4430 = vmatprep.subr.mxu0 0.0
    %4431 = vmatpush1.msra.mxu0 0.0
    %4432 = vmatprep.mubr.f32.mxu0 0.0
    %v4433 = vand.u32 %v4001, 4294901760
    %v4434 = vsub.f32 %v4001, %v4433
    %v4435 = vand.u32 %v4434, 4294901760
    %4436 = vmatmul.mubr.f32.gmra.mrb[0].mxu0 %v4435
    %v4437 = vpop.f32.mrb[0].mxu0
    %v4438 = vadd.f32 %v4348, %v4437
    %v4439 = vpop.f32.mrb[0].mxu0
    %v4440 = vadd.f32 %v4350, %v4439
    %4441 = vdwg.mxu0
    %v4442 = vand.u32 %v3074, 4294901760
    %v4443 = vsub.f32 %v3074, %v4442
    %v4444 = vand.u32 %v4443, 4294901760
    %4445 = vmatprep.subr.mxu0 %v4444
    %v4446 = vand.u32 %v3073, 4294901760
    %v4447 = vsub.f32 %v3073, %v4446
    %v4448 = vand.u32 %v4447, 4294901760
    %4449 = vmatpush1.msra.mxu0 %v4448
    %v4450 = vand.u32 %v3076, 4294901760
    %v4451 = vsub.f32 %v3076, %v4450
    %v4452 = vand.u32 %v4451, 4294901760
    %4453 = vmatprep.subr.mxu0 %v4452
    %v4454 = vand.u32 %v3075, 4294901760
    %v4455 = vsub.f32 %v3075, %v4454
    %v4456 = vand.u32 %v4455, 4294901760
    %4457 = vmatpush1.msra.mxu0 %v4456
    %v4458 = vand.u32 %v3078, 4294901760
    %v4459 = vsub.f32 %v3078, %v4458
    %v4460 = vand.u32 %v4459, 4294901760
    %4461 = vmatprep.subr.mxu0 %v4460
    %v4462 = vand.u32 %v3077, 4294901760
    %v4463 = vsub.f32 %v3077, %v4462
    %v4464 = vand.u32 %v4463, 4294901760
    %4465 = vmatpush1.msra.mxu0 %v4464
    %v4466 = vand.u32 %v3080, 4294901760
    %v4467 = vsub.f32 %v3080, %v4466
    %v4468 = vand.u32 %v4467, 4294901760
    %4469 = vmatprep.subr.mxu0 %v4468
    %v4470 = vand.u32 %v3079, 4294901760
    %v4471 = vsub.f32 %v3079, %v4470
    %v4472 = vand.u32 %v4471, 4294901760
    %4473 = vmatpush1.msra.mxu0 %v4472
    %v4474 = vand.u32 %v3082, 4294901760
    %v4475 = vsub.f32 %v3082, %v4474
    %v4476 = vand.u32 %v4475, 4294901760
    %4477 = vmatprep.subr.mxu0 %v4476
    %v4478 = vand.u32 %v3081, 4294901760
    %v4479 = vsub.f32 %v3081, %v4478
    %v4480 = vand.u32 %v4479, 4294901760
    %4481 = vmatpush1.msra.mxu0 %v4480
    %v4482 = vand.u32 %v3084, 4294901760
    %v4483 = vsub.f32 %v3084, %v4482
    %v4484 = vand.u32 %v4483, 4294901760
    %4485 = vmatprep.subr.mxu0 %v4484
    %v4486 = vand.u32 %v3083, 4294901760
    %v4487 = vsub.f32 %v3083, %v4486
    %v4488 = vand.u32 %v4487, 4294901760
    %4489 = vmatpush1.msra.mxu0 %v4488
    %v4490 = vand.u32 %v3086, 4294901760
    %v4491 = vsub.f32 %v3086, %v4490
    %v4492 = vand.u32 %v4491, 4294901760
    %4493 = vmatprep.subr.mxu0 %v4492
    %v4494 = vand.u32 %v3085, 4294901760
    %v4495 = vsub.f32 %v3085, %v4494
    %v4496 = vand.u32 %v4495, 4294901760
    %4497 = vmatpush1.msra.mxu0 %v4496
    %v4498 = vand.u32 %v3088, 4294901760
    %v4499 = vsub.f32 %v3088, %v4498
    %v4500 = vand.u32 %v4499, 4294901760
    %4501 = vmatprep.subr.mxu0 %v4500
    %v4502 = vand.u32 %v3087, 4294901760
    %v4503 = vsub.f32 %v3087, %v4502
    %v4504 = vand.u32 %v4503, 4294901760
    %4505 = vmatpush1.msra.mxu0 %v4504
    %4506 = vmatprep.subr.mxu0 0.0
    %4507 = vmatpush1.msra.mxu0 0.0
    %4508 = vmatprep.subr.mxu0 0.0
    %4509 = vmatpush1.msra.mxu0 0.0
    %4510 = vmatprep.subr.mxu0 0.0
    %4511 = vmatpush1.msra.mxu0 0.0
    %4512 = vmatprep.subr.mxu0 0.0
    %4513 = vmatpush1.msra.mxu0 0.0
    %4514 = vmatprep.subr.mxu0 0.0
    %4515 = vmatpush1.msra.mxu0 0.0
    %4516 = vmatprep.subr.mxu0 0.0
    %4517 = vmatpush1.msra.mxu0 0.0
    %4518 = vmatprep.subr.mxu0 0.0
    %4519 = vmatpush1.msra.mxu0 0.0
    %4520 = vmatprep.subr.mxu0 0.0
    %4521 = vmatpush1.msra.mxu0 0.0
    %4522 = vmatprep.subr.mxu0 0.0
    %4523 = vmatpush1.msra.mxu0 0.0
    %4524 = vmatprep.subr.mxu0 0.0
    %4525 = vmatpush1.msra.mxu0 0.0
    %4526 = vmatprep.subr.mxu0 0.0
    %4527 = vmatpush1.msra.mxu0 0.0
    %4528 = vmatprep.subr.mxu0 0.0
    %4529 = vmatpush1.msra.mxu0 0.0
    %4530 = vmatprep.subr.mxu0 0.0
    %4531 = vmatpush1.msra.mxu0 0.0
    %4532 = vmatprep.subr.mxu0 0.0
    %4533 = vmatpush1.msra.mxu0 0.0
    %4534 = vmatprep.subr.mxu0 0.0
    %4535 = vmatpush1.msra.mxu0 0.0
    %4536 = vmatprep.subr.mxu0 0.0
    %4537 = vmatpush1.msra.mxu0 0.0
    %4538 = vmatprep.subr.mxu0 0.0
    %4539 = vmatpush1.msra.mxu0 0.0
    %4540 = vmatprep.subr.mxu0 0.0
    %4541 = vmatpush1.msra.mxu0 0.0
    %4542 = vmatprep.subr.mxu0 0.0
    %4543 = vmatpush1.msra.mxu0 0.0
    %4544 = vmatprep.subr.mxu0 0.0
    %4545 = vmatpush1.msra.mxu0 0.0
    %4546 = vmatprep.subr.mxu0 0.0
    %4547 = vmatpush1.msra.mxu0 0.0
    %4548 = vmatprep.subr.mxu0 0.0
    %4549 = vmatpush1.msra.mxu0 0.0
    %4550 = vmatprep.subr.mxu0 0.0
    %4551 = vmatpush1.msra.mxu0 0.0
    %4552 = vmatprep.subr.mxu0 0.0
    %4553 = vmatpush1.msra.mxu0 0.0
    %4554 = vmatprep.mubr.f32.mxu0 0.0
    %v4555 = vand.u32 %v4001, 4294901760
    %4556 = vmatmul.mubr.f32.gmra.mrb[0].mxu0 %v4555
    %v4557 = vpop.f32.mrb[0].mxu0
    %v4558 = vadd.f32 %v4438, %v4557
    %v4559 = vpop.f32.mrb[0].mxu0
    %v4560 = vadd.f32 %v4440, %v4559
    %4561 = vdwg.mxu0
    %v4562 = vand.u32 %v3074, 4294901760
    %4563 = vmatprep.subr.mxu0 %v4562
    %v4564 = vand.u32 %v3073, 4294901760
    %4565 = vmatpush1.msra.mxu0 %v4564
    %v4566 = vand.u32 %v3076, 4294901760
    %4567 = vmatprep.subr.mxu0 %v4566
    %v4568 = vand.u32 %v3075, 4294901760
    %4569 = vmatpush1.msra.mxu0 %v4568
    %v4570 = vand.u32 %v3078, 4294901760
    %4571 = vmatprep.subr.mxu0 %v4570
    %v4572 = vand.u32 %v3077, 4294901760
    %4573 = vmatpush1.msra.mxu0 %v4572
    %v4574 = vand.u32 %v3080, 4294901760
    %4575 = vmatprep.subr.mxu0 %v4574
    %v4576 = vand.u32 %v3079, 4294901760
    %4577 = vmatpush1.msra.mxu0 %v4576
    %v4578 = vand.u32 %v3082, 4294901760
    %4579 = vmatprep.subr.mxu0 %v4578
    %v4580 = vand.u32 %v3081, 4294901760
    %4581 = vmatpush1.msra.mxu0 %v4580
    %v4582 = vand.u32 %v3084, 4294901760
    %4583 = vmatprep.subr.mxu0 %v4582
    %v4584 = vand.u32 %v3083, 4294901760
    %4585 = vmatpush1.msra.mxu0 %v4584
    %v4586 = vand.u32 %v3086, 4294901760
    %4587 = vmatprep.subr.mxu0 %v4586
    %v4588 = vand.u32 %v3085, 4294901760
    %4589 = vmatpush1.msra.mxu0 %v4588
    %v4590 = vand.u32 %v3088, 4294901760
    %4591 = vmatprep.subr.mxu0 %v4590
    %v4592 = vand.u32 %v3087, 4294901760
    %4593 = vmatpush1.msra.mxu0 %v4592
    %4594 = vmatprep.subr.mxu0 0.0
    %4595 = vmatpush1.msra.mxu0 0.0
    %4596 = vmatprep.subr.mxu0 0.0
    %4597 = vmatpush1.msra.mxu0 0.0
    %4598 = vmatprep.subr.mxu0 0.0
    %4599 = vmatpush1.msra.mxu0 0.0
    %4600 = vmatprep.subr.mxu0 0.0
    %4601 = vmatpush1.msra.mxu0 0.0
    %4602 = vmatprep.subr.mxu0 0.0
    %4603 = vmatpush1.msra.mxu0 0.0
    %4604 = vmatprep.subr.mxu0 0.0
    %4605 = vmatpush1.msra.mxu0 0.0
    %4606 = vmatprep.subr.mxu0 0.0
    %4607 = vmatpush1.msra.mxu0 0.0
    %4608 = vmatprep.subr.mxu0 0.0
    %4609 = vmatpush1.msra.mxu0 0.0
    %4610 = vmatprep.subr.mxu0 0.0
    %4611 = vmatpush1.msra.mxu0 0.0
    %4612 = vmatprep.subr.mxu0 0.0
    %4613 = vmatpush1.msra.mxu0 0.0
    %4614 = vmatprep.subr.mxu0 0.0
    %4615 = vmatpush1.msra.mxu0 0.0
    %4616 = vmatprep.subr.mxu0 0.0
    %4617 = vmatpush1.msra.mxu0 0.0
    %4618 = vmatprep.subr.mxu0 0.0
    %4619 = vmatpush1.msra.mxu0 0.0
    %4620 = vmatprep.subr.mxu0 0.0
    %4621 = vmatpush1.msra.mxu0 0.0
    %4622 = vmatprep.subr.mxu0 0.0
    %4623 = vmatpush1.msra.mxu0 0.0
    %4624 = vmatprep.subr.mxu0 0.0
    %4625 = vmatpush1.msra.mxu0 0.0
    %4626 = vmatprep.subr.mxu0 0.0
    %4627 = vmatpush1.msra.mxu0 0.0
    %4628 = vmatprep.subr.mxu0 0.0
    %4629 = vmatpush1.msra.mxu0 0.0
    %4630 = vmatprep.subr.mxu0 0.0
    %4631 = vmatpush1.msra.mxu0 0.0
    %4632 = vmatprep.subr.mxu0 0.0
    %4633 = vmatpush1.msra.mxu0 0.0
    %4634 = vmatprep.subr.mxu0 0.0
    %4635 = vmatpush1.msra.mxu0 0.0
    %4636 = vmatprep.subr.mxu0 0.0
    %4637 = vmatpush1.msra.mxu0 0.0
    %4638 = vmatprep.subr.mxu0 0.0
    %4639 = vmatpush1.msra.mxu0 0.0
    %4640 = vmatprep.subr.mxu0 0.0
    %4641 = vmatpush1.msra.mxu0 0.0
    %4642 = vmatprep.mubr.f32.mxu0 0.0
    %v4643 = vand.u32 %v4001, 4294901760
    %4644 = vmatmul.mubr.f32.gmra.mrb[0].mxu0 %v4643
    %v4645 = vpop.f32.mrb[0].mxu0
    %v4646 = vadd.f32 %v4558, %v4645
    %v4647 = vpop.f32.mrb[0].mxu0
    %v4648 = vadd.f32 %v4560, %v4647
    %4649 = vdwg.mxu0
    %v4650 = vlaneseq
    %v4651 = vshrl.u32 %v4650, 7
    %v4652 = vsub.s32 0, %v4651
    %v4653 = vrot.slane %v4646, %v4652
    %v4654 = vlaneseq
    %v4655 = vshrl.u32 %v4654, 7
    %v4656 = vsub.s32 0, %v4655
    %v4657 = vrot.slane %v4648, %v4656
    %v4658 = vmul.f32 %v3035, %v4653
    %v4659 = vmul.f32 %v3036, %v4657
    %v4660 = vlaneseq
    %v4661 = vshrl.u32 %v4660, 7
    %v4662 = vsub.s32 1, %v4661
    %v4663 = vrot.slane %v4646, %v4662
    %v4664 = vlaneseq
    %v4665 = vshrl.u32 %v4664, 7
    %v4666 = vsub.s32 1, %v4665
    %v4667 = vrot.slane %v4648, %v4666
    %v4668 = vadd.f32 %v4658, %v4663
    %v4669 = vadd.f32 %v4659, %v4667
    %vm4670 = vcmp.ge.f32.partialorder %v4668, 0.0
    %vm4671 = vcmp.ge.f32.partialorder %v4669, 0.0
    %v4672 = vmul.f32 %v4668, 0.2
    %v4673 = vmul.f32 %v4669, 0.2
    %v4674 = vsel %vm4670, %v4668, %v4672
    %v4675 = vsel %vm4671, %v4669, %v4673
    %s4676 = smul.u32 4, 130
    %s4677 = smul.u32 %s4676, 2
    %s4678 = sshll.u32 %s4677, 4
    %4679 = dma.done %s148, %s4678
    %v4680 = vld [vmem:[#allocation2 + $0xa60] sm:$0xff]
    %v4681 = vpack.c.bf16 %v4674, %v4674
    %v4682 = vpack.c.bf16 %v4675, %v4675
    %vm4683 = vcmask 64512
    %v4685 = vsel %vm4683, %v4680, 0
    %vm4687 = vcmask 1043456
    %v4689 = vsel %vm4687, %v4681, 0
    %v4692 = vsel %vm4687, %v4682, 0
    %4694 = vmatprep.subr.bf16.mxu0 %v4692
    %4695 = vmatpush1.bf16.msra.mxu0 %v4689
    %4696 = vmatprep.subr.bf16.mxu0 0
    %4697 = vmatpush1.bf16.msra.mxu0 0
    %4698 = vmatprep.subr.bf16.mxu0 0
    %4699 = vmatpush1.bf16.msra.mxu0 0
    %4700 = vmatprep.subr.bf16.mxu0 0
    %4701 = vmatpush1.bf16.msra.mxu0 0
    %4702 = vmatprep.subr.bf16.mxu0 0
    %4703 = vmatpush1.bf16.msra.mxu0 0
    %4704 = vmatprep.subr.bf16.mxu0 0
    %4705 = vmatpush1.bf16.msra.mxu0 0
    %4706 = vmatprep.subr.bf16.mxu0 0
    %4707 = vmatpush1.bf16.msra.mxu0 0
    %4708 = vmatprep.subr.bf16.mxu0 0
    %4709 = vmatpush1.bf16.msra.mxu0 0
    %4710 = vmatprep.subr.bf16.mxu0 0
    %4711 = vmatpush1.bf16.msra.mxu0 0
    %4712 = vmatprep.subr.bf16.mxu0 0
    %4713 = vmatpush1.bf16.msra.mxu0 0
    %4714 = vmatprep.subr.bf16.mxu0 0
    %4715 = vmatpush1.bf16.msra.mxu0 0
    %4716 = vmatprep.subr.bf16.mxu0 0
    %4717 = vmatpush1.bf16.msra.mxu0 0
    %4718 = vmatprep.subr.bf16.mxu0 0
    %4719 = vmatpush1.bf16.msra.mxu0 0
    %4720 = vmatprep.subr.bf16.mxu0 0
    %4721 = vmatpush1.bf16.msra.mxu0 0
    %4722 = vmatprep.subr.bf16.mxu0 0
    %4723 = vmatpush1.bf16.msra.mxu0 0
    %4724 = vmatprep.subr.bf16.mxu0 0
    %4725 = vmatpush1.bf16.msra.mxu0 0
    %4726 = vmatprep.mubr.bf16.mxu0 0
    %4727 = vmatmul.mubr.bf16.gmra.mrb[0].mxu0 %v4685
    %v4728 = vpop.f32.mrb[0].mxu0
    %v4729 = vadd.f32 0.0, %v4728
    %v4730 = vpop.f32.mrb[0].mxu0
    %v4731 = vadd.f32 0.0, %v4730
    %v4732 = vpop.f32.mrb[0].mxu0
    %v4733 = vadd.f32 0.0, %v4732
    %v4734 = vpop.f32.mrb[0].mxu0
    %v4735 = vadd.f32 0.0, %v4734
    %4736 = vdwg.mxu0
    %v4737 = vpack.c.bf16 %v4733, %v4729
    %v4738 = vpack.c.bf16 %v4735, %v4731
    %v4739 = vld [vmem:[#allocation2 + $0xa70] sm:$0xff]
    %v4740 = vld [vmem:[#allocation2 + $0xa78] sm:$0xff]
    %v4741 = vld [vmem:[#allocation2 + $0xa80] sm:$0xff]
    %v4742 = vld [vmem:[#allocation2 + $0xa88] sm:$0xff]
    %v4743 = vld [vmem:[#allocation2 + $0xa90] sm:$0xff]
    %v4744 = vld [vmem:[#allocation2 + $0xa98] sm:$0xff]
    %v4745 = vld [vmem:[#allocation2 + $0xaa0] sm:$0xff]
    %v4746 = vld [vmem:[#allocation2 + $0xaa8] sm:$0xff]
    %v4747 = vld [vmem:[#allocation2 + $0xab0] sm:$0xff]
    %v4748 = vld [vmem:[#allocation2 + $0xab8] sm:$0xff]
    %v4749 = vld [vmem:[#allocation2 + $0xac0] sm:$0xff]
    %v4750 = vld [vmem:[#allocation2 + $0xac8] sm:$0xff]
    %v4751 = vld [vmem:[#allocation2 + $0xad0] sm:$0xff]
    %v4752 = vld [vmem:[#allocation2 + $0xad8] sm:$0xff]
    %v4753 = vld [vmem:[#allocation2 + $0xae0] sm:$0xff]
    %v4754 = vld [vmem:[#allocation2 + $0xae8] sm:$0xff]
    %v4755 = vld [vmem:[#allocation2 + $0xaf0] sm:$0xff]
    %v4756 = vld [vmem:[#allocation2 + $0xaf8] sm:$0xff]
    %v4757 = vld [vmem:[#allocation2 + $0xb00] sm:$0xff]
    %v4758 = vld [vmem:[#allocation2 + $0xb08] sm:$0xff]
    %v4759 = vld [vmem:[#allocation2 + $0xb10] sm:$0xff]
    %v4760 = vld [vmem:[#allocation2 + $0xb18] sm:$0xff]
    %v4761 = vld [vmem:[#allocation2 + $0xb20] sm:$0xff]
    %v4762 = vld [vmem:[#allocation2 + $0xb28] sm:$0xff]
    %v4763 = vld [vmem:[#allocation2 + $0xb30] sm:$0xff]
    %v4764 = vld [vmem:[#allocation2 + $0xb38] sm:$0xff]
    %v4765 = vld [vmem:[#allocation2 + $0xb40] sm:$0xff]
    %v4766 = vld [vmem:[#allocation2 + $0xb48] sm:$0xff]
    %v4767 = vld [vmem:[#allocation2 + $0xb50] sm:$0xff]
    %v4768 = vld [vmem:[#allocation2 + $0xb58] sm:$0xff]
    %v4769 = vld [vmem:[#allocation2 + $0xb60] sm:$0xff]
    %v4770 = vld [vmem:[#allocation2 + $0xb68] sm:$0xff]
    %v4771 = vld [vmem:[#allocation2 + $0xb70] sm:$0xff]
    %v4772 = vld [vmem:[#allocation2 + $0xb78] sm:$0xff]
    %v4773 = vld [vmem:[#allocation2 + $0xb80] sm:$0xff]
    %v4774 = vld [vmem:[#allocation2 + $0xb88] sm:$0xff]
    %v4775 = vld [vmem:[#allocation2 + $0xb90] sm:$0xff]
    %v4776 = vld [vmem:[#allocation2 + $0xb98] sm:$0xff]
    %v4777 = vld [vmem:[#allocation2 + $0xba0] sm:$0xff]
    %v4778 = vld [vmem:[#allocation2 + $0xba8] sm:$0xff]
    %v4779 = vld [vmem:[#allocation2 + $0xbb0] sm:$0xff]
    %v4780 = vld [vmem:[#allocation2 + $0xbb8] sm:$0xff]
    %v4781 = vld [vmem:[#allocation2 + $0xbc0] sm:$0xff]
    %v4782 = vld [vmem:[#allocation2 + $0xbc8] sm:$0xff]
    %v4783 = vld [vmem:[#allocation2 + $0xbd0] sm:$0xff]
    %v4784 = vld [vmem:[#allocation2 + $0xbd8] sm:$0xff]
    %v4785 = vld [vmem:[#allocation2 + $0xbe0] sm:$0xff]
    %v4786 = vld [vmem:[#allocation2 + $0xbe8] sm:$0xff]
    %v4787 = vld [vmem:[#allocation2 + $0xbf0] sm:$0xff]
    %v4788 = vld [vmem:[#allocation2 + $0xbf8] sm:$0xff]
    %v4789 = vld [vmem:[#allocation2 + $0xc00] sm:$0xff]
    %v4790 = vld [vmem:[#allocation2 + $0xc08] sm:$0xff]
    %v4791 = vld [vmem:[#allocation2 + $0xc10] sm:$0xff]
    %v4792 = vld [vmem:[#allocation2 + $0xc18] sm:$0xff]
    %v4793 = vld [vmem:[#allocation2 + $0xc20] sm:$0xff]
    %v4794 = vld [vmem:[#allocation2 + $0xc28] sm:$0xff]
    %v4795 = vld [vmem:[#allocation2 + $0xc30] sm:$0xff]
    %v4796 = vld [vmem:[#allocation2 + $0xc38] sm:$0xff]
    %v4797 = vld [vmem:[#allocation2 + $0xc40] sm:$0xff]
    %v4798 = vld [vmem:[#allocation2 + $0xc48] sm:$0xff]
    %v4799 = vld [vmem:[#allocation2 + $0xc50] sm:$0xff]
    %v4800 = vld [vmem:[#allocation2 + $0xc58] sm:$0xff]
    %v4801 = vld [vmem:[#allocation2 + $0xc60] sm:$0xff]
    %v4802 = vld [vmem:[#allocation2 + $0xc68] sm:$0xff]
    %v4805 = vrot.slane %v4737, 2
    %v4806 = vrot.slane %v4738, 2
    %4809 = vmatprep.subr.bf16.mxu0 %v4772
    %4810 = vmatpush1.bf16.msra.mxu0 %v4771
    %4811 = vmatprep.subr.bf16.mxu0 %v4774
    %4812 = vmatpush1.bf16.msra.mxu0 %v4773
    %4813 = vmatprep.subr.bf16.mxu0 %v4776
    %4814 = vmatpush1.bf16.msra.mxu0 %v4775
    %4815 = vmatprep.subr.bf16.mxu0 %v4778
    %4816 = vmatpush1.bf16.msra.mxu0 %v4777
    %4817 = vmatprep.subr.bf16.mxu0 %v4780
    %4818 = vmatpush1.bf16.msra.mxu0 %v4779
    %4819 = vmatprep.subr.bf16.mxu0 %v4782
    %4820 = vmatpush1.bf16.msra.mxu0 %v4781
    %4821 = vmatprep.subr.bf16.mxu0 %v4784
    %4822 = vmatpush1.bf16.msra.mxu0 %v4783
    %4823 = vmatprep.subr.bf16.mxu0 %v4786
    %4824 = vmatpush1.bf16.msra.mxu0 %v4785
    %4825 = vmatprep.subr.bf16.mxu0 %v4788
    %4826 = vmatpush1.bf16.msra.mxu0 %v4787
    %4827 = vmatprep.subr.bf16.mxu0 %v4790
    %4828 = vmatpush1.bf16.msra.mxu0 %v4789
    %4829 = vmatprep.subr.bf16.mxu0 %v4792
    %4830 = vmatpush1.bf16.msra.mxu0 %v4791
    %4831 = vmatprep.subr.bf16.mxu0 %v4794
    %4832 = vmatpush1.bf16.msra.mxu0 %v4793
    %4833 = vmatprep.subr.bf16.mxu0 %v4796
    %4834 = vmatpush1.bf16.msra.mxu0 %v4795
    %4835 = vmatprep.subr.bf16.mxu0 %v4798
    %4836 = vmatpush1.bf16.msra.mxu0 %v4797
    %4837 = vmatprep.subr.bf16.mxu0 %v4800
    %4838 = vmatpush1.bf16.msra.mxu0 %v4799
    %4839 = vmatprep.subr.bf16.mxu0 %v4802
    %4840 = vmatpush1.bf16.msra.mxu0 %v4801
    %4841 = vmatprep.mubr.bf16.mxu0 %v4806
    %4842 = vmatmul.mubr.bf16.gmra.mrb[0].mxu0 %v4805
    %v4843 = vpop.f32.mrb[0].mxu0
    %v4844 = vadd.f32 0.0, %v4843
    %v4845 = vpop.f32.mrb[0].mxu0
    %v4846 = vadd.f32 0.0, %v4845
    %v4847 = vpop.f32.mrb[0].mxu0
    %v4848 = vpop.f32.mrb[0].mxu0
    %4849 = vdwg.mxu0
    %v4850 = vld [vmem:[#allocation2 + $0xc70] sm:$0xff]
    %v4851 = vld [vmem:[#allocation2 + $0xc78] sm:$0xff]
    %v4852 = vld [vmem:[#allocation2 + $0xc80] sm:$0xff]
    %v4853 = vld [vmem:[#allocation2 + $0xc88] sm:$0xff]
    %v4854 = vld [vmem:[#allocation2 + $0xc90] sm:$0xff]
    %v4855 = vld [vmem:[#allocation2 + $0xc98] sm:$0xff]
    %v4856 = vld [vmem:[#allocation2 + $0xca0] sm:$0xff]
    %v4857 = vld [vmem:[#allocation2 + $0xca8] sm:$0xff]
    %v4858 = vld [vmem:[#allocation2 + $0xcb0] sm:$0xff]
    %v4859 = vld [vmem:[#allocation2 + $0xcb8] sm:$0xff]
    %v4860 = vld [vmem:[#allocation2 + $0xcc0] sm:$0xff]
    %v4861 = vld [vmem:[#allocation2 + $0xcc8] sm:$0xff]
    %v4862 = vld [vmem:[#allocation2 + $0xcd0] sm:$0xff]
    %v4863 = vld [vmem:[#allocation2 + $0xcd8] sm:$0xff]
    %v4864 = vld [vmem:[#allocation2 + $0xce0] sm:$0xff]
    %v4865 = vld [vmem:[#allocation2 + $0xce8] sm:$0xff]
    %v4866 = vld [vmem:[#allocation2 + $0xcf0] sm:$0xff]
    %v4867 = vld [vmem:[#allocation2 + $0xcf8] sm:$0xff]
    %v4868 = vld [vmem:[#allocation2 + $0xd00] sm:$0xff]
    %v4869 = vld [vmem:[#allocation2 + $0xd08] sm:$0xff]
    %v4870 = vld [vmem:[#allocation2 + $0xd10] sm:$0xff]
    %v4871 = vld [vmem:[#allocation2 + $0xd18] sm:$0xff]
    %v4872 = vld [vmem:[#allocation2 + $0xd20] sm:$0xff]
    %v4873 = vld [vmem:[#allocation2 + $0xd28] sm:$0xff]
    %v4874 = vld [vmem:[#allocation2 + $0xd30] sm:$0xff]
    %v4875 = vld [vmem:[#allocation2 + $0xd38] sm:$0xff]
    %v4876 = vld [vmem:[#allocation2 + $0xd40] sm:$0xff]
    %v4877 = vld [vmem:[#allocation2 + $0xd48] sm:$0xff]
    %v4878 = vld [vmem:[#allocation2 + $0xd50] sm:$0xff]
    %v4879 = vld [vmem:[#allocation2 + $0xd58] sm:$0xff]
    %v4880 = vld [vmem:[#allocation2 + $0xd60] sm:$0xff]
    %v4881 = vld [vmem:[#allocation2 + $0xd68] sm:$0xff]
    %v4882 = vld [vmem:[#allocation2 + $0xd70] sm:$0xff]
    %v4883 = vld [vmem:[#allocation2 + $0xd78] sm:$0xff]
    %v4884 = vld [vmem:[#allocation2 + $0xd80] sm:$0xff]
    %v4885 = vld [vmem:[#allocation2 + $0xd88] sm:$0xff]
    %v4886 = vld [vmem:[#allocation2 + $0xd90] sm:$0xff]
    %v4887 = vld [vmem:[#allocation2 + $0xd98] sm:$0xff]
    %v4888 = vld [vmem:[#allocation2 + $0xda0] sm:$0xff]
    %v4889 = vld [vmem:[#allocation2 + $0xda8] sm:$0xff]
    %v4890 = vld [vmem:[#allocation2 + $0xdb0] sm:$0xff]
    %v4891 = vld [vmem:[#allocation2 + $0xdb8] sm:$0xff]
    %v4892 = vld [vmem:[#allocation2 + $0xdc0] sm:$0xff]
    %v4893 = vld [vmem:[#allocation2 + $0xdc8] sm:$0xff]
    %v4894 = vld [vmem:[#allocation2 + $0xdd0] sm:$0xff]
    %v4895 = vld [vmem:[#allocation2 + $0xdd8] sm:$0xff]
    %v4896 = vld [vmem:[#allocation2 + $0xde0] sm:$0xff]
    %v4897 = vld [vmem:[#allocation2 + $0xde8] sm:$0xff]
    %v4898 = vld [vmem:[#allocation2 + $0xdf0] sm:$0xff]
    %v4899 = vld [vmem:[#allocation2 + $0xdf8] sm:$0xff]
    %v4900 = vld [vmem:[#allocation2 + $0xe00] sm:$0xff]
    %v4901 = vld [vmem:[#allocation2 + $0xe08] sm:$0xff]
    %v4902 = vld [vmem:[#allocation2 + $0xe10] sm:$0xff]
    %v4903 = vld [vmem:[#allocation2 + $0xe18] sm:$0xff]
    %v4904 = vld [vmem:[#allocation2 + $0xe20] sm:$0xff]
    %v4905 = vld [vmem:[#allocation2 + $0xe28] sm:$0xff]
    %v4906 = vld [vmem:[#allocation2 + $0xe30] sm:$0xff]
    %v4907 = vld [vmem:[#allocation2 + $0xe38] sm:$0xff]
    %v4908 = vld [vmem:[#allocation2 + $0xe40] sm:$0xff]
    %v4909 = vld [vmem:[#allocation2 + $0xe48] sm:$0xff]
    %v4910 = vld [vmem:[#allocation2 + $0xe50] sm:$0xff]
    %v4911 = vld [vmem:[#allocation2 + $0xe58] sm:$0xff]
    %v4912 = vld [vmem:[#allocation2 + $0xe60] sm:$0xff]
    %v4913 = vld [vmem:[#allocation2 + $0xe68] sm:$0xff]
    %v4914 = vrot.slane %v4737, 6
    %v4915 = vrot.slane %v4738, 6
    %4918 = vmatprep.subr.bf16.mxu0 %v4883
    %4919 = vmatpush1.bf16.msra.mxu0 %v4882
    %4920 = vmatprep.subr.bf16.mxu0 %v4885
    %4921 = vmatpush1.bf16.msra.mxu0 %v4884
    %4922 = vmatprep.subr.bf16.mxu0 %v4887
    %4923 = vmatpush1.bf16.msra.mxu0 %v4886
    %4924 = vmatprep.subr.bf16.mxu0 %v4889
    %4925 = vmatpush1.bf16.msra.mxu0 %v4888
    %4926 = vmatprep.subr.bf16.mxu0 %v4891
    %4927 = vmatpush1.bf16.msra.mxu0 %v4890
    %4928 = vmatprep.subr.bf16.mxu0 %v4893
    %4929 = vmatpush1.bf16.msra.mxu0 %v4892
    %4930 = vmatprep.subr.bf16.mxu0 %v4895
    %4931 = vmatpush1.bf16.msra.mxu0 %v4894
    %4932 = vmatprep.subr.bf16.mxu0 %v4897
    %4933 = vmatpush1.bf16.msra.mxu0 %v4896
    %4934 = vmatprep.subr.bf16.mxu0 %v4899
    %4935 = vmatpush1.bf16.msra.mxu0 %v4898
    %4936 = vmatprep.subr.bf16.mxu0 %v4901
    %4937 = vmatpush1.bf16.msra.mxu0 %v4900
    %4938 = vmatprep.subr.bf16.mxu0 %v4903
    %4939 = vmatpush1.bf16.msra.mxu0 %v4902
    %4940 = vmatprep.subr.bf16.mxu0 %v4905
    %4941 = vmatpush1.bf16.msra.mxu0 %v4904
    %4942 = vmatprep.subr.bf16.mxu0 %v4907
    %4943 = vmatpush1.bf16.msra.mxu0 %v4906
    %4944 = vmatprep.subr.bf16.mxu0 %v4909
    %4945 = vmatpush1.bf16.msra.mxu0 %v4908
    %4946 = vmatprep.subr.bf16.mxu0 %v4911
    %4947 = vmatpush1.bf16.msra.mxu0 %v4910
    %4948 = vmatprep.subr.bf16.mxu0 %v4913
    %4949 = vmatpush1.bf16.msra.mxu0 %v4912
    %4950 = vmatprep.mubr.bf16.mxu0 %v4915
    %4951 = vmatmul.mubr.bf16.gmra.mrb[0].mxu0 %v4914
    %v4952 = vpop.f32.mrb[0].mxu0
    %v4953 = vadd.f32 0.0, %v4952
    %v4954 = vpop.f32.mrb[0].mxu0
    %v4955 = vadd.f32 0.0, %v4954
    %v4956 = vpop.f32.mrb[0].mxu0
    %v4957 = vpop.f32.mrb[0].mxu0
    %4958 = vdwg.mxu0
    %4959 = vmatprep.subr.bf16.mxu0 %v4740
    %4960 = vmatpush1.bf16.msra.mxu0 %v4739
    %4961 = vmatprep.subr.bf16.mxu0 %v4742
    %4962 = vmatpush1.bf16.msra.mxu0 %v4741
    %4963 = vmatprep.subr.bf16.mxu0 %v4744
    %4964 = vmatpush1.bf16.msra.mxu0 %v4743
    %4965 = vmatprep.subr.bf16.mxu0 %v4746
    %4966 = vmatpush1.bf16.msra.mxu0 %v4745
    %4967 = vmatprep.subr.bf16.mxu0 %v4748
    %4968 = vmatpush1.bf16.msra.mxu0 %v4747
    %4969 = vmatprep.subr.bf16.mxu0 %v4750
    %4970 = vmatpush1.bf16.msra.mxu0 %v4749
    %4971 = vmatprep.subr.bf16.mxu0 %v4752
    %4972 = vmatpush1.bf16.msra.mxu0 %v4751
    %4973 = vmatprep.subr.bf16.mxu0 %v4754
    %4974 = vmatpush1.bf16.msra.mxu0 %v4753
    %4975 = vmatprep.subr.bf16.mxu0 %v4756
    %4976 = vmatpush1.bf16.msra.mxu0 %v4755
    %4977 = vmatprep.subr.bf16.mxu0 %v4758
    %4978 = vmatpush1.bf16.msra.mxu0 %v4757
    %4979 = vmatprep.subr.bf16.mxu0 %v4760
    %4980 = vmatpush1.bf16.msra.mxu0 %v4759
    %4981 = vmatprep.subr.bf16.mxu0 %v4762
    %4982 = vmatpush1.bf16.msra.mxu0 %v4761
    %4983 = vmatprep.subr.bf16.mxu0 %v4764
    %4984 = vmatpush1.bf16.msra.mxu0 %v4763
    %4985 = vmatprep.subr.bf16.mxu0 %v4766
    %4986 = vmatpush1.bf16.msra.mxu0 %v4765
    %4987 = vmatprep.subr.bf16.mxu0 %v4768
    %4988 = vmatpush1.bf16.msra.mxu0 %v4767
    %4989 = vmatprep.subr.bf16.mxu0 %v4770
    %4990 = vmatpush1.bf16.msra.mxu0 %v4769
    %4991 = vmatprep.mubr.bf16.mxu0 %v4738
    %4992 = vmatmul.mubr.bf16.gmra.mrb[0].mxu0 %v4737
    %v4993 = vpop.f32.mrb[0].mxu0
    %v4994 = vadd.f32 %v4844, %v4993
    %v4995 = vpop.f32.mrb[0].mxu0
    %v4996 = vadd.f32 %v4846, %v4995
    %v4997 = vpop.f32.mrb[0].mxu0
    %v4998 = vpop.f32.mrb[0].mxu0
    %4999 = vdwg.mxu0
    %v5000 = vrot.slane %v4737, 4
    %v5001 = vrot.slane %v4738, 4
    %5004 = vmatprep.subr.bf16.mxu0 %v4851
    %5005 = vmatpush1.bf16.msra.mxu0 %v4850
    %5006 = vmatprep.subr.bf16.mxu0 %v4853
    %5007 = vmatpush1.bf16.msra.mxu0 %v4852
    %5008 = vmatprep.subr.bf16.mxu0 %v4855
    %5009 = vmatpush1.bf16.msra.mxu0 %v4854
    %5010 = vmatprep.subr.bf16.mxu0 %v4857
    %5011 = vmatpush1.bf16.msra.mxu0 %v4856
    %5012 = vmatprep.subr.bf16.mxu0 %v4859
    %5013 = vmatpush1.bf16.msra.mxu0 %v4858
    %5014 = vmatprep.subr.bf16.mxu0 %v4861
    %5015 = vmatpush1.bf16.msra.mxu0 %v4860
    %5016 = vmatprep.subr.bf16.mxu0 %v4863
    %5017 = vmatpush1.bf16.msra.mxu0 %v4862
    %5018 = vmatprep.subr.bf16.mxu0 %v4865
    %5019 = vmatpush1.bf16.msra.mxu0 %v4864
    %5020 = vmatprep.subr.bf16.mxu0 %v4867
    %5021 = vmatpush1.bf16.msra.mxu0 %v4866
    %5022 = vmatprep.subr.bf16.mxu0 %v4869
    %5023 = vmatpush1.bf16.msra.mxu0 %v4868
    %5024 = vmatprep.subr.bf16.mxu0 %v4871
    %5025 = vmatpush1.bf16.msra.mxu0 %v4870
    %5026 = vmatprep.subr.bf16.mxu0 %v4873
    %5027 = vmatpush1.bf16.msra.mxu0 %v4872
    %5028 = vmatprep.subr.bf16.mxu0 %v4875
    %5029 = vmatpush1.bf16.msra.mxu0 %v4874
    %5030 = vmatprep.subr.bf16.mxu0 %v4877
    %5031 = vmatpush1.bf16.msra.mxu0 %v4876
    %5032 = vmatprep.subr.bf16.mxu0 %v4879
    %5033 = vmatpush1.bf16.msra.mxu0 %v4878
    %5034 = vmatprep.subr.bf16.mxu0 %v4881
    %5035 = vmatpush1.bf16.msra.mxu0 %v4880
    %5036 = vmatprep.mubr.bf16.mxu0 %v5001
    %5037 = vmatmul.mubr.bf16.gmra.mrb[0].mxu0 %v5000
    %v5038 = vpop.f32.mrb[0].mxu0
    %v5039 = vadd.f32 %v4953, %v5038
    %v5040 = vpop.f32.mrb[0].mxu0
    %v5041 = vadd.f32 %v4955, %v5040
    %v5042 = vpop.f32.mrb[0].mxu0
    %v5043 = vpop.f32.mrb[0].mxu0
    %5044 = vdwg.mxu0
    %v5045 = vadd.f32 %v4994, %v5039
    %v5046 = vadd.f32 %v4996, %v5041
    %s5047 = smul.u32 8, 49
    %s5048 = smul.u32 %s5047, 2
    %s5049 = sshll.u32 %s5048, 4
    %5050 = dma.done %s185, %s5049
    %v5051 = vld [vmem:[#allocation3 + $0x4e0] sm:$0xff]
    %v5052 = vld [vmem:[#allocation3 + $0x4f0] sm:$0xff]
    %v5053 = vld [vmem:[#allocation3 + $0x500] sm:$0xff]
    %v5054 = vld [vmem:[#allocation3 + $0x510] sm:$0xff]
    %v5055 = vld [vmem:[#allocation3 + $0x520] sm:$0xff]
    %v5056 = vld [vmem:[#allocation3 + $0x530] sm:$0xff]
    %v5057 = vld [vmem:[#allocation3 + $0x540] sm:$0xff]
    %v5058 = vld [vmem:[#allocation3 + $0x550] sm:$0xff]
    %v5059 = vld [vmem:[#allocation3 + $0x560] sm:$0xff]
    %v5060 = vld [vmem:[#allocation3 + $0x570] sm:$0xff]
    %v5061 = vld [vmem:[#allocation3 + $0x580] sm:$0xff]
    %v5062 = vld [vmem:[#allocation3 + $0x590] sm:$0xff]
    %v5063 = vld [vmem:[#allocation3 + $0x5a0] sm:$0xff]
    %v5064 = vld [vmem:[#allocation3 + $0x5b0] sm:$0xff]
    %v5065 = vld [vmem:[#allocation3 + $0x5c0] sm:$0xff]
    %v5066 = vld [vmem:[#allocation3 + $0x5d0] sm:$0xff]
    %v5067 = vld [vmem:[#allocation3 + $0x5e0] sm:$0xff]
    %v5068 = vld [vmem:[#allocation3 + $0x5f0] sm:$0xff]
    %v5069 = vld [vmem:[#allocation3 + $0x600] sm:$0xff]
    %v5070 = vld [vmem:[#allocation3 + $0x610] sm:$0xff]
    %v5071 = vld [vmem:[#allocation3 + $0x620] sm:$0xff]
    %v5072 = vld [vmem:[#allocation3 + $0x630] sm:$0xff]
    %v5073 = vld [vmem:[#allocation3 + $0x640] sm:$0xff]
    %v5074 = vld [vmem:[#allocation3 + $0x650] sm:$0xff]
    %v5075 = vld [vmem:[#allocation3 + $0x660] sm:$0xff]
    %v5076 = vld [vmem:[#allocation3 + $0x670] sm:$0xff]
    %v5077 = vld [vmem:[#allocation3 + $0x680] sm:$0xff]
    %v5078 = vld [vmem:[#allocation3 + $0x690] sm:$0xff]
    %v5079 = vld [vmem:[#allocation3 + $0x6a0] sm:$0xff]
    %v5080 = vld [vmem:[#allocation3 + $0x6b0] sm:$0xff]
    %v5081 = vld [vmem:[#allocation3 + $0x6c0] sm:$0xff]
    %v5082 = vld [vmem:[#allocation3 + $0x6d0] sm:$0xff]
    %v5083 = vld [vmem:[#allocation3 + $0x6e0] sm:$0xff]
    %v5084 = vld [vmem:[#allocation3 + $0x6e8] sm:$0xff]
    %v5085 = vld [vmem:[#allocation3 + $0x6f0] sm:$0xff]
    %v5086 = vld [vmem:[#allocation3 + $0x6f8] sm:$0xff]
    %v5087 = vld [vmem:[#allocation3 + $0x700] sm:$0xff]
    %v5088 = vld [vmem:[#allocation3 + $0x708] sm:$0xff]
    %v5089 = vld [vmem:[#allocation3 + $0x710] sm:$0xff]
    %v5090 = vld [vmem:[#allocation3 + $0x718] sm:$0xff]
    %v5091 = vld [vmem:[#allocation3 + $0x720] sm:$0xff]
    %v5092 = vld [vmem:[#allocation3 + $0x728] sm:$0xff]
    %v5093 = vld [vmem:[#allocation3 + $0x730] sm:$0xff]
    %v5094 = vld [vmem:[#allocation3 + $0x738] sm:$0xff]
    %v5095 = vld [vmem:[#allocation3 + $0x740] sm:$0xff]
    %v5096 = vld [vmem:[#allocation3 + $0x748] sm:$0xff]
    %v5097 = vld [vmem:[#allocation3 + $0x750] sm:$0xff]
    %v5098 = vld [vmem:[#allocation3 + $0x758] sm:$0xff]
    %v5099 = vld [vmem:[#allocation3 + $0x760] sm:$0xff]
    %v5100 = vld [vmem:[#allocation3 + $0x768] sm:$0xff]
    %v5101 = vld [vmem:[#allocation3 + $0x770] sm:$0xff]
    %v5102 = vld [vmem:[#allocation3 + $0x778] sm:$0xff]
    %v5103 = vld [vmem:[#allocation3 + $0x780] sm:$0xff]
    %v5104 = vld [vmem:[#allocation3 + $0x788] sm:$0xff]
    %v5105 = vld [vmem:[#allocation3 + $0x790] sm:$0xff]
    %v5106 = vld [vmem:[#allocation3 + $0x798] sm:$0xff]
    %v5107 = vld [vmem:[#allocation3 + $0x7a0] sm:$0xff]
    %v5108 = vld [vmem:[#allocation3 + $0x7a8] sm:$0xff]
    %v5109 = vld [vmem:[#allocation3 + $0x7b0] sm:$0xff]
    %v5110 = vld [vmem:[#allocation3 + $0x7b8] sm:$0xff]
    %v5111 = vld [vmem:[#allocation3 + $0x7c0] sm:$0xff]
    %v5112 = vld [vmem:[#allocation3 + $0x7c8] sm:$0xff]
    %v5113 = vld [vmem:[#allocation3 + $0x7d0] sm:$0xff]
    %v5114 = vld [vmem:[#allocation3 + $0x7d8] sm:$0xff]
    %v5115 = vld [vmem:[#allocation3 + $0x7e0] sm:$0x3]
    %v5116 = vsel %vm4687, %v5045, 0.0
    %v5117 = vrot.slane %v5116, 4
    %v5118 = vadd.f32 %v5116, %v5117
    %v5119 = vrot.slane %v5118, 2
    %v5120 = vadd.f32 %v5118, %v5119
    %v5121 = vrot.slane %v5120, 1
    %v5122 = vadd.f32 %v5120, %v5121
    %v5123 = vsel %vm4687, %v5046, 0.0
    %v5124 = vrot.slane %v5123, 4
    %v5125 = vadd.f32 %v5123, %v5124
    %v5126 = vrot.slane %v5125, 2
    %v5127 = vadd.f32 %v5125, %v5126
    %v5128 = vrot.slane %v5127, 1
    %v5129 = vadd.f32 %v5127, %v5128
    %v5130 = vmul.f32 %v5045, %v5045
    %v5131 = vmul.f32 %v5046, %v5046
    %v5132 = vsel %vm4687, %v5130, 0.0
    %v5133 = vrot.slane %v5132, 4
    %v5134 = vadd.f32 %v5132, %v5133
    %v5135 = vrot.slane %v5134, 2
    %v5136 = vadd.f32 %v5134, %v5135
    %v5137 = vrot.slane %v5136, 1
    %v5138 = vadd.f32 %v5136, %v5137
    %v5139 = vsel %vm4687, %v5131, 0.0
    %v5140 = vrot.slane %v5139, 4
    %v5141 = vadd.f32 %v5139, %v5140
    %v5142 = vrot.slane %v5141, 2
    %v5143 = vadd.f32 %v5141, %v5142
    %v5144 = vrot.slane %v5143, 1
    %v5145 = vadd.f32 %v5143, %v5144
    %v5146 = vsel %vm1192, %v5122, %v5138
    %v5147 = vsel %vm1192, %v5129, %v5145
    %5148 = vmatprep.subr.mxu0 0.0
    %v5149 = vand.u32 %v5051, 4294901760
    %5150 = vmatpush1.msra.mxu0 %v5149
    %5151 = vmatprep.subr.mxu0 0.0
    %v5152 = vand.u32 %v5052, 4294901760
    %5153 = vmatpush1.msra.mxu0 %v5152
    %5154 = vmatprep.subr.mxu0 0.0
    %v5155 = vand.u32 %v5053, 4294901760
    %5156 = vmatpush1.msra.mxu0 %v5155
    %5157 = vmatprep.subr.mxu0 0.0
    %v5158 = vand.u32 %v5054, 4294901760
    %5159 = vmatpush1.msra.mxu0 %v5158
    %5160 = vmatprep.subr.mxu0 0.0
    %v5161 = vand.u32 %v5055, 4294901760
    %5162 = vmatpush1.msra.mxu0 %v5161
    %5163 = vmatprep.subr.mxu0 0.0
    %v5164 = vand.u32 %v5056, 4294901760
    %5165 = vmatpush1.msra.mxu0 %v5164
    %5166 = vmatprep.subr.mxu0 0.0
    %v5167 = vand.u32 %v5057, 4294901760
    %5168 = vmatpush1.msra.mxu0 %v5167
    %5169 = vmatprep.subr.mxu0 0.0
    %v5170 = vand.u32 %v5058, 4294901760
    %5171 = vmatpush1.msra.mxu0 %v5170
    %5172 = vmatprep.subr.mxu0 0.0
    %v5173 = vand.u32 %v5059, 4294901760
    %5174 = vmatpush1.msra.mxu0 %v5173
    %5175 = vmatprep.subr.mxu0 0.0
    %v5176 = vand.u32 %v5060, 4294901760
    %5177 = vmatpush1.msra.mxu0 %v5176
    %5178 = vmatprep.subr.mxu0 0.0
    %v5179 = vand.u32 %v5061, 4294901760
    %5180 = vmatpush1.msra.mxu0 %v5179
    %5181 = vmatprep.subr.mxu0 0.0
    %v5182 = vand.u32 %v5062, 4294901760
    %5183 = vmatpush1.msra.mxu0 %v5182
    %5184 = vmatprep.subr.mxu0 0.0
    %v5185 = vand.u32 %v5063, 4294901760
    %5186 = vmatpush1.msra.mxu0 %v5185
    %5187 = vmatprep.subr.mxu0 0.0
    %v5188 = vand.u32 %v5064, 4294901760
    %5189 = vmatpush1.msra.mxu0 %v5188
    %5190 = vmatprep.subr.mxu0 0.0
    %v5191 = vand.u32 %v5065, 4294901760
    %5192 = vmatpush1.msra.mxu0 %v5191
    %5193 = vmatprep.subr.mxu0 0.0
    %v5194 = vand.u32 %v5066, 4294901760
    %5195 = vmatpush1.msra.mxu0 %v5194
    %5196 = vmatprep.subr.mxu0 0.0
    %v5197 = vand.u32 %v5067, 4294901760
    %5198 = vmatpush1.msra.mxu0 %v5197
    %5199 = vmatprep.subr.mxu0 0.0
    %v5200 = vand.u32 %v5068, 4294901760
    %5201 = vmatpush1.msra.mxu0 %v5200
    %5202 = vmatprep.subr.mxu0 0.0
    %v5203 = vand.u32 %v5069, 4294901760
    %5204 = vmatpush1.msra.mxu0 %v5203
    %5205 = vmatprep.subr.mxu0 0.0
    %v5206 = vand.u32 %v5070, 4294901760
    %5207 = vmatpush1.msra.mxu0 %v5206
    %5208 = vmatprep.subr.mxu0 0.0
    %v5209 = vand.u32 %v5071, 4294901760
    %5210 = vmatpush1.msra.mxu0 %v5209
    %5211 = vmatprep.subr.mxu0 0.0
    %v5212 = vand.u32 %v5072, 4294901760
    %5213 = vmatpush1.msra.mxu0 %v5212
    %5214 = vmatprep.subr.mxu0 0.0
    %v5215 = vand.u32 %v5073, 4294901760
    %5216 = vmatpush1.msra.mxu0 %v5215
    %5217 = vmatprep.subr.mxu0 0.0
    %v5218 = vand.u32 %v5074, 4294901760
    %5219 = vmatpush1.msra.mxu0 %v5218
    %5220 = vmatprep.subr.mxu0 0.0
    %v5221 = vand.u32 %v5075, 4294901760
    %5222 = vmatpush1.msra.mxu0 %v5221
    %5223 = vmatprep.subr.mxu0 0.0
    %v5224 = vand.u32 %v5076, 4294901760
    %5225 = vmatpush1.msra.mxu0 %v5224
    %5226 = vmatprep.subr.mxu0 0.0
    %v5227 = vand.u32 %v5077, 4294901760
    %5228 = vmatpush1.msra.mxu0 %v5227
    %5229 = vmatprep.subr.mxu0 0.0
    %v5230 = vand.u32 %v5078, 4294901760
    %5231 = vmatpush1.msra.mxu0 %v5230
    %5232 = vmatprep.subr.mxu0 0.0
    %v5233 = vand.u32 %v5079, 4294901760
    %5234 = vmatpush1.msra.mxu0 %v5233
    %5235 = vmatprep.subr.mxu0 0.0
    %v5236 = vand.u32 %v5080, 4294901760
    %5237 = vmatpush1.msra.mxu0 %v5236
    %5238 = vmatprep.subr.mxu0 0.0
    %v5239 = vand.u32 %v5081, 4294901760
    %5240 = vmatpush1.msra.mxu0 %v5239
    %5241 = vmatprep.subr.mxu0 0.0
    %v5242 = vand.u32 %v5082, 4294901760
    %5243 = vmatpush1.msra.mxu0 %v5242
    %v5244 = vand.u32 %v5147, 4294901760
    %v5245 = vsub.f32 %v5147, %v5244
    %v5246 = vand.u32 %v5245, 4294901760
    %v5247 = vsub.f32 %v5245, %v5246
    %v5248 = vand.u32 %v5247, 4294901760
    %5249 = vmatprep.mubr.f32.mxu0 %v5248
    %v5250 = vand.u32 %v5146, 4294901760
    %v5251 = vsub.f32 %v5146, %v5250
    %v5252 = vand.u32 %v5251, 4294901760
    %v5253 = vsub.f32 %v5251, %v5252
    %v5254 = vand.u32 %v5253, 4294901760
    %5255 = vmatmul.mubr.f32.gmra.mrb[0].mxu0 %v5254
    %v5256 = vpop.f32.mrb[0].mxu0
    %v5257 = vadd.f32 0.0, %v5256
    %v5258 = vpop.f32.mrb[0].mxu0
    %5259 = vdwg.mxu0
    %5260 = vmatprep.subr.mxu0 0.0
    %v5261 = vand.u32 %v5051, 4294901760
    %v5262 = vsub.f32 %v5051, %v5261
    %v5263 = vand.u32 %v5262, 4294901760
    %v5264 = vsub.f32 %v5262, %v5263
    %v5265 = vand.u32 %v5264, 4294901760
    %5266 = vmatpush1.msra.mxu0 %v5265
    %5267 = vmatprep.subr.mxu0 0.0
    %v5268 = vand.u32 %v5052, 4294901760
    %v5269 = vsub.f32 %v5052, %v5268
    %v5270 = vand.u32 %v5269, 4294901760
    %v5271 = vsub.f32 %v5269, %v5270
    %v5272 = vand.u32 %v5271, 4294901760
    %5273 = vmatpush1.msra.mxu0 %v5272
    %5274 = vmatprep.subr.mxu0 0.0
    %v5275 = vand.u32 %v5053, 4294901760
    %v5276 = vsub.f32 %v5053, %v5275
    %v5277 = vand.u32 %v5276, 4294901760
    %v5278 = vsub.f32 %v5276, %v5277
    %v5279 = vand.u32 %v5278, 4294901760
    %5280 = vmatpush1.msra.mxu0 %v5279
    %5281 = vmatprep.subr.mxu0 0.0
    %v5282 = vand.u32 %v5054, 4294901760
    %v5283 = vsub.f32 %v5054, %v5282
    %v5284 = vand.u32 %v5283, 4294901760
    %v5285 = vsub.f32 %v5283, %v5284
    %v5286 = vand.u32 %v5285, 4294901760
    %5287 = vmatpush1.msra.mxu0 %v5286
    %5288 = vmatprep.subr.mxu0 0.0
    %v5289 = vand.u32 %v5055, 4294901760
    %v5290 = vsub.f32 %v5055, %v5289
    %v5291 = vand.u32 %v5290, 4294901760
    %v5292 = vsub.f32 %v5290, %v5291
    %v5293 = vand.u32 %v5292, 4294901760
    %5294 = vmatpush1.msra.mxu0 %v5293
    %5295 = vmatprep.subr.mxu0 0.0
    %v5296 = vand.u32 %v5056, 4294901760
    %v5297 = vsub.f32 %v5056, %v5296
    %v5298 = vand.u32 %v5297, 4294901760
    %v5299 = vsub.f32 %v5297, %v5298
    %v5300 = vand.u32 %v5299, 4294901760
    %5301 = vmatpush1.msra.mxu0 %v5300
    %5302 = vmatprep.subr.mxu0 0.0
    %v5303 = vand.u32 %v5057, 4294901760
    %v5304 = vsub.f32 %v5057, %v5303
    %v5305 = vand.u32 %v5304, 4294901760
    %v5306 = vsub.f32 %v5304, %v5305
    %v5307 = vand.u32 %v5306, 4294901760
    %5308 = vmatpush1.msra.mxu0 %v5307
    %5309 = vmatprep.subr.mxu0 0.0
    %v5310 = vand.u32 %v5058, 4294901760
    %v5311 = vsub.f32 %v5058, %v5310
    %v5312 = vand.u32 %v5311, 4294901760
    %v5313 = vsub.f32 %v5311, %v5312
    %v5314 = vand.u32 %v5313, 4294901760
    %5315 = vmatpush1.msra.mxu0 %v5314
    %5316 = vmatprep.subr.mxu0 0.0
    %v5317 = vand.u32 %v5059, 4294901760
    %v5318 = vsub.f32 %v5059, %v5317
    %v5319 = vand.u32 %v5318, 4294901760
    %v5320 = vsub.f32 %v5318, %v5319
    %v5321 = vand.u32 %v5320, 4294901760
    %5322 = vmatpush1.msra.mxu0 %v5321
    %5323 = vmatprep.subr.mxu0 0.0
    %v5324 = vand.u32 %v5060, 4294901760
    %v5325 = vsub.f32 %v5060, %v5324
    %v5326 = vand.u32 %v5325, 4294901760
    %v5327 = vsub.f32 %v5325, %v5326
    %v5328 = vand.u32 %v5327, 4294901760
    %5329 = vmatpush1.msra.mxu0 %v5328
    %5330 = vmatprep.subr.mxu0 0.0
    %v5331 = vand.u32 %v5061, 4294901760
    %v5332 = vsub.f32 %v5061, %v5331
    %v5333 = vand.u32 %v5332, 4294901760
    %v5334 = vsub.f32 %v5332, %v5333
    %v5335 = vand.u32 %v5334, 4294901760
    %5336 = vmatpush1.msra.mxu0 %v5335
    %5337 = vmatprep.subr.mxu0 0.0
    %v5338 = vand.u32 %v5062, 4294901760
    %v5339 = vsub.f32 %v5062, %v5338
    %v5340 = vand.u32 %v5339, 4294901760
    %v5341 = vsub.f32 %v5339, %v5340
    %v5342 = vand.u32 %v5341, 4294901760
    %5343 = vmatpush1.msra.mxu0 %v5342
    %5344 = vmatprep.subr.mxu0 0.0
    %v5345 = vand.u32 %v5063, 4294901760
    %v5346 = vsub.f32 %v5063, %v5345
    %v5347 = vand.u32 %v5346, 4294901760
    %v5348 = vsub.f32 %v5346, %v5347
    %v5349 = vand.u32 %v5348, 4294901760
    %5350 = vmatpush1.msra.mxu0 %v5349
    %5351 = vmatprep.subr.mxu0 0.0
    %v5352 = vand.u32 %v5064, 4294901760
    %v5353 = vsub.f32 %v5064, %v5352
    %v5354 = vand.u32 %v5353, 4294901760
    %v5355 = vsub.f32 %v5353, %v5354
    %v5356 = vand.u32 %v5355, 4294901760
    %5357 = vmatpush1.msra.mxu0 %v5356
    %5358 = vmatprep.subr.mxu0 0.0
    %v5359 = vand.u32 %v5065, 4294901760
    %v5360 = vsub.f32 %v5065, %v5359
    %v5361 = vand.u32 %v5360, 4294901760
    %v5362 = vsub.f32 %v5360, %v5361
    %v5363 = vand.u32 %v5362, 4294901760
    %5364 = vmatpush1.msra.mxu0 %v5363
    %5365 = vmatprep.subr.mxu0 0.0
    %v5366 = vand.u32 %v5066, 4294901760
    %v5367 = vsub.f32 %v5066, %v5366
    %v5368 = vand.u32 %v5367, 4294901760
    %v5369 = vsub.f32 %v5367, %v5368
    %v5370 = vand.u32 %v5369, 4294901760
    %5371 = vmatpush1.msra.mxu0 %v5370
    %5372 = vmatprep.subr.mxu0 0.0
    %v5373 = vand.u32 %v5067, 4294901760
    %v5374 = vsub.f32 %v5067, %v5373
    %v5375 = vand.u32 %v5374, 4294901760
    %v5376 = vsub.f32 %v5374, %v5375
    %v5377 = vand.u32 %v5376, 4294901760
    %5378 = vmatpush1.msra.mxu0 %v5377
    %5379 = vmatprep.subr.mxu0 0.0
    %v5380 = vand.u32 %v5068, 4294901760
    %v5381 = vsub.f32 %v5068, %v5380
    %v5382 = vand.u32 %v5381, 4294901760
    %v5383 = vsub.f32 %v5381, %v5382
    %v5384 = vand.u32 %v5383, 4294901760
    %5385 = vmatpush1.msra.mxu0 %v5384
    %5386 = vmatprep.subr.mxu0 0.0
    %v5387 = vand.u32 %v5069, 4294901760
    %v5388 = vsub.f32 %v5069, %v5387
    %v5389 = vand.u32 %v5388, 4294901760
    %v5390 = vsub.f32 %v5388, %v5389
    %v5391 = vand.u32 %v5390, 4294901760
    %5392 = vmatpush1.msra.mxu0 %v5391
    %5393 = vmatprep.subr.mxu0 0.0
    %v5394 = vand.u32 %v5070, 4294901760
    %v5395 = vsub.f32 %v5070, %v5394
    %v5396 = vand.u32 %v5395, 4294901760
    %v5397 = vsub.f32 %v5395, %v5396
    %v5398 = vand.u32 %v5397, 4294901760
    %5399 = vmatpush1.msra.mxu0 %v5398
    %5400 = vmatprep.subr.mxu0 0.0
    %v5401 = vand.u32 %v5071, 4294901760
    %v5402 = vsub.f32 %v5071, %v5401
    %v5403 = vand.u32 %v5402, 4294901760
    %v5404 = vsub.f32 %v5402, %v5403
    %v5405 = vand.u32 %v5404, 4294901760
    %5406 = vmatpush1.msra.mxu0 %v5405
    %5407 = vmatprep.subr.mxu0 0.0
    %v5408 = vand.u32 %v5072, 4294901760
    %v5409 = vsub.f32 %v5072, %v5408
    %v5410 = vand.u32 %v5409, 4294901760
    %v5411 = vsub.f32 %v5409, %v5410
    %v5412 = vand.u32 %v5411, 4294901760
    %5413 = vmatpush1.msra.mxu0 %v5412
    %5414 = vmatprep.subr.mxu0 0.0
    %v5415 = vand.u32 %v5073, 4294901760
    %v5416 = vsub.f32 %v5073, %v5415
    %v5417 = vand.u32 %v5416, 4294901760
    %v5418 = vsub.f32 %v5416, %v5417
    %v5419 = vand.u32 %v5418, 4294901760
    %5420 = vmatpush1.msra.mxu0 %v5419
    %5421 = vmatprep.subr.mxu0 0.0
    %v5422 = vand.u32 %v5074, 4294901760
    %v5423 = vsub.f32 %v5074, %v5422
    %v5424 = vand.u32 %v5423, 4294901760
    %v5425 = vsub.f32 %v5423, %v5424
    %v5426 = vand.u32 %v5425, 4294901760
    %5427 = vmatpush1.msra.mxu0 %v5426
    %5428 = vmatprep.subr.mxu0 0.0
    %v5429 = vand.u32 %v5075, 4294901760
    %v5430 = vsub.f32 %v5075, %v5429
    %v5431 = vand.u32 %v5430, 4294901760
    %v5432 = vsub.f32 %v5430, %v5431
    %v5433 = vand.u32 %v5432, 4294901760
    %5434 = vmatpush1.msra.mxu0 %v5433
    %5435 = vmatprep.subr.mxu0 0.0
    %v5436 = vand.u32 %v5076, 4294901760
    %v5437 = vsub.f32 %v5076, %v5436
    %v5438 = vand.u32 %v5437, 4294901760
    %v5439 = vsub.f32 %v5437, %v5438
    %v5440 = vand.u32 %v5439, 4294901760
    %5441 = vmatpush1.msra.mxu0 %v5440
    %5442 = vmatprep.subr.mxu0 0.0
    %v5443 = vand.u32 %v5077, 4294901760
    %v5444 = vsub.f32 %v5077, %v5443
    %v5445 = vand.u32 %v5444, 4294901760
    %v5446 = vsub.f32 %v5444, %v5445
    %v5447 = vand.u32 %v5446, 4294901760
    %5448 = vmatpush1.msra.mxu0 %v5447
    %5449 = vmatprep.subr.mxu0 0.0
    %v5450 = vand.u32 %v5078, 4294901760
    %v5451 = vsub.f32 %v5078, %v5450
    %v5452 = vand.u32 %v5451, 4294901760
    %v5453 = vsub.f32 %v5451, %v5452
    %v5454 = vand.u32 %v5453, 4294901760
    %5455 = vmatpush1.msra.mxu0 %v5454
    %5456 = vmatprep.subr.mxu0 0.0
    %v5457 = vand.u32 %v5079, 4294901760
    %v5458 = vsub.f32 %v5079, %v5457
    %v5459 = vand.u32 %v5458, 4294901760
    %v5460 = vsub.f32 %v5458, %v5459
    %v5461 = vand.u32 %v5460, 4294901760
    %5462 = vmatpush1.msra.mxu0 %v5461
    %5463 = vmatprep.subr.mxu0 0.0
    %v5464 = vand.u32 %v5080, 4294901760
    %v5465 = vsub.f32 %v5080, %v5464
    %v5466 = vand.u32 %v5465, 4294901760
    %v5467 = vsub.f32 %v5465, %v5466
    %v5468 = vand.u32 %v5467, 4294901760
    %5469 = vmatpush1.msra.mxu0 %v5468
    %5470 = vmatprep.subr.mxu0 0.0
    %v5471 = vand.u32 %v5081, 4294901760
    %v5472 = vsub.f32 %v5081, %v5471
    %v5473 = vand.u32 %v5472, 4294901760
    %v5474 = vsub.f32 %v5472, %v5473
    %v5475 = vand.u32 %v5474, 4294901760
    %5476 = vmatpush1.msra.mxu0 %v5475
    %5477 = vmatprep.subr.mxu0 0.0
    %v5478 = vand.u32 %v5082, 4294901760
    %v5479 = vsub.f32 %v5082, %v5478
    %v5480 = vand.u32 %v5479, 4294901760
    %v5481 = vsub.f32 %v5479, %v5480
    %v5482 = vand.u32 %v5481, 4294901760
    %5483 = vmatpush1.msra.mxu0 %v5482
    %v5484 = vand.u32 %v5147, 4294901760
    %5485 = vmatprep.mubr.f32.mxu0 %v5484
    %v5486 = vand.u32 %v5146, 4294901760
    %5487 = vmatmul.mubr.f32.gmra.mrb[0].mxu0 %v5486
    %v5488 = vpop.f32.mrb[0].mxu0
    %v5489 = vadd.f32 %v5257, %v5488
    %v5490 = vpop.f32.mrb[0].mxu0
    %5491 = vdwg.mxu0
    %5492 = vmatprep.subr.mxu0 0.0
    %v5493 = vand.u32 %v5051, 4294901760
    %v5494 = vsub.f32 %v5051, %v5493
    %5495 = vmatpush1.msra.mxu0 %v5494
    %5496 = vmatprep.subr.mxu0 0.0
    %v5497 = vand.u32 %v5052, 4294901760
    %v5498 = vsub.f32 %v5052, %v5497
    %5499 = vmatpush1.msra.mxu0 %v5498
    %5500 = vmatprep.subr.mxu0 0.0
    %v5501 = vand.u32 %v5053, 4294901760
    %v5502 = vsub.f32 %v5053, %v5501
    %5503 = vmatpush1.msra.mxu0 %v5502
    %5504 = vmatprep.subr.mxu0 0.0
    %v5505 = vand.u32 %v5054, 4294901760
    %v5506 = vsub.f32 %v5054, %v5505
    %5507 = vmatpush1.msra.mxu0 %v5506
    %5508 = vmatprep.subr.mxu0 0.0
    %v5509 = vand.u32 %v5055, 4294901760
    %v5510 = vsub.f32 %v5055, %v5509
    %5511 = vmatpush1.msra.mxu0 %v5510
    %5512 = vmatprep.subr.mxu0 0.0
    %v5513 = vand.u32 %v5056, 4294901760
    %v5514 = vsub.f32 %v5056, %v5513
    %5515 = vmatpush1.msra.mxu0 %v5514
    %5516 = vmatprep.subr.mxu0 0.0
    %v5517 = vand.u32 %v5057, 4294901760
    %v5518 = vsub.f32 %v5057, %v5517
    %5519 = vmatpush1.msra.mxu0 %v5518
    %5520 = vmatprep.subr.mxu0 0.0
    %v5521 = vand.u32 %v5058, 4294901760
    %v5522 = vsub.f32 %v5058, %v5521
    %5523 = vmatpush1.msra.mxu0 %v5522
    %5524 = vmatprep.subr.mxu0 0.0
    %v5525 = vand.u32 %v5059, 4294901760
    %v5526 = vsub.f32 %v5059, %v5525
    %5527 = vmatpush1.msra.mxu0 %v5526
    %5528 = vmatprep.subr.mxu0 0.0
    %v5529 = vand.u32 %v5060, 4294901760
    %v5530 = vsub.f32 %v5060, %v5529
    %5531 = vmatpush1.msra.mxu0 %v5530
    %5532 = vmatprep.subr.mxu0 0.0
    %v5533 = vand.u32 %v5061, 4294901760
    %v5534 = vsub.f32 %v5061, %v5533
    %5535 = vmatpush1.msra.mxu0 %v5534
    %5536 = vmatprep.subr.mxu0 0.0
    %v5537 = vand.u32 %v5062, 4294901760
    %v5538 = vsub.f32 %v5062, %v5537
    %5539 = vmatpush1.msra.mxu0 %v5538
    %5540 = vmatprep.subr.mxu0 0.0
    %v5541 = vand.u32 %v5063, 4294901760
    %v5542 = vsub.f32 %v5063, %v5541
    %5543 = vmatpush1.msra.mxu0 %v5542
    %5544 = vmatprep.subr.mxu0 0.0
    %v5545 = vand.u32 %v5064, 4294901760
    %v5546 = vsub.f32 %v5064, %v5545
    %5547 = vmatpush1.msra.mxu0 %v5546
    %5548 = vmatprep.subr.mxu0 0.0
    %v5549 = vand.u32 %v5065, 4294901760
    %v5550 = vsub.f32 %v5065, %v5549
    %5551 = vmatpush1.msra.mxu0 %v5550
    %5552 = vmatprep.subr.mxu0 0.0
    %v5553 = vand.u32 %v5066, 4294901760
    %v5554 = vsub.f32 %v5066, %v5553
    %5555 = vmatpush1.msra.mxu0 %v5554
    %5556 = vmatprep.subr.mxu0 0.0
    %v5557 = vand.u32 %v5067, 4294901760
    %v5558 = vsub.f32 %v5067, %v5557
    %5559 = vmatpush1.msra.mxu0 %v5558
    %5560 = vmatprep.subr.mxu0 0.0
    %v5561 = vand.u32 %v5068, 4294901760
    %v5562 = vsub.f32 %v5068, %v5561
    %5563 = vmatpush1.msra.mxu0 %v5562
    %5564 = vmatprep.subr.mxu0 0.0
    %v5565 = vand.u32 %v5069, 4294901760
    %v5566 = vsub.f32 %v5069, %v5565
    %5567 = vmatpush1.msra.mxu0 %v5566
    %5568 = vmatprep.subr.mxu0 0.0
    %v5569 = vand.u32 %v5070, 4294901760
    %v5570 = vsub.f32 %v5070, %v5569
    %5571 = vmatpush1.msra.mxu0 %v5570
    %5572 = vmatprep.subr.mxu0 0.0
    %v5573 = vand.u32 %v5071, 4294901760
    %v5574 = vsub.f32 %v5071, %v5573
    %5575 = vmatpush1.msra.mxu0 %v5574
    %5576 = vmatprep.subr.mxu0 0.0
    %v5577 = vand.u32 %v5072, 4294901760
    %v5578 = vsub.f32 %v5072, %v5577
    %5579 = vmatpush1.msra.mxu0 %v5578
    %5580 = vmatprep.subr.mxu0 0.0
    %v5581 = vand.u32 %v5073, 4294901760
    %v5582 = vsub.f32 %v5073, %v5581
    %5583 = vmatpush1.msra.mxu0 %v5582
    %5584 = vmatprep.subr.mxu0 0.0
    %v5585 = vand.u32 %v5074, 4294901760
    %v5586 = vsub.f32 %v5074, %v5585
    %5587 = vmatpush1.msra.mxu0 %v5586
    %5588 = vmatprep.subr.mxu0 0.0
    %v5589 = vand.u32 %v5075, 4294901760
    %v5590 = vsub.f32 %v5075, %v5589
    %5591 = vmatpush1.msra.mxu0 %v5590
    %5592 = vmatprep.subr.mxu0 0.0
    %v5593 = vand.u32 %v5076, 4294901760
    %v5594 = vsub.f32 %v5076, %v5593
    %5595 = vmatpush1.msra.mxu0 %v5594
    %5596 = vmatprep.subr.mxu0 0.0
    %v5597 = vand.u32 %v5077, 4294901760
    %v5598 = vsub.f32 %v5077, %v5597
    %5599 = vmatpush1.msra.mxu0 %v5598
    %5600 = vmatprep.subr.mxu0 0.0
    %v5601 = vand.u32 %v5078, 4294901760
    %v5602 = vsub.f32 %v5078, %v5601
    %5603 = vmatpush1.msra.mxu0 %v5602
    %5604 = vmatprep.subr.mxu0 0.0
    %v5605 = vand.u32 %v5079, 4294901760
    %v5606 = vsub.f32 %v5079, %v5605
    %5607 = vmatpush1.msra.mxu0 %v5606
    %5608 = vmatprep.subr.mxu0 0.0
    %v5609 = vand.u32 %v5080, 4294901760
    %v5610 = vsub.f32 %v5080, %v5609
    %5611 = vmatpush1.msra.mxu0 %v5610
    %5612 = vmatprep.subr.mxu0 0.0
    %v5613 = vand.u32 %v5081, 4294901760
    %v5614 = vsub.f32 %v5081, %v5613
    %5615 = vmatpush1.msra.mxu0 %v5614
    %5616 = vmatprep.subr.mxu0 0.0
    %v5617 = vand.u32 %v5082, 4294901760
    %v5618 = vsub.f32 %v5082, %v5617
    %5619 = vmatpush1.msra.mxu0 %v5618
    %v5620 = vand.u32 %v5147, 4294901760
    %v5621 = vsub.f32 %v5147, %v5620
    %5622 = vmatprep.mubr.f32.mxu0 %v5621
    %v5623 = vand.u32 %v5146, 4294901760
    %v5624 = vsub.f32 %v5146, %v5623
    %5625 = vmatmul.mubr.f32.gmra.mrb[0].mxu0 %v5624
    %v5626 = vpop.f32.mrb[0].mxu0
    %v5627 = vadd.f32 %v5489, %v5626
    %v5628 = vpop.f32.mrb[0].mxu0
    %5629 = vdwg.mxu0
    %5630 = vmatprep.subr.mxu0 0.0
    %v5631 = vand.u32 %v5051, 4294901760
    %5632 = vmatpush1.msra.mxu0 %v5631
    %5633 = vmatprep.subr.mxu0 0.0
    %v5634 = vand.u32 %v5052, 4294901760
    %5635 = vmatpush1.msra.mxu0 %v5634
    %5636 = vmatprep.subr.mxu0 0.0
    %v5637 = vand.u32 %v5053, 4294901760
    %5638 = vmatpush1.msra.mxu0 %v5637
    %5639 = vmatprep.subr.mxu0 0.0
    %v5640 = vand.u32 %v5054, 4294901760
    %5641 = vmatpush1.msra.mxu0 %v5640
    %5642 = vmatprep.subr.mxu0 0.0
    %v5643 = vand.u32 %v5055, 4294901760
    %5644 = vmatpush1.msra.mxu0 %v5643
    %5645 = vmatprep.subr.mxu0 0.0
    %v5646 = vand.u32 %v5056, 4294901760
    %5647 = vmatpush1.msra.mxu0 %v5646
    %5648 = vmatprep.subr.mxu0 0.0
    %v5649 = vand.u32 %v5057, 4294901760
    %5650 = vmatpush1.msra.mxu0 %v5649
    %5651 = vmatprep.subr.mxu0 0.0
    %v5652 = vand.u32 %v5058, 4294901760
    %5653 = vmatpush1.msra.mxu0 %v5652
    %5654 = vmatprep.subr.mxu0 0.0
    %v5655 = vand.u32 %v5059, 4294901760
    %5656 = vmatpush1.msra.mxu0 %v5655
    %5657 = vmatprep.subr.mxu0 0.0
    %v5658 = vand.u32 %v5060, 4294901760
    %5659 = vmatpush1.msra.mxu0 %v5658
    %5660 = vmatprep.subr.mxu0 0.0
    %v5661 = vand.u32 %v5061, 4294901760
    %5662 = vmatpush1.msra.mxu0 %v5661
    %5663 = vmatprep.subr.mxu0 0.0
    %v5664 = vand.u32 %v5062, 4294901760
    %5665 = vmatpush1.msra.mxu0 %v5664
    %5666 = vmatprep.subr.mxu0 0.0
    %v5667 = vand.u32 %v5063, 4294901760
    %5668 = vmatpush1.msra.mxu0 %v5667
    %5669 = vmatprep.subr.mxu0 0.0
    %v5670 = vand.u32 %v5064, 4294901760
    %5671 = vmatpush1.msra.mxu0 %v5670
    %5672 = vmatprep.subr.mxu0 0.0
    %v5673 = vand.u32 %v5065, 4294901760
    %5674 = vmatpush1.msra.mxu0 %v5673
    %5675 = vmatprep.subr.mxu0 0.0
    %v5676 = vand.u32 %v5066, 4294901760
    %5677 = vmatpush1.msra.mxu0 %v5676
    %5678 = vmatprep.subr.mxu0 0.0
    %v5679 = vand.u32 %v5067, 4294901760
    %5680 = vmatpush1.msra.mxu0 %v5679
    %5681 = vmatprep.subr.mxu0 0.0
    %v5682 = vand.u32 %v5068, 4294901760
    %5683 = vmatpush1.msra.mxu0 %v5682
    %5684 = vmatprep.subr.mxu0 0.0
    %v5685 = vand.u32 %v5069, 4294901760
    %5686 = vmatpush1.msra.mxu0 %v5685
    %5687 = vmatprep.subr.mxu0 0.0
    %v5688 = vand.u32 %v5070, 4294901760
    %5689 = vmatpush1.msra.mxu0 %v5688
    %5690 = vmatprep.subr.mxu0 0.0
    %v5691 = vand.u32 %v5071, 4294901760
    %5692 = vmatpush1.msra.mxu0 %v5691
    %5693 = vmatprep.subr.mxu0 0.0
    %v5694 = vand.u32 %v5072, 4294901760
    %5695 = vmatpush1.msra.mxu0 %v5694
    %5696 = vmatprep.subr.mxu0 0.0
    %v5697 = vand.u32 %v5073, 4294901760
    %5698 = vmatpush1.msra.mxu0 %v5697
    %5699 = vmatprep.subr.mxu0 0.0
    %v5700 = vand.u32 %v5074, 4294901760
    %5701 = vmatpush1.msra.mxu0 %v5700
    %5702 = vmatprep.subr.mxu0 0.0
    %v5703 = vand.u32 %v5075, 4294901760
    %5704 = vmatpush1.msra.mxu0 %v5703
    %5705 = vmatprep.subr.mxu0 0.0
    %v5706 = vand.u32 %v5076, 4294901760
    %5707 = vmatpush1.msra.mxu0 %v5706
    %5708 = vmatprep.subr.mxu0 0.0
    %v5709 = vand.u32 %v5077, 4294901760
    %5710 = vmatpush1.msra.mxu0 %v5709
    %5711 = vmatprep.subr.mxu0 0.0
    %v5712 = vand.u32 %v5078, 4294901760
    %5713 = vmatpush1.msra.mxu0 %v5712
    %5714 = vmatprep.subr.mxu0 0.0
    %v5715 = vand.u32 %v5079, 4294901760
    %5716 = vmatpush1.msra.mxu0 %v5715
    %5717 = vmatprep.subr.mxu0 0.0
    %v5718 = vand.u32 %v5080, 4294901760
    %5719 = vmatpush1.msra.mxu0 %v5718
    %5720 = vmatprep.subr.mxu0 0.0
    %v5721 = vand.u32 %v5081, 4294901760
    %5722 = vmatpush1.msra.mxu0 %v5721
    %5723 = vmatprep.subr.mxu0 0.0
    %v5724 = vand.u32 %v5082, 4294901760
    %5725 = vmatpush1.msra.mxu0 %v5724
    %v5726 = vand.u32 %v5147, 4294901760
    %v5727 = vsub.f32 %v5147, %v5726
    %v5728 = vand.u32 %v5727, 4294901760
    %5729 = vmatprep.mubr.f32.mxu0 %v5728
    %v5730 = vand.u32 %v5146, 4294901760
    %v5731 = vsub.f32 %v5146, %v5730
    %v5732 = vand.u32 %v5731, 4294901760
    %5733 = vmatmul.mubr.f32.gmra.mrb[0].mxu0 %v5732
    %v5734 = vpop.f32.mrb[0].mxu0
    %v5735 = vadd.f32 %v5627, %v5734
    %v5736 = vpop.f32.mrb[0].mxu0
    %5737 = vdwg.mxu0
    %5738 = vmatprep.subr.mxu0 0.0
    %v5739 = vand.u32 %v5051, 4294901760
    %v5740 = vsub.f32 %v5051, %v5739
    %v5741 = vand.u32 %v5740, 4294901760
    %5742 = vmatpush1.msra.mxu0 %v5741
    %5743 = vmatprep.subr.mxu0 0.0
    %v5744 = vand.u32 %v5052, 4294901760
    %v5745 = vsub.f32 %v5052, %v5744
    %v5746 = vand.u32 %v5745, 4294901760
    %5747 = vmatpush1.msra.mxu0 %v5746
    %5748 = vmatprep.subr.mxu0 0.0
    %v5749 = vand.u32 %v5053, 4294901760
    %v5750 = vsub.f32 %v5053, %v5749
    %v5751 = vand.u32 %v5750, 4294901760
    %5752 = vmatpush1.msra.mxu0 %v5751
    %5753 = vmatprep.subr.mxu0 0.0
    %v5754 = vand.u32 %v5054, 4294901760
    %v5755 = vsub.f32 %v5054, %v5754
    %v5756 = vand.u32 %v5755, 4294901760
    %5757 = vmatpush1.msra.mxu0 %v5756
    %5758 = vmatprep.subr.mxu0 0.0
    %v5759 = vand.u32 %v5055, 4294901760
    %v5760 = vsub.f32 %v5055, %v5759
    %v5761 = vand.u32 %v5760, 4294901760
    %5762 = vmatpush1.msra.mxu0 %v5761
    %5763 = vmatprep.subr.mxu0 0.0
    %v5764 = vand.u32 %v5056, 4294901760
    %v5765 = vsub.f32 %v5056, %v5764
    %v5766 = vand.u32 %v5765, 4294901760
    %5767 = vmatpush1.msra.mxu0 %v5766
    %5768 = vmatprep.subr.mxu0 0.0
    %v5769 = vand.u32 %v5057, 4294901760
    %v5770 = vsub.f32 %v5057, %v5769
    %v5771 = vand.u32 %v5770, 4294901760
    %5772 = vmatpush1.msra.mxu0 %v5771
    %5773 = vmatprep.subr.mxu0 0.0
    %v5774 = vand.u32 %v5058, 4294901760
    %v5775 = vsub.f32 %v5058, %v5774
    %v5776 = vand.u32 %v5775, 4294901760
    %5777 = vmatpush1.msra.mxu0 %v5776
    %5778 = vmatprep.subr.mxu0 0.0
    %v5779 = vand.u32 %v5059, 4294901760
    %v5780 = vsub.f32 %v5059, %v5779
    %v5781 = vand.u32 %v5780, 4294901760
    %5782 = vmatpush1.msra.mxu0 %v5781
    %5783 = vmatprep.subr.mxu0 0.0
    %v5784 = vand.u32 %v5060, 4294901760
    %v5785 = vsub.f32 %v5060, %v5784
    %v5786 = vand.u32 %v5785, 4294901760
    %5787 = vmatpush1.msra.mxu0 %v5786
    %5788 = vmatprep.subr.mxu0 0.0
    %v5789 = vand.u32 %v5061, 4294901760
    %v5790 = vsub.f32 %v5061, %v5789
    %v5791 = vand.u32 %v5790, 4294901760
    %5792 = vmatpush1.msra.mxu0 %v5791
    %5793 = vmatprep.subr.mxu0 0.0
    %v5794 = vand.u32 %v5062, 4294901760
    %v5795 = vsub.f32 %v5062, %v5794
    %v5796 = vand.u32 %v5795, 4294901760
    %5797 = vmatpush1.msra.mxu0 %v5796
    %5798 = vmatprep.subr.mxu0 0.0
    %v5799 = vand.u32 %v5063, 4294901760
    %v5800 = vsub.f32 %v5063, %v5799
    %v5801 = vand.u32 %v5800, 4294901760
    %5802 = vmatpush1.msra.mxu0 %v5801
    %5803 = vmatprep.subr.mxu0 0.0
    %v5804 = vand.u32 %v5064, 4294901760
    %v5805 = vsub.f32 %v5064, %v5804
    %v5806 = vand.u32 %v5805, 4294901760
    %5807 = vmatpush1.msra.mxu0 %v5806
    %5808 = vmatprep.subr.mxu0 0.0
    %v5809 = vand.u32 %v5065, 4294901760
    %v5810 = vsub.f32 %v5065, %v5809
    %v5811 = vand.u32 %v5810, 4294901760
    %5812 = vmatpush1.msra.mxu0 %v5811
    %5813 = vmatprep.subr.mxu0 0.0
    %v5814 = vand.u32 %v5066, 4294901760
    %v5815 = vsub.f32 %v5066, %v5814
    %v5816 = vand.u32 %v5815, 4294901760
    %5817 = vmatpush1.msra.mxu0 %v5816
    %5818 = vmatprep.subr.mxu0 0.0
    %v5819 = vand.u32 %v5067, 4294901760
    %v5820 = vsub.f32 %v5067, %v5819
    %v5821 = vand.u32 %v5820, 4294901760
    %5822 = vmatpush1.msra.mxu0 %v5821
    %5823 = vmatprep.subr.mxu0 0.0
    %v5824 = vand.u32 %v5068, 4294901760
    %v5825 = vsub.f32 %v5068, %v5824
    %v5826 = vand.u32 %v5825, 4294901760
    %5827 = vmatpush1.msra.mxu0 %v5826
    %5828 = vmatprep.subr.mxu0 0.0
    %v5829 = vand.u32 %v5069, 4294901760
    %v5830 = vsub.f32 %v5069, %v5829
    %v5831 = vand.u32 %v5830, 4294901760
    %5832 = vmatpush1.msra.mxu0 %v5831
    %5833 = vmatprep.subr.mxu0 0.0
    %v5834 = vand.u32 %v5070, 4294901760
    %v5835 = vsub.f32 %v5070, %v5834
    %v5836 = vand.u32 %v5835, 4294901760
    %5837 = vmatpush1.msra.mxu0 %v5836
    %5838 = vmatprep.subr.mxu0 0.0
    %v5839 = vand.u32 %v5071, 4294901760
    %v5840 = vsub.f32 %v5071, %v5839
    %v5841 = vand.u32 %v5840, 4294901760
    %5842 = vmatpush1.msra.mxu0 %v5841
    %5843 = vmatprep.subr.mxu0 0.0
    %v5844 = vand.u32 %v5072, 4294901760
    %v5845 = vsub.f32 %v5072, %v5844
    %v5846 = vand.u32 %v5845, 4294901760
    %5847 = vmatpush1.msra.mxu0 %v5846
    %5848 = vmatprep.subr.mxu0 0.0
    %v5849 = vand.u32 %v5073, 4294901760
    %v5850 = vsub.f32 %v5073, %v5849
    %v5851 = vand.u32 %v5850, 4294901760
    %5852 = vmatpush1.msra.mxu0 %v5851
    %5853 = vmatprep.subr.mxu0 0.0
    %v5854 = vand.u32 %v5074, 4294901760
    %v5855 = vsub.f32 %v5074, %v5854
    %v5856 = vand.u32 %v5855, 4294901760
    %5857 = vmatpush1.msra.mxu0 %v5856
    %5858 = vmatprep.subr.mxu0 0.0
    %v5859 = vand.u32 %v5075, 4294901760
    %v5860 = vsub.f32 %v5075, %v5859
    %v5861 = vand.u32 %v5860, 4294901760
    %5862 = vmatpush1.msra.mxu0 %v5861
    %5863 = vmatprep.subr.mxu0 0.0
    %v5864 = vand.u32 %v5076, 4294901760
    %v5865 = vsub.f32 %v5076, %v5864
    %v5866 = vand.u32 %v5865, 4294901760
    %5867 = vmatpush1.msra.mxu0 %v5866
    %5868 = vmatprep.subr.mxu0 0.0
    %v5869 = vand.u32 %v5077, 4294901760
    %v5870 = vsub.f32 %v5077, %v5869
    %v5871 = vand.u32 %v5870, 4294901760
    %5872 = vmatpush1.msra.mxu0 %v5871
    %5873 = vmatprep.subr.mxu0 0.0
    %v5874 = vand.u32 %v5078, 4294901760
    %v5875 = vsub.f32 %v5078, %v5874
    %v5876 = vand.u32 %v5875, 4294901760
    %5877 = vmatpush1.msra.mxu0 %v5876
    %5878 = vmatprep.subr.mxu0 0.0
    %v5879 = vand.u32 %v5079, 4294901760
    %v5880 = vsub.f32 %v5079, %v5879
    %v5881 = vand.u32 %v5880, 4294901760
    %5882 = vmatpush1.msra.mxu0 %v5881
    %5883 = vmatprep.subr.mxu0 0.0
    %v5884 = vand.u32 %v5080, 4294901760
    %v5885 = vsub.f32 %v5080, %v5884
    %v5886 = vand.u32 %v5885, 4294901760
    %5887 = vmatpush1.msra.mxu0 %v5886
    %5888 = vmatprep.subr.mxu0 0.0
    %v5889 = vand.u32 %v5081, 4294901760
    %v5890 = vsub.f32 %v5081, %v5889
    %v5891 = vand.u32 %v5890, 4294901760
    %5892 = vmatpush1.msra.mxu0 %v5891
    %5893 = vmatprep.subr.mxu0 0.0
    %v5894 = vand.u32 %v5082, 4294901760
    %v5895 = vsub.f32 %v5082, %v5894
    %v5896 = vand.u32 %v5895, 4294901760
    %5897 = vmatpush1.msra.mxu0 %v5896
    %v5898 = vand.u32 %v5147, 4294901760
    %5899 = vmatprep.mubr.f32.mxu0 %v5898
    %v5900 = vand.u32 %v5146, 4294901760
    %5901 = vmatmul.mubr.f32.gmra.mrb[0].mxu0 %v5900
    %v5902 = vpop.f32.mrb[0].mxu0
    %v5903 = vadd.f32 %v5735, %v5902
    %v5904 = vpop.f32.mrb[0].mxu0
    %5905 = vdwg.mxu0
    %5906 = vmatprep.subr.mxu0 0.0
    %v5907 = vand.u32 %v5051, 4294901760
    %5908 = vmatpush1.msra.mxu0 %v5907
    %5909 = vmatprep.subr.mxu0 0.0
    %v5910 = vand.u32 %v5052, 4294901760
    %5911 = vmatpush1.msra.mxu0 %v5910
    %5912 = vmatprep.subr.mxu0 0.0
    %v5913 = vand.u32 %v5053, 4294901760
    %5914 = vmatpush1.msra.mxu0 %v5913
    %5915 = vmatprep.subr.mxu0 0.0
    %v5916 = vand.u32 %v5054, 4294901760
    %5917 = vmatpush1.msra.mxu0 %v5916
    %5918 = vmatprep.subr.mxu0 0.0
    %v5919 = vand.u32 %v5055, 4294901760
    %5920 = vmatpush1.msra.mxu0 %v5919
    %5921 = vmatprep.subr.mxu0 0.0
    %v5922 = vand.u32 %v5056, 4294901760
    %5923 = vmatpush1.msra.mxu0 %v5922
    %5924 = vmatprep.subr.mxu0 0.0
    %v5925 = vand.u32 %v5057, 4294901760
    %5926 = vmatpush1.msra.mxu0 %v5925
    %5927 = vmatprep.subr.mxu0 0.0
    %v5928 = vand.u32 %v5058, 4294901760
    %5929 = vmatpush1.msra.mxu0 %v5928
    %5930 = vmatprep.subr.mxu0 0.0
    %v5931 = vand.u32 %v5059, 4294901760
    %5932 = vmatpush1.msra.mxu0 %v5931
    %5933 = vmatprep.subr.mxu0 0.0
    %v5934 = vand.u32 %v5060, 4294901760
    %5935 = vmatpush1.msra.mxu0 %v5934
    %5936 = vmatprep.subr.mxu0 0.0
    %v5937 = vand.u32 %v5061, 4294901760
    %5938 = vmatpush1.msra.mxu0 %v5937
    %5939 = vmatprep.subr.mxu0 0.0
    %v5940 = vand.u32 %v5062, 4294901760
    %5941 = vmatpush1.msra.mxu0 %v5940
    %5942 = vmatprep.subr.mxu0 0.0
    %v5943 = vand.u32 %v5063, 4294901760
    %5944 = vmatpush1.msra.mxu0 %v5943
    %5945 = vmatprep.subr.mxu0 0.0
    %v5946 = vand.u32 %v5064, 4294901760
    %5947 = vmatpush1.msra.mxu0 %v5946
    %5948 = vmatprep.subr.mxu0 0.0
    %v5949 = vand.u32 %v5065, 4294901760
    %5950 = vmatpush1.msra.mxu0 %v5949
    %5951 = vmatprep.subr.mxu0 0.0
    %v5952 = vand.u32 %v5066, 4294901760
    %5953 = vmatpush1.msra.mxu0 %v5952
    %5954 = vmatprep.subr.mxu0 0.0
    %v5955 = vand.u32 %v5067, 4294901760
    %5956 = vmatpush1.msra.mxu0 %v5955
    %5957 = vmatprep.subr.mxu0 0.0
    %v5958 = vand.u32 %v5068, 4294901760
    %5959 = vmatpush1.msra.mxu0 %v5958
    %5960 = vmatprep.subr.mxu0 0.0
    %v5961 = vand.u32 %v5069, 4294901760
    %5962 = vmatpush1.msra.mxu0 %v5961
    %5963 = vmatprep.subr.mxu0 0.0
    %v5964 = vand.u32 %v5070, 4294901760
    %5965 = vmatpush1.msra.mxu0 %v5964
    %5966 = vmatprep.subr.mxu0 0.0
    %v5967 = vand.u32 %v5071, 4294901760
    %5968 = vmatpush1.msra.mxu0 %v5967
    %5969 = vmatprep.subr.mxu0 0.0
    %v5970 = vand.u32 %v5072, 4294901760
    %5971 = vmatpush1.msra.mxu0 %v5970
    %5972 = vmatprep.subr.mxu0 0.0
    %v5973 = vand.u32 %v5073, 4294901760
    %5974 = vmatpush1.msra.mxu0 %v5973
    %5975 = vmatprep.subr.mxu0 0.0
    %v5976 = vand.u32 %v5074, 4294901760
    %5977 = vmatpush1.msra.mxu0 %v5976
    %5978 = vmatprep.subr.mxu0 0.0
    %v5979 = vand.u32 %v5075, 4294901760
    %5980 = vmatpush1.msra.mxu0 %v5979
    %5981 = vmatprep.subr.mxu0 0.0
    %v5982 = vand.u32 %v5076, 4294901760
    %5983 = vmatpush1.msra.mxu0 %v5982
    %5984 = vmatprep.subr.mxu0 0.0
    %v5985 = vand.u32 %v5077, 4294901760
    %5986 = vmatpush1.msra.mxu0 %v5985
    %5987 = vmatprep.subr.mxu0 0.0
    %v5988 = vand.u32 %v5078, 4294901760
    %5989 = vmatpush1.msra.mxu0 %v5988
    %5990 = vmatprep.subr.mxu0 0.0
    %v5991 = vand.u32 %v5079, 4294901760
    %5992 = vmatpush1.msra.mxu0 %v5991
    %5993 = vmatprep.subr.mxu0 0.0
    %v5994 = vand.u32 %v5080, 4294901760
    %5995 = vmatpush1.msra.mxu0 %v5994
    %5996 = vmatprep.subr.mxu0 0.0
    %v5997 = vand.u32 %v5081, 4294901760
    %5998 = vmatpush1.msra.mxu0 %v5997
    %5999 = vmatprep.subr.mxu0 0.0
    %v6000 = vand.u32 %v5082, 4294901760
    %6001 = vmatpush1.msra.mxu0 %v6000
    %v6002 = vand.u32 %v5147, 4294901760
    %6003 = vmatprep.mubr.f32.mxu0 %v6002
    %v6004 = vand.u32 %v5146, 4294901760
    %6005 = vmatmul.mubr.f32.gmra.mrb[0].mxu0 %v6004
    %v6006 = vpop.f32.mrb[0].mxu0
    %v6007 = vadd.f32 %v5903, %v6006
    %v6008 = vpop.f32.mrb[0].mxu0
    %6009 = vdwg.mxu0
    %v6010 = vrcp.pop 8.0
    %v6011 = vmul.f32 %v6007, %v6010
    %v6012 = vmul.f32 %v6011, %v6011
    %v6014 = vrot.slane %v6012, 7
    %v6016 = vsub.f32 %v6011, %v6014
    %v6017 = vmax.f32 %v6016, 0.0
    %v6018 = vadd.f32 %v6017, 1e-05
    %v6019 = vrsqrt.pop %v6018
    %v6021 = vrot.slane %v6019, 1
    %v6023 = vmul.f32 %v5115, %v6021
    %v6024 = vmul.f32 %v6011, %v6023
    %v6026 = vrot.slane %v6024, 7
    %v6028 = vsub.f32 %v5115, %v6026
    %v6029 = vsel %vm1192, %v6023, %v6028
    %v6030 = vand.u32 %v5084, 4294901760
    %6031 = vmatprep.subr.mxu0 %v6030
    %v6032 = vand.u32 %v5083, 4294901760
    %6033 = vmatpush1.msra.mxu0 %v6032
    %v6034 = vand.u32 %v5086, 4294901760
    %6035 = vmatprep.subr.mxu0 %v6034
    %v6036 = vand.u32 %v5085, 4294901760
    %6037 = vmatpush1.msra.mxu0 %v6036
    %v6038 = vand.u32 %v5088, 4294901760
    %6039 = vmatprep.subr.mxu0 %v6038
    %v6040 = vand.u32 %v5087, 4294901760
    %6041 = vmatpush1.msra.mxu0 %v6040
    %v6042 = vand.u32 %v5090, 4294901760
    %6043 = vmatprep.subr.mxu0 %v6042
    %v6044 = vand.u32 %v5089, 4294901760
    %6045 = vmatpush1.msra.mxu0 %v6044
    %v6046 = vand.u32 %v5092, 4294901760
    %6047 = vmatprep.subr.mxu0 %v6046
    %v6048 = vand.u32 %v5091, 4294901760
    %6049 = vmatpush1.msra.mxu0 %v6048
    %v6050 = vand.u32 %v5094, 4294901760
    %6051 = vmatprep.subr.mxu0 %v6050
    %v6052 = vand.u32 %v5093, 4294901760
    %6053 = vmatpush1.msra.mxu0 %v6052
    %v6054 = vand.u32 %v5096, 4294901760
    %6055 = vmatprep.subr.mxu0 %v6054
    %v6056 = vand.u32 %v5095, 4294901760
    %6057 = vmatpush1.msra.mxu0 %v6056
    %v6058 = vand.u32 %v5098, 4294901760
    %6059 = vmatprep.subr.mxu0 %v6058
    %v6060 = vand.u32 %v5097, 4294901760
    %6061 = vmatpush1.msra.mxu0 %v6060
    %v6062 = vand.u32 %v5100, 4294901760
    %6063 = vmatprep.subr.mxu0 %v6062
    %v6064 = vand.u32 %v5099, 4294901760
    %6065 = vmatpush1.msra.mxu0 %v6064
    %v6066 = vand.u32 %v5102, 4294901760
    %6067 = vmatprep.subr.mxu0 %v6066
    %v6068 = vand.u32 %v5101, 4294901760
    %6069 = vmatpush1.msra.mxu0 %v6068
    %v6070 = vand.u32 %v5104, 4294901760
    %6071 = vmatprep.subr.mxu0 %v6070
    %v6072 = vand.u32 %v5103, 4294901760
    %6073 = vmatpush1.msra.mxu0 %v6072
    %v6074 = vand.u32 %v5106, 4294901760
    %6075 = vmatprep.subr.mxu0 %v6074
    %v6076 = vand.u32 %v5105, 4294901760
    %6077 = vmatpush1.msra.mxu0 %v6076
    %v6078 = vand.u32 %v5108, 4294901760
    %6079 = vmatprep.subr.mxu0 %v6078
    %v6080 = vand.u32 %v5107, 4294901760
    %6081 = vmatpush1.msra.mxu0 %v6080
    %v6082 = vand.u32 %v5110, 4294901760
    %6083 = vmatprep.subr.mxu0 %v6082
    %v6084 = vand.u32 %v5109, 4294901760
    %6085 = vmatpush1.msra.mxu0 %v6084
    %v6086 = vand.u32 %v5112, 4294901760
    %6087 = vmatprep.subr.mxu0 %v6086
    %v6088 = vand.u32 %v5111, 4294901760
    %6089 = vmatpush1.msra.mxu0 %v6088
    %v6090 = vand.u32 %v5114, 4294901760
    %6091 = vmatprep.subr.mxu0 %v6090
    %v6092 = vand.u32 %v5113, 4294901760
    %6093 = vmatpush1.msra.mxu0 %v6092
    %6094 = vmatprep.subr.mxu0 0.0
    %6095 = vmatpush1.msra.mxu0 0.0
    %6096 = vmatprep.subr.mxu0 0.0
    %6097 = vmatpush1.msra.mxu0 0.0
    %6098 = vmatprep.subr.mxu0 0.0
    %6099 = vmatpush1.msra.mxu0 0.0
    %6100 = vmatprep.subr.mxu0 0.0
    %6101 = vmatpush1.msra.mxu0 0.0
    %6102 = vmatprep.subr.mxu0 0.0
    %6103 = vmatpush1.msra.mxu0 0.0
    %6104 = vmatprep.subr.mxu0 0.0
    %6105 = vmatpush1.msra.mxu0 0.0
    %6106 = vmatprep.subr.mxu0 0.0
    %6107 = vmatpush1.msra.mxu0 0.0
    %6108 = vmatprep.subr.mxu0 0.0
    %6109 = vmatpush1.msra.mxu0 0.0
    %6110 = vmatprep.subr.mxu0 0.0
    %6111 = vmatpush1.msra.mxu0 0.0
    %6112 = vmatprep.subr.mxu0 0.0
    %6113 = vmatpush1.msra.mxu0 0.0
    %6114 = vmatprep.subr.mxu0 0.0
    %6115 = vmatpush1.msra.mxu0 0.0
    %6116 = vmatprep.subr.mxu0 0.0
    %6117 = vmatpush1.msra.mxu0 0.0
    %6118 = vmatprep.subr.mxu0 0.0
    %6119 = vmatpush1.msra.mxu0 0.0
    %6120 = vmatprep.subr.mxu0 0.0
    %6121 = vmatpush1.msra.mxu0 0.0
    %6122 = vmatprep.subr.mxu0 0.0
    %6123 = vmatpush1.msra.mxu0 0.0
    %6124 = vmatprep.subr.mxu0 0.0
    %6125 = vmatpush1.msra.mxu0 0.0
    %6126 = vmatprep.mubr.f32.mxu0 0.0
    %v6127 = vand.u32 %v6029, 4294901760
    %v6128 = vsub.f32 %v6029, %v6127
    %v6129 = vand.u32 %v6128, 4294901760
    %v6130 = vsub.f32 %v6128, %v6129
    %v6131 = vand.u32 %v6130, 4294901760
    %6132 = vmatmul.mubr.f32.gmra.mrb[0].mxu0 %v6131
    %v6133 = vpop.f32.mrb[0].mxu0
    %v6134 = vadd.f32 0.0, %v6133
    %v6135 = vpop.f32.mrb[0].mxu0
    %v6136 = vadd.f32 0.0, %v6135
    %6137 = vdwg.mxu0
    %v6138 = vand.u32 %v5084, 4294901760
    %v6139 = vsub.f32 %v5084, %v6138
    %v6140 = vand.u32 %v6139, 4294901760
    %v6141 = vsub.f32 %v6139, %v6140
    %v6142 = vand.u32 %v6141, 4294901760
    %6143 = vmatprep.subr.mxu0 %v6142
    %v6144 = vand.u32 %v5083, 4294901760
    %v6145 = vsub.f32 %v5083, %v6144
    %v6146 = vand.u32 %v6145, 4294901760
    %v6147 = vsub.f32 %v6145, %v6146
    %v6148 = vand.u32 %v6147, 4294901760
    %6149 = vmatpush1.msra.mxu0 %v6148
    %v6150 = vand.u32 %v5086, 4294901760
    %v6151 = vsub.f32 %v5086, %v6150
    %v6152 = vand.u32 %v6151, 4294901760
    %v6153 = vsub.f32 %v6151, %v6152
    %v6154 = vand.u32 %v6153, 4294901760
    %6155 = vmatprep.subr.mxu0 %v6154
    %v6156 = vand.u32 %v5085, 4294901760
    %v6157 = vsub.f32 %v5085, %v6156
    %v6158 = vand.u32 %v6157, 4294901760
    %v6159 = vsub.f32 %v6157, %v6158
    %v6160 = vand.u32 %v6159, 4294901760
    %6161 = vmatpush1.msra.mxu0 %v6160
    %v6162 = vand.u32 %v5088, 4294901760
    %v6163 = vsub.f32 %v5088, %v6162
    %v6164 = vand.u32 %v6163, 4294901760
    %v6165 = vsub.f32 %v6163, %v6164
    %v6166 = vand.u32 %v6165, 4294901760
    %6167 = vmatprep.subr.mxu0 %v6166
    %v6168 = vand.u32 %v5087, 4294901760
    %v6169 = vsub.f32 %v5087, %v6168
    %v6170 = vand.u32 %v6169, 4294901760
    %v6171 = vsub.f32 %v6169, %v6170
    %v6172 = vand.u32 %v6171, 4294901760
    %6173 = vmatpush1.msra.mxu0 %v6172
    %v6174 = vand.u32 %v5090, 4294901760
    %v6175 = vsub.f32 %v5090, %v6174
    %v6176 = vand.u32 %v6175, 4294901760
    %v6177 = vsub.f32 %v6175, %v6176
    %v6178 = vand.u32 %v6177, 4294901760
    %6179 = vmatprep.subr.mxu0 %v6178
    %v6180 = vand.u32 %v5089, 4294901760
    %v6181 = vsub.f32 %v5089, %v6180
    %v6182 = vand.u32 %v6181, 4294901760
    %v6183 = vsub.f32 %v6181, %v6182
    %v6184 = vand.u32 %v6183, 4294901760
    %6185 = vmatpush1.msra.mxu0 %v6184
    %v6186 = vand.u32 %v5092, 4294901760
    %v6187 = vsub.f32 %v5092, %v6186
    %v6188 = vand.u32 %v6187, 4294901760
    %v6189 = vsub.f32 %v6187, %v6188
    %v6190 = vand.u32 %v6189, 4294901760
    %6191 = vmatprep.subr.mxu0 %v6190
    %v6192 = vand.u32 %v5091, 4294901760
    %v6193 = vsub.f32 %v5091, %v6192
    %v6194 = vand.u32 %v6193, 4294901760
    %v6195 = vsub.f32 %v6193, %v6194
    %v6196 = vand.u32 %v6195, 4294901760
    %6197 = vmatpush1.msra.mxu0 %v6196
    %v6198 = vand.u32 %v5094, 4294901760
    %v6199 = vsub.f32 %v5094, %v6198
    %v6200 = vand.u32 %v6199, 4294901760
    %v6201 = vsub.f32 %v6199, %v6200
    %v6202 = vand.u32 %v6201, 4294901760
    %6203 = vmatprep.subr.mxu0 %v6202
    %v6204 = vand.u32 %v5093, 4294901760
    %v6205 = vsub.f32 %v5093, %v6204
    %v6206 = vand.u32 %v6205, 4294901760
    %v6207 = vsub.f32 %v6205, %v6206
    %v6208 = vand.u32 %v6207, 4294901760
    %6209 = vmatpush1.msra.mxu0 %v6208
    %v6210 = vand.u32 %v5096, 4294901760
    %v6211 = vsub.f32 %v5096, %v6210
    %v6212 = vand.u32 %v6211, 4294901760
    %v6213 = vsub.f32 %v6211, %v6212
    %v6214 = vand.u32 %v6213, 4294901760
    %6215 = vmatprep.subr.mxu0 %v6214
    %v6216 = vand.u32 %v5095, 4294901760
    %v6217 = vsub.f32 %v5095, %v6216
    %v6218 = vand.u32 %v6217, 4294901760
    %v6219 = vsub.f32 %v6217, %v6218
    %v6220 = vand.u32 %v6219, 4294901760
    %6221 = vmatpush1.msra.mxu0 %v6220
    %v6222 = vand.u32 %v5098, 4294901760
    %v6223 = vsub.f32 %v5098, %v6222
    %v6224 = vand.u32 %v6223, 4294901760
    %v6225 = vsub.f32 %v6223, %v6224
    %v6226 = vand.u32 %v6225, 4294901760
    %6227 = vmatprep.subr.mxu0 %v6226
    %v6228 = vand.u32 %v5097, 4294901760
    %v6229 = vsub.f32 %v5097, %v6228
    %v6230 = vand.u32 %v6229, 4294901760
    %v6231 = vsub.f32 %v6229, %v6230
    %v6232 = vand.u32 %v6231, 4294901760
    %6233 = vmatpush1.msra.mxu0 %v6232
    %v6234 = vand.u32 %v5100, 4294901760
    %v6235 = vsub.f32 %v5100, %v6234
    %v6236 = vand.u32 %v6235, 4294901760
    %v6237 = vsub.f32 %v6235, %v6236
    %v6238 = vand.u32 %v6237, 4294901760
    %6239 = vmatprep.subr.mxu0 %v6238
    %v6240 = vand.u32 %v5099, 4294901760
    %v6241 = vsub.f32 %v5099, %v6240
    %v6242 = vand.u32 %v6241, 4294901760
    %v6243 = vsub.f32 %v6241, %v6242
    %v6244 = vand.u32 %v6243, 4294901760
    %6245 = vmatpush1.msra.mxu0 %v6244
    %v6246 = vand.u32 %v5102, 4294901760
    %v6247 = vsub.f32 %v5102, %v6246
    %v6248 = vand.u32 %v6247, 4294901760
    %v6249 = vsub.f32 %v6247, %v6248
    %v6250 = vand.u32 %v6249, 4294901760
    %6251 = vmatprep.subr.mxu0 %v6250
    %v6252 = vand.u32 %v5101, 4294901760
    %v6253 = vsub.f32 %v5101, %v6252
    %v6254 = vand.u32 %v6253, 4294901760
    %v6255 = vsub.f32 %v6253, %v6254
    %v6256 = vand.u32 %v6255, 4294901760
    %6257 = vmatpush1.msra.mxu0 %v6256
    %v6258 = vand.u32 %v5104, 4294901760
    %v6259 = vsub.f32 %v5104, %v6258
    %v6260 = vand.u32 %v6259, 4294901760
    %v6261 = vsub.f32 %v6259, %v6260
    %v6262 = vand.u32 %v6261, 4294901760
    %6263 = vmatprep.subr.mxu0 %v6262
    %v6264 = vand.u32 %v5103, 4294901760
    %v6265 = vsub.f32 %v5103, %v6264
    %v6266 = vand.u32 %v6265, 4294901760
    %v6267 = vsub.f32 %v6265, %v6266
    %v6268 = vand.u32 %v6267, 4294901760
    %6269 = vmatpush1.msra.mxu0 %v6268
    %v6270 = vand.u32 %v5106, 4294901760
    %v6271 = vsub.f32 %v5106, %v6270
    %v6272 = vand.u32 %v6271, 4294901760
    %v6273 = vsub.f32 %v6271, %v6272
    %v6274 = vand.u32 %v6273, 4294901760
    %6275 = vmatprep.subr.mxu0 %v6274
    %v6276 = vand.u32 %v5105, 4294901760
    %v6277 = vsub.f32 %v5105, %v6276
    %v6278 = vand.u32 %v6277, 4294901760
    %v6279 = vsub.f32 %v6277, %v6278
    %v6280 = vand.u32 %v6279, 4294901760
    %6281 = vmatpush1.msra.mxu0 %v6280
    %v6282 = vand.u32 %v5108, 4294901760
    %v6283 = vsub.f32 %v5108, %v6282
    %v6284 = vand.u32 %v6283, 4294901760
    %v6285 = vsub.f32 %v6283, %v6284
    %v6286 = vand.u32 %v6285, 4294901760
    %6287 = vmatprep.subr.mxu0 %v6286
    %v6288 = vand.u32 %v5107, 4294901760
    %v6289 = vsub.f32 %v5107, %v6288
    %v6290 = vand.u32 %v6289, 4294901760
    %v6291 = vsub.f32 %v6289, %v6290
    %v6292 = vand.u32 %v6291, 4294901760
    %6293 = vmatpush1.msra.mxu0 %v6292
    %v6294 = vand.u32 %v5110, 4294901760
    %v6295 = vsub.f32 %v5110, %v6294
    %v6296 = vand.u32 %v6295, 4294901760
    %v6297 = vsub.f32 %v6295, %v6296
    %v6298 = vand.u32 %v6297, 4294901760
    %6299 = vmatprep.subr.mxu0 %v6298
    %v6300 = vand.u32 %v5109, 4294901760
    %v6301 = vsub.f32 %v5109, %v6300
    %v6302 = vand.u32 %v6301, 4294901760
    %v6303 = vsub.f32 %v6301, %v6302
    %v6304 = vand.u32 %v6303, 4294901760
    %6305 = vmatpush1.msra.mxu0 %v6304
    %v6306 = vand.u32 %v5112, 4294901760
    %v6307 = vsub.f32 %v5112, %v6306
    %v6308 = vand.u32 %v6307, 4294901760
    %v6309 = vsub.f32 %v6307, %v6308
    %v6310 = vand.u32 %v6309, 4294901760
    %6311 = vmatprep.subr.mxu0 %v6310
    %v6312 = vand.u32 %v5111, 4294901760
    %v6313 = vsub.f32 %v5111, %v6312
    %v6314 = vand.u32 %v6313, 4294901760
    %v6315 = vsub.f32 %v6313, %v6314
    %v6316 = vand.u32 %v6315, 4294901760
    %6317 = vmatpush1.msra.mxu0 %v6316
    %v6318 = vand.u32 %v5114, 4294901760
    %v6319 = vsub.f32 %v5114, %v6318
    %v6320 = vand.u32 %v6319, 4294901760
    %v6321 = vsub.f32 %v6319, %v6320
    %v6322 = vand.u32 %v6321, 4294901760
    %6323 = vmatprep.subr.mxu0 %v6322
    %v6324 = vand.u32 %v5113, 4294901760
    %v6325 = vsub.f32 %v5113, %v6324
    %v6326 = vand.u32 %v6325, 4294901760
    %v6327 = vsub.f32 %v6325, %v6326
    %v6328 = vand.u32 %v6327, 4294901760
    %6329 = vmatpush1.msra.mxu0 %v6328
    %6330 = vmatprep.subr.mxu0 0.0
    %6331 = vmatpush1.msra.mxu0 0.0
    %6332 = vmatprep.subr.mxu0 0.0
    %6333 = vmatpush1.msra.mxu0 0.0
    %6334 = vmatprep.subr.mxu0 0.0
    %6335 = vmatpush1.msra.mxu0 0.0
    %6336 = vmatprep.subr.mxu0 0.0
    %6337 = vmatpush1.msra.mxu0 0.0
    %6338 = vmatprep.subr.mxu0 0.0
    %6339 = vmatpush1.msra.mxu0 0.0
    %6340 = vmatprep.subr.mxu0 0.0
    %6341 = vmatpush1.msra.mxu0 0.0
    %6342 = vmatprep.subr.mxu0 0.0
    %6343 = vmatpush1.msra.mxu0 0.0
    %6344 = vmatprep.subr.mxu0 0.0
    %6345 = vmatpush1.msra.mxu0 0.0
    %6346 = vmatprep.subr.mxu0 0.0
    %6347 = vmatpush1.msra.mxu0 0.0
    %6348 = vmatprep.subr.mxu0 0.0
    %6349 = vmatpush1.msra.mxu0 0.0
    %6350 = vmatprep.subr.mxu0 0.0
    %6351 = vmatpush1.msra.mxu0 0.0
    %6352 = vmatprep.subr.mxu0 0.0
    %6353 = vmatpush1.msra.mxu0 0.0
    %6354 = vmatprep.subr.mxu0 0.0
    %6355 = vmatpush1.msra.mxu0 0.0
    %6356 = vmatprep.subr.mxu0 0.0
    %6357 = vmatpush1.msra.mxu0 0.0
    %6358 = vmatprep.subr.mxu0 0.0
    %6359 = vmatpush1.msra.mxu0 0.0
    %6360 = vmatprep.subr.mxu0 0.0
    %6361 = vmatpush1.msra.mxu0 0.0
    %6362 = vmatprep.mubr.f32.mxu0 0.0
    %v6363 = vand.u32 %v6029, 4294901760
    %6364 = vmatmul.mubr.f32.gmra.mrb[0].mxu0 %v6363
    %v6365 = vpop.f32.mrb[0].mxu0
    %v6366 = vadd.f32 %v6134, %v6365
    %v6367 = vpop.f32.mrb[0].mxu0
    %v6368 = vadd.f32 %v6136, %v6367
    %6369 = vdwg.mxu0
    %v6370 = vand.u32 %v5084, 4294901760
    %v6371 = vsub.f32 %v5084, %v6370
    %6372 = vmatprep.subr.mxu0 %v6371
    %v6373 = vand.u32 %v5083, 4294901760
    %v6374 = vsub.f32 %v5083, %v6373
    %6375 = vmatpush1.msra.mxu0 %v6374
    %v6376 = vand.u32 %v5086, 4294901760
    %v6377 = vsub.f32 %v5086, %v6376
    %6378 = vmatprep.subr.mxu0 %v6377
    %v6379 = vand.u32 %v5085, 4294901760
    %v6380 = vsub.f32 %v5085, %v6379
    %6381 = vmatpush1.msra.mxu0 %v6380
    %v6382 = vand.u32 %v5088, 4294901760
    %v6383 = vsub.f32 %v5088, %v6382
    %6384 = vmatprep.subr.mxu0 %v6383
    %v6385 = vand.u32 %v5087, 4294901760
    %v6386 = vsub.f32 %v5087, %v6385
    %6387 = vmatpush1.msra.mxu0 %v6386
    %v6388 = vand.u32 %v5090, 4294901760
    %v6389 = vsub.f32 %v5090, %v6388
    %6390 = vmatprep.subr.mxu0 %v6389
    %v6391 = vand.u32 %v5089, 4294901760
    %v6392 = vsub.f32 %v5089, %v6391
    %6393 = vmatpush1.msra.mxu0 %v6392
    %v6394 = vand.u32 %v5092, 4294901760
    %v6395 = vsub.f32 %v5092, %v6394
    %6396 = vmatprep.subr.mxu0 %v6395
    %v6397 = vand.u32 %v5091, 4294901760
    %v6398 = vsub.f32 %v5091, %v6397
    %6399 = vmatpush1.msra.mxu0 %v6398
    %v6400 = vand.u32 %v5094, 4294901760
    %v6401 = vsub.f32 %v5094, %v6400
    %6402 = vmatprep.subr.mxu0 %v6401
    %v6403 = vand.u32 %v5093, 4294901760
    %v6404 = vsub.f32 %v5093, %v6403
    %6405 = vmatpush1.msra.mxu0 %v6404
    %v6406 = vand.u32 %v5096, 4294901760
    %v6407 = vsub.f32 %v5096, %v6406
    %6408 = vmatprep.subr.mxu0 %v6407
    %v6409 = vand.u32 %v5095, 4294901760
    %v6410 = vsub.f32 %v5095, %v6409
    %6411 = vmatpush1.msra.mxu0 %v6410
    %v6412 = vand.u32 %v5098, 4294901760
    %v6413 = vsub.f32 %v5098, %v6412
    %6414 = vmatprep.subr.mxu0 %v6413
    %v6415 = vand.u32 %v5097, 4294901760
    %v6416 = vsub.f32 %v5097, %v6415
    %6417 = vmatpush1.msra.mxu0 %v6416
    %v6418 = vand.u32 %v5100, 4294901760
    %v6419 = vsub.f32 %v5100, %v6418
    %6420 = vmatprep.subr.mxu0 %v6419
    %v6421 = vand.u32 %v5099, 4294901760
    %v6422 = vsub.f32 %v5099, %v6421
    %6423 = vmatpush1.msra.mxu0 %v6422
    %v6424 = vand.u32 %v5102, 4294901760
    %v6425 = vsub.f32 %v5102, %v6424
    %6426 = vmatprep.subr.mxu0 %v6425
    %v6427 = vand.u32 %v5101, 4294901760
    %v6428 = vsub.f32 %v5101, %v6427
    %6429 = vmatpush1.msra.mxu0 %v6428
    %v6430 = vand.u32 %v5104, 4294901760
    %v6431 = vsub.f32 %v5104, %v6430
    %6432 = vmatprep.subr.mxu0 %v6431
    %v6433 = vand.u32 %v5103, 4294901760
    %v6434 = vsub.f32 %v5103, %v6433
    %6435 = vmatpush1.msra.mxu0 %v6434
    %v6436 = vand.u32 %v5106, 4294901760
    %v6437 = vsub.f32 %v5106, %v6436
    %6438 = vmatprep.subr.mxu0 %v6437
    %v6439 = vand.u32 %v5105, 4294901760
    %v6440 = vsub.f32 %v5105, %v6439
    %6441 = vmatpush1.msra.mxu0 %v6440
    %v6442 = vand.u32 %v5108, 4294901760
    %v6443 = vsub.f32 %v5108, %v6442
    %6444 = vmatprep.subr.mxu0 %v6443
    %v6445 = vand.u32 %v5107, 4294901760
    %v6446 = vsub.f32 %v5107, %v6445
    %6447 = vmatpush1.msra.mxu0 %v6446
    %v6448 = vand.u32 %v5110, 4294901760
    %v6449 = vsub.f32 %v5110, %v6448
    %6450 = vmatprep.subr.mxu0 %v6449
    %v6451 = vand.u32 %v5109, 4294901760
    %v6452 = vsub.f32 %v5109, %v6451
    %6453 = vmatpush1.msra.mxu0 %v6452
    %v6454 = vand.u32 %v5112, 4294901760
    %v6455 = vsub.f32 %v5112, %v6454
    %6456 = vmatprep.subr.mxu0 %v6455
    %v6457 = vand.u32 %v5111, 4294901760
    %v6458 = vsub.f32 %v5111, %v6457
    %6459 = vmatpush1.msra.mxu0 %v6458
    %v6460 = vand.u32 %v5114, 4294901760
    %v6461 = vsub.f32 %v5114, %v6460
    %6462 = vmatprep.subr.mxu0 %v6461
    %v6463 = vand.u32 %v5113, 4294901760
    %v6464 = vsub.f32 %v5113, %v6463
    %6465 = vmatpush1.msra.mxu0 %v6464
    %6466 = vmatprep.subr.mxu0 0.0
    %6467 = vmatpush1.msra.mxu0 0.0
    %6468 = vmatprep.subr.mxu0 0.0
    %6469 = vmatpush1.msra.mxu0 0.0
    %6470 = vmatprep.subr.mxu0 0.0
    %6471 = vmatpush1.msra.mxu0 0.0
    %6472 = vmatprep.subr.mxu0 0.0
    %6473 = vmatpush1.msra.mxu0 0.0
    %6474 = vmatprep.subr.mxu0 0.0
    %6475 = vmatpush1.msra.mxu0 0.0
    %6476 = vmatprep.subr.mxu0 0.0
    %6477 = vmatpush1.msra.mxu0 0.0
    %6478 = vmatprep.subr.mxu0 0.0
    %6479 = vmatpush1.msra.mxu0 0.0
    %6480 = vmatprep.subr.mxu0 0.0
    %6481 = vmatpush1.msra.mxu0 0.0
    %6482 = vmatprep.subr.mxu0 0.0
    %6483 = vmatpush1.msra.mxu0 0.0
    %6484 = vmatprep.subr.mxu0 0.0
    %6485 = vmatpush1.msra.mxu0 0.0
    %6486 = vmatprep.subr.mxu0 0.0
    %6487 = vmatpush1.msra.mxu0 0.0
    %6488 = vmatprep.subr.mxu0 0.0
    %6489 = vmatpush1.msra.mxu0 0.0
    %6490 = vmatprep.subr.mxu0 0.0
    %6491 = vmatpush1.msra.mxu0 0.0
    %6492 = vmatprep.subr.mxu0 0.0
    %6493 = vmatpush1.msra.mxu0 0.0
    %6494 = vmatprep.subr.mxu0 0.0
    %6495 = vmatpush1.msra.mxu0 0.0
    %6496 = vmatprep.subr.mxu0 0.0
    %6497 = vmatpush1.msra.mxu0 0.0
    %6498 = vmatprep.mubr.f32.mxu0 0.0
    %v6499 = vand.u32 %v6029, 4294901760
    %v6500 = vsub.f32 %v6029, %v6499
    %6501 = vmatmul.mubr.f32.gmra.mrb[0].mxu0 %v6500
    %v6502 = vpop.f32.mrb[0].mxu0
    %v6503 = vadd.f32 %v6366, %v6502
    %v6504 = vpop.f32.mrb[0].mxu0
    %v6505 = vadd.f32 %v6368, %v6504
    %6506 = vdwg.mxu0
    %v6507 = vand.u32 %v5084, 4294901760
    %6508 = vmatprep.subr.mxu0 %v6507
    %v6509 = vand.u32 %v5083, 4294901760
    %6510 = vmatpush1.msra.mxu0 %v6509
    %v6511 = vand.u32 %v5086, 4294901760
    %6512 = vmatprep.subr.mxu0 %v6511
    %v6513 = vand.u32 %v5085, 4294901760
    %6514 = vmatpush1.msra.mxu0 %v6513
    %v6515 = vand.u32 %v5088, 4294901760
    %6516 = vmatprep.subr.mxu0 %v6515
    %v6517 = vand.u32 %v5087, 4294901760
    %6518 = vmatpush1.msra.mxu0 %v6517
    %v6519 = vand.u32 %v5090, 4294901760
    %6520 = vmatprep.subr.mxu0 %v6519
    %v6521 = vand.u32 %v5089, 4294901760
    %6522 = vmatpush1.msra.mxu0 %v6521
    %v6523 = vand.u32 %v5092, 4294901760
    %6524 = vmatprep.subr.mxu0 %v6523
    %v6525 = vand.u32 %v5091, 4294901760
    %6526 = vmatpush1.msra.mxu0 %v6525
    %v6527 = vand.u32 %v5094, 4294901760
    %6528 = vmatprep.subr.mxu0 %v6527
    %v6529 = vand.u32 %v5093, 4294901760
    %6530 = vmatpush1.msra.mxu0 %v6529
    %v6531 = vand.u32 %v5096, 4294901760
    %6532 = vmatprep.subr.mxu0 %v6531
    %v6533 = vand.u32 %v5095, 4294901760
    %6534 = vmatpush1.msra.mxu0 %v6533
    %v6535 = vand.u32 %v5098, 4294901760
    %6536 = vmatprep.subr.mxu0 %v6535
    %v6537 = vand.u32 %v5097, 4294901760
    %6538 = vmatpush1.msra.mxu0 %v6537
    %v6539 = vand.u32 %v5100, 4294901760
    %6540 = vmatprep.subr.mxu0 %v6539
    %v6541 = vand.u32 %v5099, 4294901760
    %6542 = vmatpush1.msra.mxu0 %v6541
    %v6543 = vand.u32 %v5102, 4294901760
    %6544 = vmatprep.subr.mxu0 %v6543
    %v6545 = vand.u32 %v5101, 4294901760
    %6546 = vmatpush1.msra.mxu0 %v6545
    %v6547 = vand.u32 %v5104, 4294901760
    %6548 = vmatprep.subr.mxu0 %v6547
    %v6549 = vand.u32 %v5103, 4294901760
    %6550 = vmatpush1.msra.mxu0 %v6549
    %v6551 = vand.u32 %v5106, 4294901760
    %6552 = vmatprep.subr.mxu0 %v6551
    %v6553 = vand.u32 %v5105, 4294901760
    %6554 = vmatpush1.msra.mxu0 %v6553
    %v6555 = vand.u32 %v5108, 4294901760
    %6556 = vmatprep.subr.mxu0 %v6555
    %v6557 = vand.u32 %v5107, 4294901760
    %6558 = vmatpush1.msra.mxu0 %v6557
    %v6559 = vand.u32 %v5110, 4294901760
    %6560 = vmatprep.subr.mxu0 %v6559
    %v6561 = vand.u32 %v5109, 4294901760
    %6562 = vmatpush1.msra.mxu0 %v6561
    %v6563 = vand.u32 %v5112, 4294901760
    %6564 = vmatprep.subr.mxu0 %v6563
    %v6565 = vand.u32 %v5111, 4294901760
    %6566 = vmatpush1.msra.mxu0 %v6565
    %v6567 = vand.u32 %v5114, 4294901760
    %6568 = vmatprep.subr.mxu0 %v6567
    %v6569 = vand.u32 %v5113, 4294901760
    %6570 = vmatpush1.msra.mxu0 %v6569
    %6571 = vmatprep.subr.mxu0 0.0
    %6572 = vmatpush1.msra.mxu0 0.0
    %6573 = vmatprep.subr.mxu0 0.0
    %6574 = vmatpush1.msra.mxu0 0.0
    %6575 = vmatprep.subr.mxu0 0.0
    %6576 = vmatpush1.msra.mxu0 0.0
    %6577 = vmatprep.subr.mxu0 0.0
    %6578 = vmatpush1.msra.mxu0 0.0
    %6579 = vmatprep.subr.mxu0 0.0
    %6580 = vmatpush1.msra.mxu0 0.0
    %6581 = vmatprep.subr.mxu0 0.0
    %6582 = vmatpush1.msra.mxu0 0.0
    %6583 = vmatprep.subr.mxu0 0.0
    %6584 = vmatpush1.msra.mxu0 0.0
    %6585 = vmatprep.subr.mxu0 0.0
    %6586 = vmatpush1.msra.mxu0 0.0
    %6587 = vmatprep.subr.mxu0 0.0
    %6588 = vmatpush1.msra.mxu0 0.0
    %6589 = vmatprep.subr.mxu0 0.0
    %6590 = vmatpush1.msra.mxu0 0.0
    %6591 = vmatprep.subr.mxu0 0.0
    %6592 = vmatpush1.msra.mxu0 0.0
    %6593 = vmatprep.subr.mxu0 0.0
    %6594 = vmatpush1.msra.mxu0 0.0
    %6595 = vmatprep.subr.mxu0 0.0
    %6596 = vmatpush1.msra.mxu0 0.0
    %6597 = vmatprep.subr.mxu0 0.0
    %6598 = vmatpush1.msra.mxu0 0.0
    %6599 = vmatprep.subr.mxu0 0.0
    %6600 = vmatpush1.msra.mxu0 0.0
    %6601 = vmatprep.subr.mxu0 0.0
    %6602 = vmatpush1.msra.mxu0 0.0
    %6603 = vmatprep.mubr.f32.mxu0 0.0
    %v6604 = vand.u32 %v6029, 4294901760
    %v6605 = vsub.f32 %v6029, %v6604
    %v6606 = vand.u32 %v6605, 4294901760
    %6607 = vmatmul.mubr.f32.gmra.mrb[0].mxu0 %v6606
    %v6608 = vpop.f32.mrb[0].mxu0
    %v6609 = vadd.f32 %v6503, %v6608
    %v6610 = vpop.f32.mrb[0].mxu0
    %v6611 = vadd.f32 %v6505, %v6610
    %6612 = vdwg.mxu0
    %v6613 = vand.u32 %v5084, 4294901760
    %v6614 = vsub.f32 %v5084, %v6613
    %v6615 = vand.u32 %v6614, 4294901760
    %6616 = vmatprep.subr.mxu0 %v6615
    %v6617 = vand.u32 %v5083, 4294901760
    %v6618 = vsub.f32 %v5083, %v6617
    %v6619 = vand.u32 %v6618, 4294901760
    %6620 = vmatpush1.msra.mxu0 %v6619
    %v6621 = vand.u32 %v5086, 4294901760
    %v6622 = vsub.f32 %v5086, %v6621
    %v6623 = vand.u32 %v6622, 4294901760
    %6624 = vmatprep.subr.mxu0 %v6623
    %v6625 = vand.u32 %v5085, 4294901760
    %v6626 = vsub.f32 %v5085, %v6625
    %v6627 = vand.u32 %v6626, 4294901760
    %6628 = vmatpush1.msra.mxu0 %v6627
    %v6629 = vand.u32 %v5088, 4294901760
    %v6630 = vsub.f32 %v5088, %v6629
    %v6631 = vand.u32 %v6630, 4294901760
    %6632 = vmatprep.subr.mxu0 %v6631
    %v6633 = vand.u32 %v5087, 4294901760
    %v6634 = vsub.f32 %v5087, %v6633
    %v6635 = vand.u32 %v6634, 4294901760
    %6636 = vmatpush1.msra.mxu0 %v6635
    %v6637 = vand.u32 %v5090, 4294901760
    %v6638 = vsub.f32 %v5090, %v6637
    %v6639 = vand.u32 %v6638, 4294901760
    %6640 = vmatprep.subr.mxu0 %v6639
    %v6641 = vand.u32 %v5089, 4294901760
    %v6642 = vsub.f32 %v5089, %v6641
    %v6643 = vand.u32 %v6642, 4294901760
    %6644 = vmatpush1.msra.mxu0 %v6643
    %v6645 = vand.u32 %v5092, 4294901760
    %v6646 = vsub.f32 %v5092, %v6645
    %v6647 = vand.u32 %v6646, 4294901760
    %6648 = vmatprep.subr.mxu0 %v6647
    %v6649 = vand.u32 %v5091, 4294901760
    %v6650 = vsub.f32 %v5091, %v6649
    %v6651 = vand.u32 %v6650, 4294901760
    %6652 = vmatpush1.msra.mxu0 %v6651
    %v6653 = vand.u32 %v5094, 4294901760
    %v6654 = vsub.f32 %v5094, %v6653
    %v6655 = vand.u32 %v6654, 4294901760
    %6656 = vmatprep.subr.mxu0 %v6655
    %v6657 = vand.u32 %v5093, 4294901760
    %v6658 = vsub.f32 %v5093, %v6657
    %v6659 = vand.u32 %v6658, 4294901760
    %6660 = vmatpush1.msra.mxu0 %v6659
    %v6661 = vand.u32 %v5096, 4294901760
    %v6662 = vsub.f32 %v5096, %v6661
    %v6663 = vand.u32 %v6662, 4294901760
    %6664 = vmatprep.subr.mxu0 %v6663
    %v6665 = vand.u32 %v5095, 4294901760
    %v6666 = vsub.f32 %v5095, %v6665
    %v6667 = vand.u32 %v6666, 4294901760
    %6668 = vmatpush1.msra.mxu0 %v6667
    %v6669 = vand.u32 %v5098, 4294901760
    %v6670 = vsub.f32 %v5098, %v6669
    %v6671 = vand.u32 %v6670, 4294901760
    %6672 = vmatprep.subr.mxu0 %v6671
    %v6673 = vand.u32 %v5097, 4294901760
    %v6674 = vsub.f32 %v5097, %v6673
    %v6675 = vand.u32 %v6674, 4294901760
    %6676 = vmatpush1.msra.mxu0 %v6675
    %v6677 = vand.u32 %v5100, 4294901760
    %v6678 = vsub.f32 %v5100, %v6677
    %v6679 = vand.u32 %v6678, 4294901760
    %6680 = vmatprep.subr.mxu0 %v6679
    %v6681 = vand.u32 %v5099, 4294901760
    %v6682 = vsub.f32 %v5099, %v6681
    %v6683 = vand.u32 %v6682, 4294901760
    %6684 = vmatpush1.msra.mxu0 %v6683
    %v6685 = vand.u32 %v5102, 4294901760
    %v6686 = vsub.f32 %v5102, %v6685
    %v6687 = vand.u32 %v6686, 4294901760
    %6688 = vmatprep.subr.mxu0 %v6687
    %v6689 = vand.u32 %v5101, 4294901760
    %v6690 = vsub.f32 %v5101, %v6689
    %v6691 = vand.u32 %v6690, 4294901760
    %6692 = vmatpush1.msra.mxu0 %v6691
    %v6693 = vand.u32 %v5104, 4294901760
    %v6694 = vsub.f32 %v5104, %v6693
    %v6695 = vand.u32 %v6694, 4294901760
    %6696 = vmatprep.subr.mxu0 %v6695
    %v6697 = vand.u32 %v5103, 4294901760
    %v6698 = vsub.f32 %v5103, %v6697
    %v6699 = vand.u32 %v6698, 4294901760
    %6700 = vmatpush1.msra.mxu0 %v6699
    %v6701 = vand.u32 %v5106, 4294901760
    %v6702 = vsub.f32 %v5106, %v6701
    %v6703 = vand.u32 %v6702, 4294901760
    %6704 = vmatprep.subr.mxu0 %v6703
    %v6705 = vand.u32 %v5105, 4294901760
    %v6706 = vsub.f32 %v5105, %v6705
    %v6707 = vand.u32 %v6706, 4294901760
    %6708 = vmatpush1.msra.mxu0 %v6707
    %v6709 = vand.u32 %v5108, 4294901760
    %v6710 = vsub.f32 %v5108, %v6709
    %v6711 = vand.u32 %v6710, 4294901760
    %6712 = vmatprep.subr.mxu0 %v6711
    %v6713 = vand.u32 %v5107, 4294901760
    %v6714 = vsub.f32 %v5107, %v6713
    %v6715 = vand.u32 %v6714, 4294901760
    %6716 = vmatpush1.msra.mxu0 %v6715
    %v6717 = vand.u32 %v5110, 4294901760
    %v6718 = vsub.f32 %v5110, %v6717
    %v6719 = vand.u32 %v6718, 4294901760
    %6720 = vmatprep.subr.mxu0 %v6719
    %v6721 = vand.u32 %v5109, 4294901760
    %v6722 = vsub.f32 %v5109, %v6721
    %v6723 = vand.u32 %v6722, 4294901760
    %6724 = vmatpush1.msra.mxu0 %v6723
    %v6725 = vand.u32 %v5112, 4294901760
    %v6726 = vsub.f32 %v5112, %v6725
    %v6727 = vand.u32 %v6726, 4294901760
    %6728 = vmatprep.subr.mxu0 %v6727
    %v6729 = vand.u32 %v5111, 4294901760
    %v6730 = vsub.f32 %v5111, %v6729
    %v6731 = vand.u32 %v6730, 4294901760
    %6732 = vmatpush1.msra.mxu0 %v6731
    %v6733 = vand.u32 %v5114, 4294901760
    %v6734 = vsub.f32 %v5114, %v6733
    %v6735 = vand.u32 %v6734, 4294901760
    %6736 = vmatprep.subr.mxu0 %v6735
    %v6737 = vand.u32 %v5113, 4294901760
    %v6738 = vsub.f32 %v5113, %v6737
    %v6739 = vand.u32 %v6738, 4294901760
    %6740 = vmatpush1.msra.mxu0 %v6739
    %6741 = vmatprep.subr.mxu0 0.0
    %6742 = vmatpush1.msra.mxu0 0.0
    %6743 = vmatprep.subr.mxu0 0.0
    %6744 = vmatpush1.msra.mxu0 0.0
    %6745 = vmatprep.subr.mxu0 0.0
    %6746 = vmatpush1.msra.mxu0 0.0
    %6747 = vmatprep.subr.mxu0 0.0
    %6748 = vmatpush1.msra.mxu0 0.0
    %6749 = vmatprep.subr.mxu0 0.0
    %6750 = vmatpush1.msra.mxu0 0.0
    %6751 = vmatprep.subr.mxu0 0.0
    %6752 = vmatpush1.msra.mxu0 0.0
    %6753 = vmatprep.subr.mxu0 0.0
    %6754 = vmatpush1.msra.mxu0 0.0
    %6755 = vmatprep.subr.mxu0 0.0
    %6756 = vmatpush1.msra.mxu0 0.0
    %6757 = vmatprep.subr.mxu0 0.0
    %6758 = vmatpush1.msra.mxu0 0.0
    %6759 = vmatprep.subr.mxu0 0.0
    %6760 = vmatpush1.msra.mxu0 0.0
    %6761 = vmatprep.subr.mxu0 0.0
    %6762 = vmatpush1.msra.mxu0 0.0
    %6763 = vmatprep.subr.mxu0 0.0
    %6764 = vmatpush1.msra.mxu0 0.0
    %6765 = vmatprep.subr.mxu0 0.0
    %6766 = vmatpush1.msra.mxu0 0.0
    %6767 = vmatprep.subr.mxu0 0.0
    %6768 = vmatpush1.msra.mxu0 0.0
    %6769 = vmatprep.subr.mxu0 0.0
    %6770 = vmatpush1.msra.mxu0 0.0
    %6771 = vmatprep.subr.mxu0 0.0
    %6772 = vmatpush1.msra.mxu0 0.0
    %6773 = vmatprep.mubr.f32.mxu0 0.0
    %v6774 = vand.u32 %v6029, 4294901760
    %6775 = vmatmul.mubr.f32.gmra.mrb[0].mxu0 %v6774
    %v6776 = vpop.f32.mrb[0].mxu0
    %v6777 = vadd.f32 %v6609, %v6776
    %v6778 = vpop.f32.mrb[0].mxu0
    %v6779 = vadd.f32 %v6611, %v6778
    %6780 = vdwg.mxu0
    %v6781 = vand.u32 %v5084, 4294901760
    %6782 = vmatprep.subr.mxu0 %v6781
    %v6783 = vand.u32 %v5083, 4294901760
    %6784 = vmatpush1.msra.mxu0 %v6783
    %v6785 = vand.u32 %v5086, 4294901760
    %6786 = vmatprep.subr.mxu0 %v6785
    %v6787 = vand.u32 %v5085, 4294901760
    %6788 = vmatpush1.msra.mxu0 %v6787
    %v6789 = vand.u32 %v5088, 4294901760
    %6790 = vmatprep.subr.mxu0 %v6789
    %v6791 = vand.u32 %v5087, 4294901760
    %6792 = vmatpush1.msra.mxu0 %v6791
    %v6793 = vand.u32 %v5090, 4294901760
    %6794 = vmatprep.subr.mxu0 %v6793
    %v6795 = vand.u32 %v5089, 4294901760
    %6796 = vmatpush1.msra.mxu0 %v6795
    %v6797 = vand.u32 %v5092, 4294901760
    %6798 = vmatprep.subr.mxu0 %v6797
    %v6799 = vand.u32 %v5091, 4294901760
    %6800 = vmatpush1.msra.mxu0 %v6799
    %v6801 = vand.u32 %v5094, 4294901760
    %6802 = vmatprep.subr.mxu0 %v6801
    %v6803 = vand.u32 %v5093, 4294901760
    %6804 = vmatpush1.msra.mxu0 %v6803
    %v6805 = vand.u32 %v5096, 4294901760
    %6806 = vmatprep.subr.mxu0 %v6805
    %v6807 = vand.u32 %v5095, 4294901760
    %6808 = vmatpush1.msra.mxu0 %v6807
    %v6809 = vand.u32 %v5098, 4294901760
    %6810 = vmatprep.subr.mxu0 %v6809
    %v6811 = vand.u32 %v5097, 4294901760
    %6812 = vmatpush1.msra.mxu0 %v6811
    %v6813 = vand.u32 %v5100, 4294901760
    %6814 = vmatprep.subr.mxu0 %v6813
    %v6815 = vand.u32 %v5099, 4294901760
    %6816 = vmatpush1.msra.mxu0 %v6815
    %v6817 = vand.u32 %v5102, 4294901760
    %6818 = vmatprep.subr.mxu0 %v6817
    %v6819 = vand.u32 %v5101, 4294901760
    %6820 = vmatpush1.msra.mxu0 %v6819
    %v6821 = vand.u32 %v5104, 4294901760
    %6822 = vmatprep.subr.mxu0 %v6821
    %v6823 = vand.u32 %v5103, 4294901760
    %6824 = vmatpush1.msra.mxu0 %v6823
    %v6825 = vand.u32 %v5106, 4294901760
    %6826 = vmatprep.subr.mxu0 %v6825
    %v6827 = vand.u32 %v5105, 4294901760
    %6828 = vmatpush1.msra.mxu0 %v6827
    %v6829 = vand.u32 %v5108, 4294901760
    %6830 = vmatprep.subr.mxu0 %v6829
    %v6831 = vand.u32 %v5107, 4294901760
    %6832 = vmatpush1.msra.mxu0 %v6831
    %v6833 = vand.u32 %v5110, 4294901760
    %6834 = vmatprep.subr.mxu0 %v6833
    %v6835 = vand.u32 %v5109, 4294901760
    %6836 = vmatpush1.msra.mxu0 %v6835
    %v6837 = vand.u32 %v5112, 4294901760
    %6838 = vmatprep.subr.mxu0 %v6837
    %v6839 = vand.u32 %v5111, 4294901760
    %6840 = vmatpush1.msra.mxu0 %v6839
    %v6841 = vand.u32 %v5114, 4294901760
    %6842 = vmatprep.subr.mxu0 %v6841
    %v6843 = vand.u32 %v5113, 4294901760
    %6844 = vmatpush1.msra.mxu0 %v6843
    %6845 = vmatprep.subr.mxu0 0.0
    %6846 = vmatpush1.msra.mxu0 0.0
    %6847 = vmatprep.subr.mxu0 0.0
    %6848 = vmatpush1.msra.mxu0 0.0
    %6849 = vmatprep.subr.mxu0 0.0
    %6850 = vmatpush1.msra.mxu0 0.0
    %6851 = vmatprep.subr.mxu0 0.0
    %6852 = vmatpush1.msra.mxu0 0.0
    %6853 = vmatprep.subr.mxu0 0.0
    %6854 = vmatpush1.msra.mxu0 0.0
    %6855 = vmatprep.subr.mxu0 0.0
    %6856 = vmatpush1.msra.mxu0 0.0
    %6857 = vmatprep.subr.mxu0 0.0
    %6858 = vmatpush1.msra.mxu0 0.0
    %6859 = vmatprep.subr.mxu0 0.0
    %6860 = vmatpush1.msra.mxu0 0.0
    %6861 = vmatprep.subr.mxu0 0.0
    %6862 = vmatpush1.msra.mxu0 0.0
    %6863 = vmatprep.subr.mxu0 0.0
    %6864 = vmatpush1.msra.mxu0 0.0
    %6865 = vmatprep.subr.mxu0 0.0
    %6866 = vmatpush1.msra.mxu0 0.0
    %6867 = vmatprep.subr.mxu0 0.0
    %6868 = vmatpush1.msra.mxu0 0.0
    %6869 = vmatprep.subr.mxu0 0.0
    %6870 = vmatpush1.msra.mxu0 0.0
    %6871 = vmatprep.subr.mxu0 0.0
    %6872 = vmatpush1.msra.mxu0 0.0
    %6873 = vmatprep.subr.mxu0 0.0
    %6874 = vmatpush1.msra.mxu0 0.0
    %6875 = vmatprep.subr.mxu0 0.0
    %6876 = vmatpush1.msra.mxu0 0.0
    %6877 = vmatprep.mubr.f32.mxu0 0.0
    %v6878 = vand.u32 %v6029, 4294901760
    %6879 = vmatmul.mubr.f32.gmra.mrb[0].mxu0 %v6878
    %v6880 = vpop.f32.mrb[0].mxu0
    %v6881 = vadd.f32 %v6777, %v6880
    %v6882 = vpop.f32.mrb[0].mxu0
    %v6883 = vadd.f32 %v6779, %v6882
    %6884 = vdwg.mxu0
    %v6885 = vlaneseq
    %v6886 = vshrl.u32 %v6885, 7
    %v6887 = vsub.s32 0, %v6886
    %v6888 = vrot.slane %v6881, %v6887
    %v6889 = vlaneseq
    %v6890 = vshrl.u32 %v6889, 7
    %v6891 = vsub.s32 0, %v6890
    %v6892 = vrot.slane %v6883, %v6891
    %v6893 = vmul.f32 %v5045, %v6888
    %v6894 = vmul.f32 %v5046, %v6892
    %v6895 = vlaneseq
    %v6896 = vshrl.u32 %v6895, 7
    %v6897 = vsub.s32 1, %v6896
    %v6898 = vrot.slane %v6881, %v6897
    %v6899 = vlaneseq
    %v6900 = vshrl.u32 %v6899, 7
    %v6901 = vsub.s32 1, %v6900
    %v6902 = vrot.slane %v6883, %v6901
    %v6903 = vadd.f32 %v6893, %v6898
    %v6904 = vadd.f32 %v6894, %v6902
    %vm6905 = vcmp.ge.f32.partialorder %v6903, 0.0
    %vm6906 = vcmp.ge.f32.partialorder %v6904, 0.0
    %v6907 = vmul.f32 %v6903, 0.2
    %v6908 = vmul.f32 %v6904, 0.2
    %v6909 = vsel %vm6905, %v6903, %v6907
    %v6910 = vsel %vm6906, %v6904, %v6908
    %s6911 = smul.u32 4, 4
    %s6912 = smul.u32 %s6911, 2
    %s6913 = sshll.u32 %s6912, 4
    %6914 = dma.done %s199, %s6913
    %v6915 = vld [vmem:[#allocation2 + $0xe70] sm:$0xf]
    %v6916 = vpack.c.bf16 %v6909, %v6909
    %v6917 = vpack.c.bf16 %v6910, %v6910
    %vm6918 = vcmask 31744
    %v6920 = vsel %vm6918, %v6915, 0
    %vm6922 = vcmask 1041408
    %v6924 = vsel %vm6922, %v6916, 0
    %v6927 = vsel %vm6922, %v6917, 0
    %6929 = vmatprep.subr.bf16.mxu0 %v6927
    %6930 = vmatpush1.bf16.msra.mxu0 %v6924
    %6931 = vmatprep.subr.bf16.mxu0 0
    %6932 = vmatpush1.bf16.msra.mxu0 0
    %6933 = vmatprep.subr.bf16.mxu0 0
    %6934 = vmatpush1.bf16.msra.mxu0 0
    %6935 = vmatprep.subr.bf16.mxu0 0
    %6936 = vmatpush1.bf16.msra.mxu0 0
    %6937 = vmatprep.subr.bf16.mxu0 0
    %6938 = vmatpush1.bf16.msra.mxu0 0
    %6939 = vmatprep.subr.bf16.mxu0 0
    %6940 = vmatpush1.bf16.msra.mxu0 0
    %6941 = vmatprep.subr.bf16.mxu0 0
    %6942 = vmatpush1.bf16.msra.mxu0 0
    %6943 = vmatprep.subr.bf16.mxu0 0
    %6944 = vmatpush1.bf16.msra.mxu0 0
    %6945 = vmatprep.subr.bf16.mxu0 0
    %6946 = vmatpush1.bf16.msra.mxu0 0
    %6947 = vmatprep.subr.bf16.mxu0 0
    %6948 = vmatpush1.bf16.msra.mxu0 0
    %6949 = vmatprep.subr.bf16.mxu0 0
    %6950 = vmatpush1.bf16.msra.mxu0 0
    %6951 = vmatprep.subr.bf16.mxu0 0
    %6952 = vmatpush1.bf16.msra.mxu0 0
    %6953 = vmatprep.subr.bf16.mxu0 0
    %6954 = vmatpush1.bf16.msra.mxu0 0
    %6955 = vmatprep.subr.bf16.mxu0 0
    %6956 = vmatpush1.bf16.msra.mxu0 0
    %6957 = vmatprep.subr.bf16.mxu0 0
    %6958 = vmatpush1.bf16.msra.mxu0 0
    %6959 = vmatprep.subr.bf16.mxu0 0
    %6960 = vmatpush1.bf16.msra.mxu0 0
    %6961 = vmatprep.mubr.bf16.mxu0 0
    %6962 = vmatmul.mubr.bf16.gmra.mrb[0].mxu0 %v6920
    %v6963 = vpop.f32.mrb[0].mxu0
    %v6964 = vadd.f32 0.0, %v6963
    %v6965 = vpop.f32.mrb[0].mxu0
    %v6966 = vadd.f32 0.0, %v6965
    %v6967 = vpop.f32.mrb[0].mxu0
    %v6968 = vpop.f32.mrb[0].mxu0
    %6969 = vdwg.mxu0
    %v6970 = vpack.c.bf16 %v6964, %v6964
    %v6971 = vpack.c.bf16 %v6966, %v6966
    %v6972 = vld [vmem:[#allocation2 + $0xe80] sm:$0xf]
    %v6973 = vld [vmem:[#allocation2 + $0xe88] sm:$0xf]
    %v6974 = vunpack.c.l.bf16 %v6972
    %v6975 = vunpack.c.l.bf16 %v6973
    %v6976 = vunpack.c.l.bf16 %v6970
    %v6977 = vunpack.c.l.bf16 %v6971
    %v6978 = vmul.f32 %v6976, %v6974
    %v6979 = vmul.f32 %v6977, %v6975
    %v6980 = vadd.f32 %v6978, %v6979
    %6981 = vadd.xlane.f32.xlu0 %v6980
    %v6982 = vpop.xlane.xlu0 %6981
    %v6984 = vrot.slane %v6982, 2
    %v6986 = vadd.f32 %v6982, %v6984
    %v6988 = vrot.slane %v6986, 4
    %v6990 = vadd.f32 %v6986, %v6988
    %vm6991 = vcmask 1024
    %6992 = vst.msk [vmem:[%s3] sm:$0x3] %vm6991, %v6990
    // Predicated region
    $region18: #{patch_discriminator_forward.1} parent=1 // pred_check
      _
    $region19: #{patch_discriminator_forward.1} parent=1 // pred_check_branch
      %6994 = sbr.rel (0) target = $region21
    $region20: #{patch_discriminator_forward.1} parent=1 // pred_region
      _
    $region21: #{patch_discriminator_forward.1} parent=1 // pred_fallthru
      _
    // Predicated region
    $region22: #{patch_discriminator_forward.1} parent=1 // pred_check
      _
    $region23: #{patch_discriminator_forward.1} parent=1 // pred_check_branch
      %6996 = sbr.rel (0) target = $region25
    $region24: #{patch_discriminator_forward.1} parent=1 // pred_region
      _
    $region25: #{patch_discriminator_forward.1} parent=1 // pred_fallthru
      _
  %6997 = vsyncmov [#allocation4]
  %s6998 = vpop.sfrf %6997
  %p6999 = scmp.eq.s32.totalorder %s6998, 0
  %p7000 = pneg %p6999
  %7002 = shalt.err (%p7000)
  %s7003 = scalar_lea.sflag [#allocation4], 1
  %7004 = vsyncmov %s7003
  %s7005 = vpop.sfrf %7004
  %p7006 = scmp.eq.s32.totalorder %s7005, 0
  %p7007 = pneg %p7006
  %7009 = shalt.err (%p7007)
  %s7010 = scalar_lea.sflag [#allocation4], 2
  %7011 = vsyncmov %s7010
  %s7012 = vpop.sfrf %7011
  %p7013 = scmp.eq.s32.totalorder %s7012, 0
  %p7014 = pneg %p7013
  %7016 = shalt.err (%p7014)
  %s7017 = scalar_lea.sflag [#allocation4], 3
  %7018 = vsyncmov %s7017
  %s7019 = vpop.sfrf %7018
  %p7020 = scmp.eq.s32.totalorder %s7019, 0
  %p7021 = pneg %p7020
  %7023 = shalt.err (%p7021)
  %s7024 = scalar_lea.sflag [#allocation4], 4
  %7025 = vsyncmov %s7024
  %s7026 = vpop.sfrf %7025
  %p7027 = scmp.eq.s32.totalorder %s7026, 0
  %p7028 = pneg %p7027
  %7030 = shalt.err (%p7028)
  %s7031 = scalar_lea.sflag [#allocation4], 5
  %7032 = vsyncmov %s7031
  %s7033 = vpop.sfrf %7032
  %p7034 = scmp.eq.s32.totalorder %s7033, 0
  %p7035 = pneg %p7034
  %7037 = shalt.err (%p7035)
  %s7038 = scalar_lea.sflag [#allocation4], 6
  %7039 = vsyncmov %s7038
  %s7040 = vpop.sfrf %7039
  %p7041 = scmp.eq.s32.totalorder %s7040, 0
  %p7042 = pneg %p7041
  %7044 = shalt.err (%p7042)
  %s7045 = scalar_lea.sflag [#allocation4], 7
  %7046 = vsyncmov %s7045
  %s7047 = vpop.sfrf %7046
  %p7048 = scmp.eq.s32.totalorder %s7047, 0
  %p7049 = pneg %p7048
  %7051 = shalt.err (%p7049)

</llo_original>
